<compile_context>
chip_gen: v5e
topology: v5e:2x2
jax: 0.10.0
libtpu: 0.0.40
codegen_flags: <defaults>
</compile_context>

<pallas_src>
import jax
import jax.numpy as jnp
from jax.experimental import pallas as pl
from jax.experimental.pallas import tpu as pltpu

BN_EPS = 1e-5


def _conv_bn_relu_pool(x, w, gamma, beta):
    """One ConvNet block, entirely in VMEM / vregs.

    x:     (N, H, W, Cin) float32 activations (NHWC)
    w:     (9*Cin, Cout) bf16  [im2col form, used when Cin % 128 == 0]  or
           (9, Cin, Cout) bf16 [per-tap form, for lane-unaligned Cin]
           rows / taps ordered (kh, kw, cin)
    gamma: (1, Cout) float32 BatchNorm scale
    beta:  (1, Cout) float32 BatchNorm shift
    returns (N, H//2, W//2, Cout) float32
    """
    N, H, W, Cin = x.shape
    Cout = w.shape[-1]

    # ---- 3x3 conv, padding=1 (zero pad built with concatenations) ---------
    zr = jnp.zeros((N, 1, W, Cin), x.dtype)
    xp = jnp.concatenate([zr, x, zr], axis=1)              # pad H
    zc = jnp.zeros((N, H + 2, 1, Cin), x.dtype)
    xp = jnp.concatenate([zc, xp, zc], axis=2)             # pad W

    taps = [xp[:, kh:kh + H, kw:kw + W, :]                 # 9 shifted views
            for kh in range(3) for kw in range(3)]

    if w.ndim == 2:
        # Lane-aligned im2col: one matmul with K = 9*Cin feeds the MXU deeply.
        patches = jnp.concatenate(taps, axis=-1).reshape(N * H * W, 9 * Cin)
        acc = jnp.dot(patches.astype(jnp.bfloat16), w,
                      preferred_element_type=jnp.float32)
    else:
        # Tiny-Cin first layer: accumulate 9 small matmuls in f32.
        acc = jnp.zeros((N * H * W, Cout), jnp.float32)
        for idx, tap in enumerate(taps):
            acc = acc + jnp.dot(
                tap.reshape(N * H * W, Cin).astype(jnp.bfloat16),
                w[idx], preferred_element_type=jnp.float32)

    # ---- BatchNorm2d, training-mode batch stats (biased var, eps=1e-5) ----
    # The conv bias is omitted on purpose: the per-channel mean subtraction
    # below cancels any per-channel constant bias exactly.
    # TODO(synk): running_mean / running_var buffer updates (training-mode
    # side effect) are not materialized.
    mean = jnp.mean(acc, axis=0, keepdims=True)
    var = jnp.mean((acc - mean) ** 2, axis=0, keepdims=True)
    y = (acc - mean) * jax.lax.rsqrt(var + BN_EPS)
    y = y * gamma + beta

    # ---- ReLU --------------------------------------------------------------
    y = jnp.maximum(y, 0.0)

    # ---- AvgPool2d(kernel=2, stride=2); 0.5*0.5 folded into one 0.25 -------
    t = y.reshape(N * H * (W // 2), 2, Cout)
    t = t[:, 0, :] + t[:, 1, :]                            # pool W pairs
    t = t.reshape(N * (H // 2), 2, W // 2, Cout)
    t = (t[:, 0] + t[:, 1]) * 0.25                         # pool H pairs
    return t.reshape(N, H // 2, W // 2, Cout)


def _make_convnet_kernel(depth):
    """Fused kernel: depth x (conv + BN + ReLU + pool) + linear classifier."""

    def kernel(*refs):
        # refs = (x, [w, gamma, beta] * depth, fc_w, fc_b, out)
        x_ref = refs[0]
        fcw_ref = refs[1 + 3 * depth]
        fcb_ref = refs[2 + 3 * depth]
        o_ref = refs[-1]

        h = x_ref[...]                                     # (N, H, W, C0) f32
        for d in range(depth):
            w_ref, g_ref, b_ref = refs[1 + 3 * d:4 + 3 * d]
            h = _conv_bn_relu_pool(h, w_ref[...], g_ref[...], b_ref[...])

        # NHWC flatten; fc weights were row-permuted on the host so this
        # matches PyTorch's NCHW x.view(N, -1) flatten order exactly.
        feat = h.reshape(h.shape[0], -1).astype(jnp.bfloat16)
        o_ref[...] = (jnp.dot(feat, fcw_ref[...],
                              preferred_element_type=jnp.float32)
                      + fcb_ref[...])

    return kernel


def _cost_estimate(n, channel, im_size, params):
    fh, fw = im_size
    cin = channel
    flops = 0
    bytes_acc = n * fh * fw * channel * 4
    for (w, gamma, beta) in params["blocks"]:
        cout = w.shape[-1]
        flops += 2 * n * fh * fw * (9 * cin) * cout        # conv matmul
        flops += 10 * n * fh * fw * cout                   # BN/ReLU/pool (approx)
        bytes_acc += w.size * 2 + (gamma.size + beta.size) * 4
        cin = cout
        fh //= 2
        fw //= 2
    class_pad = params["fc_w"].shape[-1]
    num_feat = cin * fh * fw
    flops += 2 * n * num_feat * class_pad
    bytes_acc += params["fc_w"].size * 2 + params["fc_b"].size * 4
    bytes_acc += n * class_pad * 4
    transcendentals = sum(int(b[0].shape[-1]) for b in params["blocks"])
    return pl.CostEstimate(flops=int(flops),
                           transcendentals=int(transcendentals),
                           bytes_accessed=int(bytes_acc))


def convnet_forward(x_nchw, params):
    n, channel, hh, ww = x_nchw.shape
    depth = len(params["blocks"])

    # Only remaining XLA glue: NCHW -> NHWC on the (tiny) network input.
    x = jnp.transpose(x_nchw, (0, 2, 3, 1))

    args = [x]
    for blk in params["blocks"]:
        args.extend(blk)
    args.extend([params["fc_w"], params["fc_b"]])

    class_pad = params["fc_w"].shape[-1]
    vmem_spec = pl.BlockSpec(memory_space=pltpu.MemorySpace.VMEM)

    out_padded = pl.pallas_call(
        _make_convnet_kernel(depth),
        out_shape=jax.ShapeDtypeStruct((n, class_pad), jnp.float32),
        in_specs=[vmem_spec] * len(args),
        out_specs=vmem_spec,
        cost_estimate=_cost_estimate(n, channel, (hh, ww), params),
        compiler_params=pltpu.CompilerParams(
            vmem_limit_bytes=32 * 1024 * 1024),
    )(*args)

    # Classifier wrote a lane-dense 128-wide slab; slice to num_classes here.
    return out_padded[:, :params["num_classes"]]


def init_params(key, channel=3, net_width=128, net_depth=3, im_size=(16, 16),
                num_classes=10, class_pad=128):
    params = {"blocks": [], "num_classes": num_classes}
    in_ch = channel
    fh, fw = im_size
    keys = jax.random.split(key, net_depth + 2)
    for d in range(net_depth):
        conv_w = 0.1 * jax.random.normal(keys[d], (3, 3, in_ch, net_width),
                                         jnp.float32)
        # Host-side, one-time weight prep: fold taps for im2col (lane-aligned
        # channels) or keep a per-tap form for tiny Cin; cast to bf16 for MXU.
        if in_ch % 128 == 0:
            w_param = conv_w.reshape(9 * in_ch, net_width).astype(jnp.bfloat16)
        else:
            w_param = conv_w.reshape(9, in_ch, net_width).astype(jnp.bfloat16)
        gamma = jnp.ones((1, net_width), jnp.float32)      # BatchNorm defaults
        beta = jnp.zeros((1, net_width), jnp.float32)
        # No conv bias parameter: training-mode BatchNorm cancels it exactly.
        params["blocks"].append((w_param, gamma, beta))
        in_ch = net_width
        fh //= 2
        fw //= 2
    num_feat = net_width * fh * fw

    # Classifier weights, generated in PyTorch's (C, H, W) flatten-row order,
    # then permuted once on the host to the kernel's NHWC flatten order and
    # zero-padded from num_classes to class_pad columns for lane-dense stores.
    fc_w = 0.05 * jax.random.normal(keys[-2], (num_feat, num_classes),
                                    jnp.float32)
    fc_b = 0.05 * jax.random.normal(keys[-1], (num_classes,), jnp.float32)
    fc_w_hwc = jnp.reshape(
        jnp.transpose(fc_w.reshape(net_width, fh, fw, num_classes),
                      (1, 2, 0, 3)),
        (num_feat, num_classes))
    pad = class_pad - num_classes
    params["fc_w"] = jnp.pad(fc_w_hwc, ((0, 0), (0, pad))).astype(jnp.bfloat16)
    params["fc_b"] = jnp.pad(fc_b, (0, pad)).reshape(1, class_pad)
    return params


if __name__ == "__main__":
    key = jax.random.PRNGKey(0)
    k_x, k_p = jax.random.split(key)

    # Small shapes consistent with the module's forward (batch=2, 3x16x16 in,
    # net_width=128, depth=3, 10 classes).
    N, C, H, W = 2, 3, 16, 16
    NET_WIDTH, NET_DEPTH, NUM_CLASSES = 128, 3, 10

    x = jax.random.normal(k_x, (N, C, H, W), jnp.float32)   # NCHW like PyTorch
    params = init_params(k_p, channel=C, net_width=NET_WIDTH,
                         net_depth=NET_DEPTH, im_size=(H, W),
                         num_classes=NUM_CLASSES)

    logits = convnet_forward(x, params)
    jax.block_until_ready(logits)
    assert logits.shape == (N, NUM_CLASSES)
    print("KERNEL_OK")
</pallas_src>

<mosaic_0001>
module attributes {stable_mosaic.version = 11 : i64} {
  func.func @kernel(%arg0: memref<2x16x16x3xf32, #tpu.memory_space<vmem>>, %arg1: memref<9x3x128xbf16, #tpu.memory_space<vmem>>, %arg2: memref<1x128xf32, #tpu.memory_space<vmem>>, %arg3: memref<1x128xf32, #tpu.memory_space<vmem>>, %arg4: memref<1152x128xbf16, #tpu.memory_space<vmem>>, %arg5: memref<1x128xf32, #tpu.memory_space<vmem>>, %arg6: memref<1x128xf32, #tpu.memory_space<vmem>>, %arg7: memref<1152x128xbf16, #tpu.memory_space<vmem>>, %arg8: memref<1x128xf32, #tpu.memory_space<vmem>>, %arg9: memref<1x128xf32, #tpu.memory_space<vmem>>, %arg10: memref<512x128xbf16, #tpu.memory_space<vmem>>, %arg11: memref<1x128xf32, #tpu.memory_space<vmem>>, %arg12: memref<2x128xf32, #tpu.memory_space<vmem>>) attributes {dimension_semantics = [], scalar_prefetch = 0 : i64, scratch_operands = 0 : i64, tpu.core_type = #tpu.core_type<tc>} {
    %c0 = arith.constant 0 : index
    %c0_0 = arith.constant 0 : index
    %c0_1 = arith.constant 0 : index
    %c0_2 = arith.constant 0 : index
    %0 = vector.load %arg0[%c0, %c0_0, %c0_1, %c0_2] : memref<2x16x16x3xf32, #tpu.memory_space<vmem>>, vector<2x16x16x3xf32>
    %c0_3 = arith.constant 0 : index
    %c0_4 = arith.constant 0 : index
    %c0_5 = arith.constant 0 : index
    %1 = vector.load %arg1[%c0_3, %c0_4, %c0_5] : memref<9x3x128xbf16, #tpu.memory_space<vmem>>, vector<9x3x128xbf16>
    %c0_6 = arith.constant 0 : index
    %c0_7 = arith.constant 0 : index
    %2 = vector.load %arg2[%c0_6, %c0_7] : memref<1x128xf32, #tpu.memory_space<vmem>>, vector<1x128xf32>
    %c0_8 = arith.constant 0 : index
    %c0_9 = arith.constant 0 : index
    %3 = vector.load %arg3[%c0_8, %c0_9] : memref<1x128xf32, #tpu.memory_space<vmem>>, vector<1x128xf32>
    %cst = arith.constant 0.000000e+00 : f32
    %4 = vector.broadcast %cst : f32 to vector<2x1x16x3xf32>
    %5 = tpu.concatenate %4, %0, %4 in 1 : vector<2x1x16x3xf32>, vector<2x16x16x3xf32>, vector<2x1x16x3xf32> -> vector<2x18x16x3xf32>
    %cst_10 = arith.constant 0.000000e+00 : f32
    %6 = vector.broadcast %cst_10 : f32 to vector<2x18x1x3xf32>
    %7 = tpu.concatenate %6, %5, %6 in 2 : vector<2x18x1x3xf32>, vector<2x18x16x3xf32>, vector<2x18x1x3xf32> -> vector<2x18x18x3xf32>
    %8 = vector.extract_strided_slice %7 {offsets = [0, 0, 0, 0], sizes = [2, 16, 16, 3], strides = [1, 1, 1, 1]} : vector<2x18x18x3xf32> to vector<2x16x16x3xf32>
    %9 = vector.extract_strided_slice %7 {offsets = [0, 0, 1, 0], sizes = [2, 16, 16, 3], strides = [1, 1, 1, 1]} : vector<2x18x18x3xf32> to vector<2x16x16x3xf32>
    %10 = vector.extract_strided_slice %7 {offsets = [0, 0, 2, 0], sizes = [2, 16, 16, 3], strides = [1, 1, 1, 1]} : vector<2x18x18x3xf32> to vector<2x16x16x3xf32>
    %11 = vector.extract_strided_slice %7 {offsets = [0, 1, 0, 0], sizes = [2, 16, 16, 3], strides = [1, 1, 1, 1]} : vector<2x18x18x3xf32> to vector<2x16x16x3xf32>
    %12 = vector.extract_strided_slice %7 {offsets = [0, 1, 1, 0], sizes = [2, 16, 16, 3], strides = [1, 1, 1, 1]} : vector<2x18x18x3xf32> to vector<2x16x16x3xf32>
    %13 = vector.extract_strided_slice %7 {offsets = [0, 1, 2, 0], sizes = [2, 16, 16, 3], strides = [1, 1, 1, 1]} : vector<2x18x18x3xf32> to vector<2x16x16x3xf32>
    %14 = vector.extract_strided_slice %7 {offsets = [0, 2, 0, 0], sizes = [2, 16, 16, 3], strides = [1, 1, 1, 1]} : vector<2x18x18x3xf32> to vector<2x16x16x3xf32>
    %15 = vector.extract_strided_slice %7 {offsets = [0, 2, 1, 0], sizes = [2, 16, 16, 3], strides = [1, 1, 1, 1]} : vector<2x18x18x3xf32> to vector<2x16x16x3xf32>
    %16 = vector.extract_strided_slice %7 {offsets = [0, 2, 2, 0], sizes = [2, 16, 16, 3], strides = [1, 1, 1, 1]} : vector<2x18x18x3xf32> to vector<2x16x16x3xf32>
    %cst_11 = arith.constant 0.000000e+00 : f32
    %17 = vector.broadcast %cst_11 : f32 to vector<512x128xf32>
    %18 = vector.shape_cast %8 : vector<2x16x16x3xf32> to vector<512x3xf32>
    %19 = arith.truncf %18 : vector<512x3xf32> to vector<512x3xbf16>
    %20 = vector.extract_strided_slice %1 {offsets = [0, 0, 0], sizes = [1, 3, 128], strides = [1, 1, 1]} : vector<9x3x128xbf16> to vector<1x3x128xbf16>
    %21 = vector.shape_cast %20 : vector<1x3x128xbf16> to vector<3x128xbf16>
    %cst_12 = arith.constant dense<0.000000e+00> : vector<512x128xf32>
    %22 = tpu.matmul %19, %21, %cst_12 {dimension_numbers = #tpu.dot_dimension_numbers<[1], [0], [0], [1], [0, 0, 1, 1], [], []>} : vector<512x3xbf16>, vector<3x128xbf16>, vector<512x128xf32> -> vector<512x128xf32>
    %23 = arith.addf %17, %22 : vector<512x128xf32>
    %24 = vector.shape_cast %9 : vector<2x16x16x3xf32> to vector<512x3xf32>
    %25 = arith.truncf %24 : vector<512x3xf32> to vector<512x3xbf16>
    %26 = vector.extract_strided_slice %1 {offsets = [1, 0, 0], sizes = [1, 3, 128], strides = [1, 1, 1]} : vector<9x3x128xbf16> to vector<1x3x128xbf16>
    %27 = vector.shape_cast %26 : vector<1x3x128xbf16> to vector<3x128xbf16>
    %cst_13 = arith.constant dense<0.000000e+00> : vector<512x128xf32>
    %28 = tpu.matmul %25, %27, %cst_13 {dimension_numbers = #tpu.dot_dimension_numbers<[1], [0], [0], [1], [0, 0, 1, 1], [], []>} : vector<512x3xbf16>, vector<3x128xbf16>, vector<512x128xf32> -> vector<512x128xf32>
    %29 = arith.addf %23, %28 : vector<512x128xf32>
    %30 = vector.shape_cast %10 : vector<2x16x16x3xf32> to vector<512x3xf32>
    %31 = arith.truncf %30 : vector<512x3xf32> to vector<512x3xbf16>
    %32 = vector.extract_strided_slice %1 {offsets = [2, 0, 0], sizes = [1, 3, 128], strides = [1, 1, 1]} : vector<9x3x128xbf16> to vector<1x3x128xbf16>
    %33 = vector.shape_cast %32 : vector<1x3x128xbf16> to vector<3x128xbf16>
    %cst_14 = arith.constant dense<0.000000e+00> : vector<512x128xf32>
    %34 = tpu.matmul %31, %33, %cst_14 {dimension_numbers = #tpu.dot_dimension_numbers<[1], [0], [0], [1], [0, 0, 1, 1], [], []>} : vector<512x3xbf16>, vector<3x128xbf16>, vector<512x128xf32> -> vector<512x128xf32>
    %35 = arith.addf %29, %34 : vector<512x128xf32>
    %36 = vector.shape_cast %11 : vector<2x16x16x3xf32> to vector<512x3xf32>
    %37 = arith.truncf %36 : vector<512x3xf32> to vector<512x3xbf16>
    %38 = vector.extract_strided_slice %1 {offsets = [3, 0, 0], sizes = [1, 3, 128], strides = [1, 1, 1]} : vector<9x3x128xbf16> to vector<1x3x128xbf16>
    %39 = vector.shape_cast %38 : vector<1x3x128xbf16> to vector<3x128xbf16>
    %cst_15 = arith.constant dense<0.000000e+00> : vector<512x128xf32>
    %40 = tpu.matmul %37, %39, %cst_15 {dimension_numbers = #tpu.dot_dimension_numbers<[1], [0], [0], [1], [0, 0, 1, 1], [], []>} : vector<512x3xbf16>, vector<3x128xbf16>, vector<512x128xf32> -> vector<512x128xf32>
    %41 = arith.addf %35, %40 : vector<512x128xf32>
    %42 = vector.shape_cast %12 : vector<2x16x16x3xf32> to vector<512x3xf32>
    %43 = arith.truncf %42 : vector<512x3xf32> to vector<512x3xbf16>
    %44 = vector.extract_strided_slice %1 {offsets = [4, 0, 0], sizes = [1, 3, 128], strides = [1, 1, 1]} : vector<9x3x128xbf16> to vector<1x3x128xbf16>
    %45 = vector.shape_cast %44 : vector<1x3x128xbf16> to vector<3x128xbf16>
    %cst_16 = arith.constant dense<0.000000e+00> : vector<512x128xf32>
    %46 = tpu.matmul %43, %45, %cst_16 {dimension_numbers = #tpu.dot_dimension_numbers<[1], [0], [0], [1], [0, 0, 1, 1], [], []>} : vector<512x3xbf16>, vector<3x128xbf16>, vector<512x128xf32> -> vector<512x128xf32>
    %47 = arith.addf %41, %46 : vector<512x128xf32>
    %48 = vector.shape_cast %13 : vector<2x16x16x3xf32> to vector<512x3xf32>
    %49 = arith.truncf %48 : vector<512x3xf32> to vector<512x3xbf16>
    %50 = vector.extract_strided_slice %1 {offsets = [5, 0, 0], sizes = [1, 3, 128], strides = [1, 1, 1]} : vector<9x3x128xbf16> to vector<1x3x128xbf16>
    %51 = vector.shape_cast %50 : vector<1x3x128xbf16> to vector<3x128xbf16>
    %cst_17 = arith.constant dense<0.000000e+00> : vector<512x128xf32>
    %52 = tpu.matmul %49, %51, %cst_17 {dimension_numbers = #tpu.dot_dimension_numbers<[1], [0], [0], [1], [0, 0, 1, 1], [], []>} : vector<512x3xbf16>, vector<3x128xbf16>, vector<512x128xf32> -> vector<512x128xf32>
    %53 = arith.addf %47, %52 : vector<512x128xf32>
    %54 = vector.shape_cast %14 : vector<2x16x16x3xf32> to vector<512x3xf32>
    %55 = arith.truncf %54 : vector<512x3xf32> to vector<512x3xbf16>
    %56 = vector.extract_strided_slice %1 {offsets = [6, 0, 0], sizes = [1, 3, 128], strides = [1, 1, 1]} : vector<9x3x128xbf16> to vector<1x3x128xbf16>
    %57 = vector.shape_cast %56 : vector<1x3x128xbf16> to vector<3x128xbf16>
    %cst_18 = arith.constant dense<0.000000e+00> : vector<512x128xf32>
    %58 = tpu.matmul %55, %57, %cst_18 {dimension_numbers = #tpu.dot_dimension_numbers<[1], [0], [0], [1], [0, 0, 1, 1], [], []>} : vector<512x3xbf16>, vector<3x128xbf16>, vector<512x128xf32> -> vector<512x128xf32>
    %59 = arith.addf %53, %58 : vector<512x128xf32>
    %60 = vector.shape_cast %15 : vector<2x16x16x3xf32> to vector<512x3xf32>
    %61 = arith.truncf %60 : vector<512x3xf32> to vector<512x3xbf16>
    %62 = vector.extract_strided_slice %1 {offsets = [7, 0, 0], sizes = [1, 3, 128], strides = [1, 1, 1]} : vector<9x3x128xbf16> to vector<1x3x128xbf16>
    %63 = vector.shape_cast %62 : vector<1x3x128xbf16> to vector<3x128xbf16>
    %cst_19 = arith.constant dense<0.000000e+00> : vector<512x128xf32>
    %64 = tpu.matmul %61, %63, %cst_19 {dimension_numbers = #tpu.dot_dimension_numbers<[1], [0], [0], [1], [0, 0, 1, 1], [], []>} : vector<512x3xbf16>, vector<3x128xbf16>, vector<512x128xf32> -> vector<512x128xf32>
    %65 = arith.addf %59, %64 : vector<512x128xf32>
    %66 = vector.shape_cast %16 : vector<2x16x16x3xf32> to vector<512x3xf32>
    %67 = arith.truncf %66 : vector<512x3xf32> to vector<512x3xbf16>
    %68 = vector.extract_strided_slice %1 {offsets = [8, 0, 0], sizes = [1, 3, 128], strides = [1, 1, 1]} : vector<9x3x128xbf16> to vector<1x3x128xbf16>
    %69 = vector.shape_cast %68 : vector<1x3x128xbf16> to vector<3x128xbf16>
    %cst_20 = arith.constant dense<0.000000e+00> : vector<512x128xf32>
    %70 = tpu.matmul %67, %69, %cst_20 {dimension_numbers = #tpu.dot_dimension_numbers<[1], [0], [0], [1], [0, 0, 1, 1], [], []>} : vector<512x3xbf16>, vector<3x128xbf16>, vector<512x128xf32> -> vector<512x128xf32>
    %71 = arith.addf %65, %70 : vector<512x128xf32>
    %cst_21 = arith.constant dense<0.000000e+00> : vector<128xf32>
    %72 = vector.multi_reduction <add>, %71, %cst_21 [0] : vector<512x128xf32> to vector<128xf32>
    %73 = vector.shape_cast %72 : vector<128xf32> to vector<1x128xf32>
    %cst_22 = arith.constant 5.120000e+02 : f32
    %74 = vector.broadcast %cst_22 : f32 to vector<1x128xf32>
    %75 = arith.divf %73, %74 : vector<1x128xf32>
    %76 = vector.broadcast %75 : vector<1x128xf32> to vector<512x128xf32>
    %77 = arith.subf %71, %76 : vector<512x128xf32>
    %78 = arith.mulf %77, %77 : vector<512x128xf32>
    %cst_23 = arith.constant dense<0.000000e+00> : vector<128xf32>
    %79 = vector.multi_reduction <add>, %78, %cst_23 [0] : vector<512x128xf32> to vector<128xf32>
    %80 = vector.shape_cast %79 : vector<128xf32> to vector<1x128xf32>
    %cst_24 = arith.constant 5.120000e+02 : f32
    %81 = vector.broadcast %cst_24 : f32 to vector<1x128xf32>
    %82 = arith.divf %80, %81 : vector<1x128xf32>
    %83 = vector.broadcast %75 : vector<1x128xf32> to vector<512x128xf32>
    %84 = arith.subf %71, %83 : vector<512x128xf32>
    %cst_25 = arith.constant 9.99999974E-6 : f32
    %85 = vector.broadcast %cst_25 : f32 to vector<1x128xf32>
    %86 = arith.addf %82, %85 : vector<1x128xf32>
    %87 = math.rsqrt %86 : vector<1x128xf32>
    %88 = vector.broadcast %87 : vector<1x128xf32> to vector<512x128xf32>
    %89 = arith.mulf %84, %88 : vector<512x128xf32>
    %90 = vector.broadcast %2 : vector<1x128xf32> to vector<512x128xf32>
    %91 = arith.mulf %89, %90 : vector<512x128xf32>
    %92 = vector.broadcast %3 : vector<1x128xf32> to vector<512x128xf32>
    %93 = arith.addf %91, %92 : vector<512x128xf32>
    %cst_26 = arith.constant 0.000000e+00 : f32
    %94 = vector.broadcast %cst_26 : f32 to vector<512x128xf32>
    %95 = arith.maximumf %93, %94 : vector<512x128xf32>
    %96 = vector.shape_cast %95 : vector<512x128xf32> to vector<256x2x128xf32>
    %97 = vector.extract_strided_slice %96 {offsets = [0, 0, 0], sizes = [256, 1, 128], strides = [1, 1, 1]} : vector<256x2x128xf32> to vector<256x1x128xf32>
    %98 = vector.shape_cast %97 : vector<256x1x128xf32> to vector<256x128xf32>
    %99 = vector.extract_strided_slice %96 {offsets = [0, 1, 0], sizes = [256, 1, 128], strides = [1, 1, 1]} : vector<256x2x128xf32> to vector<256x1x128xf32>
    %100 = vector.shape_cast %99 : vector<256x1x128xf32> to vector<256x128xf32>
    %101 = arith.addf %98, %100 : vector<256x128xf32>
    %102 = vector.shape_cast %101 : vector<256x128xf32> to vector<16x2x8x128xf32>
    %103 = vector.extract_strided_slice %102 {offsets = [0, 0, 0, 0], sizes = [16, 1, 8, 128], strides = [1, 1, 1, 1]} : vector<16x2x8x128xf32> to vector<16x1x8x128xf32>
    %104 = vector.shape_cast %103 : vector<16x1x8x128xf32> to vector<16x8x128xf32>
    %105 = vector.extract_strided_slice %102 {offsets = [0, 1, 0, 0], sizes = [16, 1, 8, 128], strides = [1, 1, 1, 1]} : vector<16x2x8x128xf32> to vector<16x1x8x128xf32>
    %106 = vector.shape_cast %105 : vector<16x1x8x128xf32> to vector<16x8x128xf32>
    %107 = arith.addf %104, %106 : vector<16x8x128xf32>
    %cst_27 = arith.constant 2.500000e-01 : f32
    %108 = vector.broadcast %cst_27 : f32 to vector<16x8x128xf32>
    %109 = arith.mulf %107, %108 : vector<16x8x128xf32>
    %110 = vector.shape_cast %109 : vector<16x8x128xf32> to vector<2x8x8x128xf32>
    %c0_28 = arith.constant 0 : index
    %c0_29 = arith.constant 0 : index
    %111 = vector.load %arg4[%c0_28, %c0_29] : memref<1152x128xbf16, #tpu.memory_space<vmem>>, vector<1152x128xbf16>
    %c0_30 = arith.constant 0 : index
    %c0_31 = arith.constant 0 : index
    %112 = vector.load %arg5[%c0_30, %c0_31] : memref<1x128xf32, #tpu.memory_space<vmem>>, vector<1x128xf32>
    %c0_32 = arith.constant 0 : index
    %c0_33 = arith.constant 0 : index
    %113 = vector.load %arg6[%c0_32, %c0_33] : memref<1x128xf32, #tpu.memory_space<vmem>>, vector<1x128xf32>
    %cst_34 = arith.constant 0.000000e+00 : f32
    %114 = vector.broadcast %cst_34 : f32 to vector<2x1x8x128xf32>
    %115 = tpu.concatenate %114, %110, %114 in 1 : vector<2x1x8x128xf32>, vector<2x8x8x128xf32>, vector<2x1x8x128xf32> -> vector<2x10x8x128xf32>
    %cst_35 = arith.constant 0.000000e+00 : f32
    %116 = vector.broadcast %cst_35 : f32 to vector<2x10x1x128xf32>
    %117 = tpu.concatenate %116, %115, %116 in 2 : vector<2x10x1x128xf32>, vector<2x10x8x128xf32>, vector<2x10x1x128xf32> -> vector<2x10x10x128xf32>
    %118 = vector.extract_strided_slice %117 {offsets = [0, 0, 0, 0], sizes = [2, 8, 8, 128], strides = [1, 1, 1, 1]} : vector<2x10x10x128xf32> to vector<2x8x8x128xf32>
    %119 = vector.extract_strided_slice %117 {offsets = [0, 0, 1, 0], sizes = [2, 8, 8, 128], strides = [1, 1, 1, 1]} : vector<2x10x10x128xf32> to vector<2x8x8x128xf32>
    %120 = vector.extract_strided_slice %117 {offsets = [0, 0, 2, 0], sizes = [2, 8, 8, 128], strides = [1, 1, 1, 1]} : vector<2x10x10x128xf32> to vector<2x8x8x128xf32>
    %121 = vector.extract_strided_slice %117 {offsets = [0, 1, 0, 0], sizes = [2, 8, 8, 128], strides = [1, 1, 1, 1]} : vector<2x10x10x128xf32> to vector<2x8x8x128xf32>
    %122 = vector.extract_strided_slice %117 {offsets = [0, 1, 1, 0], sizes = [2, 8, 8, 128], strides = [1, 1, 1, 1]} : vector<2x10x10x128xf32> to vector<2x8x8x128xf32>
    %123 = vector.extract_strided_slice %117 {offsets = [0, 1, 2, 0], sizes = [2, 8, 8, 128], strides = [1, 1, 1, 1]} : vector<2x10x10x128xf32> to vector<2x8x8x128xf32>
    %124 = vector.extract_strided_slice %117 {offsets = [0, 2, 0, 0], sizes = [2, 8, 8, 128], strides = [1, 1, 1, 1]} : vector<2x10x10x128xf32> to vector<2x8x8x128xf32>
    %125 = vector.extract_strided_slice %117 {offsets = [0, 2, 1, 0], sizes = [2, 8, 8, 128], strides = [1, 1, 1, 1]} : vector<2x10x10x128xf32> to vector<2x8x8x128xf32>
    %126 = vector.extract_strided_slice %117 {offsets = [0, 2, 2, 0], sizes = [2, 8, 8, 128], strides = [1, 1, 1, 1]} : vector<2x10x10x128xf32> to vector<2x8x8x128xf32>
    %127 = tpu.concatenate %118, %119, %120, %121, %122, %123, %124, %125, %126 in 3 : vector<2x8x8x128xf32>, vector<2x8x8x128xf32>, vector<2x8x8x128xf32>, vector<2x8x8x128xf32>, vector<2x8x8x128xf32>, vector<2x8x8x128xf32>, vector<2x8x8x128xf32>, vector<2x8x8x128xf32>, vector<2x8x8x128xf32> -> vector<2x8x8x1152xf32>
    %128 = vector.shape_cast %127 : vector<2x8x8x1152xf32> to vector<128x1152xf32>
    %129 = arith.truncf %128 : vector<128x1152xf32> to vector<128x1152xbf16>
    %cst_36 = arith.constant dense<0.000000e+00> : vector<128x128xf32>
    %130 = tpu.matmul %129, %111, %cst_36 {dimension_numbers = #tpu.dot_dimension_numbers<[1], [0], [0], [1], [0, 0, 1, 1], [], []>} : vector<128x1152xbf16>, vector<1152x128xbf16>, vector<128x128xf32> -> vector<128x128xf32>
    %cst_37 = arith.constant dense<0.000000e+00> : vector<128xf32>
    %131 = vector.multi_reduction <add>, %130, %cst_37 [0] : vector<128x128xf32> to vector<128xf32>
    %132 = vector.shape_cast %131 : vector<128xf32> to vector<1x128xf32>
    %cst_38 = arith.constant 1.280000e+02 : f32
    %133 = vector.broadcast %cst_38 : f32 to vector<1x128xf32>
    %134 = arith.divf %132, %133 : vector<1x128xf32>
    %135 = vector.broadcast %134 : vector<1x128xf32> to vector<128x128xf32>
    %136 = arith.subf %130, %135 : vector<128x128xf32>
    %137 = arith.mulf %136, %136 : vector<128x128xf32>
    %cst_39 = arith.constant dense<0.000000e+00> : vector<128xf32>
    %138 = vector.multi_reduction <add>, %137, %cst_39 [0] : vector<128x128xf32> to vector<128xf32>
    %139 = vector.shape_cast %138 : vector<128xf32> to vector<1x128xf32>
    %cst_40 = arith.constant 1.280000e+02 : f32
    %140 = vector.broadcast %cst_40 : f32 to vector<1x128xf32>
    %141 = arith.divf %139, %140 : vector<1x128xf32>
    %142 = vector.broadcast %134 : vector<1x128xf32> to vector<128x128xf32>
    %143 = arith.subf %130, %142 : vector<128x128xf32>
    %cst_41 = arith.constant 9.99999974E-6 : f32
    %144 = vector.broadcast %cst_41 : f32 to vector<1x128xf32>
    %145 = arith.addf %141, %144 : vector<1x128xf32>
    %146 = math.rsqrt %145 : vector<1x128xf32>
    %147 = vector.broadcast %146 : vector<1x128xf32> to vector<128x128xf32>
    %148 = arith.mulf %143, %147 : vector<128x128xf32>
    %149 = vector.broadcast %112 : vector<1x128xf32> to vector<128x128xf32>
    %150 = arith.mulf %148, %149 : vector<128x128xf32>
    %151 = vector.broadcast %113 : vector<1x128xf32> to vector<128x128xf32>
    %152 = arith.addf %150, %151 : vector<128x128xf32>
    %cst_42 = arith.constant 0.000000e+00 : f32
    %153 = vector.broadcast %cst_42 : f32 to vector<128x128xf32>
    %154 = arith.maximumf %152, %153 : vector<128x128xf32>
    %155 = vector.shape_cast %154 : vector<128x128xf32> to vector<64x2x128xf32>
    %156 = vector.extract_strided_slice %155 {offsets = [0, 0, 0], sizes = [64, 1, 128], strides = [1, 1, 1]} : vector<64x2x128xf32> to vector<64x1x128xf32>
    %157 = vector.shape_cast %156 : vector<64x1x128xf32> to vector<64x128xf32>
    %158 = vector.extract_strided_slice %155 {offsets = [0, 1, 0], sizes = [64, 1, 128], strides = [1, 1, 1]} : vector<64x2x128xf32> to vector<64x1x128xf32>
    %159 = vector.shape_cast %158 : vector<64x1x128xf32> to vector<64x128xf32>
    %160 = arith.addf %157, %159 : vector<64x128xf32>
    %161 = vector.shape_cast %160 : vector<64x128xf32> to vector<8x2x4x128xf32>
    %162 = vector.extract_strided_slice %161 {offsets = [0, 0, 0, 0], sizes = [8, 1, 4, 128], strides = [1, 1, 1, 1]} : vector<8x2x4x128xf32> to vector<8x1x4x128xf32>
    %163 = vector.shape_cast %162 : vector<8x1x4x128xf32> to vector<8x4x128xf32>
    %164 = vector.extract_strided_slice %161 {offsets = [0, 1, 0, 0], sizes = [8, 1, 4, 128], strides = [1, 1, 1, 1]} : vector<8x2x4x128xf32> to vector<8x1x4x128xf32>
    %165 = vector.shape_cast %164 : vector<8x1x4x128xf32> to vector<8x4x128xf32>
    %166 = arith.addf %163, %165 : vector<8x4x128xf32>
    %cst_43 = arith.constant 2.500000e-01 : f32
    %167 = vector.broadcast %cst_43 : f32 to vector<8x4x128xf32>
    %168 = arith.mulf %166, %167 : vector<8x4x128xf32>
    %169 = vector.shape_cast %168 : vector<8x4x128xf32> to vector<2x4x4x128xf32>
    %c0_44 = arith.constant 0 : index
    %c0_45 = arith.constant 0 : index
    %170 = vector.load %arg7[%c0_44, %c0_45] : memref<1152x128xbf16, #tpu.memory_space<vmem>>, vector<1152x128xbf16>
    %c0_46 = arith.constant 0 : index
    %c0_47 = arith.constant 0 : index
    %171 = vector.load %arg8[%c0_46, %c0_47] : memref<1x128xf32, #tpu.memory_space<vmem>>, vector<1x128xf32>
    %c0_48 = arith.constant 0 : index
    %c0_49 = arith.constant 0 : index
    %172 = vector.load %arg9[%c0_48, %c0_49] : memref<1x128xf32, #tpu.memory_space<vmem>>, vector<1x128xf32>
    %cst_50 = arith.constant 0.000000e+00 : f32
    %173 = vector.broadcast %cst_50 : f32 to vector<2x1x4x128xf32>
    %174 = tpu.concatenate %173, %169, %173 in 1 : vector<2x1x4x128xf32>, vector<2x4x4x128xf32>, vector<2x1x4x128xf32> -> vector<2x6x4x128xf32>
    %cst_51 = arith.constant 0.000000e+00 : f32
    %175 = vector.broadcast %cst_51 : f32 to vector<2x6x1x128xf32>
    %176 = tpu.concatenate %175, %174, %175 in 2 : vector<2x6x1x128xf32>, vector<2x6x4x128xf32>, vector<2x6x1x128xf32> -> vector<2x6x6x128xf32>
    %177 = vector.extract_strided_slice %176 {offsets = [0, 0, 0, 0], sizes = [2, 4, 4, 128], strides = [1, 1, 1, 1]} : vector<2x6x6x128xf32> to vector<2x4x4x128xf32>
    %178 = vector.extract_strided_slice %176 {offsets = [0, 0, 1, 0], sizes = [2, 4, 4, 128], strides = [1, 1, 1, 1]} : vector<2x6x6x128xf32> to vector<2x4x4x128xf32>
    %179 = vector.extract_strided_slice %176 {offsets = [0, 0, 2, 0], sizes = [2, 4, 4, 128], strides = [1, 1, 1, 1]} : vector<2x6x6x128xf32> to vector<2x4x4x128xf32>
    %180 = vector.extract_strided_slice %176 {offsets = [0, 1, 0, 0], sizes = [2, 4, 4, 128], strides = [1, 1, 1, 1]} : vector<2x6x6x128xf32> to vector<2x4x4x128xf32>
    %181 = vector.extract_strided_slice %176 {offsets = [0, 1, 1, 0], sizes = [2, 4, 4, 128], strides = [1, 1, 1, 1]} : vector<2x6x6x128xf32> to vector<2x4x4x128xf32>
    %182 = vector.extract_strided_slice %176 {offsets = [0, 1, 2, 0], sizes = [2, 4, 4, 128], strides = [1, 1, 1, 1]} : vector<2x6x6x128xf32> to vector<2x4x4x128xf32>
    %183 = vector.extract_strided_slice %176 {offsets = [0, 2, 0, 0], sizes = [2, 4, 4, 128], strides = [1, 1, 1, 1]} : vector<2x6x6x128xf32> to vector<2x4x4x128xf32>
    %184 = vector.extract_strided_slice %176 {offsets = [0, 2, 1, 0], sizes = [2, 4, 4, 128], strides = [1, 1, 1, 1]} : vector<2x6x6x128xf32> to vector<2x4x4x128xf32>
    %185 = vector.extract_strided_slice %176 {offsets = [0, 2, 2, 0], sizes = [2, 4, 4, 128], strides = [1, 1, 1, 1]} : vector<2x6x6x128xf32> to vector<2x4x4x128xf32>
    %186 = tpu.concatenate %177, %178, %179, %180, %181, %182, %183, %184, %185 in 3 : vector<2x4x4x128xf32>, vector<2x4x4x128xf32>, vector<2x4x4x128xf32>, vector<2x4x4x128xf32>, vector<2x4x4x128xf32>, vector<2x4x4x128xf32>, vector<2x4x4x128xf32>, vector<2x4x4x128xf32>, vector<2x4x4x128xf32> -> vector<2x4x4x1152xf32>
    %187 = vector.shape_cast %186 : vector<2x4x4x1152xf32> to vector<32x1152xf32>
    %188 = arith.truncf %187 : vector<32x1152xf32> to vector<32x1152xbf16>
    %cst_52 = arith.constant dense<0.000000e+00> : vector<32x128xf32>
    %189 = tpu.matmul %188, %170, %cst_52 {dimension_numbers = #tpu.dot_dimension_numbers<[1], [0], [0], [1], [0, 0, 1, 1], [], []>} : vector<32x1152xbf16>, vector<1152x128xbf16>, vector<32x128xf32> -> vector<32x128xf32>
    %cst_53 = arith.constant dense<0.000000e+00> : vector<128xf32>
    %190 = vector.multi_reduction <add>, %189, %cst_53 [0] : vector<32x128xf32> to vector<128xf32>
    %191 = vector.shape_cast %190 : vector<128xf32> to vector<1x128xf32>
    %cst_54 = arith.constant 3.200000e+01 : f32
    %192 = vector.broadcast %cst_54 : f32 to vector<1x128xf32>
    %193 = arith.divf %191, %192 : vector<1x128xf32>
    %194 = vector.broadcast %193 : vector<1x128xf32> to vector<32x128xf32>
    %195 = arith.subf %189, %194 : vector<32x128xf32>
    %196 = arith.mulf %195, %195 : vector<32x128xf32>
    %cst_55 = arith.constant dense<0.000000e+00> : vector<128xf32>
    %197 = vector.multi_reduction <add>, %196, %cst_55 [0] : vector<32x128xf32> to vector<128xf32>
    %198 = vector.shape_cast %197 : vector<128xf32> to vector<1x128xf32>
    %cst_56 = arith.constant 3.200000e+01 : f32
    %199 = vector.broadcast %cst_56 : f32 to vector<1x128xf32>
    %200 = arith.divf %198, %199 : vector<1x128xf32>
    %201 = vector.broadcast %193 : vector<1x128xf32> to vector<32x128xf32>
    %202 = arith.subf %189, %201 : vector<32x128xf32>
    %cst_57 = arith.constant 9.99999974E-6 : f32
    %203 = vector.broadcast %cst_57 : f32 to vector<1x128xf32>
    %204 = arith.addf %200, %203 : vector<1x128xf32>
    %205 = math.rsqrt %204 : vector<1x128xf32>
    %206 = vector.broadcast %205 : vector<1x128xf32> to vector<32x128xf32>
    %207 = arith.mulf %202, %206 : vector<32x128xf32>
    %208 = vector.broadcast %171 : vector<1x128xf32> to vector<32x128xf32>
    %209 = arith.mulf %207, %208 : vector<32x128xf32>
    %210 = vector.broadcast %172 : vector<1x128xf32> to vector<32x128xf32>
    %211 = arith.addf %209, %210 : vector<32x128xf32>
    %cst_58 = arith.constant 0.000000e+00 : f32
    %212 = vector.broadcast %cst_58 : f32 to vector<32x128xf32>
    %213 = arith.maximumf %211, %212 : vector<32x128xf32>
    %214 = vector.shape_cast %213 : vector<32x128xf32> to vector<16x2x128xf32>
    %215 = vector.extract_strided_slice %214 {offsets = [0, 0, 0], sizes = [16, 1, 128], strides = [1, 1, 1]} : vector<16x2x128xf32> to vector<16x1x128xf32>
    %216 = vector.shape_cast %215 : vector<16x1x128xf32> to vector<16x128xf32>
    %217 = vector.extract_strided_slice %214 {offsets = [0, 1, 0], sizes = [16, 1, 128], strides = [1, 1, 1]} : vector<16x2x128xf32> to vector<16x1x128xf32>
    %218 = vector.shape_cast %217 : vector<16x1x128xf32> to vector<16x128xf32>
    %219 = arith.addf %216, %218 : vector<16x128xf32>
    %220 = vector.shape_cast %219 : vector<16x128xf32> to vector<4x2x2x128xf32>
    %221 = vector.extract_strided_slice %220 {offsets = [0, 0, 0, 0], sizes = [4, 1, 2, 128], strides = [1, 1, 1, 1]} : vector<4x2x2x128xf32> to vector<4x1x2x128xf32>
    %222 = vector.shape_cast %221 : vector<4x1x2x128xf32> to vector<4x2x128xf32>
    %223 = vector.extract_strided_slice %220 {offsets = [0, 1, 0, 0], sizes = [4, 1, 2, 128], strides = [1, 1, 1, 1]} : vector<4x2x2x128xf32> to vector<4x1x2x128xf32>
    %224 = vector.shape_cast %223 : vector<4x1x2x128xf32> to vector<4x2x128xf32>
    %225 = arith.addf %222, %224 : vector<4x2x128xf32>
    %cst_59 = arith.constant 2.500000e-01 : f32
    %226 = vector.broadcast %cst_59 : f32 to vector<4x2x128xf32>
    %227 = arith.mulf %225, %226 : vector<4x2x128xf32>
    %228 = vector.shape_cast %227 : vector<4x2x128xf32> to vector<2x2x2x128xf32>
    %229 = vector.shape_cast %228 : vector<2x2x2x128xf32> to vector<2x512xf32>
    %230 = arith.truncf %229 : vector<2x512xf32> to vector<2x512xbf16>
    %c0_60 = arith.constant 0 : index
    %c0_61 = arith.constant 0 : index
    %231 = vector.load %arg10[%c0_60, %c0_61] : memref<512x128xbf16, #tpu.memory_space<vmem>>, vector<512x128xbf16>
    %cst_62 = arith.constant dense<0.000000e+00> : vector<2x128xf32>
    %232 = tpu.matmul %230, %231, %cst_62 {dimension_numbers = #tpu.dot_dimension_numbers<[1], [0], [0], [1], [0, 0, 1, 1], [], []>} : vector<2x512xbf16>, vector<512x128xbf16>, vector<2x128xf32> -> vector<2x128xf32>
    %c0_63 = arith.constant 0 : index
    %c0_64 = arith.constant 0 : index
    %233 = vector.load %arg11[%c0_63, %c0_64] : memref<1x128xf32, #tpu.memory_space<vmem>>, vector<1x128xf32>
    %234 = vector.broadcast %233 : vector<1x128xf32> to vector<2x128xf32>
    %235 = arith.addf %232, %234 : vector<2x128xf32>
    %c0_65 = arith.constant 0 : index
    %c0_66 = arith.constant 0 : index
    %236 = vector.load %arg12[%c0_65, %c0_66] : memref<2x128xf32, #tpu.memory_space<vmem>>, vector<2x128xf32>
    tpu.vector_store %arg12[%c0_65, %c0_66], %235 {strides = array<i32>} : memref<2x128xf32, #tpu.memory_space<vmem>>, vector<2x128xf32>,
    return
  }
}

</mosaic_0001>

<llo_original>
// kernel: tpu_custom_call.1
$region0: #{tpu_custom_call.1}
  #allocation0 [shape = 'u32[]', space=smem, size = 0x4, offset = 0x4, fixed_abs, tag = 'smem constant byte address 0x4 - core index']
  #allocation1 [shape = 'u32[72,128]{1,0:T(1,128)}', space=vmem, size = 0x9000, scoped, tag = 'internal scratch']
  %s0 = inlined_call_operand.vmem [shape: f32[2,16,16,3], index: 0, kind: input, shape index: {}]
  %s1 = inlined_call_operand.vmem [shape: bf16[9,3,128], index: 1, kind: input, shape index: {}]
  %s2 = inlined_call_operand.vmem [shape: f32[1,128], index: 2, kind: input, shape index: {}]
  %s3 = inlined_call_operand.vmem [shape: f32[1,128], index: 3, kind: input, shape index: {}]
  %s4 = inlined_call_operand.vmem [shape: bf16[1152,128], index: 4, kind: input, shape index: {}]
  %s5 = inlined_call_operand.vmem [shape: f32[1,128], index: 5, kind: input, shape index: {}]
  %s6 = inlined_call_operand.vmem [shape: f32[1,128], index: 6, kind: input, shape index: {}]
  %s7 = inlined_call_operand.hbm [shape: bf16[1152,128], index: 7, kind: input, shape index: {}]
  %s8 = inlined_call_operand.vmem [shape: f32[1,128], index: 8, kind: input, shape index: {}]
  %s9 = inlined_call_operand.vmem [shape: f32[1,128], index: 9, kind: input, shape index: {}]
  %s10 = inlined_call_operand.hbm [shape: bf16[512,128], index: 10, kind: input, shape index: {}]
  %s11 = inlined_call_operand.vmem [shape: f32[1,128], index: 11, kind: input, shape index: {}]
  %s12 = inlined_call_operand.hbm [shape: f32[2,128], index: 12, kind: output, shape index: {}]
  %s13 = sld [smem:[#allocation0]]
  $region66: #{tpu_custom_call.1} parent=0
    _
  %s15 = ssub.s32 1, %s13
  %s16 = scalar_select 0, %s15, %s13
  $region1: #{tpu_custom_call.1} parent=0
    #allocation2 [shape = 'u8[294912]{0}', space=vmem, size = 0x48000, scoped, tag = 'input window, operand 7, single buffered']
    #allocation3 [shape = 's32[1]{0}', space=sflag, size = 0x4, scoped, tag = 'scoped memory for tpu_custom_call.1']
    #allocation4 [shape = 's32[1]{0}', space=sflag, size = 0x4, scoped, tag = 'scoped memory for tpu_custom_call.1']
    #allocation5 [shape = 'u8[131072]{0}', space=vmem, size = 0x20000, scoped, tag = 'input window, operand 10, single buffered']
    #allocation6 [shape = 's32[1]{0}', space=sflag, size = 0x4, scoped, tag = 'scoped memory for tpu_custom_call.1']
    #allocation7 [shape = 'u8[1024]{0}', space=vmem, size = 0x400, scoped, tag = 'output window, operand 0, single buffered']
    %17 = vsyncpa [#allocation3], 0
    %18 = vsyncpa [#allocation6], 0
    %19 = vsyncpa [#allocation4], 0
    // Predicated region
    $region2: #{tpu_custom_call.1} parent=1 // pred_check
      _
    $region3: #{tpu_custom_call.1} parent=1 // pred_check_branch
      %21 = sbr.rel (0) target = $region5
    $region4: #{tpu_custom_call.1} parent=1 // pred_region
      _
    $region5: #{tpu_custom_call.1} parent=1 // pred_fallthru
      _
    // Predicated region
    $region6: #{tpu_custom_call.1} parent=1 // pred_check
      _
    $region7: #{tpu_custom_call.1} parent=1 // pred_check_branch
      %23 = sbr.rel (0) target = $region9
    $region8: #{tpu_custom_call.1} parent=1 // pred_region
      _
    $region9: #{tpu_custom_call.1} parent=1 // pred_fallthru
      _
    // Predicated region
    $region10: #{tpu_custom_call.1} parent=1 // pred_check
      _
    $region11: #{tpu_custom_call.1} parent=1 // pred_check_branch
      %25 = sbr.rel (0) target = $region13
    $region12: #{tpu_custom_call.1} parent=1 // pred_region
      _
    $region13: #{tpu_custom_call.1} parent=1 // pred_fallthru
      _
    // Predicated region
    $region14: #{tpu_custom_call.1} parent=1 // pred_check
      _
    $region15: #{tpu_custom_call.1} parent=1 // pred_check_branch
      %27 = sbr.rel (0) target = $region17
    $region16: #{tpu_custom_call.1} parent=1 // pred_region
      _
    $region17: #{tpu_custom_call.1} parent=1 // pred_fallthru
      _
    // Predicated region
    $region18: #{tpu_custom_call.1} parent=1 // pred_check
      _
    $region19: #{tpu_custom_call.1} parent=1 // pred_check_branch
      %29 = sbr.rel (0) target = $region21
    $region20: #{tpu_custom_call.1} parent=1 // pred_region
      _
    $region21: #{tpu_custom_call.1} parent=1 // pred_fallthru
      _
    // Predicated region
    $region22: #{tpu_custom_call.1} parent=1 // pred_check
      _
    $region23: #{tpu_custom_call.1} parent=1 // pred_check_branch
      %31 = sbr.rel (0) target = $region25
    $region24: #{tpu_custom_call.1} parent=1 // pred_region
      _
    $region25: #{tpu_custom_call.1} parent=1 // pred_fallthru
      _
    // Predicated region
    $region26: #{tpu_custom_call.1} parent=1 // pred_check
      _
    $region27: #{tpu_custom_call.1} parent=1 // pred_check_branch
      %33 = sbr.rel (0) target = $region29
    $region28: #{tpu_custom_call.1} parent=1 // pred_region
      _
    $region29: #{tpu_custom_call.1} parent=1 // pred_fallthru
      _
    // Predicated region
    $region30: #{tpu_custom_call.1} parent=1 // pred_check
      _
    $region31: #{tpu_custom_call.1} parent=1 // pred_check_branch
      %35 = sbr.rel (0) target = $region33
    $region32: #{tpu_custom_call.1} parent=1 // pred_region
      %37 = vsyncadd [#allocation3], 0
      %s38 = sshll.u32 %s7, 4
      %s39 = int_to_ptr.hbm [resolvable:$true] %s38
      %s40 = sshll.u32 [#allocation2], 4
      %s41 = int_to_ptr.vmem [resolvable:$true] %s40
      %46 = dma.hbm_to_vmem [thread:$0]  %s39, 9216, %s41, [#allocation3], 64, 64, 4
    $region33: #{tpu_custom_call.1} parent=1 // pred_fallthru
      _
    // Predicated region
    $region34: #{tpu_custom_call.1} parent=1 // pred_check
      _
    $region35: #{tpu_custom_call.1} parent=1 // pred_check_branch
      %48 = sbr.rel (0) target = $region37
    $region36: #{tpu_custom_call.1} parent=1 // pred_region
      _
    $region37: #{tpu_custom_call.1} parent=1 // pred_fallthru
      _
    // Predicated region
    $region38: #{tpu_custom_call.1} parent=1 // pred_check
      _
    $region39: #{tpu_custom_call.1} parent=1 // pred_check_branch
      %50 = sbr.rel (0) target = $region41
    $region40: #{tpu_custom_call.1} parent=1 // pred_region
      _
    $region41: #{tpu_custom_call.1} parent=1 // pred_fallthru
      _
    // Predicated region
    $region42: #{tpu_custom_call.1} parent=1 // pred_check
      _
    $region43: #{tpu_custom_call.1} parent=1 // pred_check_branch
      %52 = sbr.rel (0) target = $region45
    $region44: #{tpu_custom_call.1} parent=1 // pred_region
      %54 = vsyncadd [#allocation6], 0
      %s55 = sshll.u32 %s10, 4
      %s56 = int_to_ptr.hbm [resolvable:$true] %s55
      %s57 = sshll.u32 [#allocation5], 4
      %s58 = int_to_ptr.vmem [resolvable:$true] %s57
      %63 = dma.hbm_to_vmem [thread:$0]  %s56, 4096, %s58, [#allocation6], 64, 64, 4
    $region45: #{tpu_custom_call.1} parent=1 // pred_fallthru
      _
    // Predicated region
    $region46: #{tpu_custom_call.1} parent=1 // pred_check
      _
    $region47: #{tpu_custom_call.1} parent=1 // pred_check_branch
      %65 = sbr.rel (0) target = $region49
    $region48: #{tpu_custom_call.1} parent=1 // pred_region
      _
    $region49: #{tpu_custom_call.1} parent=1 // pred_fallthru
      _
    // Predicated region
    $region50: #{tpu_custom_call.1} parent=1 // pred_check
      _
    $region51: #{tpu_custom_call.1} parent=1 // pred_check_branch
      %67 = sbr.rel (0) target = $region53
    $region52: #{tpu_custom_call.1} parent=1 // pred_region
      %69 = dma.done [#allocation3], 9216
    $region53: #{tpu_custom_call.1} parent=1 // pred_fallthru
      _
    // Predicated region
    $region54: #{tpu_custom_call.1} parent=1 // pred_check
      _
    $region55: #{tpu_custom_call.1} parent=1 // pred_check_branch
      %71 = sbr.rel (0) target = $region57
    $region56: #{tpu_custom_call.1} parent=1 // pred_region
      %73 = dma.done [#allocation6], 4096
    $region57: #{tpu_custom_call.1} parent=1 // pred_fallthru
      _
    %v75 = vld [vmem:[%s0] sm:$0xff]
    %v76 = vld [vmem:[%s0 + $0x8] sm:$0xff]
    %v77 = vld [vmem:[%s0 + $0x10] sm:$0xff]
    %v78 = vld [vmem:[%s0 + $0x18] sm:$0xff]
    %v79 = vld [vmem:[%s0 + $0x20] sm:$0xff]
    %v80 = vld [vmem:[%s0 + $0x28] sm:$0xff]
    %v81 = vld [vmem:[%s0 + $0x30] sm:$0xff]
    %v82 = vld [vmem:[%s0 + $0x38] sm:$0xff]
    %v83 = vld [vmem:[%s0 + $0x40] sm:$0xff]
    %v84 = vld [vmem:[%s0 + $0x48] sm:$0xff]
    %v85 = vld [vmem:[%s0 + $0x50] sm:$0xff]
    %v86 = vld [vmem:[%s0 + $0x58] sm:$0xff]
    %v87 = vld [vmem:[%s0 + $0x60] sm:$0xff]
    %v88 = vld [vmem:[%s0 + $0x68] sm:$0xff]
    %v89 = vld [vmem:[%s0 + $0x70] sm:$0xff]
    %v90 = vld [vmem:[%s0 + $0x78] sm:$0xff]
    %v91 = vld [vmem:[%s0 + $0x80] sm:$0xff]
    %v92 = vld [vmem:[%s0 + $0x88] sm:$0xff]
    %v93 = vld [vmem:[%s0 + $0x90] sm:$0xff]
    %v94 = vld [vmem:[%s0 + $0x98] sm:$0xff]
    %v95 = vld [vmem:[%s0 + $0xa0] sm:$0xff]
    %v96 = vld [vmem:[%s0 + $0xa8] sm:$0xff]
    %v97 = vld [vmem:[%s0 + $0xb0] sm:$0xff]
    %v98 = vld [vmem:[%s0 + $0xb8] sm:$0xff]
    %v99 = vld [vmem:[%s0 + $0xc0] sm:$0xff]
    %v100 = vld [vmem:[%s0 + $0xc8] sm:$0xff]
    %v101 = vld [vmem:[%s0 + $0xd0] sm:$0xff]
    %v102 = vld [vmem:[%s0 + $0xd8] sm:$0xff]
    %v103 = vld [vmem:[%s0 + $0xe0] sm:$0xff]
    %v104 = vld [vmem:[%s0 + $0xe8] sm:$0xff]
    %v105 = vld [vmem:[%s0 + $0xf0] sm:$0xff]
    %v106 = vld [vmem:[%s0 + $0xf8] sm:$0xff]
    %v107 = vld [vmem:[%s0 + $0x100] sm:$0xff]
    %v108 = vld [vmem:[%s0 + $0x108] sm:$0xff]
    %v109 = vld [vmem:[%s0 + $0x110] sm:$0xff]
    %v110 = vld [vmem:[%s0 + $0x118] sm:$0xff]
    %v111 = vld [vmem:[%s0 + $0x120] sm:$0xff]
    %v112 = vld [vmem:[%s0 + $0x128] sm:$0xff]
    %v113 = vld [vmem:[%s0 + $0x130] sm:$0xff]
    %v114 = vld [vmem:[%s0 + $0x138] sm:$0xff]
    %v115 = vld [vmem:[%s0 + $0x140] sm:$0xff]
    %v116 = vld [vmem:[%s0 + $0x148] sm:$0xff]
    %v117 = vld [vmem:[%s0 + $0x150] sm:$0xff]
    %v118 = vld [vmem:[%s0 + $0x158] sm:$0xff]
    %v119 = vld [vmem:[%s0 + $0x160] sm:$0xff]
    %v120 = vld [vmem:[%s0 + $0x168] sm:$0xff]
    %v121 = vld [vmem:[%s0 + $0x170] sm:$0xff]
    %v122 = vld [vmem:[%s0 + $0x178] sm:$0xff]
    %v123 = vld [vmem:[%s0 + $0x180] sm:$0xff]
    %v124 = vld [vmem:[%s0 + $0x188] sm:$0xff]
    %v125 = vld [vmem:[%s0 + $0x190] sm:$0xff]
    %v126 = vld [vmem:[%s0 + $0x198] sm:$0xff]
    %v127 = vld [vmem:[%s0 + $0x1a0] sm:$0xff]
    %v128 = vld [vmem:[%s0 + $0x1a8] sm:$0xff]
    %v129 = vld [vmem:[%s0 + $0x1b0] sm:$0xff]
    %v130 = vld [vmem:[%s0 + $0x1b8] sm:$0xff]
    %v131 = vld [vmem:[%s0 + $0x1c0] sm:$0xff]
    %v132 = vld [vmem:[%s0 + $0x1c8] sm:$0xff]
    %v133 = vld [vmem:[%s0 + $0x1d0] sm:$0xff]
    %v134 = vld [vmem:[%s0 + $0x1d8] sm:$0xff]
    %v135 = vld [vmem:[%s0 + $0x1e0] sm:$0xff]
    %v136 = vld [vmem:[%s0 + $0x1e8] sm:$0xff]
    %v137 = vld [vmem:[%s0 + $0x1f0] sm:$0xff]
    %v138 = vld [vmem:[%s0 + $0x1f8] sm:$0xff]
    %v139 = vld [vmem:[%s1] sm:$0x3]
    %v140 = vld [vmem:[%s1 + $0x2] sm:$0x3]
    %v141 = vld [vmem:[%s1 + $0x4] sm:$0x3]
    %v142 = vld [vmem:[%s1 + $0x6] sm:$0x3]
    %v143 = vld [vmem:[%s1 + $0x8] sm:$0x3]
    %v144 = vld [vmem:[%s1 + $0xa] sm:$0x3]
    %v145 = vld [vmem:[%s1 + $0xc] sm:$0x3]
    %v146 = vld [vmem:[%s1 + $0xe] sm:$0x3]
    %v147 = vld [vmem:[%s1 + $0x10] sm:$0x3]
    %v148 = vld [vmem:[%s2] sm:$0x1]
    %v149 = vld [vmem:[%s3] sm:$0x1]
    %vm215 = vcmask 1040384
    %v216 = vrot.slane 0.0, 7
    %v217 = vsel %vm215, %v216, %v216
    %v218 = vrot.slane %v75, 7
    %v219 = vrot.slane %v76, 7
    %v220 = vsel %vm215, %v218, %v219
    %v221 = vrot.slane %v77, 7
    %v222 = vrot.slane %v78, 7
    %v223 = vsel %vm215, %v221, %v222
    %v224 = vrot.slane %v79, 7
    %v225 = vrot.slane %v80, 7
    %v226 = vsel %vm215, %v224, %v225
    %v227 = vrot.slane %v81, 7
    %v228 = vrot.slane %v82, 7
    %v229 = vsel %vm215, %v227, %v228
    %v230 = vrot.slane %v83, 7
    %v231 = vrot.slane %v84, 7
    %v232 = vsel %vm215, %v230, %v231
    %v233 = vrot.slane %v85, 7
    %v234 = vrot.slane %v86, 7
    %v235 = vsel %vm215, %v233, %v234
    %v236 = vrot.slane %v87, 7
    %v237 = vrot.slane %v88, 7
    %v238 = vsel %vm215, %v236, %v237
    %v239 = vrot.slane %v89, 7
    %v240 = vrot.slane %v90, 7
    %v241 = vsel %vm215, %v239, %v240
    %v242 = vrot.slane %v91, 7
    %v243 = vrot.slane %v92, 7
    %v244 = vsel %vm215, %v242, %v243
    %v245 = vrot.slane %v93, 7
    %v246 = vrot.slane %v94, 7
    %v247 = vsel %vm215, %v245, %v246
    %v248 = vrot.slane %v95, 7
    %v249 = vrot.slane %v96, 7
    %v250 = vsel %vm215, %v248, %v249
    %v251 = vrot.slane %v97, 7
    %v252 = vrot.slane %v98, 7
    %v253 = vsel %vm215, %v251, %v252
    %v254 = vrot.slane %v99, 7
    %v255 = vrot.slane %v100, 7
    %v256 = vsel %vm215, %v254, %v255
    %v257 = vrot.slane %v101, 7
    %v258 = vrot.slane %v102, 7
    %v259 = vsel %vm215, %v257, %v258
    %v260 = vrot.slane %v103, 7
    %v261 = vrot.slane %v104, 7
    %v262 = vsel %vm215, %v260, %v261
    %v263 = vrot.slane %v105, 7
    %v264 = vrot.slane %v106, 7
    %v265 = vsel %vm215, %v263, %v264
    %v266 = vrot.slane %v107, 7
    %v267 = vrot.slane %v108, 7
    %v268 = vsel %vm215, %v266, %v267
    %v269 = vrot.slane %v109, 7
    %v270 = vrot.slane %v110, 7
    %v271 = vsel %vm215, %v269, %v270
    %v272 = vrot.slane %v111, 7
    %v273 = vrot.slane %v112, 7
    %v274 = vsel %vm215, %v272, %v273
    %v275 = vrot.slane %v113, 7
    %v276 = vrot.slane %v114, 7
    %v277 = vsel %vm215, %v275, %v276
    %v278 = vrot.slane %v115, 7
    %v279 = vrot.slane %v116, 7
    %v280 = vsel %vm215, %v278, %v279
    %v281 = vrot.slane %v117, 7
    %v282 = vrot.slane %v118, 7
    %v283 = vsel %vm215, %v281, %v282
    %v284 = vrot.slane %v119, 7
    %v285 = vrot.slane %v120, 7
    %v286 = vsel %vm215, %v284, %v285
    %v287 = vrot.slane %v121, 7
    %v288 = vrot.slane %v122, 7
    %v289 = vsel %vm215, %v287, %v288
    %v290 = vrot.slane %v123, 7
    %v291 = vrot.slane %v124, 7
    %v292 = vsel %vm215, %v290, %v291
    %v293 = vrot.slane %v125, 7
    %v294 = vrot.slane %v126, 7
    %v295 = vsel %vm215, %v293, %v294
    %v296 = vrot.slane %v127, 7
    %v297 = vrot.slane %v128, 7
    %v298 = vsel %vm215, %v296, %v297
    %v299 = vrot.slane %v129, 7
    %v300 = vrot.slane %v130, 7
    %v301 = vsel %vm215, %v299, %v300
    %v302 = vrot.slane %v131, 7
    %v303 = vrot.slane %v132, 7
    %v304 = vsel %vm215, %v302, %v303
    %v305 = vrot.slane %v133, 7
    %v306 = vrot.slane %v134, 7
    %v307 = vsel %vm215, %v305, %v306
    %v308 = vrot.slane %v135, 7
    %v309 = vrot.slane %v136, 7
    %v310 = vsel %vm215, %v308, %v309
    %v311 = vrot.slane %v137, 7
    %v312 = vrot.slane %v138, 7
    %v313 = vsel %vm215, %v311, %v312
    %v412 = vsel %vm215, 0.0, %v216
    %v413 = vsel %vm215, 0.0, %v218
    %v414 = vsel %vm215, 0.0, %v221
    %v415 = vsel %vm215, 0.0, %v224
    %v416 = vsel %vm215, 0.0, %v227
    %v417 = vsel %vm215, 0.0, %v230
    %v418 = vsel %vm215, 0.0, %v233
    %v419 = vsel %vm215, 0.0, %v236
    %v420 = vsel %vm215, 0.0, %v239
    %v421 = vsel %vm215, 0.0, %v242
    %v422 = vsel %vm215, 0.0, %v245
    %v423 = vsel %vm215, 0.0, %v248
    %v424 = vsel %vm215, 0.0, %v251
    %v425 = vsel %vm215, 0.0, %v254
    %v426 = vsel %vm215, 0.0, %v257
    %v427 = vsel %vm215, 0.0, %v260
    %v428 = vsel %vm215, 0.0, %v263
    %v429 = vsel %vm215, 0.0, %v266
    %v430 = vsel %vm215, 0.0, %v269
    %v431 = vsel %vm215, 0.0, %v272
    %v432 = vsel %vm215, 0.0, %v275
    %v433 = vsel %vm215, 0.0, %v278
    %v434 = vsel %vm215, 0.0, %v281
    %v435 = vsel %vm215, 0.0, %v284
    %v436 = vsel %vm215, 0.0, %v287
    %v437 = vsel %vm215, 0.0, %v290
    %v438 = vsel %vm215, 0.0, %v293
    %v439 = vsel %vm215, 0.0, %v296
    %v440 = vsel %vm215, 0.0, %v299
    %v441 = vsel %vm215, 0.0, %v302
    %v442 = vsel %vm215, 0.0, %v305
    %v443 = vsel %vm215, 0.0, %v308
    %v444 = vsel %vm215, 0.0, %v311
    %v445 = vsel %vm215, %v216, 0.0
    %v446 = vsel %vm215, %v219, 0.0
    %v447 = vsel %vm215, %v222, 0.0
    %v448 = vsel %vm215, %v225, 0.0
    %v449 = vsel %vm215, %v228, 0.0
    %v450 = vsel %vm215, %v231, 0.0
    %v451 = vsel %vm215, %v234, 0.0
    %v452 = vsel %vm215, %v237, 0.0
    %v453 = vsel %vm215, %v240, 0.0
    %v454 = vsel %vm215, %v243, 0.0
    %v455 = vsel %vm215, %v246, 0.0
    %v456 = vsel %vm215, %v249, 0.0
    %v457 = vsel %vm215, %v252, 0.0
    %v458 = vsel %vm215, %v255, 0.0
    %v459 = vsel %vm215, %v258, 0.0
    %v460 = vsel %vm215, %v261, 0.0
    %v461 = vsel %vm215, %v264, 0.0
    %v462 = vsel %vm215, %v267, 0.0
    %v463 = vsel %vm215, %v270, 0.0
    %v464 = vsel %vm215, %v273, 0.0
    %v465 = vsel %vm215, %v276, 0.0
    %v466 = vsel %vm215, %v279, 0.0
    %v467 = vsel %vm215, %v282, 0.0
    %v468 = vsel %vm215, %v285, 0.0
    %v469 = vsel %vm215, %v288, 0.0
    %v470 = vsel %vm215, %v291, 0.0
    %v471 = vsel %vm215, %v294, 0.0
    %v472 = vsel %vm215, %v297, 0.0
    %v473 = vsel %vm215, %v300, 0.0
    %v474 = vsel %vm215, %v303, 0.0
    %v475 = vsel %vm215, %v306, 0.0
    %v476 = vsel %vm215, %v309, 0.0
    %v477 = vsel %vm215, %v312, 0.0
    %v478 = vpack.c.bf16 %v217, %v412
    %v479 = vpack.c.bf16 %v220, %v413
    %v480 = vpack.c.bf16 %v223, %v414
    %v481 = vpack.c.bf16 %v226, %v415
    %v482 = vpack.c.bf16 %v229, %v416
    %v483 = vpack.c.bf16 %v232, %v417
    %v484 = vpack.c.bf16 %v235, %v418
    %v485 = vpack.c.bf16 %v238, %v419
    %v486 = vpack.c.bf16 %v241, %v420
    %v487 = vpack.c.bf16 %v244, %v421
    %v488 = vpack.c.bf16 %v247, %v422
    %v489 = vpack.c.bf16 %v250, %v423
    %v490 = vpack.c.bf16 %v253, %v424
    %v491 = vpack.c.bf16 %v256, %v425
    %v492 = vpack.c.bf16 %v259, %v426
    %v493 = vpack.c.bf16 %v262, %v427
    %v494 = vpack.c.bf16 %v268, %v429
    %v495 = vpack.c.bf16 %v271, %v430
    %v496 = vpack.c.bf16 %v274, %v431
    %v497 = vpack.c.bf16 %v277, %v432
    %v498 = vpack.c.bf16 %v280, %v433
    %v499 = vpack.c.bf16 %v283, %v434
    %v500 = vpack.c.bf16 %v286, %v435
    %v501 = vpack.c.bf16 %v289, %v436
    %v502 = vpack.c.bf16 %v292, %v437
    %v503 = vpack.c.bf16 %v295, %v438
    %v504 = vpack.c.bf16 %v298, %v439
    %v505 = vpack.c.bf16 %v301, %v440
    %v506 = vpack.c.bf16 %v304, %v441
    %v507 = vpack.c.bf16 %v307, %v442
    %v508 = vpack.c.bf16 %v310, %v443
    %vm571 = vcmask 1046528
    %v572 = vrot.slane %v412, 1
    %v573 = vrot.slane %v217, 1
    %v574 = vsel %vm571, %v572, %v573
    %v575 = vrot.slane %v445, 1
    %v576 = vsel %vm571, %v573, %v575
    %v577 = vrot.slane %v413, 1
    %v578 = vrot.slane %v220, 1
    %v579 = vsel %vm571, %v577, %v578
    %v580 = vrot.slane %v446, 1
    %v581 = vsel %vm571, %v578, %v580
    %v582 = vrot.slane %v414, 1
    %v583 = vrot.slane %v223, 1
    %v584 = vsel %vm571, %v582, %v583
    %v585 = vrot.slane %v447, 1
    %v586 = vsel %vm571, %v583, %v585
    %v587 = vrot.slane %v415, 1
    %v588 = vrot.slane %v226, 1
    %v589 = vsel %vm571, %v587, %v588
    %v590 = vrot.slane %v448, 1
    %v591 = vsel %vm571, %v588, %v590
    %v592 = vrot.slane %v416, 1
    %v593 = vrot.slane %v229, 1
    %v594 = vsel %vm571, %v592, %v593
    %v595 = vrot.slane %v449, 1
    %v596 = vsel %vm571, %v593, %v595
    %v597 = vrot.slane %v417, 1
    %v598 = vrot.slane %v232, 1
    %v599 = vsel %vm571, %v597, %v598
    %v600 = vrot.slane %v450, 1
    %v601 = vsel %vm571, %v598, %v600
    %v602 = vrot.slane %v418, 1
    %v603 = vrot.slane %v235, 1
    %v604 = vsel %vm571, %v602, %v603
    %v605 = vrot.slane %v451, 1
    %v606 = vsel %vm571, %v603, %v605
    %v607 = vrot.slane %v419, 1
    %v608 = vrot.slane %v238, 1
    %v609 = vsel %vm571, %v607, %v608
    %v610 = vrot.slane %v452, 1
    %v611 = vsel %vm571, %v608, %v610
    %v612 = vrot.slane %v420, 1
    %v613 = vrot.slane %v241, 1
    %v614 = vsel %vm571, %v612, %v613
    %v615 = vrot.slane %v453, 1
    %v616 = vsel %vm571, %v613, %v615
    %v617 = vrot.slane %v421, 1
    %v618 = vrot.slane %v244, 1
    %v619 = vsel %vm571, %v617, %v618
    %v620 = vrot.slane %v454, 1
    %v621 = vsel %vm571, %v618, %v620
    %v622 = vrot.slane %v422, 1
    %v623 = vrot.slane %v247, 1
    %v624 = vsel %vm571, %v622, %v623
    %v625 = vrot.slane %v455, 1
    %v626 = vsel %vm571, %v623, %v625
    %v627 = vrot.slane %v423, 1
    %v628 = vrot.slane %v250, 1
    %v629 = vsel %vm571, %v627, %v628
    %v630 = vrot.slane %v456, 1
    %v631 = vsel %vm571, %v628, %v630
    %v632 = vrot.slane %v424, 1
    %v633 = vrot.slane %v253, 1
    %v634 = vsel %vm571, %v632, %v633
    %v635 = vrot.slane %v457, 1
    %v636 = vsel %vm571, %v633, %v635
    %v637 = vrot.slane %v425, 1
    %v638 = vrot.slane %v256, 1
    %v639 = vsel %vm571, %v637, %v638
    %v640 = vrot.slane %v458, 1
    %v641 = vsel %vm571, %v638, %v640
    %v642 = vrot.slane %v426, 1
    %v643 = vrot.slane %v259, 1
    %v644 = vsel %vm571, %v642, %v643
    %v645 = vrot.slane %v459, 1
    %v646 = vsel %vm571, %v643, %v645
    %v647 = vrot.slane %v427, 1
    %v648 = vrot.slane %v262, 1
    %v649 = vsel %vm571, %v647, %v648
    %v650 = vrot.slane %v460, 1
    %v651 = vsel %vm571, %v648, %v650
    %v652 = vrot.slane %v429, 1
    %v653 = vrot.slane %v268, 1
    %v654 = vsel %vm571, %v652, %v653
    %v655 = vrot.slane %v462, 1
    %v656 = vsel %vm571, %v653, %v655
    %v657 = vrot.slane %v430, 1
    %v658 = vrot.slane %v271, 1
    %v659 = vsel %vm571, %v657, %v658
    %v660 = vrot.slane %v463, 1
    %v661 = vsel %vm571, %v658, %v660
    %v662 = vrot.slane %v431, 1
    %v663 = vrot.slane %v274, 1
    %v664 = vsel %vm571, %v662, %v663
    %v665 = vrot.slane %v464, 1
    %v666 = vsel %vm571, %v663, %v665
    %v667 = vrot.slane %v432, 1
    %v668 = vrot.slane %v277, 1
    %v669 = vsel %vm571, %v667, %v668
    %v670 = vrot.slane %v465, 1
    %v671 = vsel %vm571, %v668, %v670
    %v672 = vrot.slane %v433, 1
    %v673 = vrot.slane %v280, 1
    %v674 = vsel %vm571, %v672, %v673
    %v675 = vrot.slane %v466, 1
    %v676 = vsel %vm571, %v673, %v675
    %v677 = vrot.slane %v434, 1
    %v678 = vrot.slane %v283, 1
    %v679 = vsel %vm571, %v677, %v678
    %v680 = vrot.slane %v467, 1
    %v681 = vsel %vm571, %v678, %v680
    %v682 = vrot.slane %v435, 1
    %v683 = vrot.slane %v286, 1
    %v684 = vsel %vm571, %v682, %v683
    %v685 = vrot.slane %v468, 1
    %v686 = vsel %vm571, %v683, %v685
    %v687 = vrot.slane %v436, 1
    %v688 = vrot.slane %v289, 1
    %v689 = vsel %vm571, %v687, %v688
    %v690 = vrot.slane %v469, 1
    %v691 = vsel %vm571, %v688, %v690
    %v692 = vrot.slane %v437, 1
    %v693 = vrot.slane %v292, 1
    %v694 = vsel %vm571, %v692, %v693
    %v695 = vrot.slane %v470, 1
    %v696 = vsel %vm571, %v693, %v695
    %v697 = vrot.slane %v438, 1
    %v698 = vrot.slane %v295, 1
    %v699 = vsel %vm571, %v697, %v698
    %v700 = vrot.slane %v471, 1
    %v701 = vsel %vm571, %v698, %v700
    %v702 = vrot.slane %v439, 1
    %v703 = vrot.slane %v298, 1
    %v704 = vsel %vm571, %v702, %v703
    %v705 = vrot.slane %v472, 1
    %v706 = vsel %vm571, %v703, %v705
    %v707 = vrot.slane %v440, 1
    %v708 = vrot.slane %v301, 1
    %v709 = vsel %vm571, %v707, %v708
    %v710 = vrot.slane %v473, 1
    %v711 = vsel %vm571, %v708, %v710
    %v712 = vrot.slane %v441, 1
    %v713 = vrot.slane %v304, 1
    %v714 = vsel %vm571, %v712, %v713
    %v715 = vrot.slane %v474, 1
    %v716 = vsel %vm571, %v713, %v715
    %v717 = vrot.slane %v442, 1
    %v718 = vrot.slane %v307, 1
    %v719 = vsel %vm571, %v717, %v718
    %v720 = vrot.slane %v475, 1
    %v721 = vsel %vm571, %v718, %v720
    %v722 = vrot.slane %v443, 1
    %v723 = vrot.slane %v310, 1
    %v724 = vsel %vm571, %v722, %v723
    %v725 = vrot.slane %v476, 1
    %v726 = vsel %vm571, %v723, %v725
    %v789 = vpack.c.bf16 %v576, %v574
    %v790 = vpack.c.bf16 %v581, %v579
    %v791 = vpack.c.bf16 %v586, %v584
    %v792 = vpack.c.bf16 %v591, %v589
    %v793 = vpack.c.bf16 %v596, %v594
    %v794 = vpack.c.bf16 %v601, %v599
    %v795 = vpack.c.bf16 %v606, %v604
    %v796 = vpack.c.bf16 %v611, %v609
    %v797 = vpack.c.bf16 %v616, %v614
    %v798 = vpack.c.bf16 %v621, %v619
    %v799 = vpack.c.bf16 %v626, %v624
    %v800 = vpack.c.bf16 %v631, %v629
    %v801 = vpack.c.bf16 %v636, %v634
    %v802 = vpack.c.bf16 %v641, %v639
    %v803 = vpack.c.bf16 %v646, %v644
    %v804 = vpack.c.bf16 %v651, %v649
    %v805 = vpack.c.bf16 %v656, %v654
    %v806 = vpack.c.bf16 %v661, %v659
    %v807 = vpack.c.bf16 %v666, %v664
    %v808 = vpack.c.bf16 %v671, %v669
    %v809 = vpack.c.bf16 %v676, %v674
    %v810 = vpack.c.bf16 %v681, %v679
    %v811 = vpack.c.bf16 %v686, %v684
    %v812 = vpack.c.bf16 %v691, %v689
    %v813 = vpack.c.bf16 %v696, %v694
    %v814 = vpack.c.bf16 %v701, %v699
    %v815 = vpack.c.bf16 %v706, %v704
    %v816 = vpack.c.bf16 %v711, %v709
    %v817 = vpack.c.bf16 %v716, %v714
    %v818 = vpack.c.bf16 %v721, %v719
    %v819 = vpack.c.bf16 %v726, %v724
    %vm820 = vcmask 23552
    %v822 = vsel %vm820, %v789, 0
    %v825 = vsel %vm820, %v790, 0
    %v828 = vsel %vm820, %v791, 0
    %v831 = vsel %vm820, %v792, 0
    %v834 = vsel %vm820, %v793, 0
    %v837 = vsel %vm820, %v794, 0
    %v840 = vsel %vm820, %v795, 0
    %v843 = vsel %vm820, %v796, 0
    %v846 = vsel %vm820, %v797, 0
    %v849 = vsel %vm820, %v798, 0
    %v852 = vsel %vm820, %v799, 0
    %v855 = vsel %vm820, %v800, 0
    %v858 = vsel %vm820, %v801, 0
    %v861 = vsel %vm820, %v802, 0
    %v864 = vsel %vm820, %v803, 0
    %v867 = vsel %vm820, %v804, 0
    %v870 = vsel %vm820, %v805, 0
    %v873 = vsel %vm820, %v806, 0
    %v876 = vsel %vm820, %v807, 0
    %v879 = vsel %vm820, %v808, 0
    %v882 = vsel %vm820, %v809, 0
    %v885 = vsel %vm820, %v810, 0
    %v888 = vsel %vm820, %v811, 0
    %v891 = vsel %vm820, %v812, 0
    %v894 = vsel %vm820, %v813, 0
    %v897 = vsel %vm820, %v814, 0
    %v900 = vsel %vm820, %v815, 0
    %v903 = vsel %vm820, %v816, 0
    %v906 = vsel %vm820, %v817, 0
    %v909 = vsel %vm820, %v818, 0
    %v912 = vsel %vm820, %v819, 0
    %vm914 = vcmask 1041408
    %v915 = vsel %vm215, 4294967295, 65535
    %v916 = vsel %vm914, %v915, 0
    %v918 = vand.u32 %v140, %v916
    %920 = vmatpush.bf16.msra.mxu0 0
    %921 = vmatpush.bf16.msra.mxu0 0
    %922 = vmatpush.bf16.msra.mxu0 0
    %923 = vmatpush.bf16.msra.mxu0 0
    %924 = vmatpush.bf16.msra.mxu0 0
    %925 = vmatpush.bf16.msra.mxu0 0
    %926 = vmatpush.bf16.msra.mxu0 0
    %927 = vmatpush.bf16.msra.mxu0 %v918
    %928 = vmatmul.bf16.gmra.mxu0 %v822
    %v929 = vpop.f32.mrf.mxu0
    %v930 = vadd.f32 0.0, %v929
    %v931 = vpop.f32.mrf.mxu0
    %v932 = vadd.f32 0.0, %v931
    %933 = vmatmul.bf16.gmra.mxu0 %v825
    %v934 = vpop.f32.mrf.mxu0
    %v935 = vadd.f32 0.0, %v934
    %v936 = vpop.f32.mrf.mxu0
    %v937 = vadd.f32 0.0, %v936
    %938 = vmatmul.bf16.gmra.mxu0 %v828
    %v939 = vpop.f32.mrf.mxu0
    %v940 = vadd.f32 0.0, %v939
    %v941 = vpop.f32.mrf.mxu0
    %v942 = vadd.f32 0.0, %v941
    %943 = vmatmul.bf16.gmra.mxu0 %v831
    %v944 = vpop.f32.mrf.mxu0
    %v945 = vadd.f32 0.0, %v944
    %v946 = vpop.f32.mrf.mxu0
    %v947 = vadd.f32 0.0, %v946
    %948 = vmatmul.bf16.gmra.mxu0 %v834
    %v949 = vpop.f32.mrf.mxu0
    %v950 = vadd.f32 0.0, %v949
    %v951 = vpop.f32.mrf.mxu0
    %v952 = vadd.f32 0.0, %v951
    %953 = vmatmul.bf16.gmra.mxu0 %v837
    %v954 = vpop.f32.mrf.mxu0
    %v955 = vadd.f32 0.0, %v954
    %v956 = vpop.f32.mrf.mxu0
    %v957 = vadd.f32 0.0, %v956
    %958 = vmatmul.bf16.gmra.mxu0 %v840
    %v959 = vpop.f32.mrf.mxu0
    %v960 = vadd.f32 0.0, %v959
    %v961 = vpop.f32.mrf.mxu0
    %v962 = vadd.f32 0.0, %v961
    %963 = vmatmul.bf16.gmra.mxu0 %v843
    %v964 = vpop.f32.mrf.mxu0
    %v965 = vadd.f32 0.0, %v964
    %v966 = vpop.f32.mrf.mxu0
    %v967 = vadd.f32 0.0, %v966
    %968 = vmatmul.bf16.gmra.mxu0 %v846
    %v969 = vpop.f32.mrf.mxu0
    %v970 = vadd.f32 0.0, %v969
    %v971 = vpop.f32.mrf.mxu0
    %v972 = vadd.f32 0.0, %v971
    %973 = vmatmul.bf16.gmra.mxu0 %v849
    %v974 = vpop.f32.mrf.mxu0
    %v975 = vadd.f32 0.0, %v974
    %v976 = vpop.f32.mrf.mxu0
    %v977 = vadd.f32 0.0, %v976
    %978 = vmatmul.bf16.gmra.mxu0 %v852
    %v979 = vpop.f32.mrf.mxu0
    %v980 = vadd.f32 0.0, %v979
    %v981 = vpop.f32.mrf.mxu0
    %v982 = vadd.f32 0.0, %v981
    %983 = vmatmul.bf16.gmra.mxu0 %v855
    %v984 = vpop.f32.mrf.mxu0
    %v985 = vadd.f32 0.0, %v984
    %v986 = vpop.f32.mrf.mxu0
    %v987 = vadd.f32 0.0, %v986
    %988 = vmatmul.bf16.gmra.mxu0 %v858
    %v989 = vpop.f32.mrf.mxu0
    %v990 = vadd.f32 0.0, %v989
    %v991 = vpop.f32.mrf.mxu0
    %v992 = vadd.f32 0.0, %v991
    %993 = vmatmul.bf16.gmra.mxu0 %v861
    %v994 = vpop.f32.mrf.mxu0
    %v995 = vadd.f32 0.0, %v994
    %v996 = vpop.f32.mrf.mxu0
    %v997 = vadd.f32 0.0, %v996
    %998 = vmatmul.bf16.gmra.mxu0 %v864
    %v999 = vpop.f32.mrf.mxu0
    %v1000 = vadd.f32 0.0, %v999
    %v1001 = vpop.f32.mrf.mxu0
    %v1002 = vadd.f32 0.0, %v1001
    %1003 = vmatmul.bf16.gmra.mxu0 %v867
    %v1004 = vpop.f32.mrf.mxu0
    %v1005 = vadd.f32 0.0, %v1004
    %v1006 = vpop.f32.mrf.mxu0
    %v1007 = vadd.f32 0.0, %v1006
    %1008 = vmatmul.bf16.gmra.mxu0 %v822
    %v1009 = vpop.f32.mrf.mxu0
    %v1010 = vadd.f32 0.0, %v1009
    %v1011 = vpop.f32.mrf.mxu0
    %v1012 = vadd.f32 0.0, %v1011
    %1013 = vmatmul.bf16.gmra.mxu0 %v870
    %v1014 = vpop.f32.mrf.mxu0
    %v1015 = vadd.f32 0.0, %v1014
    %v1016 = vpop.f32.mrf.mxu0
    %v1017 = vadd.f32 0.0, %v1016
    %1018 = vmatmul.bf16.gmra.mxu0 %v873
    %v1019 = vpop.f32.mrf.mxu0
    %v1020 = vadd.f32 0.0, %v1019
    %v1021 = vpop.f32.mrf.mxu0
    %v1022 = vadd.f32 0.0, %v1021
    %1023 = vmatmul.bf16.gmra.mxu0 %v876
    %v1024 = vpop.f32.mrf.mxu0
    %v1025 = vadd.f32 0.0, %v1024
    %v1026 = vpop.f32.mrf.mxu0
    %v1027 = vadd.f32 0.0, %v1026
    %1028 = vmatmul.bf16.gmra.mxu0 %v879
    %v1029 = vpop.f32.mrf.mxu0
    %v1030 = vadd.f32 0.0, %v1029
    %v1031 = vpop.f32.mrf.mxu0
    %v1032 = vadd.f32 0.0, %v1031
    %1033 = vmatmul.bf16.gmra.mxu0 %v882
    %v1034 = vpop.f32.mrf.mxu0
    %v1035 = vadd.f32 0.0, %v1034
    %v1036 = vpop.f32.mrf.mxu0
    %v1037 = vadd.f32 0.0, %v1036
    %1038 = vmatmul.bf16.gmra.mxu0 %v885
    %v1039 = vpop.f32.mrf.mxu0
    %v1040 = vadd.f32 0.0, %v1039
    %v1041 = vpop.f32.mrf.mxu0
    %v1042 = vadd.f32 0.0, %v1041
    %1043 = vmatmul.bf16.gmra.mxu0 %v888
    %v1044 = vpop.f32.mrf.mxu0
    %v1045 = vadd.f32 0.0, %v1044
    %v1046 = vpop.f32.mrf.mxu0
    %v1047 = vadd.f32 0.0, %v1046
    %1048 = vmatmul.bf16.gmra.mxu0 %v891
    %v1049 = vpop.f32.mrf.mxu0
    %v1050 = vadd.f32 0.0, %v1049
    %v1051 = vpop.f32.mrf.mxu0
    %v1052 = vadd.f32 0.0, %v1051
    %1053 = vmatmul.bf16.gmra.mxu0 %v894
    %v1054 = vpop.f32.mrf.mxu0
    %v1055 = vadd.f32 0.0, %v1054
    %v1056 = vpop.f32.mrf.mxu0
    %v1057 = vadd.f32 0.0, %v1056
    %1058 = vmatmul.bf16.gmra.mxu0 %v897
    %v1059 = vpop.f32.mrf.mxu0
    %v1060 = vadd.f32 0.0, %v1059
    %v1061 = vpop.f32.mrf.mxu0
    %v1062 = vadd.f32 0.0, %v1061
    %1063 = vmatmul.bf16.gmra.mxu0 %v900
    %v1064 = vpop.f32.mrf.mxu0
    %v1065 = vadd.f32 0.0, %v1064
    %v1066 = vpop.f32.mrf.mxu0
    %v1067 = vadd.f32 0.0, %v1066
    %1068 = vmatmul.bf16.gmra.mxu0 %v903
    %v1069 = vpop.f32.mrf.mxu0
    %v1070 = vadd.f32 0.0, %v1069
    %v1071 = vpop.f32.mrf.mxu0
    %v1072 = vadd.f32 0.0, %v1071
    %1073 = vmatmul.bf16.gmra.mxu0 %v906
    %v1074 = vpop.f32.mrf.mxu0
    %v1075 = vadd.f32 0.0, %v1074
    %v1076 = vpop.f32.mrf.mxu0
    %v1077 = vadd.f32 0.0, %v1076
    %1078 = vmatmul.bf16.gmra.mxu0 %v909
    %v1079 = vpop.f32.mrf.mxu0
    %v1080 = vadd.f32 0.0, %v1079
    %v1081 = vpop.f32.mrf.mxu0
    %v1082 = vadd.f32 0.0, %v1081
    %1083 = vmatmul.bf16.gmra.mxu0 %v912
    %v1084 = vpop.f32.mrf.mxu0
    %v1085 = vadd.f32 0.0, %v1084
    %v1086 = vpop.f32.mrf.mxu0
    %v1087 = vadd.f32 0.0, %v1086
    %1088 = vdwg.mxu0
    %v1090 = vsel %vm820, %v478, 0
    %v1093 = vsel %vm820, %v479, 0
    %v1096 = vsel %vm820, %v480, 0
    %v1099 = vsel %vm820, %v481, 0
    %v1102 = vsel %vm820, %v482, 0
    %v1105 = vsel %vm820, %v483, 0
    %v1108 = vsel %vm820, %v484, 0
    %v1111 = vsel %vm820, %v485, 0
    %v1114 = vsel %vm820, %v486, 0
    %v1117 = vsel %vm820, %v487, 0
    %v1120 = vsel %vm820, %v488, 0
    %v1123 = vsel %vm820, %v489, 0
    %v1126 = vsel %vm820, %v490, 0
    %v1129 = vsel %vm820, %v491, 0
    %v1132 = vsel %vm820, %v492, 0
    %v1135 = vsel %vm820, %v493, 0
    %v1138 = vsel %vm820, %v494, 0
    %v1141 = vsel %vm820, %v495, 0
    %v1144 = vsel %vm820, %v496, 0
    %v1147 = vsel %vm820, %v497, 0
    %v1150 = vsel %vm820, %v498, 0
    %v1153 = vsel %vm820, %v499, 0
    %v1156 = vsel %vm820, %v500, 0
    %v1159 = vsel %vm820, %v501, 0
    %v1162 = vsel %vm820, %v502, 0
    %v1165 = vsel %vm820, %v503, 0
    %v1168 = vsel %vm820, %v504, 0
    %v1171 = vsel %vm820, %v505, 0
    %v1174 = vsel %vm820, %v506, 0
    %v1177 = vsel %vm820, %v507, 0
    %v1180 = vsel %vm820, %v508, 0
    %v1183 = vand.u32 %v139, %v916
    %1185 = vmatpush.bf16.msra.mxu0 0
    %1186 = vmatpush.bf16.msra.mxu0 0
    %1187 = vmatpush.bf16.msra.mxu0 0
    %1188 = vmatpush.bf16.msra.mxu0 0
    %1189 = vmatpush.bf16.msra.mxu0 0
    %1190 = vmatpush.bf16.msra.mxu0 0
    %1191 = vmatpush.bf16.msra.mxu0 0
    %1192 = vmatpush.bf16.msra.mxu0 %v1183
    %1193 = vmatmul.bf16.gmra.mxu0 %v1090
    %v1194 = vpop.f32.mrf.mxu0
    %v1195 = vadd.f32 %v930, %v1194
    %v1196 = vpop.f32.mrf.mxu0
    %v1197 = vadd.f32 %v932, %v1196
    %1198 = vmatmul.bf16.gmra.mxu0 %v1093
    %v1199 = vpop.f32.mrf.mxu0
    %v1200 = vadd.f32 %v935, %v1199
    %v1201 = vpop.f32.mrf.mxu0
    %v1202 = vadd.f32 %v937, %v1201
    %1203 = vmatmul.bf16.gmra.mxu0 %v1096
    %v1204 = vpop.f32.mrf.mxu0
    %v1205 = vadd.f32 %v940, %v1204
    %v1206 = vpop.f32.mrf.mxu0
    %v1207 = vadd.f32 %v942, %v1206
    %1208 = vmatmul.bf16.gmra.mxu0 %v1099
    %v1209 = vpop.f32.mrf.mxu0
    %v1210 = vadd.f32 %v945, %v1209
    %v1211 = vpop.f32.mrf.mxu0
    %v1212 = vadd.f32 %v947, %v1211
    %1213 = vmatmul.bf16.gmra.mxu0 %v1102
    %v1214 = vpop.f32.mrf.mxu0
    %v1215 = vadd.f32 %v950, %v1214
    %v1216 = vpop.f32.mrf.mxu0
    %v1217 = vadd.f32 %v952, %v1216
    %1218 = vmatmul.bf16.gmra.mxu0 %v1105
    %v1219 = vpop.f32.mrf.mxu0
    %v1220 = vadd.f32 %v955, %v1219
    %v1221 = vpop.f32.mrf.mxu0
    %v1222 = vadd.f32 %v957, %v1221
    %1223 = vmatmul.bf16.gmra.mxu0 %v1108
    %v1224 = vpop.f32.mrf.mxu0
    %v1225 = vadd.f32 %v960, %v1224
    %v1226 = vpop.f32.mrf.mxu0
    %v1227 = vadd.f32 %v962, %v1226
    %1228 = vmatmul.bf16.gmra.mxu0 %v1111
    %v1229 = vpop.f32.mrf.mxu0
    %v1230 = vadd.f32 %v965, %v1229
    %v1231 = vpop.f32.mrf.mxu0
    %v1232 = vadd.f32 %v967, %v1231
    %1233 = vmatmul.bf16.gmra.mxu0 %v1114
    %v1234 = vpop.f32.mrf.mxu0
    %v1235 = vadd.f32 %v970, %v1234
    %v1236 = vpop.f32.mrf.mxu0
    %v1237 = vadd.f32 %v972, %v1236
    %1238 = vmatmul.bf16.gmra.mxu0 %v1117
    %v1239 = vpop.f32.mrf.mxu0
    %v1240 = vadd.f32 %v975, %v1239
    %v1241 = vpop.f32.mrf.mxu0
    %v1242 = vadd.f32 %v977, %v1241
    %1243 = vmatmul.bf16.gmra.mxu0 %v1120
    %v1244 = vpop.f32.mrf.mxu0
    %v1245 = vadd.f32 %v980, %v1244
    %v1246 = vpop.f32.mrf.mxu0
    %v1247 = vadd.f32 %v982, %v1246
    %1248 = vmatmul.bf16.gmra.mxu0 %v1123
    %v1249 = vpop.f32.mrf.mxu0
    %v1250 = vadd.f32 %v985, %v1249
    %v1251 = vpop.f32.mrf.mxu0
    %v1252 = vadd.f32 %v987, %v1251
    %1253 = vmatmul.bf16.gmra.mxu0 %v1126
    %v1254 = vpop.f32.mrf.mxu0
    %v1255 = vadd.f32 %v990, %v1254
    %v1256 = vpop.f32.mrf.mxu0
    %v1257 = vadd.f32 %v992, %v1256
    %1258 = vmatmul.bf16.gmra.mxu0 %v1129
    %v1259 = vpop.f32.mrf.mxu0
    %v1260 = vadd.f32 %v995, %v1259
    %v1261 = vpop.f32.mrf.mxu0
    %v1262 = vadd.f32 %v997, %v1261
    %1263 = vmatmul.bf16.gmra.mxu0 %v1132
    %v1264 = vpop.f32.mrf.mxu0
    %v1265 = vadd.f32 %v1000, %v1264
    %v1266 = vpop.f32.mrf.mxu0
    %v1267 = vadd.f32 %v1002, %v1266
    %1268 = vmatmul.bf16.gmra.mxu0 %v1135
    %v1269 = vpop.f32.mrf.mxu0
    %v1270 = vadd.f32 %v1005, %v1269
    %v1271 = vpop.f32.mrf.mxu0
    %v1272 = vadd.f32 %v1007, %v1271
    %1273 = vmatmul.bf16.gmra.mxu0 %v1090
    %v1274 = vpop.f32.mrf.mxu0
    %v1275 = vadd.f32 %v1010, %v1274
    %v1276 = vpop.f32.mrf.mxu0
    %v1277 = vadd.f32 %v1012, %v1276
    %1278 = vmatmul.bf16.gmra.mxu0 %v1138
    %v1279 = vpop.f32.mrf.mxu0
    %v1280 = vadd.f32 %v1015, %v1279
    %v1281 = vpop.f32.mrf.mxu0
    %v1282 = vadd.f32 %v1017, %v1281
    %1283 = vmatmul.bf16.gmra.mxu0 %v1141
    %v1284 = vpop.f32.mrf.mxu0
    %v1285 = vadd.f32 %v1020, %v1284
    %v1286 = vpop.f32.mrf.mxu0
    %v1287 = vadd.f32 %v1022, %v1286
    %1288 = vmatmul.bf16.gmra.mxu0 %v1144
    %v1289 = vpop.f32.mrf.mxu0
    %v1290 = vadd.f32 %v1025, %v1289
    %v1291 = vpop.f32.mrf.mxu0
    %v1292 = vadd.f32 %v1027, %v1291
    %1293 = vmatmul.bf16.gmra.mxu0 %v1147
    %v1294 = vpop.f32.mrf.mxu0
    %v1295 = vadd.f32 %v1030, %v1294
    %v1296 = vpop.f32.mrf.mxu0
    %v1297 = vadd.f32 %v1032, %v1296
    %1298 = vmatmul.bf16.gmra.mxu0 %v1150
    %v1299 = vpop.f32.mrf.mxu0
    %v1300 = vadd.f32 %v1035, %v1299
    %v1301 = vpop.f32.mrf.mxu0
    %v1302 = vadd.f32 %v1037, %v1301
    %1303 = vmatmul.bf16.gmra.mxu0 %v1153
    %v1304 = vpop.f32.mrf.mxu0
    %v1305 = vadd.f32 %v1040, %v1304
    %v1306 = vpop.f32.mrf.mxu0
    %v1307 = vadd.f32 %v1042, %v1306
    %1308 = vmatmul.bf16.gmra.mxu0 %v1156
    %v1309 = vpop.f32.mrf.mxu0
    %v1310 = vadd.f32 %v1045, %v1309
    %v1311 = vpop.f32.mrf.mxu0
    %v1312 = vadd.f32 %v1047, %v1311
    %1313 = vmatmul.bf16.gmra.mxu0 %v1159
    %v1314 = vpop.f32.mrf.mxu0
    %v1315 = vadd.f32 %v1050, %v1314
    %v1316 = vpop.f32.mrf.mxu0
    %v1317 = vadd.f32 %v1052, %v1316
    %1318 = vmatmul.bf16.gmra.mxu0 %v1162
    %v1319 = vpop.f32.mrf.mxu0
    %v1320 = vadd.f32 %v1055, %v1319
    %v1321 = vpop.f32.mrf.mxu0
    %v1322 = vadd.f32 %v1057, %v1321
    %1323 = vmatmul.bf16.gmra.mxu0 %v1165
    %v1324 = vpop.f32.mrf.mxu0
    %v1325 = vadd.f32 %v1060, %v1324
    %v1326 = vpop.f32.mrf.mxu0
    %v1327 = vadd.f32 %v1062, %v1326
    %1328 = vmatmul.bf16.gmra.mxu0 %v1168
    %v1329 = vpop.f32.mrf.mxu0
    %v1330 = vadd.f32 %v1065, %v1329
    %v1331 = vpop.f32.mrf.mxu0
    %v1332 = vadd.f32 %v1067, %v1331
    %1333 = vmatmul.bf16.gmra.mxu0 %v1171
    %v1334 = vpop.f32.mrf.mxu0
    %v1335 = vadd.f32 %v1070, %v1334
    %v1336 = vpop.f32.mrf.mxu0
    %v1337 = vadd.f32 %v1072, %v1336
    %1338 = vmatmul.bf16.gmra.mxu0 %v1174
    %v1339 = vpop.f32.mrf.mxu0
    %v1340 = vadd.f32 %v1075, %v1339
    %v1341 = vpop.f32.mrf.mxu0
    %v1342 = vadd.f32 %v1077, %v1341
    %1343 = vmatmul.bf16.gmra.mxu0 %v1177
    %v1344 = vpop.f32.mrf.mxu0
    %v1345 = vadd.f32 %v1080, %v1344
    %v1346 = vpop.f32.mrf.mxu0
    %v1347 = vadd.f32 %v1082, %v1346
    %1348 = vmatmul.bf16.gmra.mxu0 %v1180
    %v1349 = vpop.f32.mrf.mxu0
    %v1350 = vadd.f32 %v1085, %v1349
    %v1351 = vpop.f32.mrf.mxu0
    %v1352 = vadd.f32 %v1087, %v1351
    %1353 = vdwg.mxu0
    %vm1354 = vcmask 1045504
    %v1355 = vrot.slane %v412, 2
    %v1356 = vrot.slane %v217, 2
    %v1357 = vsel %vm1354, %v1355, %v1356
    %v1358 = vrot.slane %v445, 2
    %v1359 = vsel %vm1354, %v1356, %v1358
    %v1360 = vrot.slane %v413, 2
    %v1361 = vrot.slane %v220, 2
    %v1362 = vsel %vm1354, %v1360, %v1361
    %v1363 = vrot.slane %v446, 2
    %v1364 = vsel %vm1354, %v1361, %v1363
    %v1365 = vrot.slane %v414, 2
    %v1366 = vrot.slane %v223, 2
    %v1367 = vsel %vm1354, %v1365, %v1366
    %v1368 = vrot.slane %v447, 2
    %v1369 = vsel %vm1354, %v1366, %v1368
    %v1370 = vrot.slane %v415, 2
    %v1371 = vrot.slane %v226, 2
    %v1372 = vsel %vm1354, %v1370, %v1371
    %v1373 = vrot.slane %v448, 2
    %v1374 = vsel %vm1354, %v1371, %v1373
    %v1375 = vrot.slane %v416, 2
    %v1376 = vrot.slane %v229, 2
    %v1377 = vsel %vm1354, %v1375, %v1376
    %v1378 = vrot.slane %v449, 2
    %v1379 = vsel %vm1354, %v1376, %v1378
    %v1380 = vrot.slane %v417, 2
    %v1381 = vrot.slane %v232, 2
    %v1382 = vsel %vm1354, %v1380, %v1381
    %v1383 = vrot.slane %v450, 2
    %v1384 = vsel %vm1354, %v1381, %v1383
    %v1385 = vrot.slane %v418, 2
    %v1386 = vrot.slane %v235, 2
    %v1387 = vsel %vm1354, %v1385, %v1386
    %v1388 = vrot.slane %v451, 2
    %v1389 = vsel %vm1354, %v1386, %v1388
    %v1390 = vrot.slane %v419, 2
    %v1391 = vrot.slane %v238, 2
    %v1392 = vsel %vm1354, %v1390, %v1391
    %v1393 = vrot.slane %v452, 2
    %v1394 = vsel %vm1354, %v1391, %v1393
    %v1395 = vrot.slane %v420, 2
    %v1396 = vrot.slane %v241, 2
    %v1397 = vsel %vm1354, %v1395, %v1396
    %v1398 = vrot.slane %v453, 2
    %v1399 = vsel %vm1354, %v1396, %v1398
    %v1400 = vrot.slane %v421, 2
    %v1401 = vrot.slane %v244, 2
    %v1402 = vsel %vm1354, %v1400, %v1401
    %v1403 = vrot.slane %v454, 2
    %v1404 = vsel %vm1354, %v1401, %v1403
    %v1405 = vrot.slane %v422, 2
    %v1406 = vrot.slane %v247, 2
    %v1407 = vsel %vm1354, %v1405, %v1406
    %v1408 = vrot.slane %v455, 2
    %v1409 = vsel %vm1354, %v1406, %v1408
    %v1410 = vrot.slane %v423, 2
    %v1411 = vrot.slane %v250, 2
    %v1412 = vsel %vm1354, %v1410, %v1411
    %v1413 = vrot.slane %v456, 2
    %v1414 = vsel %vm1354, %v1411, %v1413
    %v1415 = vrot.slane %v424, 2
    %v1416 = vrot.slane %v253, 2
    %v1417 = vsel %vm1354, %v1415, %v1416
    %v1418 = vrot.slane %v457, 2
    %v1419 = vsel %vm1354, %v1416, %v1418
    %v1420 = vrot.slane %v425, 2
    %v1421 = vrot.slane %v256, 2
    %v1422 = vsel %vm1354, %v1420, %v1421
    %v1423 = vrot.slane %v458, 2
    %v1424 = vsel %vm1354, %v1421, %v1423
    %v1425 = vrot.slane %v426, 2
    %v1426 = vrot.slane %v259, 2
    %v1427 = vsel %vm1354, %v1425, %v1426
    %v1428 = vrot.slane %v459, 2
    %v1429 = vsel %vm1354, %v1426, %v1428
    %v1430 = vrot.slane %v427, 2
    %v1431 = vrot.slane %v262, 2
    %v1432 = vsel %vm1354, %v1430, %v1431
    %v1433 = vrot.slane %v460, 2
    %v1434 = vsel %vm1354, %v1431, %v1433
    %v1435 = vrot.slane %v429, 2
    %v1436 = vrot.slane %v268, 2
    %v1437 = vsel %vm1354, %v1435, %v1436
    %v1438 = vrot.slane %v462, 2
    %v1439 = vsel %vm1354, %v1436, %v1438
    %v1440 = vrot.slane %v430, 2
    %v1441 = vrot.slane %v271, 2
    %v1442 = vsel %vm1354, %v1440, %v1441
    %v1443 = vrot.slane %v463, 2
    %v1444 = vsel %vm1354, %v1441, %v1443
    %v1445 = vrot.slane %v431, 2
    %v1446 = vrot.slane %v274, 2
    %v1447 = vsel %vm1354, %v1445, %v1446
    %v1448 = vrot.slane %v464, 2
    %v1449 = vsel %vm1354, %v1446, %v1448
    %v1450 = vrot.slane %v432, 2
    %v1451 = vrot.slane %v277, 2
    %v1452 = vsel %vm1354, %v1450, %v1451
    %v1453 = vrot.slane %v465, 2
    %v1454 = vsel %vm1354, %v1451, %v1453
    %v1455 = vrot.slane %v433, 2
    %v1456 = vrot.slane %v280, 2
    %v1457 = vsel %vm1354, %v1455, %v1456
    %v1458 = vrot.slane %v466, 2
    %v1459 = vsel %vm1354, %v1456, %v1458
    %v1460 = vrot.slane %v434, 2
    %v1461 = vrot.slane %v283, 2
    %v1462 = vsel %vm1354, %v1460, %v1461
    %v1463 = vrot.slane %v467, 2
    %v1464 = vsel %vm1354, %v1461, %v1463
    %v1465 = vrot.slane %v435, 2
    %v1466 = vrot.slane %v286, 2
    %v1467 = vsel %vm1354, %v1465, %v1466
    %v1468 = vrot.slane %v468, 2
    %v1469 = vsel %vm1354, %v1466, %v1468
    %v1470 = vrot.slane %v436, 2
    %v1471 = vrot.slane %v289, 2
    %v1472 = vsel %vm1354, %v1470, %v1471
    %v1473 = vrot.slane %v469, 2
    %v1474 = vsel %vm1354, %v1471, %v1473
    %v1475 = vrot.slane %v437, 2
    %v1476 = vrot.slane %v292, 2
    %v1477 = vsel %vm1354, %v1475, %v1476
    %v1478 = vrot.slane %v470, 2
    %v1479 = vsel %vm1354, %v1476, %v1478
    %v1480 = vrot.slane %v438, 2
    %v1481 = vrot.slane %v295, 2
    %v1482 = vsel %vm1354, %v1480, %v1481
    %v1483 = vrot.slane %v471, 2
    %v1484 = vsel %vm1354, %v1481, %v1483
    %v1485 = vrot.slane %v439, 2
    %v1486 = vrot.slane %v298, 2
    %v1487 = vsel %vm1354, %v1485, %v1486
    %v1488 = vrot.slane %v472, 2
    %v1489 = vsel %vm1354, %v1486, %v1488
    %v1490 = vrot.slane %v440, 2
    %v1491 = vrot.slane %v301, 2
    %v1492 = vsel %vm1354, %v1490, %v1491
    %v1493 = vrot.slane %v473, 2
    %v1494 = vsel %vm1354, %v1491, %v1493
    %v1495 = vrot.slane %v441, 2
    %v1496 = vrot.slane %v304, 2
    %v1497 = vsel %vm1354, %v1495, %v1496
    %v1498 = vrot.slane %v474, 2
    %v1499 = vsel %vm1354, %v1496, %v1498
    %v1500 = vrot.slane %v442, 2
    %v1501 = vrot.slane %v307, 2
    %v1502 = vsel %vm1354, %v1500, %v1501
    %v1503 = vrot.slane %v475, 2
    %v1504 = vsel %vm1354, %v1501, %v1503
    %v1505 = vrot.slane %v443, 2
    %v1506 = vrot.slane %v310, 2
    %v1507 = vsel %vm1354, %v1505, %v1506
    %v1508 = vrot.slane %v476, 2
    %v1509 = vsel %vm1354, %v1506, %v1508
    %v1572 = vpack.c.bf16 %v1359, %v1357
    %v1573 = vpack.c.bf16 %v1364, %v1362
    %v1574 = vpack.c.bf16 %v1369, %v1367
    %v1575 = vpack.c.bf16 %v1374, %v1372
    %v1576 = vpack.c.bf16 %v1379, %v1377
    %v1577 = vpack.c.bf16 %v1384, %v1382
    %v1578 = vpack.c.bf16 %v1389, %v1387
    %v1579 = vpack.c.bf16 %v1394, %v1392
    %v1580 = vpack.c.bf16 %v1399, %v1397
    %v1581 = vpack.c.bf16 %v1404, %v1402
    %v1582 = vpack.c.bf16 %v1409, %v1407
    %v1583 = vpack.c.bf16 %v1414, %v1412
    %v1584 = vpack.c.bf16 %v1419, %v1417
    %v1585 = vpack.c.bf16 %v1424, %v1422
    %v1586 = vpack.c.bf16 %v1429, %v1427
    %v1587 = vpack.c.bf16 %v1434, %v1432
    %v1588 = vpack.c.bf16 %v1439, %v1437
    %v1589 = vpack.c.bf16 %v1444, %v1442
    %v1590 = vpack.c.bf16 %v1449, %v1447
    %v1591 = vpack.c.bf16 %v1454, %v1452
    %v1592 = vpack.c.bf16 %v1459, %v1457
    %v1593 = vpack.c.bf16 %v1464, %v1462
    %v1594 = vpack.c.bf16 %v1469, %v1467
    %v1595 = vpack.c.bf16 %v1474, %v1472
    %v1596 = vpack.c.bf16 %v1479, %v1477
    %v1597 = vpack.c.bf16 %v1484, %v1482
    %v1598 = vpack.c.bf16 %v1489, %v1487
    %v1599 = vpack.c.bf16 %v1494, %v1492
    %v1600 = vpack.c.bf16 %v1499, %v1497
    %v1601 = vpack.c.bf16 %v1504, %v1502
    %v1602 = vpack.c.bf16 %v1509, %v1507
    %v1604 = vsel %vm820, %v1572, 0
    %v1607 = vsel %vm820, %v1573, 0
    %v1610 = vsel %vm820, %v1574, 0
    %v1613 = vsel %vm820, %v1575, 0
    %v1616 = vsel %vm820, %v1576, 0
    %v1619 = vsel %vm820, %v1577, 0
    %v1622 = vsel %vm820, %v1578, 0
    %v1625 = vsel %vm820, %v1579, 0
    %v1628 = vsel %vm820, %v1580, 0
    %v1631 = vsel %vm820, %v1581, 0
    %v1634 = vsel %vm820, %v1582, 0
    %v1637 = vsel %vm820, %v1583, 0
    %v1640 = vsel %vm820, %v1584, 0
    %v1643 = vsel %vm820, %v1585, 0
    %v1646 = vsel %vm820, %v1586, 0
    %v1649 = vsel %vm820, %v1587, 0
    %v1652 = vsel %vm820, %v1588, 0
    %v1655 = vsel %vm820, %v1589, 0
    %v1658 = vsel %vm820, %v1590, 0
    %v1661 = vsel %vm820, %v1591, 0
    %v1664 = vsel %vm820, %v1592, 0
    %v1667 = vsel %vm820, %v1593, 0
    %v1670 = vsel %vm820, %v1594, 0
    %v1673 = vsel %vm820, %v1595, 0
    %v1676 = vsel %vm820, %v1596, 0
    %v1679 = vsel %vm820, %v1597, 0
    %v1682 = vsel %vm820, %v1598, 0
    %v1685 = vsel %vm820, %v1599, 0
    %v1688 = vsel %vm820, %v1600, 0
    %v1691 = vsel %vm820, %v1601, 0
    %v1694 = vsel %vm820, %v1602, 0
    %v1697 = vand.u32 %v141, %v916
    %1699 = vmatpush.bf16.msra.mxu0 0
    %1700 = vmatpush.bf16.msra.mxu0 0
    %1701 = vmatpush.bf16.msra.mxu0 0
    %1702 = vmatpush.bf16.msra.mxu0 0
    %1703 = vmatpush.bf16.msra.mxu0 0
    %1704 = vmatpush.bf16.msra.mxu0 0
    %1705 = vmatpush.bf16.msra.mxu0 0
    %1706 = vmatpush.bf16.msra.mxu0 %v1697
    %1707 = vmatmul.bf16.gmra.mxu0 %v1604
    %v1708 = vpop.f32.mrf.mxu0
    %v1709 = vadd.f32 0.0, %v1708
    %v1710 = vpop.f32.mrf.mxu0
    %v1711 = vadd.f32 0.0, %v1710
    %1712 = vmatmul.bf16.gmra.mxu0 %v1607
    %v1713 = vpop.f32.mrf.mxu0
    %v1714 = vadd.f32 0.0, %v1713
    %v1715 = vpop.f32.mrf.mxu0
    %v1716 = vadd.f32 0.0, %v1715
    %1717 = vmatmul.bf16.gmra.mxu0 %v1610
    %v1718 = vpop.f32.mrf.mxu0
    %v1719 = vadd.f32 0.0, %v1718
    %v1720 = vpop.f32.mrf.mxu0
    %v1721 = vadd.f32 0.0, %v1720
    %1722 = vmatmul.bf16.gmra.mxu0 %v1613
    %v1723 = vpop.f32.mrf.mxu0
    %v1724 = vadd.f32 0.0, %v1723
    %v1725 = vpop.f32.mrf.mxu0
    %v1726 = vadd.f32 0.0, %v1725
    %1727 = vmatmul.bf16.gmra.mxu0 %v1616
    %v1728 = vpop.f32.mrf.mxu0
    %v1729 = vadd.f32 0.0, %v1728
    %v1730 = vpop.f32.mrf.mxu0
    %v1731 = vadd.f32 0.0, %v1730
    %1732 = vmatmul.bf16.gmra.mxu0 %v1619
    %v1733 = vpop.f32.mrf.mxu0
    %v1734 = vadd.f32 0.0, %v1733
    %v1735 = vpop.f32.mrf.mxu0
    %v1736 = vadd.f32 0.0, %v1735
    %1737 = vmatmul.bf16.gmra.mxu0 %v1622
    %v1738 = vpop.f32.mrf.mxu0
    %v1739 = vadd.f32 0.0, %v1738
    %v1740 = vpop.f32.mrf.mxu0
    %v1741 = vadd.f32 0.0, %v1740
    %1742 = vmatmul.bf16.gmra.mxu0 %v1625
    %v1743 = vpop.f32.mrf.mxu0
    %v1744 = vadd.f32 0.0, %v1743
    %v1745 = vpop.f32.mrf.mxu0
    %v1746 = vadd.f32 0.0, %v1745
    %1747 = vmatmul.bf16.gmra.mxu0 %v1628
    %v1748 = vpop.f32.mrf.mxu0
    %v1749 = vadd.f32 0.0, %v1748
    %v1750 = vpop.f32.mrf.mxu0
    %v1751 = vadd.f32 0.0, %v1750
    %1752 = vmatmul.bf16.gmra.mxu0 %v1631
    %v1753 = vpop.f32.mrf.mxu0
    %v1754 = vadd.f32 0.0, %v1753
    %v1755 = vpop.f32.mrf.mxu0
    %v1756 = vadd.f32 0.0, %v1755
    %1757 = vmatmul.bf16.gmra.mxu0 %v1634
    %v1758 = vpop.f32.mrf.mxu0
    %v1759 = vadd.f32 0.0, %v1758
    %v1760 = vpop.f32.mrf.mxu0
    %v1761 = vadd.f32 0.0, %v1760
    %1762 = vmatmul.bf16.gmra.mxu0 %v1637
    %v1763 = vpop.f32.mrf.mxu0
    %v1764 = vadd.f32 0.0, %v1763
    %v1765 = vpop.f32.mrf.mxu0
    %v1766 = vadd.f32 0.0, %v1765
    %1767 = vmatmul.bf16.gmra.mxu0 %v1640
    %v1768 = vpop.f32.mrf.mxu0
    %v1769 = vadd.f32 0.0, %v1768
    %v1770 = vpop.f32.mrf.mxu0
    %v1771 = vadd.f32 0.0, %v1770
    %1772 = vmatmul.bf16.gmra.mxu0 %v1643
    %v1773 = vpop.f32.mrf.mxu0
    %v1774 = vadd.f32 0.0, %v1773
    %v1775 = vpop.f32.mrf.mxu0
    %v1776 = vadd.f32 0.0, %v1775
    %1777 = vmatmul.bf16.gmra.mxu0 %v1646
    %v1778 = vpop.f32.mrf.mxu0
    %v1779 = vadd.f32 0.0, %v1778
    %v1780 = vpop.f32.mrf.mxu0
    %v1781 = vadd.f32 0.0, %v1780
    %1782 = vmatmul.bf16.gmra.mxu0 %v1649
    %v1783 = vpop.f32.mrf.mxu0
    %v1784 = vadd.f32 0.0, %v1783
    %v1785 = vpop.f32.mrf.mxu0
    %v1786 = vadd.f32 0.0, %v1785
    %1787 = vmatmul.bf16.gmra.mxu0 %v1604
    %v1788 = vpop.f32.mrf.mxu0
    %v1789 = vadd.f32 0.0, %v1788
    %v1790 = vpop.f32.mrf.mxu0
    %v1791 = vadd.f32 0.0, %v1790
    %1792 = vmatmul.bf16.gmra.mxu0 %v1652
    %v1793 = vpop.f32.mrf.mxu0
    %v1794 = vadd.f32 0.0, %v1793
    %v1795 = vpop.f32.mrf.mxu0
    %v1796 = vadd.f32 0.0, %v1795
    %1797 = vmatmul.bf16.gmra.mxu0 %v1655
    %v1798 = vpop.f32.mrf.mxu0
    %v1799 = vadd.f32 0.0, %v1798
    %v1800 = vpop.f32.mrf.mxu0
    %v1801 = vadd.f32 0.0, %v1800
    %1802 = vmatmul.bf16.gmra.mxu0 %v1658
    %v1803 = vpop.f32.mrf.mxu0
    %v1804 = vadd.f32 0.0, %v1803
    %v1805 = vpop.f32.mrf.mxu0
    %v1806 = vadd.f32 0.0, %v1805
    %1807 = vmatmul.bf16.gmra.mxu0 %v1661
    %v1808 = vpop.f32.mrf.mxu0
    %v1809 = vadd.f32 0.0, %v1808
    %v1810 = vpop.f32.mrf.mxu0
    %v1811 = vadd.f32 0.0, %v1810
    %1812 = vmatmul.bf16.gmra.mxu0 %v1664
    %v1813 = vpop.f32.mrf.mxu0
    %v1814 = vadd.f32 0.0, %v1813
    %v1815 = vpop.f32.mrf.mxu0
    %v1816 = vadd.f32 0.0, %v1815
    %1817 = vmatmul.bf16.gmra.mxu0 %v1667
    %v1818 = vpop.f32.mrf.mxu0
    %v1819 = vadd.f32 0.0, %v1818
    %v1820 = vpop.f32.mrf.mxu0
    %v1821 = vadd.f32 0.0, %v1820
    %1822 = vmatmul.bf16.gmra.mxu0 %v1670
    %v1823 = vpop.f32.mrf.mxu0
    %v1824 = vadd.f32 0.0, %v1823
    %v1825 = vpop.f32.mrf.mxu0
    %v1826 = vadd.f32 0.0, %v1825
    %1827 = vmatmul.bf16.gmra.mxu0 %v1673
    %v1828 = vpop.f32.mrf.mxu0
    %v1829 = vadd.f32 0.0, %v1828
    %v1830 = vpop.f32.mrf.mxu0
    %v1831 = vadd.f32 0.0, %v1830
    %1832 = vmatmul.bf16.gmra.mxu0 %v1676
    %v1833 = vpop.f32.mrf.mxu0
    %v1834 = vadd.f32 0.0, %v1833
    %v1835 = vpop.f32.mrf.mxu0
    %v1836 = vadd.f32 0.0, %v1835
    %1837 = vmatmul.bf16.gmra.mxu0 %v1679
    %v1838 = vpop.f32.mrf.mxu0
    %v1839 = vadd.f32 0.0, %v1838
    %v1840 = vpop.f32.mrf.mxu0
    %v1841 = vadd.f32 0.0, %v1840
    %1842 = vmatmul.bf16.gmra.mxu0 %v1682
    %v1843 = vpop.f32.mrf.mxu0
    %v1844 = vadd.f32 0.0, %v1843
    %v1845 = vpop.f32.mrf.mxu0
    %v1846 = vadd.f32 0.0, %v1845
    %1847 = vmatmul.bf16.gmra.mxu0 %v1685
    %v1848 = vpop.f32.mrf.mxu0
    %v1849 = vadd.f32 0.0, %v1848
    %v1850 = vpop.f32.mrf.mxu0
    %v1851 = vadd.f32 0.0, %v1850
    %1852 = vmatmul.bf16.gmra.mxu0 %v1688
    %v1853 = vpop.f32.mrf.mxu0
    %v1854 = vadd.f32 0.0, %v1853
    %v1855 = vpop.f32.mrf.mxu0
    %v1856 = vadd.f32 0.0, %v1855
    %1857 = vmatmul.bf16.gmra.mxu0 %v1691
    %v1858 = vpop.f32.mrf.mxu0
    %v1859 = vadd.f32 0.0, %v1858
    %v1860 = vpop.f32.mrf.mxu0
    %v1861 = vadd.f32 0.0, %v1860
    %1862 = vmatmul.bf16.gmra.mxu0 %v1694
    %v1863 = vpop.f32.mrf.mxu0
    %v1864 = vadd.f32 0.0, %v1863
    %v1865 = vpop.f32.mrf.mxu0
    %v1866 = vadd.f32 0.0, %v1865
    %1867 = vdwg.mxu0
    %v1868 = vadd.f32 %v1195, %v1709
    %v1869 = vadd.f32 %v1197, %v1711
    %v1870 = vadd.f32 %v1200, %v1714
    %v1871 = vadd.f32 %v1202, %v1716
    %v1872 = vadd.f32 %v1205, %v1719
    %v1873 = vadd.f32 %v1207, %v1721
    %v1874 = vadd.f32 %v1210, %v1724
    %v1875 = vadd.f32 %v1212, %v1726
    %v1876 = vadd.f32 %v1215, %v1729
    %v1877 = vadd.f32 %v1217, %v1731
    %v1878 = vadd.f32 %v1220, %v1734
    %v1879 = vadd.f32 %v1222, %v1736
    %v1880 = vadd.f32 %v1225, %v1739
    %v1881 = vadd.f32 %v1227, %v1741
    %v1882 = vadd.f32 %v1230, %v1744
    %v1883 = vadd.f32 %v1232, %v1746
    %v1884 = vadd.f32 %v1235, %v1749
    %v1885 = vadd.f32 %v1237, %v1751
    %v1886 = vadd.f32 %v1240, %v1754
    %v1887 = vadd.f32 %v1242, %v1756
    %v1888 = vadd.f32 %v1245, %v1759
    %v1889 = vadd.f32 %v1247, %v1761
    %v1890 = vadd.f32 %v1250, %v1764
    %v1891 = vadd.f32 %v1252, %v1766
    %v1892 = vadd.f32 %v1255, %v1769
    %v1893 = vadd.f32 %v1257, %v1771
    %v1894 = vadd.f32 %v1260, %v1774
    %v1895 = vadd.f32 %v1262, %v1776
    %v1896 = vadd.f32 %v1265, %v1779
    %v1897 = vadd.f32 %v1267, %v1781
    %v1898 = vadd.f32 %v1270, %v1784
    %v1899 = vadd.f32 %v1272, %v1786
    %v1900 = vadd.f32 %v1275, %v1789
    %v1901 = vadd.f32 %v1277, %v1791
    %v1902 = vadd.f32 %v1280, %v1794
    %v1903 = vadd.f32 %v1282, %v1796
    %v1904 = vadd.f32 %v1285, %v1799
    %v1905 = vadd.f32 %v1287, %v1801
    %v1906 = vadd.f32 %v1290, %v1804
    %v1907 = vadd.f32 %v1292, %v1806
    %v1908 = vadd.f32 %v1295, %v1809
    %v1909 = vadd.f32 %v1297, %v1811
    %v1910 = vadd.f32 %v1300, %v1814
    %v1911 = vadd.f32 %v1302, %v1816
    %v1912 = vadd.f32 %v1305, %v1819
    %v1913 = vadd.f32 %v1307, %v1821
    %v1914 = vadd.f32 %v1310, %v1824
    %v1915 = vadd.f32 %v1312, %v1826
    %v1916 = vadd.f32 %v1315, %v1829
    %v1917 = vadd.f32 %v1317, %v1831
    %v1918 = vadd.f32 %v1320, %v1834
    %v1919 = vadd.f32 %v1322, %v1836
    %v1920 = vadd.f32 %v1325, %v1839
    %v1921 = vadd.f32 %v1327, %v1841
    %v1922 = vadd.f32 %v1330, %v1844
    %v1923 = vadd.f32 %v1332, %v1846
    %v1924 = vadd.f32 %v1335, %v1849
    %v1925 = vadd.f32 %v1337, %v1851
    %v1926 = vadd.f32 %v1340, %v1854
    %v1927 = vadd.f32 %v1342, %v1856
    %v1928 = vadd.f32 %v1345, %v1859
    %v1929 = vadd.f32 %v1347, %v1861
    %v1930 = vadd.f32 %v1350, %v1864
    %v1931 = vadd.f32 %v1352, %v1866
    %v1932 = vpack.c.bf16 %v265, %v428
    %v1933 = vpack.c.bf16 %v313, %v444
    %v1935 = vsel %vm820, %v1932, 0
    %v1938 = vsel %vm820, %v1933, 0
    %v1941 = vand.u32 %v142, %v916
    %1943 = vmatpush.bf16.msra.mxu0 0
    %1944 = vmatpush.bf16.msra.mxu0 0
    %1945 = vmatpush.bf16.msra.mxu0 0
    %1946 = vmatpush.bf16.msra.mxu0 0
    %1947 = vmatpush.bf16.msra.mxu0 0
    %1948 = vmatpush.bf16.msra.mxu0 0
    %1949 = vmatpush.bf16.msra.mxu0 0
    %1950 = vmatpush.bf16.msra.mxu0 %v1941
    %1951 = vmatmul.bf16.gmra.mxu0 %v1093
    %v1952 = vpop.f32.mrf.mxu0
    %v1953 = vadd.f32 0.0, %v1952
    %v1954 = vpop.f32.mrf.mxu0
    %v1955 = vadd.f32 0.0, %v1954
    %1956 = vmatmul.bf16.gmra.mxu0 %v1096
    %v1957 = vpop.f32.mrf.mxu0
    %v1958 = vadd.f32 0.0, %v1957
    %v1959 = vpop.f32.mrf.mxu0
    %v1960 = vadd.f32 0.0, %v1959
    %1961 = vmatmul.bf16.gmra.mxu0 %v1099
    %v1962 = vpop.f32.mrf.mxu0
    %v1963 = vadd.f32 0.0, %v1962
    %v1964 = vpop.f32.mrf.mxu0
    %v1965 = vadd.f32 0.0, %v1964
    %1966 = vmatmul.bf16.gmra.mxu0 %v1102
    %v1967 = vpop.f32.mrf.mxu0
    %v1968 = vadd.f32 0.0, %v1967
    %v1969 = vpop.f32.mrf.mxu0
    %v1970 = vadd.f32 0.0, %v1969
    %1971 = vmatmul.bf16.gmra.mxu0 %v1105
    %v1972 = vpop.f32.mrf.mxu0
    %v1973 = vadd.f32 0.0, %v1972
    %v1974 = vpop.f32.mrf.mxu0
    %v1975 = vadd.f32 0.0, %v1974
    %1976 = vmatmul.bf16.gmra.mxu0 %v1108
    %v1977 = vpop.f32.mrf.mxu0
    %v1978 = vadd.f32 0.0, %v1977
    %v1979 = vpop.f32.mrf.mxu0
    %v1980 = vadd.f32 0.0, %v1979
    %1981 = vmatmul.bf16.gmra.mxu0 %v1111
    %v1982 = vpop.f32.mrf.mxu0
    %v1983 = vadd.f32 0.0, %v1982
    %v1984 = vpop.f32.mrf.mxu0
    %v1985 = vadd.f32 0.0, %v1984
    %1986 = vmatmul.bf16.gmra.mxu0 %v1114
    %v1987 = vpop.f32.mrf.mxu0
    %v1988 = vadd.f32 0.0, %v1987
    %v1989 = vpop.f32.mrf.mxu0
    %v1990 = vadd.f32 0.0, %v1989
    %1991 = vmatmul.bf16.gmra.mxu0 %v1117
    %v1992 = vpop.f32.mrf.mxu0
    %v1993 = vadd.f32 0.0, %v1992
    %v1994 = vpop.f32.mrf.mxu0
    %v1995 = vadd.f32 0.0, %v1994
    %1996 = vmatmul.bf16.gmra.mxu0 %v1120
    %v1997 = vpop.f32.mrf.mxu0
    %v1998 = vadd.f32 0.0, %v1997
    %v1999 = vpop.f32.mrf.mxu0
    %v2000 = vadd.f32 0.0, %v1999
    %2001 = vmatmul.bf16.gmra.mxu0 %v1123
    %v2002 = vpop.f32.mrf.mxu0
    %v2003 = vadd.f32 0.0, %v2002
    %v2004 = vpop.f32.mrf.mxu0
    %v2005 = vadd.f32 0.0, %v2004
    %2006 = vmatmul.bf16.gmra.mxu0 %v1126
    %v2007 = vpop.f32.mrf.mxu0
    %v2008 = vadd.f32 0.0, %v2007
    %v2009 = vpop.f32.mrf.mxu0
    %v2010 = vadd.f32 0.0, %v2009
    %2011 = vmatmul.bf16.gmra.mxu0 %v1129
    %v2012 = vpop.f32.mrf.mxu0
    %v2013 = vadd.f32 0.0, %v2012
    %v2014 = vpop.f32.mrf.mxu0
    %v2015 = vadd.f32 0.0, %v2014
    %2016 = vmatmul.bf16.gmra.mxu0 %v1132
    %v2017 = vpop.f32.mrf.mxu0
    %v2018 = vadd.f32 0.0, %v2017
    %v2019 = vpop.f32.mrf.mxu0
    %v2020 = vadd.f32 0.0, %v2019
    %2021 = vmatmul.bf16.gmra.mxu0 %v1135
    %v2022 = vpop.f32.mrf.mxu0
    %v2023 = vadd.f32 0.0, %v2022
    %v2024 = vpop.f32.mrf.mxu0
    %v2025 = vadd.f32 0.0, %v2024
    %2026 = vmatmul.bf16.gmra.mxu0 %v1935
    %v2027 = vpop.f32.mrf.mxu0
    %v2028 = vadd.f32 0.0, %v2027
    %v2029 = vpop.f32.mrf.mxu0
    %v2030 = vadd.f32 0.0, %v2029
    %2031 = vmatmul.bf16.gmra.mxu0 %v1138
    %v2032 = vpop.f32.mrf.mxu0
    %v2033 = vadd.f32 0.0, %v2032
    %v2034 = vpop.f32.mrf.mxu0
    %v2035 = vadd.f32 0.0, %v2034
    %2036 = vmatmul.bf16.gmra.mxu0 %v1141
    %v2037 = vpop.f32.mrf.mxu0
    %v2038 = vadd.f32 0.0, %v2037
    %v2039 = vpop.f32.mrf.mxu0
    %v2040 = vadd.f32 0.0, %v2039
    %2041 = vmatmul.bf16.gmra.mxu0 %v1144
    %v2042 = vpop.f32.mrf.mxu0
    %v2043 = vadd.f32 0.0, %v2042
    %v2044 = vpop.f32.mrf.mxu0
    %v2045 = vadd.f32 0.0, %v2044
    %2046 = vmatmul.bf16.gmra.mxu0 %v1147
    %v2047 = vpop.f32.mrf.mxu0
    %v2048 = vadd.f32 0.0, %v2047
    %v2049 = vpop.f32.mrf.mxu0
    %v2050 = vadd.f32 0.0, %v2049
    %2051 = vmatmul.bf16.gmra.mxu0 %v1150
    %v2052 = vpop.f32.mrf.mxu0
    %v2053 = vadd.f32 0.0, %v2052
    %v2054 = vpop.f32.mrf.mxu0
    %v2055 = vadd.f32 0.0, %v2054
    %2056 = vmatmul.bf16.gmra.mxu0 %v1153
    %v2057 = vpop.f32.mrf.mxu0
    %v2058 = vadd.f32 0.0, %v2057
    %v2059 = vpop.f32.mrf.mxu0
    %v2060 = vadd.f32 0.0, %v2059
    %2061 = vmatmul.bf16.gmra.mxu0 %v1156
    %v2062 = vpop.f32.mrf.mxu0
    %v2063 = vadd.f32 0.0, %v2062
    %v2064 = vpop.f32.mrf.mxu0
    %v2065 = vadd.f32 0.0, %v2064
    %2066 = vmatmul.bf16.gmra.mxu0 %v1159
    %v2067 = vpop.f32.mrf.mxu0
    %v2068 = vadd.f32 0.0, %v2067
    %v2069 = vpop.f32.mrf.mxu0
    %v2070 = vadd.f32 0.0, %v2069
    %2071 = vmatmul.bf16.gmra.mxu0 %v1162
    %v2072 = vpop.f32.mrf.mxu0
    %v2073 = vadd.f32 0.0, %v2072
    %v2074 = vpop.f32.mrf.mxu0
    %v2075 = vadd.f32 0.0, %v2074
    %2076 = vmatmul.bf16.gmra.mxu0 %v1165
    %v2077 = vpop.f32.mrf.mxu0
    %v2078 = vadd.f32 0.0, %v2077
    %v2079 = vpop.f32.mrf.mxu0
    %v2080 = vadd.f32 0.0, %v2079
    %2081 = vmatmul.bf16.gmra.mxu0 %v1168
    %v2082 = vpop.f32.mrf.mxu0
    %v2083 = vadd.f32 0.0, %v2082
    %v2084 = vpop.f32.mrf.mxu0
    %v2085 = vadd.f32 0.0, %v2084
    %2086 = vmatmul.bf16.gmra.mxu0 %v1171
    %v2087 = vpop.f32.mrf.mxu0
    %v2088 = vadd.f32 0.0, %v2087
    %v2089 = vpop.f32.mrf.mxu0
    %v2090 = vadd.f32 0.0, %v2089
    %2091 = vmatmul.bf16.gmra.mxu0 %v1174
    %v2092 = vpop.f32.mrf.mxu0
    %v2093 = vadd.f32 0.0, %v2092
    %v2094 = vpop.f32.mrf.mxu0
    %v2095 = vadd.f32 0.0, %v2094
    %2096 = vmatmul.bf16.gmra.mxu0 %v1177
    %v2097 = vpop.f32.mrf.mxu0
    %v2098 = vadd.f32 0.0, %v2097
    %v2099 = vpop.f32.mrf.mxu0
    %v2100 = vadd.f32 0.0, %v2099
    %2101 = vmatmul.bf16.gmra.mxu0 %v1180
    %v2102 = vpop.f32.mrf.mxu0
    %v2103 = vadd.f32 0.0, %v2102
    %v2104 = vpop.f32.mrf.mxu0
    %v2105 = vadd.f32 0.0, %v2104
    %2106 = vmatmul.bf16.gmra.mxu0 %v1938
    %v2107 = vpop.f32.mrf.mxu0
    %v2108 = vadd.f32 0.0, %v2107
    %v2109 = vpop.f32.mrf.mxu0
    %v2110 = vadd.f32 0.0, %v2109
    %2111 = vdwg.mxu0
    %v2112 = vadd.f32 %v1868, %v1953
    %v2113 = vadd.f32 %v1869, %v1955
    %v2114 = vadd.f32 %v1870, %v1958
    %v2115 = vadd.f32 %v1871, %v1960
    %v2116 = vadd.f32 %v1872, %v1963
    %v2117 = vadd.f32 %v1873, %v1965
    %v2118 = vadd.f32 %v1874, %v1968
    %v2119 = vadd.f32 %v1875, %v1970
    %v2120 = vadd.f32 %v1876, %v1973
    %v2121 = vadd.f32 %v1877, %v1975
    %v2122 = vadd.f32 %v1878, %v1978
    %v2123 = vadd.f32 %v1879, %v1980
    %v2124 = vadd.f32 %v1880, %v1983
    %v2125 = vadd.f32 %v1881, %v1985
    %v2126 = vadd.f32 %v1882, %v1988
    %v2127 = vadd.f32 %v1883, %v1990
    %v2128 = vadd.f32 %v1884, %v1993
    %v2129 = vadd.f32 %v1885, %v1995
    %v2130 = vadd.f32 %v1886, %v1998
    %v2131 = vadd.f32 %v1887, %v2000
    %v2132 = vadd.f32 %v1888, %v2003
    %v2133 = vadd.f32 %v1889, %v2005
    %v2134 = vadd.f32 %v1890, %v2008
    %v2135 = vadd.f32 %v1891, %v2010
    %v2136 = vadd.f32 %v1892, %v2013
    %v2137 = vadd.f32 %v1893, %v2015
    %v2138 = vadd.f32 %v1894, %v2018
    %v2139 = vadd.f32 %v1895, %v2020
    %v2140 = vadd.f32 %v1896, %v2023
    %v2141 = vadd.f32 %v1897, %v2025
    %v2142 = vadd.f32 %v1898, %v2028
    %v2143 = vadd.f32 %v1899, %v2030
    %v2144 = vadd.f32 %v1900, %v2033
    %v2145 = vadd.f32 %v1901, %v2035
    %v2146 = vadd.f32 %v1902, %v2038
    %v2147 = vadd.f32 %v1903, %v2040
    %v2148 = vadd.f32 %v1904, %v2043
    %v2149 = vadd.f32 %v1905, %v2045
    %v2150 = vadd.f32 %v1906, %v2048
    %v2151 = vadd.f32 %v1907, %v2050
    %v2152 = vadd.f32 %v1908, %v2053
    %v2153 = vadd.f32 %v1909, %v2055
    %v2154 = vadd.f32 %v1910, %v2058
    %v2155 = vadd.f32 %v1911, %v2060
    %v2156 = vadd.f32 %v1912, %v2063
    %v2157 = vadd.f32 %v1913, %v2065
    %v2158 = vadd.f32 %v1914, %v2068
    %v2159 = vadd.f32 %v1915, %v2070
    %v2160 = vadd.f32 %v1916, %v2073
    %v2161 = vadd.f32 %v1917, %v2075
    %v2162 = vadd.f32 %v1918, %v2078
    %v2163 = vadd.f32 %v1919, %v2080
    %v2164 = vadd.f32 %v1920, %v2083
    %v2165 = vadd.f32 %v1921, %v2085
    %v2166 = vadd.f32 %v1922, %v2088
    %v2167 = vadd.f32 %v1923, %v2090
    %v2168 = vadd.f32 %v1924, %v2093
    %v2169 = vadd.f32 %v1925, %v2095
    %v2170 = vadd.f32 %v1926, %v2098
    %v2171 = vadd.f32 %v1927, %v2100
    %v2172 = vadd.f32 %v1928, %v2103
    %v2173 = vadd.f32 %v1929, %v2105
    %v2174 = vadd.f32 %v1930, %v2108
    %v2175 = vadd.f32 %v1931, %v2110
    %v2180 = vrot.slane %v428, 1
    %v2181 = vrot.slane %v265, 1
    %v2182 = vsel %vm571, %v2180, %v2181
    %v2183 = vrot.slane %v461, 1
    %v2184 = vsel %vm571, %v2181, %v2183
    %v2185 = vrot.slane %v444, 1
    %v2186 = vrot.slane %v313, 1
    %v2187 = vsel %vm571, %v2185, %v2186
    %v2188 = vrot.slane %v477, 1
    %v2189 = vsel %vm571, %v2186, %v2188
    %v2194 = vpack.c.bf16 %v2184, %v2182
    %v2195 = vpack.c.bf16 %v2189, %v2187
    %v2197 = vsel %vm820, %v2194, 0
    %v2200 = vsel %vm820, %v2195, 0
    %v2203 = vand.u32 %v143, %v916
    %2205 = vmatpush.bf16.msra.mxu0 0
    %2206 = vmatpush.bf16.msra.mxu0 0
    %2207 = vmatpush.bf16.msra.mxu0 0
    %2208 = vmatpush.bf16.msra.mxu0 0
    %2209 = vmatpush.bf16.msra.mxu0 0
    %2210 = vmatpush.bf16.msra.mxu0 0
    %2211 = vmatpush.bf16.msra.mxu0 0
    %2212 = vmatpush.bf16.msra.mxu0 %v2203
    %2213 = vmatmul.bf16.gmra.mxu0 %v825
    %v2214 = vpop.f32.mrf.mxu0
    %v2215 = vadd.f32 0.0, %v2214
    %v2216 = vpop.f32.mrf.mxu0
    %v2217 = vadd.f32 0.0, %v2216
    %2218 = vmatmul.bf16.gmra.mxu0 %v828
    %v2219 = vpop.f32.mrf.mxu0
    %v2220 = vadd.f32 0.0, %v2219
    %v2221 = vpop.f32.mrf.mxu0
    %v2222 = vadd.f32 0.0, %v2221
    %2223 = vmatmul.bf16.gmra.mxu0 %v831
    %v2224 = vpop.f32.mrf.mxu0
    %v2225 = vadd.f32 0.0, %v2224
    %v2226 = vpop.f32.mrf.mxu0
    %v2227 = vadd.f32 0.0, %v2226
    %2228 = vmatmul.bf16.gmra.mxu0 %v834
    %v2229 = vpop.f32.mrf.mxu0
    %v2230 = vadd.f32 0.0, %v2229
    %v2231 = vpop.f32.mrf.mxu0
    %v2232 = vadd.f32 0.0, %v2231
    %2233 = vmatmul.bf16.gmra.mxu0 %v837
    %v2234 = vpop.f32.mrf.mxu0
    %v2235 = vadd.f32 0.0, %v2234
    %v2236 = vpop.f32.mrf.mxu0
    %v2237 = vadd.f32 0.0, %v2236
    %2238 = vmatmul.bf16.gmra.mxu0 %v840
    %v2239 = vpop.f32.mrf.mxu0
    %v2240 = vadd.f32 0.0, %v2239
    %v2241 = vpop.f32.mrf.mxu0
    %v2242 = vadd.f32 0.0, %v2241
    %2243 = vmatmul.bf16.gmra.mxu0 %v843
    %v2244 = vpop.f32.mrf.mxu0
    %v2245 = vadd.f32 0.0, %v2244
    %v2246 = vpop.f32.mrf.mxu0
    %v2247 = vadd.f32 0.0, %v2246
    %2248 = vmatmul.bf16.gmra.mxu0 %v846
    %v2249 = vpop.f32.mrf.mxu0
    %v2250 = vadd.f32 0.0, %v2249
    %v2251 = vpop.f32.mrf.mxu0
    %v2252 = vadd.f32 0.0, %v2251
    %2253 = vmatmul.bf16.gmra.mxu0 %v849
    %v2254 = vpop.f32.mrf.mxu0
    %v2255 = vadd.f32 0.0, %v2254
    %v2256 = vpop.f32.mrf.mxu0
    %v2257 = vadd.f32 0.0, %v2256
    %2258 = vmatmul.bf16.gmra.mxu0 %v852
    %v2259 = vpop.f32.mrf.mxu0
    %v2260 = vadd.f32 0.0, %v2259
    %v2261 = vpop.f32.mrf.mxu0
    %v2262 = vadd.f32 0.0, %v2261
    %2263 = vmatmul.bf16.gmra.mxu0 %v855
    %v2264 = vpop.f32.mrf.mxu0
    %v2265 = vadd.f32 0.0, %v2264
    %v2266 = vpop.f32.mrf.mxu0
    %v2267 = vadd.f32 0.0, %v2266
    %2268 = vmatmul.bf16.gmra.mxu0 %v858
    %v2269 = vpop.f32.mrf.mxu0
    %v2270 = vadd.f32 0.0, %v2269
    %v2271 = vpop.f32.mrf.mxu0
    %v2272 = vadd.f32 0.0, %v2271
    %2273 = vmatmul.bf16.gmra.mxu0 %v861
    %v2274 = vpop.f32.mrf.mxu0
    %v2275 = vadd.f32 0.0, %v2274
    %v2276 = vpop.f32.mrf.mxu0
    %v2277 = vadd.f32 0.0, %v2276
    %2278 = vmatmul.bf16.gmra.mxu0 %v864
    %v2279 = vpop.f32.mrf.mxu0
    %v2280 = vadd.f32 0.0, %v2279
    %v2281 = vpop.f32.mrf.mxu0
    %v2282 = vadd.f32 0.0, %v2281
    %2283 = vmatmul.bf16.gmra.mxu0 %v867
    %v2284 = vpop.f32.mrf.mxu0
    %v2285 = vadd.f32 0.0, %v2284
    %v2286 = vpop.f32.mrf.mxu0
    %v2287 = vadd.f32 0.0, %v2286
    %2288 = vmatmul.bf16.gmra.mxu0 %v2197
    %v2289 = vpop.f32.mrf.mxu0
    %v2290 = vadd.f32 0.0, %v2289
    %v2291 = vpop.f32.mrf.mxu0
    %v2292 = vadd.f32 0.0, %v2291
    %2293 = vmatmul.bf16.gmra.mxu0 %v870
    %v2294 = vpop.f32.mrf.mxu0
    %v2295 = vadd.f32 0.0, %v2294
    %v2296 = vpop.f32.mrf.mxu0
    %v2297 = vadd.f32 0.0, %v2296
    %2298 = vmatmul.bf16.gmra.mxu0 %v873
    %v2299 = vpop.f32.mrf.mxu0
    %v2300 = vadd.f32 0.0, %v2299
    %v2301 = vpop.f32.mrf.mxu0
    %v2302 = vadd.f32 0.0, %v2301
    %2303 = vmatmul.bf16.gmra.mxu0 %v876
    %v2304 = vpop.f32.mrf.mxu0
    %v2305 = vadd.f32 0.0, %v2304
    %v2306 = vpop.f32.mrf.mxu0
    %v2307 = vadd.f32 0.0, %v2306
    %2308 = vmatmul.bf16.gmra.mxu0 %v879
    %v2309 = vpop.f32.mrf.mxu0
    %v2310 = vadd.f32 0.0, %v2309
    %v2311 = vpop.f32.mrf.mxu0
    %v2312 = vadd.f32 0.0, %v2311
    %2313 = vmatmul.bf16.gmra.mxu0 %v882
    %v2314 = vpop.f32.mrf.mxu0
    %v2315 = vadd.f32 0.0, %v2314
    %v2316 = vpop.f32.mrf.mxu0
    %v2317 = vadd.f32 0.0, %v2316
    %2318 = vmatmul.bf16.gmra.mxu0 %v885
    %v2319 = vpop.f32.mrf.mxu0
    %v2320 = vadd.f32 0.0, %v2319
    %v2321 = vpop.f32.mrf.mxu0
    %v2322 = vadd.f32 0.0, %v2321
    %2323 = vmatmul.bf16.gmra.mxu0 %v888
    %v2324 = vpop.f32.mrf.mxu0
    %v2325 = vadd.f32 0.0, %v2324
    %v2326 = vpop.f32.mrf.mxu0
    %v2327 = vadd.f32 0.0, %v2326
    %2328 = vmatmul.bf16.gmra.mxu0 %v891
    %v2329 = vpop.f32.mrf.mxu0
    %v2330 = vadd.f32 0.0, %v2329
    %v2331 = vpop.f32.mrf.mxu0
    %v2332 = vadd.f32 0.0, %v2331
    %2333 = vmatmul.bf16.gmra.mxu0 %v894
    %v2334 = vpop.f32.mrf.mxu0
    %v2335 = vadd.f32 0.0, %v2334
    %v2336 = vpop.f32.mrf.mxu0
    %v2337 = vadd.f32 0.0, %v2336
    %2338 = vmatmul.bf16.gmra.mxu0 %v897
    %v2339 = vpop.f32.mrf.mxu0
    %v2340 = vadd.f32 0.0, %v2339
    %v2341 = vpop.f32.mrf.mxu0
    %v2342 = vadd.f32 0.0, %v2341
    %2343 = vmatmul.bf16.gmra.mxu0 %v900
    %v2344 = vpop.f32.mrf.mxu0
    %v2345 = vadd.f32 0.0, %v2344
    %v2346 = vpop.f32.mrf.mxu0
    %v2347 = vadd.f32 0.0, %v2346
    %2348 = vmatmul.bf16.gmra.mxu0 %v903
    %v2349 = vpop.f32.mrf.mxu0
    %v2350 = vadd.f32 0.0, %v2349
    %v2351 = vpop.f32.mrf.mxu0
    %v2352 = vadd.f32 0.0, %v2351
    %2353 = vmatmul.bf16.gmra.mxu0 %v906
    %v2354 = vpop.f32.mrf.mxu0
    %v2355 = vadd.f32 0.0, %v2354
    %v2356 = vpop.f32.mrf.mxu0
    %v2357 = vadd.f32 0.0, %v2356
    %2358 = vmatmul.bf16.gmra.mxu0 %v909
    %v2359 = vpop.f32.mrf.mxu0
    %v2360 = vadd.f32 0.0, %v2359
    %v2361 = vpop.f32.mrf.mxu0
    %v2362 = vadd.f32 0.0, %v2361
    %2363 = vmatmul.bf16.gmra.mxu0 %v912
    %v2364 = vpop.f32.mrf.mxu0
    %v2365 = vadd.f32 0.0, %v2364
    %v2366 = vpop.f32.mrf.mxu0
    %v2367 = vadd.f32 0.0, %v2366
    %2368 = vmatmul.bf16.gmra.mxu0 %v2200
    %v2369 = vpop.f32.mrf.mxu0
    %v2370 = vadd.f32 0.0, %v2369
    %v2371 = vpop.f32.mrf.mxu0
    %v2372 = vadd.f32 0.0, %v2371
    %2373 = vdwg.mxu0
    %v2374 = vadd.f32 %v2112, %v2215
    %v2375 = vadd.f32 %v2113, %v2217
    %v2376 = vadd.f32 %v2114, %v2220
    %v2377 = vadd.f32 %v2115, %v2222
    %v2378 = vadd.f32 %v2116, %v2225
    %v2379 = vadd.f32 %v2117, %v2227
    %v2380 = vadd.f32 %v2118, %v2230
    %v2381 = vadd.f32 %v2119, %v2232
    %v2382 = vadd.f32 %v2120, %v2235
    %v2383 = vadd.f32 %v2121, %v2237
    %v2384 = vadd.f32 %v2122, %v2240
    %v2385 = vadd.f32 %v2123, %v2242
    %v2386 = vadd.f32 %v2124, %v2245
    %v2387 = vadd.f32 %v2125, %v2247
    %v2388 = vadd.f32 %v2126, %v2250
    %v2389 = vadd.f32 %v2127, %v2252
    %v2390 = vadd.f32 %v2128, %v2255
    %v2391 = vadd.f32 %v2129, %v2257
    %v2392 = vadd.f32 %v2130, %v2260
    %v2393 = vadd.f32 %v2131, %v2262
    %v2394 = vadd.f32 %v2132, %v2265
    %v2395 = vadd.f32 %v2133, %v2267
    %v2396 = vadd.f32 %v2134, %v2270
    %v2397 = vadd.f32 %v2135, %v2272
    %v2398 = vadd.f32 %v2136, %v2275
    %v2399 = vadd.f32 %v2137, %v2277
    %v2400 = vadd.f32 %v2138, %v2280
    %v2401 = vadd.f32 %v2139, %v2282
    %v2402 = vadd.f32 %v2140, %v2285
    %v2403 = vadd.f32 %v2141, %v2287
    %v2404 = vadd.f32 %v2142, %v2290
    %v2405 = vadd.f32 %v2143, %v2292
    %v2406 = vadd.f32 %v2144, %v2295
    %v2407 = vadd.f32 %v2145, %v2297
    %v2408 = vadd.f32 %v2146, %v2300
    %v2409 = vadd.f32 %v2147, %v2302
    %v2410 = vadd.f32 %v2148, %v2305
    %v2411 = vadd.f32 %v2149, %v2307
    %v2412 = vadd.f32 %v2150, %v2310
    %v2413 = vadd.f32 %v2151, %v2312
    %v2414 = vadd.f32 %v2152, %v2315
    %v2415 = vadd.f32 %v2153, %v2317
    %v2416 = vadd.f32 %v2154, %v2320
    %v2417 = vadd.f32 %v2155, %v2322
    %v2418 = vadd.f32 %v2156, %v2325
    %v2419 = vadd.f32 %v2157, %v2327
    %v2420 = vadd.f32 %v2158, %v2330
    %v2421 = vadd.f32 %v2159, %v2332
    %v2422 = vadd.f32 %v2160, %v2335
    %v2423 = vadd.f32 %v2161, %v2337
    %v2424 = vadd.f32 %v2162, %v2340
    %v2425 = vadd.f32 %v2163, %v2342
    %v2426 = vadd.f32 %v2164, %v2345
    %v2427 = vadd.f32 %v2165, %v2347
    %v2428 = vadd.f32 %v2166, %v2350
    %v2429 = vadd.f32 %v2167, %v2352
    %v2430 = vadd.f32 %v2168, %v2355
    %v2431 = vadd.f32 %v2169, %v2357
    %v2432 = vadd.f32 %v2170, %v2360
    %v2433 = vadd.f32 %v2171, %v2362
    %v2434 = vadd.f32 %v2172, %v2365
    %v2435 = vadd.f32 %v2173, %v2367
    %v2436 = vadd.f32 %v2174, %v2370
    %v2437 = vadd.f32 %v2175, %v2372
    %v2438 = vrot.slane %v428, 2
    %v2439 = vrot.slane %v265, 2
    %v2440 = vsel %vm1354, %v2438, %v2439
    %v2441 = vrot.slane %v461, 2
    %v2442 = vsel %vm1354, %v2439, %v2441
    %v2443 = vrot.slane %v444, 2
    %v2444 = vrot.slane %v313, 2
    %v2445 = vsel %vm1354, %v2443, %v2444
    %v2446 = vrot.slane %v477, 2
    %v2447 = vsel %vm1354, %v2444, %v2446
    %v2452 = vpack.c.bf16 %v2442, %v2440
    %v2453 = vpack.c.bf16 %v2447, %v2445
    %v2455 = vsel %vm820, %v2452, 0
    %v2458 = vsel %vm820, %v2453, 0
    %v2461 = vand.u32 %v144, %v916
    %2463 = vmatpush.bf16.msra.mxu0 0
    %2464 = vmatpush.bf16.msra.mxu0 0
    %2465 = vmatpush.bf16.msra.mxu0 0
    %2466 = vmatpush.bf16.msra.mxu0 0
    %2467 = vmatpush.bf16.msra.mxu0 0
    %2468 = vmatpush.bf16.msra.mxu0 0
    %2469 = vmatpush.bf16.msra.mxu0 0
    %2470 = vmatpush.bf16.msra.mxu0 %v2461
    %2471 = vmatmul.bf16.gmra.mxu0 %v1607
    %v2472 = vpop.f32.mrf.mxu0
    %v2473 = vadd.f32 0.0, %v2472
    %v2474 = vpop.f32.mrf.mxu0
    %v2475 = vadd.f32 0.0, %v2474
    %2476 = vmatmul.bf16.gmra.mxu0 %v1610
    %v2477 = vpop.f32.mrf.mxu0
    %v2478 = vadd.f32 0.0, %v2477
    %v2479 = vpop.f32.mrf.mxu0
    %v2480 = vadd.f32 0.0, %v2479
    %2481 = vmatmul.bf16.gmra.mxu0 %v1613
    %v2482 = vpop.f32.mrf.mxu0
    %v2483 = vadd.f32 0.0, %v2482
    %v2484 = vpop.f32.mrf.mxu0
    %v2485 = vadd.f32 0.0, %v2484
    %2486 = vmatmul.bf16.gmra.mxu0 %v1616
    %v2487 = vpop.f32.mrf.mxu0
    %v2488 = vadd.f32 0.0, %v2487
    %v2489 = vpop.f32.mrf.mxu0
    %v2490 = vadd.f32 0.0, %v2489
    %2491 = vmatmul.bf16.gmra.mxu0 %v1619
    %v2492 = vpop.f32.mrf.mxu0
    %v2493 = vadd.f32 0.0, %v2492
    %v2494 = vpop.f32.mrf.mxu0
    %v2495 = vadd.f32 0.0, %v2494
    %2496 = vmatmul.bf16.gmra.mxu0 %v1622
    %v2497 = vpop.f32.mrf.mxu0
    %v2498 = vadd.f32 0.0, %v2497
    %v2499 = vpop.f32.mrf.mxu0
    %v2500 = vadd.f32 0.0, %v2499
    %2501 = vmatmul.bf16.gmra.mxu0 %v1625
    %v2502 = vpop.f32.mrf.mxu0
    %v2503 = vadd.f32 0.0, %v2502
    %v2504 = vpop.f32.mrf.mxu0
    %v2505 = vadd.f32 0.0, %v2504
    %2506 = vmatmul.bf16.gmra.mxu0 %v1628
    %v2507 = vpop.f32.mrf.mxu0
    %v2508 = vadd.f32 0.0, %v2507
    %v2509 = vpop.f32.mrf.mxu0
    %v2510 = vadd.f32 0.0, %v2509
    %2511 = vmatmul.bf16.gmra.mxu0 %v1631
    %v2512 = vpop.f32.mrf.mxu0
    %v2513 = vadd.f32 0.0, %v2512
    %v2514 = vpop.f32.mrf.mxu0
    %v2515 = vadd.f32 0.0, %v2514
    %2516 = vmatmul.bf16.gmra.mxu0 %v1634
    %v2517 = vpop.f32.mrf.mxu0
    %v2518 = vadd.f32 0.0, %v2517
    %v2519 = vpop.f32.mrf.mxu0
    %v2520 = vadd.f32 0.0, %v2519
    %2521 = vmatmul.bf16.gmra.mxu0 %v1637
    %v2522 = vpop.f32.mrf.mxu0
    %v2523 = vadd.f32 0.0, %v2522
    %v2524 = vpop.f32.mrf.mxu0
    %v2525 = vadd.f32 0.0, %v2524
    %2526 = vmatmul.bf16.gmra.mxu0 %v1640
    %v2527 = vpop.f32.mrf.mxu0
    %v2528 = vadd.f32 0.0, %v2527
    %v2529 = vpop.f32.mrf.mxu0
    %v2530 = vadd.f32 0.0, %v2529
    %2531 = vmatmul.bf16.gmra.mxu0 %v1643
    %v2532 = vpop.f32.mrf.mxu0
    %v2533 = vadd.f32 0.0, %v2532
    %v2534 = vpop.f32.mrf.mxu0
    %v2535 = vadd.f32 0.0, %v2534
    %2536 = vmatmul.bf16.gmra.mxu0 %v1646
    %v2537 = vpop.f32.mrf.mxu0
    %v2538 = vadd.f32 0.0, %v2537
    %v2539 = vpop.f32.mrf.mxu0
    %v2540 = vadd.f32 0.0, %v2539
    %2541 = vmatmul.bf16.gmra.mxu0 %v1649
    %v2542 = vpop.f32.mrf.mxu0
    %v2543 = vadd.f32 0.0, %v2542
    %v2544 = vpop.f32.mrf.mxu0
    %v2545 = vadd.f32 0.0, %v2544
    %2546 = vmatmul.bf16.gmra.mxu0 %v2455
    %v2547 = vpop.f32.mrf.mxu0
    %v2548 = vadd.f32 0.0, %v2547
    %v2549 = vpop.f32.mrf.mxu0
    %v2550 = vadd.f32 0.0, %v2549
    %2551 = vmatmul.bf16.gmra.mxu0 %v1652
    %v2552 = vpop.f32.mrf.mxu0
    %v2553 = vadd.f32 0.0, %v2552
    %v2554 = vpop.f32.mrf.mxu0
    %v2555 = vadd.f32 0.0, %v2554
    %2556 = vmatmul.bf16.gmra.mxu0 %v1655
    %v2557 = vpop.f32.mrf.mxu0
    %v2558 = vadd.f32 0.0, %v2557
    %v2559 = vpop.f32.mrf.mxu0
    %v2560 = vadd.f32 0.0, %v2559
    %2561 = vmatmul.bf16.gmra.mxu0 %v1658
    %v2562 = vpop.f32.mrf.mxu0
    %v2563 = vadd.f32 0.0, %v2562
    %v2564 = vpop.f32.mrf.mxu0
    %v2565 = vadd.f32 0.0, %v2564
    %2566 = vmatmul.bf16.gmra.mxu0 %v1661
    %v2567 = vpop.f32.mrf.mxu0
    %v2568 = vadd.f32 0.0, %v2567
    %v2569 = vpop.f32.mrf.mxu0
    %v2570 = vadd.f32 0.0, %v2569
    %2571 = vmatmul.bf16.gmra.mxu0 %v1664
    %v2572 = vpop.f32.mrf.mxu0
    %v2573 = vadd.f32 0.0, %v2572
    %v2574 = vpop.f32.mrf.mxu0
    %v2575 = vadd.f32 0.0, %v2574
    %2576 = vmatmul.bf16.gmra.mxu0 %v1667
    %v2577 = vpop.f32.mrf.mxu0
    %v2578 = vadd.f32 0.0, %v2577
    %v2579 = vpop.f32.mrf.mxu0
    %v2580 = vadd.f32 0.0, %v2579
    %2581 = vmatmul.bf16.gmra.mxu0 %v1670
    %v2582 = vpop.f32.mrf.mxu0
    %v2583 = vadd.f32 0.0, %v2582
    %v2584 = vpop.f32.mrf.mxu0
    %v2585 = vadd.f32 0.0, %v2584
    %2586 = vmatmul.bf16.gmra.mxu0 %v1673
    %v2587 = vpop.f32.mrf.mxu0
    %v2588 = vadd.f32 0.0, %v2587
    %v2589 = vpop.f32.mrf.mxu0
    %v2590 = vadd.f32 0.0, %v2589
    %2591 = vmatmul.bf16.gmra.mxu0 %v1676
    %v2592 = vpop.f32.mrf.mxu0
    %v2593 = vadd.f32 0.0, %v2592
    %v2594 = vpop.f32.mrf.mxu0
    %v2595 = vadd.f32 0.0, %v2594
    %2596 = vmatmul.bf16.gmra.mxu0 %v1679
    %v2597 = vpop.f32.mrf.mxu0
    %v2598 = vadd.f32 0.0, %v2597
    %v2599 = vpop.f32.mrf.mxu0
    %v2600 = vadd.f32 0.0, %v2599
    %2601 = vmatmul.bf16.gmra.mxu0 %v1682
    %v2602 = vpop.f32.mrf.mxu0
    %v2603 = vadd.f32 0.0, %v2602
    %v2604 = vpop.f32.mrf.mxu0
    %v2605 = vadd.f32 0.0, %v2604
    %2606 = vmatmul.bf16.gmra.mxu0 %v1685
    %v2607 = vpop.f32.mrf.mxu0
    %v2608 = vadd.f32 0.0, %v2607
    %v2609 = vpop.f32.mrf.mxu0
    %v2610 = vadd.f32 0.0, %v2609
    %2611 = vmatmul.bf16.gmra.mxu0 %v1688
    %v2612 = vpop.f32.mrf.mxu0
    %v2613 = vadd.f32 0.0, %v2612
    %v2614 = vpop.f32.mrf.mxu0
    %v2615 = vadd.f32 0.0, %v2614
    %2616 = vmatmul.bf16.gmra.mxu0 %v1691
    %v2617 = vpop.f32.mrf.mxu0
    %v2618 = vadd.f32 0.0, %v2617
    %v2619 = vpop.f32.mrf.mxu0
    %v2620 = vadd.f32 0.0, %v2619
    %2621 = vmatmul.bf16.gmra.mxu0 %v1694
    %v2622 = vpop.f32.mrf.mxu0
    %v2623 = vadd.f32 0.0, %v2622
    %v2624 = vpop.f32.mrf.mxu0
    %v2625 = vadd.f32 0.0, %v2624
    %2626 = vmatmul.bf16.gmra.mxu0 %v2458
    %v2627 = vpop.f32.mrf.mxu0
    %v2628 = vadd.f32 0.0, %v2627
    %v2629 = vpop.f32.mrf.mxu0
    %v2630 = vadd.f32 0.0, %v2629
    %2631 = vdwg.mxu0
    %v2632 = vadd.f32 %v2374, %v2473
    %v2633 = vadd.f32 %v2375, %v2475
    %v2634 = vadd.f32 %v2376, %v2478
    %v2635 = vadd.f32 %v2377, %v2480
    %v2636 = vadd.f32 %v2378, %v2483
    %v2637 = vadd.f32 %v2379, %v2485
    %v2638 = vadd.f32 %v2380, %v2488
    %v2639 = vadd.f32 %v2381, %v2490
    %v2640 = vadd.f32 %v2382, %v2493
    %v2641 = vadd.f32 %v2383, %v2495
    %v2642 = vadd.f32 %v2384, %v2498
    %v2643 = vadd.f32 %v2385, %v2500
    %v2644 = vadd.f32 %v2386, %v2503
    %v2645 = vadd.f32 %v2387, %v2505
    %v2646 = vadd.f32 %v2388, %v2508
    %v2647 = vadd.f32 %v2389, %v2510
    %v2648 = vadd.f32 %v2390, %v2513
    %v2649 = vadd.f32 %v2391, %v2515
    %v2650 = vadd.f32 %v2392, %v2518
    %v2651 = vadd.f32 %v2393, %v2520
    %v2652 = vadd.f32 %v2394, %v2523
    %v2653 = vadd.f32 %v2395, %v2525
    %v2654 = vadd.f32 %v2396, %v2528
    %v2655 = vadd.f32 %v2397, %v2530
    %v2656 = vadd.f32 %v2398, %v2533
    %v2657 = vadd.f32 %v2399, %v2535
    %v2658 = vadd.f32 %v2400, %v2538
    %v2659 = vadd.f32 %v2401, %v2540
    %v2660 = vadd.f32 %v2402, %v2543
    %v2661 = vadd.f32 %v2403, %v2545
    %v2662 = vadd.f32 %v2404, %v2548
    %v2663 = vadd.f32 %v2405, %v2550
    %v2664 = vadd.f32 %v2406, %v2553
    %v2665 = vadd.f32 %v2407, %v2555
    %v2666 = vadd.f32 %v2408, %v2558
    %v2667 = vadd.f32 %v2409, %v2560
    %v2668 = vadd.f32 %v2410, %v2563
    %v2669 = vadd.f32 %v2411, %v2565
    %v2670 = vadd.f32 %v2412, %v2568
    %v2671 = vadd.f32 %v2413, %v2570
    %v2672 = vadd.f32 %v2414, %v2573
    %v2673 = vadd.f32 %v2415, %v2575
    %v2674 = vadd.f32 %v2416, %v2578
    %v2675 = vadd.f32 %v2417, %v2580
    %v2676 = vadd.f32 %v2418, %v2583
    %v2677 = vadd.f32 %v2419, %v2585
    %v2678 = vadd.f32 %v2420, %v2588
    %v2679 = vadd.f32 %v2421, %v2590
    %v2680 = vadd.f32 %v2422, %v2593
    %v2681 = vadd.f32 %v2423, %v2595
    %v2682 = vadd.f32 %v2424, %v2598
    %v2683 = vadd.f32 %v2425, %v2600
    %v2684 = vadd.f32 %v2426, %v2603
    %v2685 = vadd.f32 %v2427, %v2605
    %v2686 = vadd.f32 %v2428, %v2608
    %v2687 = vadd.f32 %v2429, %v2610
    %v2688 = vadd.f32 %v2430, %v2613
    %v2689 = vadd.f32 %v2431, %v2615
    %v2690 = vadd.f32 %v2432, %v2618
    %v2691 = vadd.f32 %v2433, %v2620
    %v2692 = vadd.f32 %v2434, %v2623
    %v2693 = vadd.f32 %v2435, %v2625
    %v2694 = vadd.f32 %v2436, %v2628
    %v2695 = vadd.f32 %v2437, %v2630
    %v2697 = vand.u32 %v145, %v916
    %2699 = vmatpush.bf16.msra.mxu0 0
    %2700 = vmatpush.bf16.msra.mxu0 0
    %2701 = vmatpush.bf16.msra.mxu0 0
    %2702 = vmatpush.bf16.msra.mxu0 0
    %2703 = vmatpush.bf16.msra.mxu0 0
    %2704 = vmatpush.bf16.msra.mxu0 0
    %2705 = vmatpush.bf16.msra.mxu0 0
    %2706 = vmatpush.bf16.msra.mxu0 %v2697
    %2707 = vmatmul.bf16.gmra.mxu0 %v1096
    %v2708 = vpop.f32.mrf.mxu0
    %v2709 = vadd.f32 0.0, %v2708
    %v2710 = vpop.f32.mrf.mxu0
    %v2711 = vadd.f32 0.0, %v2710
    %2712 = vmatmul.bf16.gmra.mxu0 %v1099
    %v2713 = vpop.f32.mrf.mxu0
    %v2714 = vadd.f32 0.0, %v2713
    %v2715 = vpop.f32.mrf.mxu0
    %v2716 = vadd.f32 0.0, %v2715
    %2717 = vmatmul.bf16.gmra.mxu0 %v1102
    %v2718 = vpop.f32.mrf.mxu0
    %v2719 = vadd.f32 0.0, %v2718
    %v2720 = vpop.f32.mrf.mxu0
    %v2721 = vadd.f32 0.0, %v2720
    %2722 = vmatmul.bf16.gmra.mxu0 %v1105
    %v2723 = vpop.f32.mrf.mxu0
    %v2724 = vadd.f32 0.0, %v2723
    %v2725 = vpop.f32.mrf.mxu0
    %v2726 = vadd.f32 0.0, %v2725
    %2727 = vmatmul.bf16.gmra.mxu0 %v1108
    %v2728 = vpop.f32.mrf.mxu0
    %v2729 = vadd.f32 0.0, %v2728
    %v2730 = vpop.f32.mrf.mxu0
    %v2731 = vadd.f32 0.0, %v2730
    %2732 = vmatmul.bf16.gmra.mxu0 %v1111
    %v2733 = vpop.f32.mrf.mxu0
    %v2734 = vadd.f32 0.0, %v2733
    %v2735 = vpop.f32.mrf.mxu0
    %v2736 = vadd.f32 0.0, %v2735
    %2737 = vmatmul.bf16.gmra.mxu0 %v1114
    %v2738 = vpop.f32.mrf.mxu0
    %v2739 = vadd.f32 0.0, %v2738
    %v2740 = vpop.f32.mrf.mxu0
    %v2741 = vadd.f32 0.0, %v2740
    %2742 = vmatmul.bf16.gmra.mxu0 %v1117
    %v2743 = vpop.f32.mrf.mxu0
    %v2744 = vadd.f32 0.0, %v2743
    %v2745 = vpop.f32.mrf.mxu0
    %v2746 = vadd.f32 0.0, %v2745
    %2747 = vmatmul.bf16.gmra.mxu0 %v1120
    %v2748 = vpop.f32.mrf.mxu0
    %v2749 = vadd.f32 0.0, %v2748
    %v2750 = vpop.f32.mrf.mxu0
    %v2751 = vadd.f32 0.0, %v2750
    %2752 = vmatmul.bf16.gmra.mxu0 %v1123
    %v2753 = vpop.f32.mrf.mxu0
    %v2754 = vadd.f32 0.0, %v2753
    %v2755 = vpop.f32.mrf.mxu0
    %v2756 = vadd.f32 0.0, %v2755
    %2757 = vmatmul.bf16.gmra.mxu0 %v1126
    %v2758 = vpop.f32.mrf.mxu0
    %v2759 = vadd.f32 0.0, %v2758
    %v2760 = vpop.f32.mrf.mxu0
    %v2761 = vadd.f32 0.0, %v2760
    %2762 = vmatmul.bf16.gmra.mxu0 %v1129
    %v2763 = vpop.f32.mrf.mxu0
    %v2764 = vadd.f32 0.0, %v2763
    %v2765 = vpop.f32.mrf.mxu0
    %v2766 = vadd.f32 0.0, %v2765
    %2767 = vmatmul.bf16.gmra.mxu0 %v1132
    %v2768 = vpop.f32.mrf.mxu0
    %v2769 = vadd.f32 0.0, %v2768
    %v2770 = vpop.f32.mrf.mxu0
    %v2771 = vadd.f32 0.0, %v2770
    %2772 = vmatmul.bf16.gmra.mxu0 %v1135
    %v2773 = vpop.f32.mrf.mxu0
    %v2774 = vadd.f32 0.0, %v2773
    %v2775 = vpop.f32.mrf.mxu0
    %v2776 = vadd.f32 0.0, %v2775
    %2777 = vmatmul.bf16.gmra.mxu0 %v1935
    %v2778 = vpop.f32.mrf.mxu0
    %v2779 = vadd.f32 0.0, %v2778
    %v2780 = vpop.f32.mrf.mxu0
    %v2781 = vadd.f32 0.0, %v2780
    %2782 = vmatmul.bf16.gmra.mxu0 %v1090
    %v2783 = vpop.f32.mrf.mxu0
    %v2784 = vadd.f32 0.0, %v2783
    %v2785 = vpop.f32.mrf.mxu0
    %v2786 = vadd.f32 0.0, %v2785
    %2787 = vmatmul.bf16.gmra.mxu0 %v1141
    %v2788 = vpop.f32.mrf.mxu0
    %v2789 = vadd.f32 0.0, %v2788
    %v2790 = vpop.f32.mrf.mxu0
    %v2791 = vadd.f32 0.0, %v2790
    %2792 = vmatmul.bf16.gmra.mxu0 %v1144
    %v2793 = vpop.f32.mrf.mxu0
    %v2794 = vadd.f32 0.0, %v2793
    %v2795 = vpop.f32.mrf.mxu0
    %v2796 = vadd.f32 0.0, %v2795
    %2797 = vmatmul.bf16.gmra.mxu0 %v1147
    %v2798 = vpop.f32.mrf.mxu0
    %v2799 = vadd.f32 0.0, %v2798
    %v2800 = vpop.f32.mrf.mxu0
    %v2801 = vadd.f32 0.0, %v2800
    %2802 = vmatmul.bf16.gmra.mxu0 %v1150
    %v2803 = vpop.f32.mrf.mxu0
    %v2804 = vadd.f32 0.0, %v2803
    %v2805 = vpop.f32.mrf.mxu0
    %v2806 = vadd.f32 0.0, %v2805
    %2807 = vmatmul.bf16.gmra.mxu0 %v1153
    %v2808 = vpop.f32.mrf.mxu0
    %v2809 = vadd.f32 0.0, %v2808
    %v2810 = vpop.f32.mrf.mxu0
    %v2811 = vadd.f32 0.0, %v2810
    %2812 = vmatmul.bf16.gmra.mxu0 %v1156
    %v2813 = vpop.f32.mrf.mxu0
    %v2814 = vadd.f32 0.0, %v2813
    %v2815 = vpop.f32.mrf.mxu0
    %v2816 = vadd.f32 0.0, %v2815
    %2817 = vmatmul.bf16.gmra.mxu0 %v1159
    %v2818 = vpop.f32.mrf.mxu0
    %v2819 = vadd.f32 0.0, %v2818
    %v2820 = vpop.f32.mrf.mxu0
    %v2821 = vadd.f32 0.0, %v2820
    %2822 = vmatmul.bf16.gmra.mxu0 %v1162
    %v2823 = vpop.f32.mrf.mxu0
    %v2824 = vadd.f32 0.0, %v2823
    %v2825 = vpop.f32.mrf.mxu0
    %v2826 = vadd.f32 0.0, %v2825
    %2827 = vmatmul.bf16.gmra.mxu0 %v1165
    %v2828 = vpop.f32.mrf.mxu0
    %v2829 = vadd.f32 0.0, %v2828
    %v2830 = vpop.f32.mrf.mxu0
    %v2831 = vadd.f32 0.0, %v2830
    %2832 = vmatmul.bf16.gmra.mxu0 %v1168
    %v2833 = vpop.f32.mrf.mxu0
    %v2834 = vadd.f32 0.0, %v2833
    %v2835 = vpop.f32.mrf.mxu0
    %v2836 = vadd.f32 0.0, %v2835
    %2837 = vmatmul.bf16.gmra.mxu0 %v1171
    %v2838 = vpop.f32.mrf.mxu0
    %v2839 = vadd.f32 0.0, %v2838
    %v2840 = vpop.f32.mrf.mxu0
    %v2841 = vadd.f32 0.0, %v2840
    %2842 = vmatmul.bf16.gmra.mxu0 %v1174
    %v2843 = vpop.f32.mrf.mxu0
    %v2844 = vadd.f32 0.0, %v2843
    %v2845 = vpop.f32.mrf.mxu0
    %v2846 = vadd.f32 0.0, %v2845
    %2847 = vmatmul.bf16.gmra.mxu0 %v1177
    %v2848 = vpop.f32.mrf.mxu0
    %v2849 = vadd.f32 0.0, %v2848
    %v2850 = vpop.f32.mrf.mxu0
    %v2851 = vadd.f32 0.0, %v2850
    %2852 = vmatmul.bf16.gmra.mxu0 %v1180
    %v2853 = vpop.f32.mrf.mxu0
    %v2854 = vadd.f32 0.0, %v2853
    %v2855 = vpop.f32.mrf.mxu0
    %v2856 = vadd.f32 0.0, %v2855
    %2857 = vmatmul.bf16.gmra.mxu0 %v1938
    %v2858 = vpop.f32.mrf.mxu0
    %v2859 = vadd.f32 0.0, %v2858
    %v2860 = vpop.f32.mrf.mxu0
    %v2861 = vadd.f32 0.0, %v2860
    %2862 = vmatmul.bf16.gmra.mxu0 %v1090
    %v2863 = vpop.f32.mrf.mxu0
    %v2864 = vadd.f32 0.0, %v2863
    %v2865 = vpop.f32.mrf.mxu0
    %v2866 = vadd.f32 0.0, %v2865
    %2867 = vdwg.mxu0
    %v2868 = vadd.f32 %v2632, %v2709
    %v2869 = vadd.f32 %v2633, %v2711
    %v2870 = vadd.f32 %v2634, %v2714
    %v2871 = vadd.f32 %v2635, %v2716
    %v2872 = vadd.f32 %v2636, %v2719
    %v2873 = vadd.f32 %v2637, %v2721
    %v2874 = vadd.f32 %v2638, %v2724
    %v2875 = vadd.f32 %v2639, %v2726
    %v2876 = vadd.f32 %v2640, %v2729
    %v2877 = vadd.f32 %v2641, %v2731
    %v2878 = vadd.f32 %v2642, %v2734
    %v2879 = vadd.f32 %v2643, %v2736
    %v2880 = vadd.f32 %v2644, %v2739
    %v2881 = vadd.f32 %v2645, %v2741
    %v2882 = vadd.f32 %v2646, %v2744
    %v2883 = vadd.f32 %v2647, %v2746
    %v2884 = vadd.f32 %v2648, %v2749
    %v2885 = vadd.f32 %v2649, %v2751
    %v2886 = vadd.f32 %v2650, %v2754
    %v2887 = vadd.f32 %v2651, %v2756
    %v2888 = vadd.f32 %v2652, %v2759
    %v2889 = vadd.f32 %v2653, %v2761
    %v2890 = vadd.f32 %v2654, %v2764
    %v2891 = vadd.f32 %v2655, %v2766
    %v2892 = vadd.f32 %v2656, %v2769
    %v2893 = vadd.f32 %v2657, %v2771
    %v2894 = vadd.f32 %v2658, %v2774
    %v2895 = vadd.f32 %v2659, %v2776
    %v2896 = vadd.f32 %v2660, %v2779
    %v2897 = vadd.f32 %v2661, %v2781
    %v2898 = vadd.f32 %v2662, %v2784
    %v2899 = vadd.f32 %v2663, %v2786
    %v2900 = vadd.f32 %v2664, %v2789
    %v2901 = vadd.f32 %v2665, %v2791
    %v2902 = vadd.f32 %v2666, %v2794
    %v2903 = vadd.f32 %v2667, %v2796
    %v2904 = vadd.f32 %v2668, %v2799
    %v2905 = vadd.f32 %v2669, %v2801
    %v2906 = vadd.f32 %v2670, %v2804
    %v2907 = vadd.f32 %v2671, %v2806
    %v2908 = vadd.f32 %v2672, %v2809
    %v2909 = vadd.f32 %v2673, %v2811
    %v2910 = vadd.f32 %v2674, %v2814
    %v2911 = vadd.f32 %v2675, %v2816
    %v2912 = vadd.f32 %v2676, %v2819
    %v2913 = vadd.f32 %v2677, %v2821
    %v2914 = vadd.f32 %v2678, %v2824
    %v2915 = vadd.f32 %v2679, %v2826
    %v2916 = vadd.f32 %v2680, %v2829
    %v2917 = vadd.f32 %v2681, %v2831
    %v2918 = vadd.f32 %v2682, %v2834
    %v2919 = vadd.f32 %v2683, %v2836
    %v2920 = vadd.f32 %v2684, %v2839
    %v2921 = vadd.f32 %v2685, %v2841
    %v2922 = vadd.f32 %v2686, %v2844
    %v2923 = vadd.f32 %v2687, %v2846
    %v2924 = vadd.f32 %v2688, %v2849
    %v2925 = vadd.f32 %v2689, %v2851
    %v2926 = vadd.f32 %v2690, %v2854
    %v2927 = vadd.f32 %v2691, %v2856
    %v2928 = vadd.f32 %v2692, %v2859
    %v2929 = vadd.f32 %v2693, %v2861
    %v2930 = vadd.f32 %v2694, %v2864
    %v2931 = vadd.f32 %v2695, %v2866
    %v2933 = vand.u32 %v146, %v916
    %2935 = vmatpush.bf16.msra.mxu0 0
    %2936 = vmatpush.bf16.msra.mxu0 0
    %2937 = vmatpush.bf16.msra.mxu0 0
    %2938 = vmatpush.bf16.msra.mxu0 0
    %2939 = vmatpush.bf16.msra.mxu0 0
    %2940 = vmatpush.bf16.msra.mxu0 0
    %2941 = vmatpush.bf16.msra.mxu0 0
    %2942 = vmatpush.bf16.msra.mxu0 %v2933
    %2943 = vmatmul.bf16.gmra.mxu0 %v828
    %v2944 = vpop.f32.mrf.mxu0
    %v2945 = vadd.f32 0.0, %v2944
    %v2946 = vpop.f32.mrf.mxu0
    %v2947 = vadd.f32 0.0, %v2946
    %2948 = vmatmul.bf16.gmra.mxu0 %v831
    %v2949 = vpop.f32.mrf.mxu0
    %v2950 = vadd.f32 0.0, %v2949
    %v2951 = vpop.f32.mrf.mxu0
    %v2952 = vadd.f32 0.0, %v2951
    %2953 = vmatmul.bf16.gmra.mxu0 %v834
    %v2954 = vpop.f32.mrf.mxu0
    %v2955 = vadd.f32 0.0, %v2954
    %v2956 = vpop.f32.mrf.mxu0
    %v2957 = vadd.f32 0.0, %v2956
    %2958 = vmatmul.bf16.gmra.mxu0 %v837
    %v2959 = vpop.f32.mrf.mxu0
    %v2960 = vadd.f32 0.0, %v2959
    %v2961 = vpop.f32.mrf.mxu0
    %v2962 = vadd.f32 0.0, %v2961
    %2963 = vmatmul.bf16.gmra.mxu0 %v840
    %v2964 = vpop.f32.mrf.mxu0
    %v2965 = vadd.f32 0.0, %v2964
    %v2966 = vpop.f32.mrf.mxu0
    %v2967 = vadd.f32 0.0, %v2966
    %2968 = vmatmul.bf16.gmra.mxu0 %v843
    %v2969 = vpop.f32.mrf.mxu0
    %v2970 = vadd.f32 0.0, %v2969
    %v2971 = vpop.f32.mrf.mxu0
    %v2972 = vadd.f32 0.0, %v2971
    %2973 = vmatmul.bf16.gmra.mxu0 %v846
    %v2974 = vpop.f32.mrf.mxu0
    %v2975 = vadd.f32 0.0, %v2974
    %v2976 = vpop.f32.mrf.mxu0
    %v2977 = vadd.f32 0.0, %v2976
    %2978 = vmatmul.bf16.gmra.mxu0 %v849
    %v2979 = vpop.f32.mrf.mxu0
    %v2980 = vadd.f32 0.0, %v2979
    %v2981 = vpop.f32.mrf.mxu0
    %v2982 = vadd.f32 0.0, %v2981
    %2983 = vmatmul.bf16.gmra.mxu0 %v852
    %v2984 = vpop.f32.mrf.mxu0
    %v2985 = vadd.f32 0.0, %v2984
    %v2986 = vpop.f32.mrf.mxu0
    %v2987 = vadd.f32 0.0, %v2986
    %2988 = vmatmul.bf16.gmra.mxu0 %v855
    %v2989 = vpop.f32.mrf.mxu0
    %v2990 = vadd.f32 0.0, %v2989
    %v2991 = vpop.f32.mrf.mxu0
    %v2992 = vadd.f32 0.0, %v2991
    %2993 = vmatmul.bf16.gmra.mxu0 %v858
    %v2994 = vpop.f32.mrf.mxu0
    %v2995 = vadd.f32 0.0, %v2994
    %v2996 = vpop.f32.mrf.mxu0
    %v2997 = vadd.f32 0.0, %v2996
    %2998 = vmatmul.bf16.gmra.mxu0 %v861
    %v2999 = vpop.f32.mrf.mxu0
    %v3000 = vadd.f32 0.0, %v2999
    %v3001 = vpop.f32.mrf.mxu0
    %v3002 = vadd.f32 0.0, %v3001
    %3003 = vmatmul.bf16.gmra.mxu0 %v864
    %v3004 = vpop.f32.mrf.mxu0
    %v3005 = vadd.f32 0.0, %v3004
    %v3006 = vpop.f32.mrf.mxu0
    %v3007 = vadd.f32 0.0, %v3006
    %3008 = vmatmul.bf16.gmra.mxu0 %v867
    %v3009 = vpop.f32.mrf.mxu0
    %v3010 = vadd.f32 0.0, %v3009
    %v3011 = vpop.f32.mrf.mxu0
    %v3012 = vadd.f32 0.0, %v3011
    %3013 = vmatmul.bf16.gmra.mxu0 %v2197
    %v3014 = vpop.f32.mrf.mxu0
    %v3015 = vadd.f32 0.0, %v3014
    %v3016 = vpop.f32.mrf.mxu0
    %v3017 = vadd.f32 0.0, %v3016
    %3018 = vmatmul.bf16.gmra.mxu0 %v822
    %v3019 = vpop.f32.mrf.mxu0
    %v3020 = vadd.f32 0.0, %v3019
    %v3021 = vpop.f32.mrf.mxu0
    %v3022 = vadd.f32 0.0, %v3021
    %3023 = vmatmul.bf16.gmra.mxu0 %v873
    %v3024 = vpop.f32.mrf.mxu0
    %v3025 = vadd.f32 0.0, %v3024
    %v3026 = vpop.f32.mrf.mxu0
    %v3027 = vadd.f32 0.0, %v3026
    %3028 = vmatmul.bf16.gmra.mxu0 %v876
    %v3029 = vpop.f32.mrf.mxu0
    %v3030 = vadd.f32 0.0, %v3029
    %v3031 = vpop.f32.mrf.mxu0
    %v3032 = vadd.f32 0.0, %v3031
    %3033 = vmatmul.bf16.gmra.mxu0 %v879
    %v3034 = vpop.f32.mrf.mxu0
    %v3035 = vadd.f32 0.0, %v3034
    %v3036 = vpop.f32.mrf.mxu0
    %v3037 = vadd.f32 0.0, %v3036
    %3038 = vmatmul.bf16.gmra.mxu0 %v882
    %v3039 = vpop.f32.mrf.mxu0
    %v3040 = vadd.f32 0.0, %v3039
    %v3041 = vpop.f32.mrf.mxu0
    %v3042 = vadd.f32 0.0, %v3041
    %3043 = vmatmul.bf16.gmra.mxu0 %v885
    %v3044 = vpop.f32.mrf.mxu0
    %v3045 = vadd.f32 0.0, %v3044
    %v3046 = vpop.f32.mrf.mxu0
    %v3047 = vadd.f32 0.0, %v3046
    %3048 = vmatmul.bf16.gmra.mxu0 %v888
    %v3049 = vpop.f32.mrf.mxu0
    %v3050 = vadd.f32 0.0, %v3049
    %v3051 = vpop.f32.mrf.mxu0
    %v3052 = vadd.f32 0.0, %v3051
    %3053 = vmatmul.bf16.gmra.mxu0 %v891
    %v3054 = vpop.f32.mrf.mxu0
    %v3055 = vadd.f32 0.0, %v3054
    %v3056 = vpop.f32.mrf.mxu0
    %v3057 = vadd.f32 0.0, %v3056
    %3058 = vmatmul.bf16.gmra.mxu0 %v894
    %v3059 = vpop.f32.mrf.mxu0
    %v3060 = vadd.f32 0.0, %v3059
    %v3061 = vpop.f32.mrf.mxu0
    %v3062 = vadd.f32 0.0, %v3061
    %3063 = vmatmul.bf16.gmra.mxu0 %v897
    %v3064 = vpop.f32.mrf.mxu0
    %v3065 = vadd.f32 0.0, %v3064
    %v3066 = vpop.f32.mrf.mxu0
    %v3067 = vadd.f32 0.0, %v3066
    %3068 = vmatmul.bf16.gmra.mxu0 %v900
    %v3069 = vpop.f32.mrf.mxu0
    %v3070 = vadd.f32 0.0, %v3069
    %v3071 = vpop.f32.mrf.mxu0
    %v3072 = vadd.f32 0.0, %v3071
    %3073 = vmatmul.bf16.gmra.mxu0 %v903
    %v3074 = vpop.f32.mrf.mxu0
    %v3075 = vadd.f32 0.0, %v3074
    %v3076 = vpop.f32.mrf.mxu0
    %v3077 = vadd.f32 0.0, %v3076
    %3078 = vmatmul.bf16.gmra.mxu0 %v906
    %v3079 = vpop.f32.mrf.mxu0
    %v3080 = vadd.f32 0.0, %v3079
    %v3081 = vpop.f32.mrf.mxu0
    %v3082 = vadd.f32 0.0, %v3081
    %3083 = vmatmul.bf16.gmra.mxu0 %v909
    %v3084 = vpop.f32.mrf.mxu0
    %v3085 = vadd.f32 0.0, %v3084
    %v3086 = vpop.f32.mrf.mxu0
    %v3087 = vadd.f32 0.0, %v3086
    %3088 = vmatmul.bf16.gmra.mxu0 %v912
    %v3089 = vpop.f32.mrf.mxu0
    %v3090 = vadd.f32 0.0, %v3089
    %v3091 = vpop.f32.mrf.mxu0
    %v3092 = vadd.f32 0.0, %v3091
    %3093 = vmatmul.bf16.gmra.mxu0 %v2200
    %v3094 = vpop.f32.mrf.mxu0
    %v3095 = vadd.f32 0.0, %v3094
    %v3096 = vpop.f32.mrf.mxu0
    %v3097 = vadd.f32 0.0, %v3096
    %3098 = vmatmul.bf16.gmra.mxu0 %v822
    %v3099 = vpop.f32.mrf.mxu0
    %v3100 = vadd.f32 0.0, %v3099
    %v3101 = vpop.f32.mrf.mxu0
    %v3102 = vadd.f32 0.0, %v3101
    %3103 = vdwg.mxu0
    %v3104 = vadd.f32 %v2868, %v2945
    %v3105 = vadd.f32 %v2869, %v2947
    %v3106 = vadd.f32 %v2870, %v2950
    %v3107 = vadd.f32 %v2871, %v2952
    %v3108 = vadd.f32 %v2872, %v2955
    %v3109 = vadd.f32 %v2873, %v2957
    %v3110 = vadd.f32 %v2874, %v2960
    %v3111 = vadd.f32 %v2875, %v2962
    %v3112 = vadd.f32 %v2876, %v2965
    %v3113 = vadd.f32 %v2877, %v2967
    %v3114 = vadd.f32 %v2878, %v2970
    %v3115 = vadd.f32 %v2879, %v2972
    %v3116 = vadd.f32 %v2880, %v2975
    %v3117 = vadd.f32 %v2881, %v2977
    %v3118 = vadd.f32 %v2882, %v2980
    %v3119 = vadd.f32 %v2883, %v2982
    %v3120 = vadd.f32 %v2884, %v2985
    %v3121 = vadd.f32 %v2885, %v2987
    %v3122 = vadd.f32 %v2886, %v2990
    %v3123 = vadd.f32 %v2887, %v2992
    %v3124 = vadd.f32 %v2888, %v2995
    %v3125 = vadd.f32 %v2889, %v2997
    %v3126 = vadd.f32 %v2890, %v3000
    %v3127 = vadd.f32 %v2891, %v3002
    %v3128 = vadd.f32 %v2892, %v3005
    %v3129 = vadd.f32 %v2893, %v3007
    %v3130 = vadd.f32 %v2894, %v3010
    %v3131 = vadd.f32 %v2895, %v3012
    %v3132 = vadd.f32 %v2896, %v3015
    %v3133 = vadd.f32 %v2897, %v3017
    %v3134 = vadd.f32 %v2898, %v3020
    %v3135 = vadd.f32 %v2899, %v3022
    %v3136 = vadd.f32 %v2900, %v3025
    %v3137 = vadd.f32 %v2901, %v3027
    %v3138 = vadd.f32 %v2902, %v3030
    %v3139 = vadd.f32 %v2903, %v3032
    %v3140 = vadd.f32 %v2904, %v3035
    %v3141 = vadd.f32 %v2905, %v3037
    %v3142 = vadd.f32 %v2906, %v3040
    %v3143 = vadd.f32 %v2907, %v3042
    %v3144 = vadd.f32 %v2908, %v3045
    %v3145 = vadd.f32 %v2909, %v3047
    %v3146 = vadd.f32 %v2910, %v3050
    %v3147 = vadd.f32 %v2911, %v3052
    %v3148 = vadd.f32 %v2912, %v3055
    %v3149 = vadd.f32 %v2913, %v3057
    %v3150 = vadd.f32 %v2914, %v3060
    %v3151 = vadd.f32 %v2915, %v3062
    %v3152 = vadd.f32 %v2916, %v3065
    %v3153 = vadd.f32 %v2917, %v3067
    %v3154 = vadd.f32 %v2918, %v3070
    %v3155 = vadd.f32 %v2919, %v3072
    %v3156 = vadd.f32 %v2920, %v3075
    %v3157 = vadd.f32 %v2921, %v3077
    %v3158 = vadd.f32 %v2922, %v3080
    %v3159 = vadd.f32 %v2923, %v3082
    %v3160 = vadd.f32 %v2924, %v3085
    %v3161 = vadd.f32 %v2925, %v3087
    %v3162 = vadd.f32 %v2926, %v3090
    %v3163 = vadd.f32 %v2927, %v3092
    %v3164 = vadd.f32 %v2928, %v3095
    %v3165 = vadd.f32 %v2929, %v3097
    %v3166 = vadd.f32 %v2930, %v3100
    %v3167 = vadd.f32 %v2931, %v3102
    %v3169 = vand.u32 %v147, %v916
    %3171 = vmatpush.bf16.msra.mxu0 0
    %3172 = vmatpush.bf16.msra.mxu0 0
    %3173 = vmatpush.bf16.msra.mxu0 0
    %3174 = vmatpush.bf16.msra.mxu0 0
    %3175 = vmatpush.bf16.msra.mxu0 0
    %3176 = vmatpush.bf16.msra.mxu0 0
    %3177 = vmatpush.bf16.msra.mxu0 0
    %3178 = vmatpush.bf16.msra.mxu0 %v3169
    %3179 = vmatmul.bf16.gmra.mxu0 %v1610
    %v3180 = vpop.f32.mrf.mxu0
    %v3181 = vadd.f32 0.0, %v3180
    %v3182 = vpop.f32.mrf.mxu0
    %v3183 = vadd.f32 0.0, %v3182
    %3184 = vmatmul.bf16.gmra.mxu0 %v1613
    %v3185 = vpop.f32.mrf.mxu0
    %v3186 = vadd.f32 0.0, %v3185
    %v3187 = vpop.f32.mrf.mxu0
    %v3188 = vadd.f32 0.0, %v3187
    %3189 = vmatmul.bf16.gmra.mxu0 %v1616
    %v3190 = vpop.f32.mrf.mxu0
    %v3191 = vadd.f32 0.0, %v3190
    %v3192 = vpop.f32.mrf.mxu0
    %v3193 = vadd.f32 0.0, %v3192
    %3194 = vmatmul.bf16.gmra.mxu0 %v1619
    %v3195 = vpop.f32.mrf.mxu0
    %v3196 = vadd.f32 0.0, %v3195
    %v3197 = vpop.f32.mrf.mxu0
    %v3198 = vadd.f32 0.0, %v3197
    %3199 = vmatmul.bf16.gmra.mxu0 %v1622
    %v3200 = vpop.f32.mrf.mxu0
    %v3201 = vadd.f32 0.0, %v3200
    %v3202 = vpop.f32.mrf.mxu0
    %v3203 = vadd.f32 0.0, %v3202
    %3204 = vmatmul.bf16.gmra.mxu0 %v1625
    %v3205 = vpop.f32.mrf.mxu0
    %v3206 = vadd.f32 0.0, %v3205
    %v3207 = vpop.f32.mrf.mxu0
    %v3208 = vadd.f32 0.0, %v3207
    %3209 = vmatmul.bf16.gmra.mxu0 %v1628
    %v3210 = vpop.f32.mrf.mxu0
    %v3211 = vadd.f32 0.0, %v3210
    %v3212 = vpop.f32.mrf.mxu0
    %v3213 = vadd.f32 0.0, %v3212
    %3214 = vmatmul.bf16.gmra.mxu0 %v1631
    %v3215 = vpop.f32.mrf.mxu0
    %v3216 = vadd.f32 0.0, %v3215
    %v3217 = vpop.f32.mrf.mxu0
    %v3218 = vadd.f32 0.0, %v3217
    %3219 = vmatmul.bf16.gmra.mxu0 %v1634
    %v3220 = vpop.f32.mrf.mxu0
    %v3221 = vadd.f32 0.0, %v3220
    %v3222 = vpop.f32.mrf.mxu0
    %v3223 = vadd.f32 0.0, %v3222
    %3224 = vmatmul.bf16.gmra.mxu0 %v1637
    %v3225 = vpop.f32.mrf.mxu0
    %v3226 = vadd.f32 0.0, %v3225
    %v3227 = vpop.f32.mrf.mxu0
    %v3228 = vadd.f32 0.0, %v3227
    %3229 = vmatmul.bf16.gmra.mxu0 %v1640
    %v3230 = vpop.f32.mrf.mxu0
    %v3231 = vadd.f32 0.0, %v3230
    %v3232 = vpop.f32.mrf.mxu0
    %v3233 = vadd.f32 0.0, %v3232
    %3234 = vmatmul.bf16.gmra.mxu0 %v1643
    %v3235 = vpop.f32.mrf.mxu0
    %v3236 = vadd.f32 0.0, %v3235
    %v3237 = vpop.f32.mrf.mxu0
    %v3238 = vadd.f32 0.0, %v3237
    %3239 = vmatmul.bf16.gmra.mxu0 %v1646
    %v3240 = vpop.f32.mrf.mxu0
    %v3241 = vadd.f32 0.0, %v3240
    %v3242 = vpop.f32.mrf.mxu0
    %v3243 = vadd.f32 0.0, %v3242
    %3244 = vmatmul.bf16.gmra.mxu0 %v1649
    %v3245 = vpop.f32.mrf.mxu0
    %v3246 = vadd.f32 0.0, %v3245
    %v3247 = vpop.f32.mrf.mxu0
    %v3248 = vadd.f32 0.0, %v3247
    %3249 = vmatmul.bf16.gmra.mxu0 %v2455
    %v3250 = vpop.f32.mrf.mxu0
    %v3251 = vadd.f32 0.0, %v3250
    %v3252 = vpop.f32.mrf.mxu0
    %v3253 = vadd.f32 0.0, %v3252
    %3254 = vmatmul.bf16.gmra.mxu0 %v1604
    %v3255 = vpop.f32.mrf.mxu0
    %v3256 = vadd.f32 0.0, %v3255
    %v3257 = vpop.f32.mrf.mxu0
    %v3258 = vadd.f32 0.0, %v3257
    %3259 = vmatmul.bf16.gmra.mxu0 %v1655
    %v3260 = vpop.f32.mrf.mxu0
    %v3261 = vadd.f32 0.0, %v3260
    %v3262 = vpop.f32.mrf.mxu0
    %v3263 = vadd.f32 0.0, %v3262
    %3264 = vmatmul.bf16.gmra.mxu0 %v1658
    %v3265 = vpop.f32.mrf.mxu0
    %v3266 = vadd.f32 0.0, %v3265
    %v3267 = vpop.f32.mrf.mxu0
    %v3268 = vadd.f32 0.0, %v3267
    %3269 = vmatmul.bf16.gmra.mxu0 %v1661
    %v3270 = vpop.f32.mrf.mxu0
    %v3271 = vadd.f32 0.0, %v3270
    %v3272 = vpop.f32.mrf.mxu0
    %v3273 = vadd.f32 0.0, %v3272
    %3274 = vmatmul.bf16.gmra.mxu0 %v1664
    %v3275 = vpop.f32.mrf.mxu0
    %v3276 = vadd.f32 0.0, %v3275
    %v3277 = vpop.f32.mrf.mxu0
    %v3278 = vadd.f32 0.0, %v3277
    %3279 = vmatmul.bf16.gmra.mxu0 %v1667
    %v3280 = vpop.f32.mrf.mxu0
    %v3281 = vadd.f32 0.0, %v3280
    %v3282 = vpop.f32.mrf.mxu0
    %v3283 = vadd.f32 0.0, %v3282
    %3284 = vmatmul.bf16.gmra.mxu0 %v1670
    %v3285 = vpop.f32.mrf.mxu0
    %v3286 = vadd.f32 0.0, %v3285
    %v3287 = vpop.f32.mrf.mxu0
    %v3288 = vadd.f32 0.0, %v3287
    %3289 = vmatmul.bf16.gmra.mxu0 %v1673
    %v3290 = vpop.f32.mrf.mxu0
    %v3291 = vadd.f32 0.0, %v3290
    %v3292 = vpop.f32.mrf.mxu0
    %v3293 = vadd.f32 0.0, %v3292
    %3294 = vmatmul.bf16.gmra.mxu0 %v1676
    %v3295 = vpop.f32.mrf.mxu0
    %v3296 = vadd.f32 0.0, %v3295
    %v3297 = vpop.f32.mrf.mxu0
    %v3298 = vadd.f32 0.0, %v3297
    %3299 = vmatmul.bf16.gmra.mxu0 %v1679
    %v3300 = vpop.f32.mrf.mxu0
    %v3301 = vadd.f32 0.0, %v3300
    %v3302 = vpop.f32.mrf.mxu0
    %v3303 = vadd.f32 0.0, %v3302
    %3304 = vmatmul.bf16.gmra.mxu0 %v1682
    %v3305 = vpop.f32.mrf.mxu0
    %v3306 = vadd.f32 0.0, %v3305
    %v3307 = vpop.f32.mrf.mxu0
    %v3308 = vadd.f32 0.0, %v3307
    %3309 = vmatmul.bf16.gmra.mxu0 %v1685
    %v3310 = vpop.f32.mrf.mxu0
    %v3311 = vadd.f32 0.0, %v3310
    %v3312 = vpop.f32.mrf.mxu0
    %v3313 = vadd.f32 0.0, %v3312
    %3314 = vmatmul.bf16.gmra.mxu0 %v1688
    %v3315 = vpop.f32.mrf.mxu0
    %v3316 = vadd.f32 0.0, %v3315
    %v3317 = vpop.f32.mrf.mxu0
    %v3318 = vadd.f32 0.0, %v3317
    %3319 = vmatmul.bf16.gmra.mxu0 %v1691
    %v3320 = vpop.f32.mrf.mxu0
    %v3321 = vadd.f32 0.0, %v3320
    %v3322 = vpop.f32.mrf.mxu0
    %v3323 = vadd.f32 0.0, %v3322
    %3324 = vmatmul.bf16.gmra.mxu0 %v1694
    %v3325 = vpop.f32.mrf.mxu0
    %v3326 = vadd.f32 0.0, %v3325
    %v3327 = vpop.f32.mrf.mxu0
    %v3328 = vadd.f32 0.0, %v3327
    %3329 = vmatmul.bf16.gmra.mxu0 %v2458
    %v3330 = vpop.f32.mrf.mxu0
    %v3331 = vadd.f32 0.0, %v3330
    %v3332 = vpop.f32.mrf.mxu0
    %v3333 = vadd.f32 0.0, %v3332
    %3334 = vmatmul.bf16.gmra.mxu0 %v1604
    %v3335 = vpop.f32.mrf.mxu0
    %v3336 = vadd.f32 0.0, %v3335
    %v3337 = vpop.f32.mrf.mxu0
    %v3338 = vadd.f32 0.0, %v3337
    %3339 = vdwg.mxu0
    %v3340 = vadd.f32 %v3104, %v3181
    %v3341 = vadd.f32 %v3105, %v3183
    %v3342 = vadd.f32 %v3106, %v3186
    %v3343 = vadd.f32 %v3107, %v3188
    %v3344 = vadd.f32 %v3108, %v3191
    %v3345 = vadd.f32 %v3109, %v3193
    %v3346 = vadd.f32 %v3110, %v3196
    %v3347 = vadd.f32 %v3111, %v3198
    %v3348 = vadd.f32 %v3112, %v3201
    %v3349 = vadd.f32 %v3113, %v3203
    %v3350 = vadd.f32 %v3114, %v3206
    %v3351 = vadd.f32 %v3115, %v3208
    %v3352 = vadd.f32 %v3116, %v3211
    %v3353 = vadd.f32 %v3117, %v3213
    %v3354 = vadd.f32 %v3118, %v3216
    %v3355 = vadd.f32 %v3119, %v3218
    %v3356 = vadd.f32 %v3120, %v3221
    %v3357 = vadd.f32 %v3121, %v3223
    %v3358 = vadd.f32 %v3122, %v3226
    %v3359 = vadd.f32 %v3123, %v3228
    %v3360 = vadd.f32 %v3124, %v3231
    %v3361 = vadd.f32 %v3125, %v3233
    %v3362 = vadd.f32 %v3126, %v3236
    %v3363 = vadd.f32 %v3127, %v3238
    %v3364 = vadd.f32 %v3128, %v3241
    %v3365 = vadd.f32 %v3129, %v3243
    %v3366 = vadd.f32 %v3130, %v3246
    %v3367 = vadd.f32 %v3131, %v3248
    %v3368 = vadd.f32 %v3132, %v3251
    %v3369 = vadd.f32 %v3133, %v3253
    %v3370 = vadd.f32 %v3134, %v3256
    %v3371 = vadd.f32 %v3135, %v3258
    %v3372 = vadd.f32 %v3136, %v3261
    %v3373 = vadd.f32 %v3137, %v3263
    %v3374 = vadd.f32 %v3138, %v3266
    %v3375 = vadd.f32 %v3139, %v3268
    %v3376 = vadd.f32 %v3140, %v3271
    %v3377 = vadd.f32 %v3141, %v3273
    %v3378 = vadd.f32 %v3142, %v3276
    %v3379 = vadd.f32 %v3143, %v3278
    %v3380 = vadd.f32 %v3144, %v3281
    %v3381 = vadd.f32 %v3145, %v3283
    %v3382 = vadd.f32 %v3146, %v3286
    %v3383 = vadd.f32 %v3147, %v3288
    %v3384 = vadd.f32 %v3148, %v3291
    %v3385 = vadd.f32 %v3149, %v3293
    %v3386 = vadd.f32 %v3150, %v3296
    %v3387 = vadd.f32 %v3151, %v3298
    %v3388 = vadd.f32 %v3152, %v3301
    %v3389 = vadd.f32 %v3153, %v3303
    %v3390 = vadd.f32 %v3154, %v3306
    %v3391 = vadd.f32 %v3155, %v3308
    %v3392 = vadd.f32 %v3156, %v3311
    %v3393 = vadd.f32 %v3157, %v3313
    %v3394 = vadd.f32 %v3158, %v3316
    %v3395 = vadd.f32 %v3159, %v3318
    %v3396 = vadd.f32 %v3160, %v3321
    %v3397 = vadd.f32 %v3161, %v3323
    %v3398 = vadd.f32 %v3162, %v3326
    %v3399 = vadd.f32 %v3163, %v3328
    %v3400 = vadd.f32 %v3164, %v3331
    %v3401 = vadd.f32 %v3165, %v3333
    %v3402 = vadd.f32 %v3166, %v3336
    %v3403 = vadd.f32 %v3167, %v3338
    %v3404 = vadd.f32 %v3340, %v3341
    %v3405 = vadd.f32 %v3404, %v3342
    %v3406 = vadd.f32 %v3405, %v3343
    %v3407 = vadd.f32 %v3406, %v3344
    %v3408 = vadd.f32 %v3407, %v3345
    %v3409 = vadd.f32 %v3408, %v3346
    %v3410 = vadd.f32 %v3409, %v3347
    %v3411 = vadd.f32 %v3410, %v3348
    %v3412 = vadd.f32 %v3411, %v3349
    %v3413 = vadd.f32 %v3412, %v3350
    %v3414 = vadd.f32 %v3413, %v3351
    %v3415 = vadd.f32 %v3414, %v3352
    %v3416 = vadd.f32 %v3415, %v3353
    %v3417 = vadd.f32 %v3416, %v3354
    %v3418 = vadd.f32 %v3417, %v3355
    %v3419 = vadd.f32 %v3418, %v3356
    %v3420 = vadd.f32 %v3419, %v3357
    %v3421 = vadd.f32 %v3420, %v3358
    %v3422 = vadd.f32 %v3421, %v3359
    %v3423 = vadd.f32 %v3422, %v3360
    %v3424 = vadd.f32 %v3423, %v3361
    %v3425 = vadd.f32 %v3424, %v3362
    %v3426 = vadd.f32 %v3425, %v3363
    %v3427 = vadd.f32 %v3426, %v3364
    %v3428 = vadd.f32 %v3427, %v3365
    %v3429 = vadd.f32 %v3428, %v3366
    %v3430 = vadd.f32 %v3429, %v3367
    %v3431 = vadd.f32 %v3430, %v3368
    %v3432 = vadd.f32 %v3431, %v3369
    %v3433 = vadd.f32 %v3432, %v3370
    %v3434 = vadd.f32 %v3433, %v3371
    %v3435 = vadd.f32 %v3434, %v3372
    %v3436 = vadd.f32 %v3435, %v3373
    %v3437 = vadd.f32 %v3436, %v3374
    %v3438 = vadd.f32 %v3437, %v3375
    %v3439 = vadd.f32 %v3438, %v3376
    %v3440 = vadd.f32 %v3439, %v3377
    %v3441 = vadd.f32 %v3440, %v3378
    %v3442 = vadd.f32 %v3441, %v3379
    %v3443 = vadd.f32 %v3442, %v3380
    %v3444 = vadd.f32 %v3443, %v3381
    %v3445 = vadd.f32 %v3444, %v3382
    %v3446 = vadd.f32 %v3445, %v3383
    %v3447 = vadd.f32 %v3446, %v3384
    %v3448 = vadd.f32 %v3447, %v3385
    %v3449 = vadd.f32 %v3448, %v3386
    %v3450 = vadd.f32 %v3449, %v3387
    %v3451 = vadd.f32 %v3450, %v3388
    %v3452 = vadd.f32 %v3451, %v3389
    %v3453 = vadd.f32 %v3452, %v3390
    %v3454 = vadd.f32 %v3453, %v3391
    %v3455 = vadd.f32 %v3454, %v3392
    %v3456 = vadd.f32 %v3455, %v3393
    %v3457 = vadd.f32 %v3456, %v3394
    %v3458 = vadd.f32 %v3457, %v3395
    %v3459 = vadd.f32 %v3458, %v3396
    %v3460 = vadd.f32 %v3459, %v3397
    %v3461 = vadd.f32 %v3460, %v3398
    %v3462 = vadd.f32 %v3461, %v3399
    %v3463 = vadd.f32 %v3462, %v3400
    %v3464 = vadd.f32 %v3463, %v3401
    %v3465 = vadd.f32 %v3464, %v3402
    %v3466 = vadd.f32 %v3465, %v3403
    %v3467 = vrot.slane %v3466, 4
    %v3468 = vadd.f32 %v3466, %v3467
    %v3469 = vrot.slane %v3468, 2
    %v3470 = vadd.f32 %v3468, %v3469
    %v3471 = vrot.slane %v3470, 1
    %v3472 = vadd.f32 %v3470, %v3471
    %v3473 = vrcp.pop 512.0
    %v3474 = vmul.f32 512.0, %v3473
    %v3475 = vsub.f32 1.0, %v3474
    %v3476 = vmul.f32 %v3473, %v3475
    %v3477 = vadd.f32 %v3473, %v3476
    %vm3478 = vweird.f32 %v3473
    %v3479 = vsel %vm3478, %v3473, %v3477
    %v3480 = vmul.f32 %v3472, %v3479
    %v3481 = vsub.f32 %v3340, %v3480
    %v3482 = vsub.f32 %v3341, %v3480
    %v3483 = vsub.f32 %v3342, %v3480
    %v3484 = vsub.f32 %v3343, %v3480
    %v3485 = vsub.f32 %v3344, %v3480
    %v3486 = vsub.f32 %v3345, %v3480
    %v3487 = vsub.f32 %v3346, %v3480
    %v3488 = vsub.f32 %v3347, %v3480
    %v3489 = vsub.f32 %v3348, %v3480
    %v3490 = vsub.f32 %v3349, %v3480
    %v3491 = vsub.f32 %v3350, %v3480
    %v3492 = vsub.f32 %v3351, %v3480
    %v3493 = vsub.f32 %v3352, %v3480
    %v3494 = vsub.f32 %v3353, %v3480
    %v3495 = vsub.f32 %v3354, %v3480
    %v3496 = vsub.f32 %v3355, %v3480
    %v3497 = vsub.f32 %v3356, %v3480
    %v3498 = vsub.f32 %v3357, %v3480
    %v3499 = vsub.f32 %v3358, %v3480
    %v3500 = vsub.f32 %v3359, %v3480
    %v3501 = vsub.f32 %v3360, %v3480
    %v3502 = vsub.f32 %v3361, %v3480
    %v3503 = vsub.f32 %v3362, %v3480
    %v3504 = vsub.f32 %v3363, %v3480
    %v3505 = vsub.f32 %v3364, %v3480
    %v3506 = vsub.f32 %v3365, %v3480
    %v3507 = vsub.f32 %v3366, %v3480
    %v3508 = vsub.f32 %v3367, %v3480
    %v3509 = vsub.f32 %v3368, %v3480
    %v3510 = vsub.f32 %v3369, %v3480
    %v3511 = vsub.f32 %v3370, %v3480
    %v3512 = vsub.f32 %v3371, %v3480
    %v3513 = vsub.f32 %v3372, %v3480
    %v3514 = vsub.f32 %v3373, %v3480
    %v3515 = vsub.f32 %v3374, %v3480
    %v3516 = vsub.f32 %v3375, %v3480
    %v3517 = vsub.f32 %v3376, %v3480
    %v3518 = vsub.f32 %v3377, %v3480
    %v3519 = vsub.f32 %v3378, %v3480
    %v3520 = vsub.f32 %v3379, %v3480
    %v3521 = vsub.f32 %v3380, %v3480
    %v3522 = vsub.f32 %v3381, %v3480
    %v3523 = vsub.f32 %v3382, %v3480
    %v3524 = vsub.f32 %v3383, %v3480
    %v3525 = vsub.f32 %v3384, %v3480
    %v3526 = vsub.f32 %v3385, %v3480
    %v3527 = vsub.f32 %v3386, %v3480
    %v3528 = vsub.f32 %v3387, %v3480
    %v3529 = vsub.f32 %v3388, %v3480
    %v3530 = vsub.f32 %v3389, %v3480
    %v3531 = vsub.f32 %v3390, %v3480
    %v3532 = vsub.f32 %v3391, %v3480
    %v3533 = vsub.f32 %v3392, %v3480
    %v3534 = vsub.f32 %v3393, %v3480
    %v3535 = vsub.f32 %v3394, %v3480
    %v3536 = vsub.f32 %v3395, %v3480
    %v3537 = vsub.f32 %v3396, %v3480
    %v3538 = vsub.f32 %v3397, %v3480
    %v3539 = vsub.f32 %v3398, %v3480
    %v3540 = vsub.f32 %v3399, %v3480
    %v3541 = vsub.f32 %v3400, %v3480
    %v3542 = vsub.f32 %v3401, %v3480
    %v3543 = vsub.f32 %v3402, %v3480
    %v3544 = vsub.f32 %v3403, %v3480
    %v3545 = vmul.f32 %v3481, %v3481
    %v3546 = vmul.f32 %v3482, %v3482
    %v3547 = vmul.f32 %v3483, %v3483
    %v3548 = vmul.f32 %v3484, %v3484
    %v3549 = vmul.f32 %v3485, %v3485
    %v3550 = vmul.f32 %v3486, %v3486
    %v3551 = vmul.f32 %v3487, %v3487
    %v3552 = vmul.f32 %v3488, %v3488
    %v3553 = vmul.f32 %v3489, %v3489
    %v3554 = vmul.f32 %v3490, %v3490
    %v3555 = vmul.f32 %v3491, %v3491
    %v3556 = vmul.f32 %v3492, %v3492
    %v3557 = vmul.f32 %v3493, %v3493
    %v3558 = vmul.f32 %v3494, %v3494
    %v3559 = vmul.f32 %v3495, %v3495
    %v3560 = vmul.f32 %v3496, %v3496
    %v3561 = vmul.f32 %v3497, %v3497
    %v3562 = vmul.f32 %v3498, %v3498
    %v3563 = vmul.f32 %v3499, %v3499
    %v3564 = vmul.f32 %v3500, %v3500
    %v3565 = vmul.f32 %v3501, %v3501
    %v3566 = vmul.f32 %v3502, %v3502
    %v3567 = vmul.f32 %v3503, %v3503
    %v3568 = vmul.f32 %v3504, %v3504
    %v3569 = vmul.f32 %v3505, %v3505
    %v3570 = vmul.f32 %v3506, %v3506
    %v3571 = vmul.f32 %v3507, %v3507
    %v3572 = vmul.f32 %v3508, %v3508
    %v3573 = vmul.f32 %v3509, %v3509
    %v3574 = vmul.f32 %v3510, %v3510
    %v3575 = vmul.f32 %v3511, %v3511
    %v3576 = vmul.f32 %v3512, %v3512
    %v3577 = vmul.f32 %v3513, %v3513
    %v3578 = vmul.f32 %v3514, %v3514
    %v3579 = vmul.f32 %v3515, %v3515
    %v3580 = vmul.f32 %v3516, %v3516
    %v3581 = vmul.f32 %v3517, %v3517
    %v3582 = vmul.f32 %v3518, %v3518
    %v3583 = vmul.f32 %v3519, %v3519
    %v3584 = vmul.f32 %v3520, %v3520
    %v3585 = vmul.f32 %v3521, %v3521
    %v3586 = vmul.f32 %v3522, %v3522
    %v3587 = vmul.f32 %v3523, %v3523
    %v3588 = vmul.f32 %v3524, %v3524
    %v3589 = vmul.f32 %v3525, %v3525
    %v3590 = vmul.f32 %v3526, %v3526
    %v3591 = vmul.f32 %v3527, %v3527
    %v3592 = vmul.f32 %v3528, %v3528
    %v3593 = vmul.f32 %v3529, %v3529
    %v3594 = vmul.f32 %v3530, %v3530
    %v3595 = vmul.f32 %v3531, %v3531
    %v3596 = vmul.f32 %v3532, %v3532
    %v3597 = vmul.f32 %v3533, %v3533
    %v3598 = vmul.f32 %v3534, %v3534
    %v3599 = vmul.f32 %v3535, %v3535
    %v3600 = vmul.f32 %v3536, %v3536
    %v3601 = vmul.f32 %v3537, %v3537
    %v3602 = vmul.f32 %v3538, %v3538
    %v3603 = vmul.f32 %v3539, %v3539
    %v3604 = vmul.f32 %v3540, %v3540
    %v3605 = vmul.f32 %v3541, %v3541
    %v3606 = vmul.f32 %v3542, %v3542
    %v3607 = vmul.f32 %v3543, %v3543
    %v3608 = vmul.f32 %v3544, %v3544
    %v3609 = vadd.f32 %v3545, %v3546
    %v3610 = vadd.f32 %v3609, %v3547
    %v3611 = vadd.f32 %v3610, %v3548
    %v3612 = vadd.f32 %v3611, %v3549
    %v3613 = vadd.f32 %v3612, %v3550
    %v3614 = vadd.f32 %v3613, %v3551
    %v3615 = vadd.f32 %v3614, %v3552
    %v3616 = vadd.f32 %v3615, %v3553
    %v3617 = vadd.f32 %v3616, %v3554
    %v3618 = vadd.f32 %v3617, %v3555
    %v3619 = vadd.f32 %v3618, %v3556
    %v3620 = vadd.f32 %v3619, %v3557
    %v3621 = vadd.f32 %v3620, %v3558
    %v3622 = vadd.f32 %v3621, %v3559
    %v3623 = vadd.f32 %v3622, %v3560
    %v3624 = vadd.f32 %v3623, %v3561
    %v3625 = vadd.f32 %v3624, %v3562
    %v3626 = vadd.f32 %v3625, %v3563
    %v3627 = vadd.f32 %v3626, %v3564
    %v3628 = vadd.f32 %v3627, %v3565
    %v3629 = vadd.f32 %v3628, %v3566
    %v3630 = vadd.f32 %v3629, %v3567
    %v3631 = vadd.f32 %v3630, %v3568
    %v3632 = vadd.f32 %v3631, %v3569
    %v3633 = vadd.f32 %v3632, %v3570
    %v3634 = vadd.f32 %v3633, %v3571
    %v3635 = vadd.f32 %v3634, %v3572
    %v3636 = vadd.f32 %v3635, %v3573
    %v3637 = vadd.f32 %v3636, %v3574
    %v3638 = vadd.f32 %v3637, %v3575
    %v3639 = vadd.f32 %v3638, %v3576
    %v3640 = vadd.f32 %v3639, %v3577
    %v3641 = vadd.f32 %v3640, %v3578
    %v3642 = vadd.f32 %v3641, %v3579
    %v3643 = vadd.f32 %v3642, %v3580
    %v3644 = vadd.f32 %v3643, %v3581
    %v3645 = vadd.f32 %v3644, %v3582
    %v3646 = vadd.f32 %v3645, %v3583
    %v3647 = vadd.f32 %v3646, %v3584
    %v3648 = vadd.f32 %v3647, %v3585
    %v3649 = vadd.f32 %v3648, %v3586
    %v3650 = vadd.f32 %v3649, %v3587
    %v3651 = vadd.f32 %v3650, %v3588
    %v3652 = vadd.f32 %v3651, %v3589
    %v3653 = vadd.f32 %v3652, %v3590
    %v3654 = vadd.f32 %v3653, %v3591
    %v3655 = vadd.f32 %v3654, %v3592
    %v3656 = vadd.f32 %v3655, %v3593
    %v3657 = vadd.f32 %v3656, %v3594
    %v3658 = vadd.f32 %v3657, %v3595
    %v3659 = vadd.f32 %v3658, %v3596
    %v3660 = vadd.f32 %v3659, %v3597
    %v3661 = vadd.f32 %v3660, %v3598
    %v3662 = vadd.f32 %v3661, %v3599
    %v3663 = vadd.f32 %v3662, %v3600
    %v3664 = vadd.f32 %v3663, %v3601
    %v3665 = vadd.f32 %v3664, %v3602
    %v3666 = vadd.f32 %v3665, %v3603
    %v3667 = vadd.f32 %v3666, %v3604
    %v3668 = vadd.f32 %v3667, %v3605
    %v3669 = vadd.f32 %v3668, %v3606
    %v3670 = vadd.f32 %v3669, %v3607
    %v3671 = vadd.f32 %v3670, %v3608
    %v3672 = vrot.slane %v3671, 4
    %v3673 = vadd.f32 %v3671, %v3672
    %v3674 = vrot.slane %v3673, 2
    %v3675 = vadd.f32 %v3673, %v3674
    %v3676 = vrot.slane %v3675, 1
    %v3677 = vadd.f32 %v3675, %v3676
    %v3678 = vmul.f32 %v3677, %v3479
    %v3679 = vadd.f32 %v3678, 1e-05
    %v3680 = vrsqrt.pop %v3679
    %v3681 = vmul.f32 %v3680, %v3679
    %v3682 = vmul.f32 %v3681, %v3680
    %v3683 = vmul.f32 0.5, %v3682
    %v3684 = vsub.f32 1.5, %v3683
    %v3685 = vmul.f32 %v3680, %v3684
    %vm3686 = vweird.f32 %v3679
    %vm3687 = vweird.f32 %v3680
    %vm3688 = vmor %vm3686, %vm3687
    %v3689 = vsel %vm3688, %v3680, %v3685
    %v3690 = vmul.f32 %v3481, %v3689
    %v3691 = vmul.f32 %v3482, %v3689
    %v3692 = vmul.f32 %v3483, %v3689
    %v3693 = vmul.f32 %v3484, %v3689
    %v3694 = vmul.f32 %v3485, %v3689
    %v3695 = vmul.f32 %v3486, %v3689
    %v3696 = vmul.f32 %v3487, %v3689
    %v3697 = vmul.f32 %v3488, %v3689
    %v3698 = vmul.f32 %v3489, %v3689
    %v3699 = vmul.f32 %v3490, %v3689
    %v3700 = vmul.f32 %v3491, %v3689
    %v3701 = vmul.f32 %v3492, %v3689
    %v3702 = vmul.f32 %v3493, %v3689
    %v3703 = vmul.f32 %v3494, %v3689
    %v3704 = vmul.f32 %v3495, %v3689
    %v3705 = vmul.f32 %v3496, %v3689
    %v3706 = vmul.f32 %v3497, %v3689
    %v3707 = vmul.f32 %v3498, %v3689
    %v3708 = vmul.f32 %v3499, %v3689
    %v3709 = vmul.f32 %v3500, %v3689
    %v3710 = vmul.f32 %v3501, %v3689
    %v3711 = vmul.f32 %v3502, %v3689
    %v3712 = vmul.f32 %v3503, %v3689
    %v3713 = vmul.f32 %v3504, %v3689
    %v3714 = vmul.f32 %v3505, %v3689
    %v3715 = vmul.f32 %v3506, %v3689
    %v3716 = vmul.f32 %v3507, %v3689
    %v3717 = vmul.f32 %v3508, %v3689
    %v3718 = vmul.f32 %v3509, %v3689
    %v3719 = vmul.f32 %v3510, %v3689
    %v3720 = vmul.f32 %v3511, %v3689
    %v3721 = vmul.f32 %v3512, %v3689
    %v3722 = vmul.f32 %v3513, %v3689
    %v3723 = vmul.f32 %v3514, %v3689
    %v3724 = vmul.f32 %v3515, %v3689
    %v3725 = vmul.f32 %v3516, %v3689
    %v3726 = vmul.f32 %v3517, %v3689
    %v3727 = vmul.f32 %v3518, %v3689
    %v3728 = vmul.f32 %v3519, %v3689
    %v3729 = vmul.f32 %v3520, %v3689
    %v3730 = vmul.f32 %v3521, %v3689
    %v3731 = vmul.f32 %v3522, %v3689
    %v3732 = vmul.f32 %v3523, %v3689
    %v3733 = vmul.f32 %v3524, %v3689
    %v3734 = vmul.f32 %v3525, %v3689
    %v3735 = vmul.f32 %v3526, %v3689
    %v3736 = vmul.f32 %v3527, %v3689
    %v3737 = vmul.f32 %v3528, %v3689
    %v3738 = vmul.f32 %v3529, %v3689
    %v3739 = vmul.f32 %v3530, %v3689
    %v3740 = vmul.f32 %v3531, %v3689
    %v3741 = vmul.f32 %v3532, %v3689
    %v3742 = vmul.f32 %v3533, %v3689
    %v3743 = vmul.f32 %v3534, %v3689
    %v3744 = vmul.f32 %v3535, %v3689
    %v3745 = vmul.f32 %v3536, %v3689
    %v3746 = vmul.f32 %v3537, %v3689
    %v3747 = vmul.f32 %v3538, %v3689
    %v3748 = vmul.f32 %v3539, %v3689
    %v3749 = vmul.f32 %v3540, %v3689
    %v3750 = vmul.f32 %v3541, %v3689
    %v3751 = vmul.f32 %v3542, %v3689
    %v3752 = vmul.f32 %v3543, %v3689
    %v3753 = vmul.f32 %v3544, %v3689
    %v3755 = vperm.slane %v148, 0
    %v3757 = vmul.f32 %v3690, %v3755
    %v3758 = vmul.f32 %v3691, %v3755
    %v3759 = vmul.f32 %v3692, %v3755
    %v3760 = vmul.f32 %v3693, %v3755
    %v3761 = vmul.f32 %v3694, %v3755
    %v3762 = vmul.f32 %v3695, %v3755
    %v3763 = vmul.f32 %v3696, %v3755
    %v3764 = vmul.f32 %v3697, %v3755
    %v3765 = vmul.f32 %v3698, %v3755
    %v3766 = vmul.f32 %v3699, %v3755
    %v3767 = vmul.f32 %v3700, %v3755
    %v3768 = vmul.f32 %v3701, %v3755
    %v3769 = vmul.f32 %v3702, %v3755
    %v3770 = vmul.f32 %v3703, %v3755
    %v3771 = vmul.f32 %v3704, %v3755
    %v3772 = vmul.f32 %v3705, %v3755
    %v3773 = vmul.f32 %v3706, %v3755
    %v3774 = vmul.f32 %v3707, %v3755
    %v3775 = vmul.f32 %v3708, %v3755
    %v3776 = vmul.f32 %v3709, %v3755
    %v3777 = vmul.f32 %v3710, %v3755
    %v3778 = vmul.f32 %v3711, %v3755
    %v3779 = vmul.f32 %v3712, %v3755
    %v3780 = vmul.f32 %v3713, %v3755
    %v3781 = vmul.f32 %v3714, %v3755
    %v3782 = vmul.f32 %v3715, %v3755
    %v3783 = vmul.f32 %v3716, %v3755
    %v3784 = vmul.f32 %v3717, %v3755
    %v3785 = vmul.f32 %v3718, %v3755
    %v3786 = vmul.f32 %v3719, %v3755
    %v3787 = vmul.f32 %v3720, %v3755
    %v3788 = vmul.f32 %v3721, %v3755
    %v3789 = vmul.f32 %v3722, %v3755
    %v3790 = vmul.f32 %v3723, %v3755
    %v3791 = vmul.f32 %v3724, %v3755
    %v3792 = vmul.f32 %v3725, %v3755
    %v3793 = vmul.f32 %v3726, %v3755
    %v3794 = vmul.f32 %v3727, %v3755
    %v3795 = vmul.f32 %v3728, %v3755
    %v3796 = vmul.f32 %v3729, %v3755
    %v3797 = vmul.f32 %v3730, %v3755
    %v3798 = vmul.f32 %v3731, %v3755
    %v3799 = vmul.f32 %v3732, %v3755
    %v3800 = vmul.f32 %v3733, %v3755
    %v3801 = vmul.f32 %v3734, %v3755
    %v3802 = vmul.f32 %v3735, %v3755
    %v3803 = vmul.f32 %v3736, %v3755
    %v3804 = vmul.f32 %v3737, %v3755
    %v3805 = vmul.f32 %v3738, %v3755
    %v3806 = vmul.f32 %v3739, %v3755
    %v3807 = vmul.f32 %v3740, %v3755
    %v3808 = vmul.f32 %v3741, %v3755
    %v3809 = vmul.f32 %v3742, %v3755
    %v3810 = vmul.f32 %v3743, %v3755
    %v3811 = vmul.f32 %v3744, %v3755
    %v3812 = vmul.f32 %v3745, %v3755
    %v3813 = vmul.f32 %v3746, %v3755
    %v3814 = vmul.f32 %v3747, %v3755
    %v3815 = vmul.f32 %v3748, %v3755
    %v3816 = vmul.f32 %v3749, %v3755
    %v3817 = vmul.f32 %v3750, %v3755
    %v3818 = vmul.f32 %v3751, %v3755
    %v3819 = vmul.f32 %v3752, %v3755
    %v3820 = vmul.f32 %v3753, %v3755
    %v3822 = vperm.slane %v149, 0
    %v3824 = vadd.f32 %v3757, %v3822
    %v3825 = vadd.f32 %v3758, %v3822
    %v3826 = vadd.f32 %v3759, %v3822
    %v3827 = vadd.f32 %v3760, %v3822
    %v3828 = vadd.f32 %v3761, %v3822
    %v3829 = vadd.f32 %v3762, %v3822
    %v3830 = vadd.f32 %v3763, %v3822
    %v3831 = vadd.f32 %v3764, %v3822
    %v3832 = vadd.f32 %v3765, %v3822
    %v3833 = vadd.f32 %v3766, %v3822
    %v3834 = vadd.f32 %v3767, %v3822
    %v3835 = vadd.f32 %v3768, %v3822
    %v3836 = vadd.f32 %v3769, %v3822
    %v3837 = vadd.f32 %v3770, %v3822
    %v3838 = vadd.f32 %v3771, %v3822
    %v3839 = vadd.f32 %v3772, %v3822
    %v3840 = vadd.f32 %v3773, %v3822
    %v3841 = vadd.f32 %v3774, %v3822
    %v3842 = vadd.f32 %v3775, %v3822
    %v3843 = vadd.f32 %v3776, %v3822
    %v3844 = vadd.f32 %v3777, %v3822
    %v3845 = vadd.f32 %v3778, %v3822
    %v3846 = vadd.f32 %v3779, %v3822
    %v3847 = vadd.f32 %v3780, %v3822
    %v3848 = vadd.f32 %v3781, %v3822
    %v3849 = vadd.f32 %v3782, %v3822
    %v3850 = vadd.f32 %v3783, %v3822
    %v3851 = vadd.f32 %v3784, %v3822
    %v3852 = vadd.f32 %v3785, %v3822
    %v3853 = vadd.f32 %v3786, %v3822
    %v3854 = vadd.f32 %v3787, %v3822
    %v3855 = vadd.f32 %v3788, %v3822
    %v3856 = vadd.f32 %v3789, %v3822
    %v3857 = vadd.f32 %v3790, %v3822
    %v3858 = vadd.f32 %v3791, %v3822
    %v3859 = vadd.f32 %v3792, %v3822
    %v3860 = vadd.f32 %v3793, %v3822
    %v3861 = vadd.f32 %v3794, %v3822
    %v3862 = vadd.f32 %v3795, %v3822
    %v3863 = vadd.f32 %v3796, %v3822
    %v3864 = vadd.f32 %v3797, %v3822
    %v3865 = vadd.f32 %v3798, %v3822
    %v3866 = vadd.f32 %v3799, %v3822
    %v3867 = vadd.f32 %v3800, %v3822
    %v3868 = vadd.f32 %v3801, %v3822
    %v3869 = vadd.f32 %v3802, %v3822
    %v3870 = vadd.f32 %v3803, %v3822
    %v3871 = vadd.f32 %v3804, %v3822
    %v3872 = vadd.f32 %v3805, %v3822
    %v3873 = vadd.f32 %v3806, %v3822
    %v3874 = vadd.f32 %v3807, %v3822
    %v3875 = vadd.f32 %v3808, %v3822
    %v3876 = vadd.f32 %v3809, %v3822
    %v3877 = vadd.f32 %v3810, %v3822
    %v3878 = vadd.f32 %v3811, %v3822
    %v3879 = vadd.f32 %v3812, %v3822
    %v3880 = vadd.f32 %v3813, %v3822
    %v3881 = vadd.f32 %v3814, %v3822
    %v3882 = vadd.f32 %v3815, %v3822
    %v3883 = vadd.f32 %v3816, %v3822
    %v3884 = vadd.f32 %v3817, %v3822
    %v3885 = vadd.f32 %v3818, %v3822
    %v3886 = vadd.f32 %v3819, %v3822
    %v3887 = vadd.f32 %v3820, %v3822
    %v3888 = vmax.f32 %v3824, 0.0
    %v3889 = vmax.f32 %v3825, 0.0
    %v3890 = vmax.f32 %v3826, 0.0
    %v3891 = vmax.f32 %v3827, 0.0
    %v3892 = vmax.f32 %v3828, 0.0
    %v3893 = vmax.f32 %v3829, 0.0
    %v3894 = vmax.f32 %v3830, 0.0
    %v3895 = vmax.f32 %v3831, 0.0
    %v3896 = vmax.f32 %v3832, 0.0
    %v3897 = vmax.f32 %v3833, 0.0
    %v3898 = vmax.f32 %v3834, 0.0
    %v3899 = vmax.f32 %v3835, 0.0
    %v3900 = vmax.f32 %v3836, 0.0
    %v3901 = vmax.f32 %v3837, 0.0
    %v3902 = vmax.f32 %v3838, 0.0
    %v3903 = vmax.f32 %v3839, 0.0
    %v3904 = vmax.f32 %v3840, 0.0
    %v3905 = vmax.f32 %v3841, 0.0
    %v3906 = vmax.f32 %v3842, 0.0
    %v3907 = vmax.f32 %v3843, 0.0
    %v3908 = vmax.f32 %v3844, 0.0
    %v3909 = vmax.f32 %v3845, 0.0
    %v3910 = vmax.f32 %v3846, 0.0
    %v3911 = vmax.f32 %v3847, 0.0
    %v3912 = vmax.f32 %v3848, 0.0
    %v3913 = vmax.f32 %v3849, 0.0
    %v3914 = vmax.f32 %v3850, 0.0
    %v3915 = vmax.f32 %v3851, 0.0
    %v3916 = vmax.f32 %v3852, 0.0
    %v3917 = vmax.f32 %v3853, 0.0
    %v3918 = vmax.f32 %v3854, 0.0
    %v3919 = vmax.f32 %v3855, 0.0
    %v3920 = vmax.f32 %v3856, 0.0
    %v3921 = vmax.f32 %v3857, 0.0
    %v3922 = vmax.f32 %v3858, 0.0
    %v3923 = vmax.f32 %v3859, 0.0
    %v3924 = vmax.f32 %v3860, 0.0
    %v3925 = vmax.f32 %v3861, 0.0
    %v3926 = vmax.f32 %v3862, 0.0
    %v3927 = vmax.f32 %v3863, 0.0
    %v3928 = vmax.f32 %v3864, 0.0
    %v3929 = vmax.f32 %v3865, 0.0
    %v3930 = vmax.f32 %v3866, 0.0
    %v3931 = vmax.f32 %v3867, 0.0
    %v3932 = vmax.f32 %v3868, 0.0
    %v3933 = vmax.f32 %v3869, 0.0
    %v3934 = vmax.f32 %v3870, 0.0
    %v3935 = vmax.f32 %v3871, 0.0
    %v3936 = vmax.f32 %v3872, 0.0
    %v3937 = vmax.f32 %v3873, 0.0
    %v3938 = vmax.f32 %v3874, 0.0
    %v3939 = vmax.f32 %v3875, 0.0
    %v3940 = vmax.f32 %v3876, 0.0
    %v3941 = vmax.f32 %v3877, 0.0
    %v3942 = vmax.f32 %v3878, 0.0
    %v3943 = vmax.f32 %v3879, 0.0
    %v3944 = vmax.f32 %v3880, 0.0
    %v3945 = vmax.f32 %v3881, 0.0
    %v3946 = vmax.f32 %v3882, 0.0
    %v3947 = vmax.f32 %v3883, 0.0
    %v3948 = vmax.f32 %v3884, 0.0
    %v3949 = vmax.f32 %v3885, 0.0
    %v3950 = vmax.f32 %v3886, 0.0
    %v3951 = vmax.f32 %v3887, 0.0
    %v4016 = vrot.slane %v3888, 2
    %v4017 = vrot.slane %v3888, 4
    %v4018 = vrot.slane %v3888, 6
    %v4019 = vrot.slane %v3889, 2
    %v4020 = vrot.slane %v3889, 4
    %v4021 = vrot.slane %v3889, 6
    %v4022 = vrot.slane %v3890, 2
    %v4023 = vrot.slane %v3890, 4
    %v4024 = vrot.slane %v3890, 6
    %v4025 = vrot.slane %v3891, 2
    %v4026 = vrot.slane %v3891, 4
    %v4027 = vrot.slane %v3891, 6
    %v4028 = vrot.slane %v3892, 2
    %v4029 = vrot.slane %v3892, 4
    %v4030 = vrot.slane %v3892, 6
    %v4031 = vrot.slane %v3893, 2
    %v4032 = vrot.slane %v3893, 4
    %v4033 = vrot.slane %v3893, 6
    %v4034 = vrot.slane %v3894, 2
    %v4035 = vrot.slane %v3894, 4
    %v4036 = vrot.slane %v3894, 6
    %v4037 = vrot.slane %v3895, 2
    %v4038 = vrot.slane %v3895, 4
    %v4039 = vrot.slane %v3895, 6
    %v4040 = vrot.slane %v3896, 2
    %v4041 = vrot.slane %v3896, 4
    %v4042 = vrot.slane %v3896, 6
    %v4043 = vrot.slane %v3897, 2
    %v4044 = vrot.slane %v3897, 4
    %v4045 = vrot.slane %v3897, 6
    %v4046 = vrot.slane %v3898, 2
    %v4047 = vrot.slane %v3898, 4
    %v4048 = vrot.slane %v3898, 6
    %v4049 = vrot.slane %v3899, 2
    %v4050 = vrot.slane %v3899, 4
    %v4051 = vrot.slane %v3899, 6
    %v4052 = vrot.slane %v3900, 2
    %v4053 = vrot.slane %v3900, 4
    %v4054 = vrot.slane %v3900, 6
    %v4055 = vrot.slane %v3901, 2
    %v4056 = vrot.slane %v3901, 4
    %v4057 = vrot.slane %v3901, 6
    %v4058 = vrot.slane %v3902, 2
    %v4059 = vrot.slane %v3902, 4
    %v4060 = vrot.slane %v3902, 6
    %v4061 = vrot.slane %v3903, 2
    %v4062 = vrot.slane %v3903, 4
    %v4063 = vrot.slane %v3903, 6
    %v4064 = vrot.slane %v3904, 2
    %v4065 = vrot.slane %v3904, 4
    %v4066 = vrot.slane %v3904, 6
    %v4067 = vrot.slane %v3905, 2
    %v4068 = vrot.slane %v3905, 4
    %v4069 = vrot.slane %v3905, 6
    %v4070 = vrot.slane %v3906, 2
    %v4071 = vrot.slane %v3906, 4
    %v4072 = vrot.slane %v3906, 6
    %v4073 = vrot.slane %v3907, 2
    %v4074 = vrot.slane %v3907, 4
    %v4075 = vrot.slane %v3907, 6
    %v4076 = vrot.slane %v3908, 2
    %v4077 = vrot.slane %v3908, 4
    %v4078 = vrot.slane %v3908, 6
    %v4079 = vrot.slane %v3909, 2
    %v4080 = vrot.slane %v3909, 4
    %v4081 = vrot.slane %v3909, 6
    %v4082 = vrot.slane %v3910, 2
    %v4083 = vrot.slane %v3910, 4
    %v4084 = vrot.slane %v3910, 6
    %v4085 = vrot.slane %v3911, 2
    %v4086 = vrot.slane %v3911, 4
    %v4087 = vrot.slane %v3911, 6
    %v4088 = vrot.slane %v3912, 2
    %v4089 = vrot.slane %v3912, 4
    %v4090 = vrot.slane %v3912, 6
    %v4091 = vrot.slane %v3913, 2
    %v4092 = vrot.slane %v3913, 4
    %v4093 = vrot.slane %v3913, 6
    %v4094 = vrot.slane %v3914, 2
    %v4095 = vrot.slane %v3914, 4
    %v4096 = vrot.slane %v3914, 6
    %v4097 = vrot.slane %v3915, 2
    %v4098 = vrot.slane %v3915, 4
    %v4099 = vrot.slane %v3915, 6
    %v4100 = vrot.slane %v3916, 2
    %v4101 = vrot.slane %v3916, 4
    %v4102 = vrot.slane %v3916, 6
    %v4103 = vrot.slane %v3917, 2
    %v4104 = vrot.slane %v3917, 4
    %v4105 = vrot.slane %v3917, 6
    %v4106 = vrot.slane %v3918, 2
    %v4107 = vrot.slane %v3918, 4
    %v4108 = vrot.slane %v3918, 6
    %v4109 = vrot.slane %v3919, 2
    %v4110 = vrot.slane %v3919, 4
    %v4111 = vrot.slane %v3919, 6
    %v4112 = vrot.slane %v3920, 2
    %v4113 = vrot.slane %v3920, 4
    %v4114 = vrot.slane %v3920, 6
    %v4115 = vrot.slane %v3921, 2
    %v4116 = vrot.slane %v3921, 4
    %v4117 = vrot.slane %v3921, 6
    %v4118 = vrot.slane %v3922, 2
    %v4119 = vrot.slane %v3922, 4
    %v4120 = vrot.slane %v3922, 6
    %v4121 = vrot.slane %v3923, 2
    %v4122 = vrot.slane %v3923, 4
    %v4123 = vrot.slane %v3923, 6
    %v4124 = vrot.slane %v3924, 2
    %v4125 = vrot.slane %v3924, 4
    %v4126 = vrot.slane %v3924, 6
    %v4127 = vrot.slane %v3925, 2
    %v4128 = vrot.slane %v3925, 4
    %v4129 = vrot.slane %v3925, 6
    %v4130 = vrot.slane %v3926, 2
    %v4131 = vrot.slane %v3926, 4
    %v4132 = vrot.slane %v3926, 6
    %v4133 = vrot.slane %v3927, 2
    %v4134 = vrot.slane %v3927, 4
    %v4135 = vrot.slane %v3927, 6
    %v4136 = vrot.slane %v3928, 2
    %v4137 = vrot.slane %v3928, 4
    %v4138 = vrot.slane %v3928, 6
    %v4139 = vrot.slane %v3929, 2
    %v4140 = vrot.slane %v3929, 4
    %v4141 = vrot.slane %v3929, 6
    %v4142 = vrot.slane %v3930, 2
    %v4143 = vrot.slane %v3930, 4
    %v4144 = vrot.slane %v3930, 6
    %v4145 = vrot.slane %v3931, 2
    %v4146 = vrot.slane %v3931, 4
    %v4147 = vrot.slane %v3931, 6
    %v4148 = vrot.slane %v3932, 2
    %v4149 = vrot.slane %v3932, 4
    %v4150 = vrot.slane %v3932, 6
    %v4151 = vrot.slane %v3933, 2
    %v4152 = vrot.slane %v3933, 4
    %v4153 = vrot.slane %v3933, 6
    %v4154 = vrot.slane %v3934, 2
    %v4155 = vrot.slane %v3934, 4
    %v4156 = vrot.slane %v3934, 6
    %v4157 = vrot.slane %v3935, 2
    %v4158 = vrot.slane %v3935, 4
    %v4159 = vrot.slane %v3935, 6
    %v4160 = vrot.slane %v3936, 2
    %v4161 = vrot.slane %v3936, 4
    %v4162 = vrot.slane %v3936, 6
    %v4163 = vrot.slane %v3937, 2
    %v4164 = vrot.slane %v3937, 4
    %v4165 = vrot.slane %v3937, 6
    %v4166 = vrot.slane %v3938, 2
    %v4167 = vrot.slane %v3938, 4
    %v4168 = vrot.slane %v3938, 6
    %v4169 = vrot.slane %v3939, 2
    %v4170 = vrot.slane %v3939, 4
    %v4171 = vrot.slane %v3939, 6
    %v4172 = vrot.slane %v3940, 2
    %v4173 = vrot.slane %v3940, 4
    %v4174 = vrot.slane %v3940, 6
    %v4175 = vrot.slane %v3941, 2
    %v4176 = vrot.slane %v3941, 4
    %v4177 = vrot.slane %v3941, 6
    %v4178 = vrot.slane %v3942, 2
    %v4179 = vrot.slane %v3942, 4
    %v4180 = vrot.slane %v3942, 6
    %v4181 = vrot.slane %v3943, 2
    %v4182 = vrot.slane %v3943, 4
    %v4183 = vrot.slane %v3943, 6
    %v4184 = vrot.slane %v3944, 2
    %v4185 = vrot.slane %v3944, 4
    %v4186 = vrot.slane %v3944, 6
    %v4187 = vrot.slane %v3945, 2
    %v4188 = vrot.slane %v3945, 4
    %v4189 = vrot.slane %v3945, 6
    %v4190 = vrot.slane %v3946, 2
    %v4191 = vrot.slane %v3946, 4
    %v4192 = vrot.slane %v3946, 6
    %v4193 = vrot.slane %v3947, 2
    %v4194 = vrot.slane %v3947, 4
    %v4195 = vrot.slane %v3947, 6
    %v4196 = vrot.slane %v3948, 2
    %v4197 = vrot.slane %v3948, 4
    %v4198 = vrot.slane %v3948, 6
    %v4199 = vrot.slane %v3949, 2
    %v4200 = vrot.slane %v3949, 4
    %v4201 = vrot.slane %v3949, 6
    %v4202 = vrot.slane %v3950, 2
    %v4203 = vrot.slane %v3950, 4
    %v4204 = vrot.slane %v3950, 6
    %v4205 = vrot.slane %v3951, 2
    %v4206 = vrot.slane %v3951, 4
    %v4207 = vrot.slane %v3951, 6
    %v4400 = vrot.slane %v3888, 7
    %v4401 = vrot.slane %v4400, 2
    %v4402 = vrot.slane %v4016, 7
    %v4403 = vrot.slane %v4402, 2
    %v4404 = vrot.slane %v4017, 7
    %v4405 = vrot.slane %v4404, 2
    %v4406 = vrot.slane %v4018, 7
    %v4407 = vrot.slane %v4406, 2
    %v4408 = vrot.slane %v3889, 7
    %v4409 = vrot.slane %v4408, 2
    %v4410 = vrot.slane %v4019, 7
    %v4411 = vrot.slane %v4410, 2
    %v4412 = vrot.slane %v4020, 7
    %v4413 = vrot.slane %v4412, 2
    %v4414 = vrot.slane %v4021, 7
    %v4415 = vrot.slane %v4414, 2
    %v4416 = vrot.slane %v3890, 7
    %v4417 = vrot.slane %v4416, 2
    %v4418 = vrot.slane %v4022, 7
    %v4419 = vrot.slane %v4418, 2
    %v4420 = vrot.slane %v4023, 7
    %v4421 = vrot.slane %v4420, 2
    %v4422 = vrot.slane %v4024, 7
    %v4423 = vrot.slane %v4422, 2
    %v4424 = vrot.slane %v3891, 7
    %v4425 = vrot.slane %v4424, 2
    %v4426 = vrot.slane %v4025, 7
    %v4427 = vrot.slane %v4426, 2
    %v4428 = vrot.slane %v4026, 7
    %v4429 = vrot.slane %v4428, 2
    %v4430 = vrot.slane %v4027, 7
    %v4431 = vrot.slane %v4430, 2
    %v4432 = vrot.slane %v3892, 7
    %v4433 = vrot.slane %v4432, 2
    %v4434 = vrot.slane %v4028, 7
    %v4435 = vrot.slane %v4434, 2
    %v4436 = vrot.slane %v4029, 7
    %v4437 = vrot.slane %v4436, 2
    %v4438 = vrot.slane %v4030, 7
    %v4439 = vrot.slane %v4438, 2
    %v4440 = vrot.slane %v3893, 7
    %v4441 = vrot.slane %v4440, 2
    %v4442 = vrot.slane %v4031, 7
    %v4443 = vrot.slane %v4442, 2
    %v4444 = vrot.slane %v4032, 7
    %v4445 = vrot.slane %v4444, 2
    %v4446 = vrot.slane %v4033, 7
    %v4447 = vrot.slane %v4446, 2
    %v4448 = vrot.slane %v3894, 7
    %v4449 = vrot.slane %v4448, 2
    %v4450 = vrot.slane %v4034, 7
    %v4451 = vrot.slane %v4450, 2
    %v4452 = vrot.slane %v4035, 7
    %v4453 = vrot.slane %v4452, 2
    %v4454 = vrot.slane %v4036, 7
    %v4455 = vrot.slane %v4454, 2
    %v4456 = vrot.slane %v3895, 7
    %v4457 = vrot.slane %v4456, 2
    %v4458 = vrot.slane %v4037, 7
    %v4459 = vrot.slane %v4458, 2
    %v4460 = vrot.slane %v4038, 7
    %v4461 = vrot.slane %v4460, 2
    %v4462 = vrot.slane %v4039, 7
    %v4463 = vrot.slane %v4462, 2
    %v4464 = vrot.slane %v3896, 7
    %v4465 = vrot.slane %v4464, 2
    %v4466 = vrot.slane %v4040, 7
    %v4467 = vrot.slane %v4466, 2
    %v4468 = vrot.slane %v4041, 7
    %v4469 = vrot.slane %v4468, 2
    %v4470 = vrot.slane %v4042, 7
    %v4471 = vrot.slane %v4470, 2
    %v4472 = vrot.slane %v3897, 7
    %v4473 = vrot.slane %v4472, 2
    %v4474 = vrot.slane %v4043, 7
    %v4475 = vrot.slane %v4474, 2
    %v4476 = vrot.slane %v4044, 7
    %v4477 = vrot.slane %v4476, 2
    %v4478 = vrot.slane %v4045, 7
    %v4479 = vrot.slane %v4478, 2
    %v4480 = vrot.slane %v3898, 7
    %v4481 = vrot.slane %v4480, 2
    %v4482 = vrot.slane %v4046, 7
    %v4483 = vrot.slane %v4482, 2
    %v4484 = vrot.slane %v4047, 7
    %v4485 = vrot.slane %v4484, 2
    %v4486 = vrot.slane %v4048, 7
    %v4487 = vrot.slane %v4486, 2
    %v4488 = vrot.slane %v3899, 7
    %v4489 = vrot.slane %v4488, 2
    %v4490 = vrot.slane %v4049, 7
    %v4491 = vrot.slane %v4490, 2
    %v4492 = vrot.slane %v4050, 7
    %v4493 = vrot.slane %v4492, 2
    %v4494 = vrot.slane %v4051, 7
    %v4495 = vrot.slane %v4494, 2
    %v4496 = vrot.slane %v3900, 7
    %v4497 = vrot.slane %v4496, 2
    %v4498 = vrot.slane %v4052, 7
    %v4499 = vrot.slane %v4498, 2
    %v4500 = vrot.slane %v4053, 7
    %v4501 = vrot.slane %v4500, 2
    %v4502 = vrot.slane %v4054, 7
    %v4503 = vrot.slane %v4502, 2
    %v4504 = vrot.slane %v3901, 7
    %v4505 = vrot.slane %v4504, 2
    %v4506 = vrot.slane %v4055, 7
    %v4507 = vrot.slane %v4506, 2
    %v4508 = vrot.slane %v4056, 7
    %v4509 = vrot.slane %v4508, 2
    %v4510 = vrot.slane %v4057, 7
    %v4511 = vrot.slane %v4510, 2
    %v4512 = vrot.slane %v3902, 7
    %v4513 = vrot.slane %v4512, 2
    %v4514 = vrot.slane %v4058, 7
    %v4515 = vrot.slane %v4514, 2
    %v4516 = vrot.slane %v4059, 7
    %v4517 = vrot.slane %v4516, 2
    %v4518 = vrot.slane %v4060, 7
    %v4519 = vrot.slane %v4518, 2
    %v4520 = vrot.slane %v3903, 7
    %v4521 = vrot.slane %v4520, 2
    %v4522 = vrot.slane %v4061, 7
    %v4523 = vrot.slane %v4522, 2
    %v4524 = vrot.slane %v4062, 7
    %v4525 = vrot.slane %v4524, 2
    %v4526 = vrot.slane %v4063, 7
    %v4527 = vrot.slane %v4526, 2
    %v4528 = vrot.slane %v3904, 7
    %v4529 = vrot.slane %v4528, 2
    %v4530 = vrot.slane %v4064, 7
    %v4531 = vrot.slane %v4530, 2
    %v4532 = vrot.slane %v4065, 7
    %v4533 = vrot.slane %v4532, 2
    %v4534 = vrot.slane %v4066, 7
    %v4535 = vrot.slane %v4534, 2
    %v4536 = vrot.slane %v3905, 7
    %v4537 = vrot.slane %v4536, 2
    %v4538 = vrot.slane %v4067, 7
    %v4539 = vrot.slane %v4538, 2
    %v4540 = vrot.slane %v4068, 7
    %v4541 = vrot.slane %v4540, 2
    %v4542 = vrot.slane %v4069, 7
    %v4543 = vrot.slane %v4542, 2
    %v4544 = vrot.slane %v3906, 7
    %v4545 = vrot.slane %v4544, 2
    %v4546 = vrot.slane %v4070, 7
    %v4547 = vrot.slane %v4546, 2
    %v4548 = vrot.slane %v4071, 7
    %v4549 = vrot.slane %v4548, 2
    %v4550 = vrot.slane %v4072, 7
    %v4551 = vrot.slane %v4550, 2
    %v4552 = vrot.slane %v3907, 7
    %v4553 = vrot.slane %v4552, 2
    %v4554 = vrot.slane %v4073, 7
    %v4555 = vrot.slane %v4554, 2
    %v4556 = vrot.slane %v4074, 7
    %v4557 = vrot.slane %v4556, 2
    %v4558 = vrot.slane %v4075, 7
    %v4559 = vrot.slane %v4558, 2
    %v4560 = vrot.slane %v3908, 7
    %v4561 = vrot.slane %v4560, 2
    %v4562 = vrot.slane %v4076, 7
    %v4563 = vrot.slane %v4562, 2
    %v4564 = vrot.slane %v4077, 7
    %v4565 = vrot.slane %v4564, 2
    %v4566 = vrot.slane %v4078, 7
    %v4567 = vrot.slane %v4566, 2
    %v4568 = vrot.slane %v3909, 7
    %v4569 = vrot.slane %v4568, 2
    %v4570 = vrot.slane %v4079, 7
    %v4571 = vrot.slane %v4570, 2
    %v4572 = vrot.slane %v4080, 7
    %v4573 = vrot.slane %v4572, 2
    %v4574 = vrot.slane %v4081, 7
    %v4575 = vrot.slane %v4574, 2
    %v4576 = vrot.slane %v3910, 7
    %v4577 = vrot.slane %v4576, 2
    %v4578 = vrot.slane %v4082, 7
    %v4579 = vrot.slane %v4578, 2
    %v4580 = vrot.slane %v4083, 7
    %v4581 = vrot.slane %v4580, 2
    %v4582 = vrot.slane %v4084, 7
    %v4583 = vrot.slane %v4582, 2
    %v4584 = vrot.slane %v3911, 7
    %v4585 = vrot.slane %v4584, 2
    %v4586 = vrot.slane %v4085, 7
    %v4587 = vrot.slane %v4586, 2
    %v4588 = vrot.slane %v4086, 7
    %v4589 = vrot.slane %v4588, 2
    %v4590 = vrot.slane %v4087, 7
    %v4591 = vrot.slane %v4590, 2
    %v4592 = vrot.slane %v3912, 7
    %v4593 = vrot.slane %v4592, 2
    %v4594 = vrot.slane %v4088, 7
    %v4595 = vrot.slane %v4594, 2
    %v4596 = vrot.slane %v4089, 7
    %v4597 = vrot.slane %v4596, 2
    %v4598 = vrot.slane %v4090, 7
    %v4599 = vrot.slane %v4598, 2
    %v4600 = vrot.slane %v3913, 7
    %v4601 = vrot.slane %v4600, 2
    %v4602 = vrot.slane %v4091, 7
    %v4603 = vrot.slane %v4602, 2
    %v4604 = vrot.slane %v4092, 7
    %v4605 = vrot.slane %v4604, 2
    %v4606 = vrot.slane %v4093, 7
    %v4607 = vrot.slane %v4606, 2
    %v4608 = vrot.slane %v3914, 7
    %v4609 = vrot.slane %v4608, 2
    %v4610 = vrot.slane %v4094, 7
    %v4611 = vrot.slane %v4610, 2
    %v4612 = vrot.slane %v4095, 7
    %v4613 = vrot.slane %v4612, 2
    %v4614 = vrot.slane %v4096, 7
    %v4615 = vrot.slane %v4614, 2
    %v4616 = vrot.slane %v3915, 7
    %v4617 = vrot.slane %v4616, 2
    %v4618 = vrot.slane %v4097, 7
    %v4619 = vrot.slane %v4618, 2
    %v4620 = vrot.slane %v4098, 7
    %v4621 = vrot.slane %v4620, 2
    %v4622 = vrot.slane %v4099, 7
    %v4623 = vrot.slane %v4622, 2
    %v4624 = vrot.slane %v3916, 7
    %v4625 = vrot.slane %v4624, 2
    %v4626 = vrot.slane %v4100, 7
    %v4627 = vrot.slane %v4626, 2
    %v4628 = vrot.slane %v4101, 7
    %v4629 = vrot.slane %v4628, 2
    %v4630 = vrot.slane %v4102, 7
    %v4631 = vrot.slane %v4630, 2
    %v4632 = vrot.slane %v3917, 7
    %v4633 = vrot.slane %v4632, 2
    %v4634 = vrot.slane %v4103, 7
    %v4635 = vrot.slane %v4634, 2
    %v4636 = vrot.slane %v4104, 7
    %v4637 = vrot.slane %v4636, 2
    %v4638 = vrot.slane %v4105, 7
    %v4639 = vrot.slane %v4638, 2
    %v4640 = vrot.slane %v3918, 7
    %v4641 = vrot.slane %v4640, 2
    %v4642 = vrot.slane %v4106, 7
    %v4643 = vrot.slane %v4642, 2
    %v4644 = vrot.slane %v4107, 7
    %v4645 = vrot.slane %v4644, 2
    %v4646 = vrot.slane %v4108, 7
    %v4647 = vrot.slane %v4646, 2
    %v4648 = vrot.slane %v3919, 7
    %v4649 = vrot.slane %v4648, 2
    %v4650 = vrot.slane %v4109, 7
    %v4651 = vrot.slane %v4650, 2
    %v4652 = vrot.slane %v4110, 7
    %v4653 = vrot.slane %v4652, 2
    %v4654 = vrot.slane %v4111, 7
    %v4655 = vrot.slane %v4654, 2
    %v4656 = vrot.slane %v3920, 7
    %v4657 = vrot.slane %v4656, 2
    %v4658 = vrot.slane %v4112, 7
    %v4659 = vrot.slane %v4658, 2
    %v4660 = vrot.slane %v4113, 7
    %v4661 = vrot.slane %v4660, 2
    %v4662 = vrot.slane %v4114, 7
    %v4663 = vrot.slane %v4662, 2
    %v4664 = vrot.slane %v3921, 7
    %v4665 = vrot.slane %v4664, 2
    %v4666 = vrot.slane %v4115, 7
    %v4667 = vrot.slane %v4666, 2
    %v4668 = vrot.slane %v4116, 7
    %v4669 = vrot.slane %v4668, 2
    %v4670 = vrot.slane %v4117, 7
    %v4671 = vrot.slane %v4670, 2
    %v4672 = vrot.slane %v3922, 7
    %v4673 = vrot.slane %v4672, 2
    %v4674 = vrot.slane %v4118, 7
    %v4675 = vrot.slane %v4674, 2
    %v4676 = vrot.slane %v4119, 7
    %v4677 = vrot.slane %v4676, 2
    %v4678 = vrot.slane %v4120, 7
    %v4679 = vrot.slane %v4678, 2
    %v4680 = vrot.slane %v3923, 7
    %v4681 = vrot.slane %v4680, 2
    %v4682 = vrot.slane %v4121, 7
    %v4683 = vrot.slane %v4682, 2
    %v4684 = vrot.slane %v4122, 7
    %v4685 = vrot.slane %v4684, 2
    %v4686 = vrot.slane %v4123, 7
    %v4687 = vrot.slane %v4686, 2
    %v4688 = vrot.slane %v3924, 7
    %v4689 = vrot.slane %v4688, 2
    %v4690 = vrot.slane %v4124, 7
    %v4691 = vrot.slane %v4690, 2
    %v4692 = vrot.slane %v4125, 7
    %v4693 = vrot.slane %v4692, 2
    %v4694 = vrot.slane %v4126, 7
    %v4695 = vrot.slane %v4694, 2
    %v4696 = vrot.slane %v3925, 7
    %v4697 = vrot.slane %v4696, 2
    %v4698 = vrot.slane %v4127, 7
    %v4699 = vrot.slane %v4698, 2
    %v4700 = vrot.slane %v4128, 7
    %v4701 = vrot.slane %v4700, 2
    %v4702 = vrot.slane %v4129, 7
    %v4703 = vrot.slane %v4702, 2
    %v4704 = vrot.slane %v3926, 7
    %v4705 = vrot.slane %v4704, 2
    %v4706 = vrot.slane %v4130, 7
    %v4707 = vrot.slane %v4706, 2
    %v4708 = vrot.slane %v4131, 7
    %v4709 = vrot.slane %v4708, 2
    %v4710 = vrot.slane %v4132, 7
    %v4711 = vrot.slane %v4710, 2
    %v4712 = vrot.slane %v3927, 7
    %v4713 = vrot.slane %v4712, 2
    %v4714 = vrot.slane %v4133, 7
    %v4715 = vrot.slane %v4714, 2
    %v4716 = vrot.slane %v4134, 7
    %v4717 = vrot.slane %v4716, 2
    %v4718 = vrot.slane %v4135, 7
    %v4719 = vrot.slane %v4718, 2
    %v4720 = vrot.slane %v3928, 7
    %v4721 = vrot.slane %v4720, 2
    %v4722 = vrot.slane %v4136, 7
    %v4723 = vrot.slane %v4722, 2
    %v4724 = vrot.slane %v4137, 7
    %v4725 = vrot.slane %v4724, 2
    %v4726 = vrot.slane %v4138, 7
    %v4727 = vrot.slane %v4726, 2
    %v4728 = vrot.slane %v3929, 7
    %v4729 = vrot.slane %v4728, 2
    %v4730 = vrot.slane %v4139, 7
    %v4731 = vrot.slane %v4730, 2
    %v4732 = vrot.slane %v4140, 7
    %v4733 = vrot.slane %v4732, 2
    %v4734 = vrot.slane %v4141, 7
    %v4735 = vrot.slane %v4734, 2
    %v4736 = vrot.slane %v3930, 7
    %v4737 = vrot.slane %v4736, 2
    %v4738 = vrot.slane %v4142, 7
    %v4739 = vrot.slane %v4738, 2
    %v4740 = vrot.slane %v4143, 7
    %v4741 = vrot.slane %v4740, 2
    %v4742 = vrot.slane %v4144, 7
    %v4743 = vrot.slane %v4742, 2
    %v4744 = vrot.slane %v3931, 7
    %v4745 = vrot.slane %v4744, 2
    %v4746 = vrot.slane %v4145, 7
    %v4747 = vrot.slane %v4746, 2
    %v4748 = vrot.slane %v4146, 7
    %v4749 = vrot.slane %v4748, 2
    %v4750 = vrot.slane %v4147, 7
    %v4751 = vrot.slane %v4750, 2
    %v4752 = vrot.slane %v3932, 7
    %v4753 = vrot.slane %v4752, 2
    %v4754 = vrot.slane %v4148, 7
    %v4755 = vrot.slane %v4754, 2
    %v4756 = vrot.slane %v4149, 7
    %v4757 = vrot.slane %v4756, 2
    %v4758 = vrot.slane %v4150, 7
    %v4759 = vrot.slane %v4758, 2
    %v4760 = vrot.slane %v3933, 7
    %v4761 = vrot.slane %v4760, 2
    %v4762 = vrot.slane %v4151, 7
    %v4763 = vrot.slane %v4762, 2
    %v4764 = vrot.slane %v4152, 7
    %v4765 = vrot.slane %v4764, 2
    %v4766 = vrot.slane %v4153, 7
    %v4767 = vrot.slane %v4766, 2
    %v4768 = vrot.slane %v3934, 7
    %v4769 = vrot.slane %v4768, 2
    %v4770 = vrot.slane %v4154, 7
    %v4771 = vrot.slane %v4770, 2
    %v4772 = vrot.slane %v4155, 7
    %v4773 = vrot.slane %v4772, 2
    %v4774 = vrot.slane %v4156, 7
    %v4775 = vrot.slane %v4774, 2
    %v4776 = vrot.slane %v3935, 7
    %v4777 = vrot.slane %v4776, 2
    %v4778 = vrot.slane %v4157, 7
    %v4779 = vrot.slane %v4778, 2
    %v4780 = vrot.slane %v4158, 7
    %v4781 = vrot.slane %v4780, 2
    %v4782 = vrot.slane %v4159, 7
    %v4783 = vrot.slane %v4782, 2
    %v4784 = vrot.slane %v3936, 7
    %v4785 = vrot.slane %v4784, 2
    %v4786 = vrot.slane %v4160, 7
    %v4787 = vrot.slane %v4786, 2
    %v4788 = vrot.slane %v4161, 7
    %v4789 = vrot.slane %v4788, 2
    %v4790 = vrot.slane %v4162, 7
    %v4791 = vrot.slane %v4790, 2
    %v4792 = vrot.slane %v3937, 7
    %v4793 = vrot.slane %v4792, 2
    %v4794 = vrot.slane %v4163, 7
    %v4795 = vrot.slane %v4794, 2
    %v4796 = vrot.slane %v4164, 7
    %v4797 = vrot.slane %v4796, 2
    %v4798 = vrot.slane %v4165, 7
    %v4799 = vrot.slane %v4798, 2
    %v4800 = vrot.slane %v3938, 7
    %v4801 = vrot.slane %v4800, 2
    %v4802 = vrot.slane %v4166, 7
    %v4803 = vrot.slane %v4802, 2
    %v4804 = vrot.slane %v4167, 7
    %v4805 = vrot.slane %v4804, 2
    %v4806 = vrot.slane %v4168, 7
    %v4807 = vrot.slane %v4806, 2
    %v4808 = vrot.slane %v3939, 7
    %v4809 = vrot.slane %v4808, 2
    %v4810 = vrot.slane %v4169, 7
    %v4811 = vrot.slane %v4810, 2
    %v4812 = vrot.slane %v4170, 7
    %v4813 = vrot.slane %v4812, 2
    %v4814 = vrot.slane %v4171, 7
    %v4815 = vrot.slane %v4814, 2
    %v4816 = vrot.slane %v3940, 7
    %v4817 = vrot.slane %v4816, 2
    %v4818 = vrot.slane %v4172, 7
    %v4819 = vrot.slane %v4818, 2
    %v4820 = vrot.slane %v4173, 7
    %v4821 = vrot.slane %v4820, 2
    %v4822 = vrot.slane %v4174, 7
    %v4823 = vrot.slane %v4822, 2
    %v4824 = vrot.slane %v3941, 7
    %v4825 = vrot.slane %v4824, 2
    %v4826 = vrot.slane %v4175, 7
    %v4827 = vrot.slane %v4826, 2
    %v4828 = vrot.slane %v4176, 7
    %v4829 = vrot.slane %v4828, 2
    %v4830 = vrot.slane %v4177, 7
    %v4831 = vrot.slane %v4830, 2
    %v4832 = vrot.slane %v3942, 7
    %v4833 = vrot.slane %v4832, 2
    %v4834 = vrot.slane %v4178, 7
    %v4835 = vrot.slane %v4834, 2
    %v4836 = vrot.slane %v4179, 7
    %v4837 = vrot.slane %v4836, 2
    %v4838 = vrot.slane %v4180, 7
    %v4839 = vrot.slane %v4838, 2
    %v4840 = vrot.slane %v3943, 7
    %v4841 = vrot.slane %v4840, 2
    %v4842 = vrot.slane %v4181, 7
    %v4843 = vrot.slane %v4842, 2
    %v4844 = vrot.slane %v4182, 7
    %v4845 = vrot.slane %v4844, 2
    %v4846 = vrot.slane %v4183, 7
    %v4847 = vrot.slane %v4846, 2
    %v4848 = vrot.slane %v3944, 7
    %v4849 = vrot.slane %v4848, 2
    %v4850 = vrot.slane %v4184, 7
    %v4851 = vrot.slane %v4850, 2
    %v4852 = vrot.slane %v4185, 7
    %v4853 = vrot.slane %v4852, 2
    %v4854 = vrot.slane %v4186, 7
    %v4855 = vrot.slane %v4854, 2
    %v4856 = vrot.slane %v3945, 7
    %v4857 = vrot.slane %v4856, 2
    %v4858 = vrot.slane %v4187, 7
    %v4859 = vrot.slane %v4858, 2
    %v4860 = vrot.slane %v4188, 7
    %v4861 = vrot.slane %v4860, 2
    %v4862 = vrot.slane %v4189, 7
    %v4863 = vrot.slane %v4862, 2
    %v4864 = vrot.slane %v3946, 7
    %v4865 = vrot.slane %v4864, 2
    %v4866 = vrot.slane %v4190, 7
    %v4867 = vrot.slane %v4866, 2
    %v4868 = vrot.slane %v4191, 7
    %v4869 = vrot.slane %v4868, 2
    %v4870 = vrot.slane %v4192, 7
    %v4871 = vrot.slane %v4870, 2
    %v4872 = vrot.slane %v3947, 7
    %v4873 = vrot.slane %v4872, 2
    %v4874 = vrot.slane %v4193, 7
    %v4875 = vrot.slane %v4874, 2
    %v4876 = vrot.slane %v4194, 7
    %v4877 = vrot.slane %v4876, 2
    %v4878 = vrot.slane %v4195, 7
    %v4879 = vrot.slane %v4878, 2
    %v4880 = vrot.slane %v3948, 7
    %v4881 = vrot.slane %v4880, 2
    %v4882 = vrot.slane %v4196, 7
    %v4883 = vrot.slane %v4882, 2
    %v4884 = vrot.slane %v4197, 7
    %v4885 = vrot.slane %v4884, 2
    %v4886 = vrot.slane %v4198, 7
    %v4887 = vrot.slane %v4886, 2
    %v4888 = vrot.slane %v3949, 7
    %v4889 = vrot.slane %v4888, 2
    %v4890 = vrot.slane %v4199, 7
    %v4891 = vrot.slane %v4890, 2
    %v4892 = vrot.slane %v4200, 7
    %v4893 = vrot.slane %v4892, 2
    %v4894 = vrot.slane %v4201, 7
    %v4895 = vrot.slane %v4894, 2
    %v4896 = vrot.slane %v3950, 7
    %v4897 = vrot.slane %v4896, 2
    %v4898 = vrot.slane %v4202, 7
    %v4899 = vrot.slane %v4898, 2
    %v4900 = vrot.slane %v4203, 7
    %v4901 = vrot.slane %v4900, 2
    %v4902 = vrot.slane %v4204, 7
    %v4903 = vrot.slane %v4902, 2
    %v4904 = vrot.slane %v3951, 7
    %v4905 = vrot.slane %v4904, 2
    %v4906 = vrot.slane %v4205, 7
    %v4907 = vrot.slane %v4906, 2
    %v4908 = vrot.slane %v4206, 7
    %v4909 = vrot.slane %v4908, 2
    %v4910 = vrot.slane %v4207, 7
    %v4911 = vrot.slane %v4910, 2
    %v5168 = vadd.f32 %v3888, %v4401
    %v5169 = vadd.f32 %v4016, %v4403
    %v5170 = vadd.f32 %v4017, %v4405
    %v5171 = vadd.f32 %v4018, %v4407
    %v5172 = vadd.f32 %v3889, %v4409
    %v5173 = vadd.f32 %v4019, %v4411
    %v5174 = vadd.f32 %v4020, %v4413
    %v5175 = vadd.f32 %v4021, %v4415
    %v5176 = vadd.f32 %v3890, %v4417
    %v5177 = vadd.f32 %v4022, %v4419
    %v5178 = vadd.f32 %v4023, %v4421
    %v5179 = vadd.f32 %v4024, %v4423
    %v5180 = vadd.f32 %v3891, %v4425
    %v5181 = vadd.f32 %v4025, %v4427
    %v5182 = vadd.f32 %v4026, %v4429
    %v5183 = vadd.f32 %v4027, %v4431
    %v5184 = vadd.f32 %v3892, %v4433
    %v5185 = vadd.f32 %v4028, %v4435
    %v5186 = vadd.f32 %v4029, %v4437
    %v5187 = vadd.f32 %v4030, %v4439
    %v5188 = vadd.f32 %v3893, %v4441
    %v5189 = vadd.f32 %v4031, %v4443
    %v5190 = vadd.f32 %v4032, %v4445
    %v5191 = vadd.f32 %v4033, %v4447
    %v5192 = vadd.f32 %v3894, %v4449
    %v5193 = vadd.f32 %v4034, %v4451
    %v5194 = vadd.f32 %v4035, %v4453
    %v5195 = vadd.f32 %v4036, %v4455
    %v5196 = vadd.f32 %v3895, %v4457
    %v5197 = vadd.f32 %v4037, %v4459
    %v5198 = vadd.f32 %v4038, %v4461
    %v5199 = vadd.f32 %v4039, %v4463
    %v5200 = vadd.f32 %v3896, %v4465
    %v5201 = vadd.f32 %v4040, %v4467
    %v5202 = vadd.f32 %v4041, %v4469
    %v5203 = vadd.f32 %v4042, %v4471
    %v5204 = vadd.f32 %v3897, %v4473
    %v5205 = vadd.f32 %v4043, %v4475
    %v5206 = vadd.f32 %v4044, %v4477
    %v5207 = vadd.f32 %v4045, %v4479
    %v5208 = vadd.f32 %v3898, %v4481
    %v5209 = vadd.f32 %v4046, %v4483
    %v5210 = vadd.f32 %v4047, %v4485
    %v5211 = vadd.f32 %v4048, %v4487
    %v5212 = vadd.f32 %v3899, %v4489
    %v5213 = vadd.f32 %v4049, %v4491
    %v5214 = vadd.f32 %v4050, %v4493
    %v5215 = vadd.f32 %v4051, %v4495
    %v5216 = vadd.f32 %v3900, %v4497
    %v5217 = vadd.f32 %v4052, %v4499
    %v5218 = vadd.f32 %v4053, %v4501
    %v5219 = vadd.f32 %v4054, %v4503
    %v5220 = vadd.f32 %v3901, %v4505
    %v5221 = vadd.f32 %v4055, %v4507
    %v5222 = vadd.f32 %v4056, %v4509
    %v5223 = vadd.f32 %v4057, %v4511
    %v5224 = vadd.f32 %v3902, %v4513
    %v5225 = vadd.f32 %v4058, %v4515
    %v5226 = vadd.f32 %v4059, %v4517
    %v5227 = vadd.f32 %v4060, %v4519
    %v5228 = vadd.f32 %v3903, %v4521
    %v5229 = vadd.f32 %v4061, %v4523
    %v5230 = vadd.f32 %v4062, %v4525
    %v5231 = vadd.f32 %v4063, %v4527
    %v5232 = vadd.f32 %v3904, %v4529
    %v5233 = vadd.f32 %v4064, %v4531
    %v5234 = vadd.f32 %v4065, %v4533
    %v5235 = vadd.f32 %v4066, %v4535
    %v5236 = vadd.f32 %v3905, %v4537
    %v5237 = vadd.f32 %v4067, %v4539
    %v5238 = vadd.f32 %v4068, %v4541
    %v5239 = vadd.f32 %v4069, %v4543
    %v5240 = vadd.f32 %v3906, %v4545
    %v5241 = vadd.f32 %v4070, %v4547
    %v5242 = vadd.f32 %v4071, %v4549
    %v5243 = vadd.f32 %v4072, %v4551
    %v5244 = vadd.f32 %v3907, %v4553
    %v5245 = vadd.f32 %v4073, %v4555
    %v5246 = vadd.f32 %v4074, %v4557
    %v5247 = vadd.f32 %v4075, %v4559
    %v5248 = vadd.f32 %v3908, %v4561
    %v5249 = vadd.f32 %v4076, %v4563
    %v5250 = vadd.f32 %v4077, %v4565
    %v5251 = vadd.f32 %v4078, %v4567
    %v5252 = vadd.f32 %v3909, %v4569
    %v5253 = vadd.f32 %v4079, %v4571
    %v5254 = vadd.f32 %v4080, %v4573
    %v5255 = vadd.f32 %v4081, %v4575
    %v5256 = vadd.f32 %v3910, %v4577
    %v5257 = vadd.f32 %v4082, %v4579
    %v5258 = vadd.f32 %v4083, %v4581
    %v5259 = vadd.f32 %v4084, %v4583
    %v5260 = vadd.f32 %v3911, %v4585
    %v5261 = vadd.f32 %v4085, %v4587
    %v5262 = vadd.f32 %v4086, %v4589
    %v5263 = vadd.f32 %v4087, %v4591
    %v5264 = vadd.f32 %v3912, %v4593
    %v5265 = vadd.f32 %v4088, %v4595
    %v5266 = vadd.f32 %v4089, %v4597
    %v5267 = vadd.f32 %v4090, %v4599
    %v5268 = vadd.f32 %v3913, %v4601
    %v5269 = vadd.f32 %v4091, %v4603
    %v5270 = vadd.f32 %v4092, %v4605
    %v5271 = vadd.f32 %v4093, %v4607
    %v5272 = vadd.f32 %v3914, %v4609
    %v5273 = vadd.f32 %v4094, %v4611
    %v5274 = vadd.f32 %v4095, %v4613
    %v5275 = vadd.f32 %v4096, %v4615
    %v5276 = vadd.f32 %v3915, %v4617
    %v5277 = vadd.f32 %v4097, %v4619
    %v5278 = vadd.f32 %v4098, %v4621
    %v5279 = vadd.f32 %v4099, %v4623
    %v5280 = vadd.f32 %v3916, %v4625
    %v5281 = vadd.f32 %v4100, %v4627
    %v5282 = vadd.f32 %v4101, %v4629
    %v5283 = vadd.f32 %v4102, %v4631
    %v5284 = vadd.f32 %v3917, %v4633
    %v5285 = vadd.f32 %v4103, %v4635
    %v5286 = vadd.f32 %v4104, %v4637
    %v5287 = vadd.f32 %v4105, %v4639
    %v5288 = vadd.f32 %v3918, %v4641
    %v5289 = vadd.f32 %v4106, %v4643
    %v5290 = vadd.f32 %v4107, %v4645
    %v5291 = vadd.f32 %v4108, %v4647
    %v5292 = vadd.f32 %v3919, %v4649
    %v5293 = vadd.f32 %v4109, %v4651
    %v5294 = vadd.f32 %v4110, %v4653
    %v5295 = vadd.f32 %v4111, %v4655
    %v5296 = vadd.f32 %v3920, %v4657
    %v5297 = vadd.f32 %v4112, %v4659
    %v5298 = vadd.f32 %v4113, %v4661
    %v5299 = vadd.f32 %v4114, %v4663
    %v5300 = vadd.f32 %v3921, %v4665
    %v5301 = vadd.f32 %v4115, %v4667
    %v5302 = vadd.f32 %v4116, %v4669
    %v5303 = vadd.f32 %v4117, %v4671
    %v5304 = vadd.f32 %v3922, %v4673
    %v5305 = vadd.f32 %v4118, %v4675
    %v5306 = vadd.f32 %v4119, %v4677
    %v5307 = vadd.f32 %v4120, %v4679
    %v5308 = vadd.f32 %v3923, %v4681
    %v5309 = vadd.f32 %v4121, %v4683
    %v5310 = vadd.f32 %v4122, %v4685
    %v5311 = vadd.f32 %v4123, %v4687
    %v5312 = vadd.f32 %v3924, %v4689
    %v5313 = vadd.f32 %v4124, %v4691
    %v5314 = vadd.f32 %v4125, %v4693
    %v5315 = vadd.f32 %v4126, %v4695
    %v5316 = vadd.f32 %v3925, %v4697
    %v5317 = vadd.f32 %v4127, %v4699
    %v5318 = vadd.f32 %v4128, %v4701
    %v5319 = vadd.f32 %v4129, %v4703
    %v5320 = vadd.f32 %v3926, %v4705
    %v5321 = vadd.f32 %v4130, %v4707
    %v5322 = vadd.f32 %v4131, %v4709
    %v5323 = vadd.f32 %v4132, %v4711
    %v5324 = vadd.f32 %v3927, %v4713
    %v5325 = vadd.f32 %v4133, %v4715
    %v5326 = vadd.f32 %v4134, %v4717
    %v5327 = vadd.f32 %v4135, %v4719
    %v5328 = vadd.f32 %v3928, %v4721
    %v5329 = vadd.f32 %v4136, %v4723
    %v5330 = vadd.f32 %v4137, %v4725
    %v5331 = vadd.f32 %v4138, %v4727
    %v5332 = vadd.f32 %v3929, %v4729
    %v5333 = vadd.f32 %v4139, %v4731
    %v5334 = vadd.f32 %v4140, %v4733
    %v5335 = vadd.f32 %v4141, %v4735
    %v5336 = vadd.f32 %v3930, %v4737
    %v5337 = vadd.f32 %v4142, %v4739
    %v5338 = vadd.f32 %v4143, %v4741
    %v5339 = vadd.f32 %v4144, %v4743
    %v5340 = vadd.f32 %v3931, %v4745
    %v5341 = vadd.f32 %v4145, %v4747
    %v5342 = vadd.f32 %v4146, %v4749
    %v5343 = vadd.f32 %v4147, %v4751
    %v5344 = vadd.f32 %v3932, %v4753
    %v5345 = vadd.f32 %v4148, %v4755
    %v5346 = vadd.f32 %v4149, %v4757
    %v5347 = vadd.f32 %v4150, %v4759
    %v5348 = vadd.f32 %v3933, %v4761
    %v5349 = vadd.f32 %v4151, %v4763
    %v5350 = vadd.f32 %v4152, %v4765
    %v5351 = vadd.f32 %v4153, %v4767
    %v5352 = vadd.f32 %v3934, %v4769
    %v5353 = vadd.f32 %v4154, %v4771
    %v5354 = vadd.f32 %v4155, %v4773
    %v5355 = vadd.f32 %v4156, %v4775
    %v5356 = vadd.f32 %v3935, %v4777
    %v5357 = vadd.f32 %v4157, %v4779
    %v5358 = vadd.f32 %v4158, %v4781
    %v5359 = vadd.f32 %v4159, %v4783
    %v5360 = vadd.f32 %v3936, %v4785
    %v5361 = vadd.f32 %v4160, %v4787
    %v5362 = vadd.f32 %v4161, %v4789
    %v5363 = vadd.f32 %v4162, %v4791
    %v5364 = vadd.f32 %v3937, %v4793
    %v5365 = vadd.f32 %v4163, %v4795
    %v5366 = vadd.f32 %v4164, %v4797
    %v5367 = vadd.f32 %v4165, %v4799
    %v5368 = vadd.f32 %v3938, %v4801
    %v5369 = vadd.f32 %v4166, %v4803
    %v5370 = vadd.f32 %v4167, %v4805
    %v5371 = vadd.f32 %v4168, %v4807
    %v5372 = vadd.f32 %v3939, %v4809
    %v5373 = vadd.f32 %v4169, %v4811
    %v5374 = vadd.f32 %v4170, %v4813
    %v5375 = vadd.f32 %v4171, %v4815
    %v5376 = vadd.f32 %v3940, %v4817
    %v5377 = vadd.f32 %v4172, %v4819
    %v5378 = vadd.f32 %v4173, %v4821
    %v5379 = vadd.f32 %v4174, %v4823
    %v5380 = vadd.f32 %v3941, %v4825
    %v5381 = vadd.f32 %v4175, %v4827
    %v5382 = vadd.f32 %v4176, %v4829
    %v5383 = vadd.f32 %v4177, %v4831
    %v5384 = vadd.f32 %v3942, %v4833
    %v5385 = vadd.f32 %v4178, %v4835
    %v5386 = vadd.f32 %v4179, %v4837
    %v5387 = vadd.f32 %v4180, %v4839
    %v5388 = vadd.f32 %v3943, %v4841
    %v5389 = vadd.f32 %v4181, %v4843
    %v5390 = vadd.f32 %v4182, %v4845
    %v5391 = vadd.f32 %v4183, %v4847
    %v5392 = vadd.f32 %v3944, %v4849
    %v5393 = vadd.f32 %v4184, %v4851
    %v5394 = vadd.f32 %v4185, %v4853
    %v5395 = vadd.f32 %v4186, %v4855
    %v5396 = vadd.f32 %v3945, %v4857
    %v5397 = vadd.f32 %v4187, %v4859
    %v5398 = vadd.f32 %v4188, %v4861
    %v5399 = vadd.f32 %v4189, %v4863
    %v5400 = vadd.f32 %v3946, %v4865
    %v5401 = vadd.f32 %v4190, %v4867
    %v5402 = vadd.f32 %v4191, %v4869
    %v5403 = vadd.f32 %v4192, %v4871
    %v5404 = vadd.f32 %v3947, %v4873
    %v5405 = vadd.f32 %v4193, %v4875
    %v5406 = vadd.f32 %v4194, %v4877
    %v5407 = vadd.f32 %v4195, %v4879
    %v5408 = vadd.f32 %v3948, %v4881
    %v5409 = vadd.f32 %v4196, %v4883
    %v5410 = vadd.f32 %v4197, %v4885
    %v5411 = vadd.f32 %v4198, %v4887
    %v5412 = vadd.f32 %v3949, %v4889
    %v5413 = vadd.f32 %v4199, %v4891
    %v5414 = vadd.f32 %v4200, %v4893
    %v5415 = vadd.f32 %v4201, %v4895
    %v5416 = vadd.f32 %v3950, %v4897
    %v5417 = vadd.f32 %v4202, %v4899
    %v5418 = vadd.f32 %v4203, %v4901
    %v5419 = vadd.f32 %v4204, %v4903
    %v5420 = vadd.f32 %v3951, %v4905
    %v5421 = vadd.f32 %v4205, %v4907
    %v5422 = vadd.f32 %v4206, %v4909
    %v5423 = vadd.f32 %v4207, %v4911
    %v5424 = vadd.f32 %v5168, %v5176
    %v5425 = vadd.f32 %v5169, %v5177
    %v5426 = vadd.f32 %v5170, %v5178
    %v5427 = vadd.f32 %v5171, %v5179
    %v5428 = vadd.f32 %v5172, %v5180
    %v5429 = vadd.f32 %v5173, %v5181
    %v5430 = vadd.f32 %v5174, %v5182
    %v5431 = vadd.f32 %v5175, %v5183
    %v5432 = vadd.f32 %v5184, %v5192
    %v5433 = vadd.f32 %v5185, %v5193
    %v5434 = vadd.f32 %v5186, %v5194
    %v5435 = vadd.f32 %v5187, %v5195
    %v5436 = vadd.f32 %v5188, %v5196
    %v5437 = vadd.f32 %v5189, %v5197
    %v5438 = vadd.f32 %v5190, %v5198
    %v5439 = vadd.f32 %v5191, %v5199
    %v5440 = vadd.f32 %v5200, %v5208
    %v5441 = vadd.f32 %v5201, %v5209
    %v5442 = vadd.f32 %v5202, %v5210
    %v5443 = vadd.f32 %v5203, %v5211
    %v5444 = vadd.f32 %v5204, %v5212
    %v5445 = vadd.f32 %v5205, %v5213
    %v5446 = vadd.f32 %v5206, %v5214
    %v5447 = vadd.f32 %v5207, %v5215
    %v5448 = vadd.f32 %v5216, %v5224
    %v5449 = vadd.f32 %v5217, %v5225
    %v5450 = vadd.f32 %v5218, %v5226
    %v5451 = vadd.f32 %v5219, %v5227
    %v5452 = vadd.f32 %v5220, %v5228
    %v5453 = vadd.f32 %v5221, %v5229
    %v5454 = vadd.f32 %v5222, %v5230
    %v5455 = vadd.f32 %v5223, %v5231
    %v5456 = vadd.f32 %v5232, %v5240
    %v5457 = vadd.f32 %v5233, %v5241
    %v5458 = vadd.f32 %v5234, %v5242
    %v5459 = vadd.f32 %v5235, %v5243
    %v5460 = vadd.f32 %v5236, %v5244
    %v5461 = vadd.f32 %v5237, %v5245
    %v5462 = vadd.f32 %v5238, %v5246
    %v5463 = vadd.f32 %v5239, %v5247
    %v5464 = vadd.f32 %v5248, %v5256
    %v5465 = vadd.f32 %v5249, %v5257
    %v5466 = vadd.f32 %v5250, %v5258
    %v5467 = vadd.f32 %v5251, %v5259
    %v5468 = vadd.f32 %v5252, %v5260
    %v5469 = vadd.f32 %v5253, %v5261
    %v5470 = vadd.f32 %v5254, %v5262
    %v5471 = vadd.f32 %v5255, %v5263
    %v5472 = vadd.f32 %v5264, %v5272
    %v5473 = vadd.f32 %v5265, %v5273
    %v5474 = vadd.f32 %v5266, %v5274
    %v5475 = vadd.f32 %v5267, %v5275
    %v5476 = vadd.f32 %v5268, %v5276
    %v5477 = vadd.f32 %v5269, %v5277
    %v5478 = vadd.f32 %v5270, %v5278
    %v5479 = vadd.f32 %v5271, %v5279
    %v5480 = vadd.f32 %v5280, %v5288
    %v5481 = vadd.f32 %v5281, %v5289
    %v5482 = vadd.f32 %v5282, %v5290
    %v5483 = vadd.f32 %v5283, %v5291
    %v5484 = vadd.f32 %v5284, %v5292
    %v5485 = vadd.f32 %v5285, %v5293
    %v5486 = vadd.f32 %v5286, %v5294
    %v5487 = vadd.f32 %v5287, %v5295
    %v5488 = vadd.f32 %v5296, %v5304
    %v5489 = vadd.f32 %v5297, %v5305
    %v5490 = vadd.f32 %v5298, %v5306
    %v5491 = vadd.f32 %v5299, %v5307
    %v5492 = vadd.f32 %v5300, %v5308
    %v5493 = vadd.f32 %v5301, %v5309
    %v5494 = vadd.f32 %v5302, %v5310
    %v5495 = vadd.f32 %v5303, %v5311
    %v5496 = vadd.f32 %v5312, %v5320
    %v5497 = vadd.f32 %v5313, %v5321
    %v5498 = vadd.f32 %v5314, %v5322
    %v5499 = vadd.f32 %v5315, %v5323
    %v5500 = vadd.f32 %v5316, %v5324
    %v5501 = vadd.f32 %v5317, %v5325
    %v5502 = vadd.f32 %v5318, %v5326
    %v5503 = vadd.f32 %v5319, %v5327
    %v5504 = vadd.f32 %v5328, %v5336
    %v5505 = vadd.f32 %v5329, %v5337
    %v5506 = vadd.f32 %v5330, %v5338
    %v5507 = vadd.f32 %v5331, %v5339
    %v5508 = vadd.f32 %v5332, %v5340
    %v5509 = vadd.f32 %v5333, %v5341
    %v5510 = vadd.f32 %v5334, %v5342
    %v5511 = vadd.f32 %v5335, %v5343
    %v5512 = vadd.f32 %v5344, %v5352
    %v5513 = vadd.f32 %v5345, %v5353
    %v5514 = vadd.f32 %v5346, %v5354
    %v5515 = vadd.f32 %v5347, %v5355
    %v5516 = vadd.f32 %v5348, %v5356
    %v5517 = vadd.f32 %v5349, %v5357
    %v5518 = vadd.f32 %v5350, %v5358
    %v5519 = vadd.f32 %v5351, %v5359
    %v5520 = vadd.f32 %v5360, %v5368
    %v5521 = vadd.f32 %v5361, %v5369
    %v5522 = vadd.f32 %v5362, %v5370
    %v5523 = vadd.f32 %v5363, %v5371
    %v5524 = vadd.f32 %v5364, %v5372
    %v5525 = vadd.f32 %v5365, %v5373
    %v5526 = vadd.f32 %v5366, %v5374
    %v5527 = vadd.f32 %v5367, %v5375
    %v5528 = vadd.f32 %v5376, %v5384
    %v5529 = vadd.f32 %v5377, %v5385
    %v5530 = vadd.f32 %v5378, %v5386
    %v5531 = vadd.f32 %v5379, %v5387
    %v5532 = vadd.f32 %v5380, %v5388
    %v5533 = vadd.f32 %v5381, %v5389
    %v5534 = vadd.f32 %v5382, %v5390
    %v5535 = vadd.f32 %v5383, %v5391
    %v5536 = vadd.f32 %v5392, %v5400
    %v5537 = vadd.f32 %v5393, %v5401
    %v5538 = vadd.f32 %v5394, %v5402
    %v5539 = vadd.f32 %v5395, %v5403
    %v5540 = vadd.f32 %v5396, %v5404
    %v5541 = vadd.f32 %v5397, %v5405
    %v5542 = vadd.f32 %v5398, %v5406
    %v5543 = vadd.f32 %v5399, %v5407
    %v5544 = vadd.f32 %v5408, %v5416
    %v5545 = vadd.f32 %v5409, %v5417
    %v5546 = vadd.f32 %v5410, %v5418
    %v5547 = vadd.f32 %v5411, %v5419
    %v5548 = vadd.f32 %v5412, %v5420
    %v5549 = vadd.f32 %v5413, %v5421
    %v5550 = vadd.f32 %v5414, %v5422
    %v5551 = vadd.f32 %v5415, %v5423
    %v5552 = vmul.f32 %v5424, 0.25
    %v5553 = vmul.f32 %v5425, 0.25
    %v5554 = vmul.f32 %v5426, 0.25
    %v5555 = vmul.f32 %v5427, 0.25
    %v5556 = vmul.f32 %v5428, 0.25
    %v5557 = vmul.f32 %v5429, 0.25
    %v5558 = vmul.f32 %v5430, 0.25
    %v5559 = vmul.f32 %v5431, 0.25
    %v5560 = vmul.f32 %v5432, 0.25
    %v5561 = vmul.f32 %v5433, 0.25
    %v5562 = vmul.f32 %v5434, 0.25
    %v5563 = vmul.f32 %v5435, 0.25
    %v5564 = vmul.f32 %v5436, 0.25
    %v5565 = vmul.f32 %v5437, 0.25
    %v5566 = vmul.f32 %v5438, 0.25
    %v5567 = vmul.f32 %v5439, 0.25
    %v5568 = vmul.f32 %v5440, 0.25
    %v5569 = vmul.f32 %v5441, 0.25
    %v5570 = vmul.f32 %v5442, 0.25
    %v5571 = vmul.f32 %v5443, 0.25
    %v5572 = vmul.f32 %v5444, 0.25
    %v5573 = vmul.f32 %v5445, 0.25
    %v5574 = vmul.f32 %v5446, 0.25
    %v5575 = vmul.f32 %v5447, 0.25
    %v5576 = vmul.f32 %v5448, 0.25
    %v5577 = vmul.f32 %v5449, 0.25
    %v5578 = vmul.f32 %v5450, 0.25
    %v5579 = vmul.f32 %v5451, 0.25
    %v5580 = vmul.f32 %v5452, 0.25
    %v5581 = vmul.f32 %v5453, 0.25
    %v5582 = vmul.f32 %v5454, 0.25
    %v5583 = vmul.f32 %v5455, 0.25
    %v5584 = vmul.f32 %v5456, 0.25
    %v5585 = vmul.f32 %v5457, 0.25
    %v5586 = vmul.f32 %v5458, 0.25
    %v5587 = vmul.f32 %v5459, 0.25
    %v5588 = vmul.f32 %v5460, 0.25
    %v5589 = vmul.f32 %v5461, 0.25
    %v5590 = vmul.f32 %v5462, 0.25
    %v5591 = vmul.f32 %v5463, 0.25
    %v5592 = vmul.f32 %v5464, 0.25
    %v5593 = vmul.f32 %v5465, 0.25
    %v5594 = vmul.f32 %v5466, 0.25
    %v5595 = vmul.f32 %v5467, 0.25
    %v5596 = vmul.f32 %v5468, 0.25
    %v5597 = vmul.f32 %v5469, 0.25
    %v5598 = vmul.f32 %v5470, 0.25
    %v5599 = vmul.f32 %v5471, 0.25
    %v5600 = vmul.f32 %v5472, 0.25
    %v5601 = vmul.f32 %v5473, 0.25
    %v5602 = vmul.f32 %v5474, 0.25
    %v5603 = vmul.f32 %v5475, 0.25
    %v5604 = vmul.f32 %v5476, 0.25
    %v5605 = vmul.f32 %v5477, 0.25
    %v5606 = vmul.f32 %v5478, 0.25
    %v5607 = vmul.f32 %v5479, 0.25
    %v5608 = vmul.f32 %v5480, 0.25
    %v5609 = vmul.f32 %v5481, 0.25
    %v5610 = vmul.f32 %v5482, 0.25
    %v5611 = vmul.f32 %v5483, 0.25
    %v5612 = vmul.f32 %v5484, 0.25
    %v5613 = vmul.f32 %v5485, 0.25
    %v5614 = vmul.f32 %v5486, 0.25
    %v5615 = vmul.f32 %v5487, 0.25
    %v5616 = vmul.f32 %v5488, 0.25
    %v5617 = vmul.f32 %v5489, 0.25
    %v5618 = vmul.f32 %v5490, 0.25
    %v5619 = vmul.f32 %v5491, 0.25
    %v5620 = vmul.f32 %v5492, 0.25
    %v5621 = vmul.f32 %v5493, 0.25
    %v5622 = vmul.f32 %v5494, 0.25
    %v5623 = vmul.f32 %v5495, 0.25
    %v5624 = vmul.f32 %v5496, 0.25
    %v5625 = vmul.f32 %v5497, 0.25
    %v5626 = vmul.f32 %v5498, 0.25
    %v5627 = vmul.f32 %v5499, 0.25
    %v5628 = vmul.f32 %v5500, 0.25
    %v5629 = vmul.f32 %v5501, 0.25
    %v5630 = vmul.f32 %v5502, 0.25
    %v5631 = vmul.f32 %v5503, 0.25
    %v5632 = vmul.f32 %v5504, 0.25
    %v5633 = vmul.f32 %v5505, 0.25
    %v5634 = vmul.f32 %v5506, 0.25
    %v5635 = vmul.f32 %v5507, 0.25
    %v5636 = vmul.f32 %v5508, 0.25
    %v5637 = vmul.f32 %v5509, 0.25
    %v5638 = vmul.f32 %v5510, 0.25
    %v5639 = vmul.f32 %v5511, 0.25
    %v5640 = vmul.f32 %v5512, 0.25
    %v5641 = vmul.f32 %v5513, 0.25
    %v5642 = vmul.f32 %v5514, 0.25
    %v5643 = vmul.f32 %v5515, 0.25
    %v5644 = vmul.f32 %v5516, 0.25
    %v5645 = vmul.f32 %v5517, 0.25
    %v5646 = vmul.f32 %v5518, 0.25
    %v5647 = vmul.f32 %v5519, 0.25
    %v5648 = vmul.f32 %v5520, 0.25
    %v5649 = vmul.f32 %v5521, 0.25
    %v5650 = vmul.f32 %v5522, 0.25
    %v5651 = vmul.f32 %v5523, 0.25
    %v5652 = vmul.f32 %v5524, 0.25
    %v5653 = vmul.f32 %v5525, 0.25
    %v5654 = vmul.f32 %v5526, 0.25
    %v5655 = vmul.f32 %v5527, 0.25
    %v5656 = vmul.f32 %v5528, 0.25
    %v5657 = vmul.f32 %v5529, 0.25
    %v5658 = vmul.f32 %v5530, 0.25
    %v5659 = vmul.f32 %v5531, 0.25
    %v5660 = vmul.f32 %v5532, 0.25
    %v5661 = vmul.f32 %v5533, 0.25
    %v5662 = vmul.f32 %v5534, 0.25
    %v5663 = vmul.f32 %v5535, 0.25
    %v5664 = vmul.f32 %v5536, 0.25
    %v5665 = vmul.f32 %v5537, 0.25
    %v5666 = vmul.f32 %v5538, 0.25
    %v5667 = vmul.f32 %v5539, 0.25
    %v5668 = vmul.f32 %v5540, 0.25
    %v5669 = vmul.f32 %v5541, 0.25
    %v5670 = vmul.f32 %v5542, 0.25
    %v5671 = vmul.f32 %v5543, 0.25
    %v5672 = vmul.f32 %v5544, 0.25
    %v5673 = vmul.f32 %v5545, 0.25
    %v5674 = vmul.f32 %v5546, 0.25
    %v5675 = vmul.f32 %v5547, 0.25
    %v5676 = vmul.f32 %v5548, 0.25
    %v5677 = vmul.f32 %v5549, 0.25
    %v5678 = vmul.f32 %v5550, 0.25
    %v5679 = vmul.f32 %v5551, 0.25
    %v5680 = vld [vmem:[%s4] sm:$0xf]
    %v5681 = vld [vmem:[%s4 + $0x4] sm:$0xf]
    %v5682 = vld [vmem:[%s4 + $0x8] sm:$0xf]
    %v5683 = vld [vmem:[%s4 + $0xc] sm:$0xf]
    %v5684 = vld [vmem:[%s4 + $0x10] sm:$0xf]
    %v5685 = vld [vmem:[%s4 + $0x14] sm:$0xf]
    %v5686 = vld [vmem:[%s4 + $0x18] sm:$0xf]
    %v5687 = vld [vmem:[%s4 + $0x1c] sm:$0xf]
    %v5688 = vld [vmem:[%s4 + $0x20] sm:$0xf]
    %v5689 = vld [vmem:[%s4 + $0x24] sm:$0xf]
    %v5690 = vld [vmem:[%s4 + $0x28] sm:$0xf]
    %v5691 = vld [vmem:[%s4 + $0x2c] sm:$0xf]
    %v5692 = vld [vmem:[%s4 + $0x30] sm:$0xf]
    %v5693 = vld [vmem:[%s4 + $0x34] sm:$0xf]
    %v5694 = vld [vmem:[%s4 + $0x38] sm:$0xf]
    %v5695 = vld [vmem:[%s4 + $0x3c] sm:$0xf]
    %v5696 = vld [vmem:[%s4 + $0x40] sm:$0xf]
    %v5697 = vld [vmem:[%s4 + $0x44] sm:$0xf]
    %v5698 = vld [vmem:[%s4 + $0x48] sm:$0xf]
    %v5699 = vld [vmem:[%s4 + $0x4c] sm:$0xf]
    %v5700 = vld [vmem:[%s4 + $0x50] sm:$0xf]
    %v5701 = vld [vmem:[%s4 + $0x54] sm:$0xf]
    %v5702 = vld [vmem:[%s4 + $0x58] sm:$0xf]
    %v5703 = vld [vmem:[%s4 + $0x5c] sm:$0xf]
    %v5704 = vld [vmem:[%s4 + $0x60] sm:$0xf]
    %v5705 = vld [vmem:[%s4 + $0x64] sm:$0xf]
    %v5706 = vld [vmem:[%s4 + $0x68] sm:$0xf]
    %v5707 = vld [vmem:[%s4 + $0x6c] sm:$0xf]
    %v5708 = vld [vmem:[%s4 + $0x70] sm:$0xf]
    %v5709 = vld [vmem:[%s4 + $0x74] sm:$0xf]
    %v5710 = vld [vmem:[%s4 + $0x78] sm:$0xf]
    %v5711 = vld [vmem:[%s4 + $0x7c] sm:$0xf]
    %v5712 = vld [vmem:[%s4 + $0x80] sm:$0xf]
    %v5713 = vld [vmem:[%s4 + $0x84] sm:$0xf]
    %v5714 = vld [vmem:[%s4 + $0x88] sm:$0xf]
    %v5715 = vld [vmem:[%s4 + $0x8c] sm:$0xf]
    %v5716 = vld [vmem:[%s4 + $0x90] sm:$0xf]
    %v5717 = vld [vmem:[%s4 + $0x94] sm:$0xf]
    %v5718 = vld [vmem:[%s4 + $0x98] sm:$0xf]
    %v5719 = vld [vmem:[%s4 + $0x9c] sm:$0xf]
    %v5720 = vld [vmem:[%s4 + $0xa0] sm:$0xf]
    %v5721 = vld [vmem:[%s4 + $0xa4] sm:$0xf]
    %v5722 = vld [vmem:[%s4 + $0xa8] sm:$0xf]
    %v5723 = vld [vmem:[%s4 + $0xac] sm:$0xf]
    %v5724 = vld [vmem:[%s4 + $0xb0] sm:$0xf]
    %v5725 = vld [vmem:[%s4 + $0xb4] sm:$0xf]
    %v5726 = vld [vmem:[%s4 + $0xb8] sm:$0xf]
    %v5727 = vld [vmem:[%s4 + $0xbc] sm:$0xf]
    %v5728 = vld [vmem:[%s4 + $0xc0] sm:$0xf]
    %v5729 = vld [vmem:[%s4 + $0xc4] sm:$0xf]
    %v5730 = vld [vmem:[%s4 + $0xc8] sm:$0xf]
    %v5731 = vld [vmem:[%s4 + $0xcc] sm:$0xf]
    %v5732 = vld [vmem:[%s4 + $0xd0] sm:$0xf]
    %v5733 = vld [vmem:[%s4 + $0xd4] sm:$0xf]
    %v5734 = vld [vmem:[%s4 + $0xd8] sm:$0xf]
    %v5735 = vld [vmem:[%s4 + $0xdc] sm:$0xf]
    %v5736 = vld [vmem:[%s4 + $0xe0] sm:$0xf]
    %v5737 = vld [vmem:[%s4 + $0xe4] sm:$0xf]
    %v5738 = vld [vmem:[%s4 + $0xe8] sm:$0xf]
    %v5739 = vld [vmem:[%s4 + $0xec] sm:$0xf]
    %v5740 = vld [vmem:[%s4 + $0xf0] sm:$0xf]
    %v5741 = vld [vmem:[%s4 + $0xf4] sm:$0xf]
    %v5742 = vld [vmem:[%s4 + $0xf8] sm:$0xf]
    %v5743 = vld [vmem:[%s4 + $0xfc] sm:$0xf]
    %v5744 = vld [vmem:[%s4 + $0x100] sm:$0xf]
    %v5745 = vld [vmem:[%s4 + $0x104] sm:$0xf]
    %v5746 = vld [vmem:[%s4 + $0x108] sm:$0xf]
    %v5747 = vld [vmem:[%s4 + $0x10c] sm:$0xf]
    %v5748 = vld [vmem:[%s4 + $0x110] sm:$0xf]
    %v5749 = vld [vmem:[%s4 + $0x114] sm:$0xf]
    %v5750 = vld [vmem:[%s4 + $0x118] sm:$0xf]
    %v5751 = vld [vmem:[%s4 + $0x11c] sm:$0xf]
    %v5752 = vld [vmem:[%s4 + $0x120] sm:$0xf]
    %v5753 = vld [vmem:[%s4 + $0x124] sm:$0xf]
    %v5754 = vld [vmem:[%s4 + $0x128] sm:$0xf]
    %v5755 = vld [vmem:[%s4 + $0x12c] sm:$0xf]
    %v5756 = vld [vmem:[%s4 + $0x130] sm:$0xf]
    %v5757 = vld [vmem:[%s4 + $0x134] sm:$0xf]
    %v5758 = vld [vmem:[%s4 + $0x138] sm:$0xf]
    %v5759 = vld [vmem:[%s4 + $0x13c] sm:$0xf]
    %v5760 = vld [vmem:[%s4 + $0x140] sm:$0xf]
    %v5761 = vld [vmem:[%s4 + $0x144] sm:$0xf]
    %v5762 = vld [vmem:[%s4 + $0x148] sm:$0xf]
    %v5763 = vld [vmem:[%s4 + $0x14c] sm:$0xf]
    %v5764 = vld [vmem:[%s4 + $0x150] sm:$0xf]
    %v5765 = vld [vmem:[%s4 + $0x154] sm:$0xf]
    %v5766 = vld [vmem:[%s4 + $0x158] sm:$0xf]
    %v5767 = vld [vmem:[%s4 + $0x15c] sm:$0xf]
    %v5768 = vld [vmem:[%s4 + $0x160] sm:$0xf]
    %v5769 = vld [vmem:[%s4 + $0x164] sm:$0xf]
    %v5770 = vld [vmem:[%s4 + $0x168] sm:$0xf]
    %v5771 = vld [vmem:[%s4 + $0x16c] sm:$0xf]
    %v5772 = vld [vmem:[%s4 + $0x170] sm:$0xf]
    %v5773 = vld [vmem:[%s4 + $0x174] sm:$0xf]
    %v5774 = vld [vmem:[%s4 + $0x178] sm:$0xf]
    %v5775 = vld [vmem:[%s4 + $0x17c] sm:$0xf]
    %v5776 = vld [vmem:[%s4 + $0x180] sm:$0xf]
    %v5777 = vld [vmem:[%s4 + $0x184] sm:$0xf]
    %v5778 = vld [vmem:[%s4 + $0x188] sm:$0xf]
    %v5779 = vld [vmem:[%s4 + $0x18c] sm:$0xf]
    %v5780 = vld [vmem:[%s4 + $0x190] sm:$0xf]
    %v5781 = vld [vmem:[%s4 + $0x194] sm:$0xf]
    %v5782 = vld [vmem:[%s4 + $0x198] sm:$0xf]
    %v5783 = vld [vmem:[%s4 + $0x19c] sm:$0xf]
    %v5784 = vld [vmem:[%s4 + $0x1a0] sm:$0xf]
    %v5785 = vld [vmem:[%s4 + $0x1a4] sm:$0xf]
    %v5786 = vld [vmem:[%s4 + $0x1a8] sm:$0xf]
    %v5787 = vld [vmem:[%s4 + $0x1ac] sm:$0xf]
    %v5788 = vld [vmem:[%s4 + $0x1b0] sm:$0xf]
    %v5789 = vld [vmem:[%s4 + $0x1b4] sm:$0xf]
    %v5790 = vld [vmem:[%s4 + $0x1b8] sm:$0xf]
    %v5791 = vld [vmem:[%s4 + $0x1bc] sm:$0xf]
    %v5792 = vld [vmem:[%s4 + $0x1c0] sm:$0xf]
    %v5793 = vld [vmem:[%s4 + $0x1c4] sm:$0xf]
    %v5794 = vld [vmem:[%s4 + $0x1c8] sm:$0xf]
    %v5795 = vld [vmem:[%s4 + $0x1cc] sm:$0xf]
    %v5796 = vld [vmem:[%s4 + $0x1d0] sm:$0xf]
    %v5797 = vld [vmem:[%s4 + $0x1d4] sm:$0xf]
    %v5798 = vld [vmem:[%s4 + $0x1d8] sm:$0xf]
    %v5799 = vld [vmem:[%s4 + $0x1dc] sm:$0xf]
    %v5800 = vld [vmem:[%s4 + $0x1e0] sm:$0xf]
    %v5801 = vld [vmem:[%s4 + $0x1e4] sm:$0xf]
    %v5802 = vld [vmem:[%s4 + $0x1e8] sm:$0xf]
    %v5803 = vld [vmem:[%s4 + $0x1ec] sm:$0xf]
    %v5804 = vld [vmem:[%s4 + $0x1f0] sm:$0xf]
    %v5805 = vld [vmem:[%s4 + $0x1f4] sm:$0xf]
    %v5806 = vld [vmem:[%s4 + $0x1f8] sm:$0xf]
    %v5807 = vld [vmem:[%s4 + $0x1fc] sm:$0xf]
    %v5808 = vld [vmem:[%s4 + $0x200] sm:$0xf]
    %v5809 = vld [vmem:[%s4 + $0x204] sm:$0xf]
    %v5810 = vld [vmem:[%s4 + $0x208] sm:$0xf]
    %v5811 = vld [vmem:[%s4 + $0x20c] sm:$0xf]
    %v5812 = vld [vmem:[%s4 + $0x210] sm:$0xf]
    %v5813 = vld [vmem:[%s4 + $0x214] sm:$0xf]
    %v5814 = vld [vmem:[%s4 + $0x218] sm:$0xf]
    %v5815 = vld [vmem:[%s4 + $0x21c] sm:$0xf]
    %v5816 = vld [vmem:[%s4 + $0x220] sm:$0xf]
    %v5817 = vld [vmem:[%s4 + $0x224] sm:$0xf]
    %v5818 = vld [vmem:[%s4 + $0x228] sm:$0xf]
    %v5819 = vld [vmem:[%s4 + $0x22c] sm:$0xf]
    %v5820 = vld [vmem:[%s4 + $0x230] sm:$0xf]
    %v5821 = vld [vmem:[%s4 + $0x234] sm:$0xf]
    %v5822 = vld [vmem:[%s4 + $0x238] sm:$0xf]
    %v5823 = vld [vmem:[%s4 + $0x23c] sm:$0xf]
    %v5824 = vld [vmem:[%s5] sm:$0x1]
    %v5825 = vld [vmem:[%s6] sm:$0x1]
    %v5954 = vperm.slane %v5552, 0
    %v5955 = vperm.slane %v5553, 0
    %v5956 = vperm.slane %v5554, 0
    %v5957 = vperm.slane %v5555, 0
    %v5958 = vperm.slane %v5556, 0
    %v5959 = vperm.slane %v5557, 0
    %v5960 = vperm.slane %v5558, 0
    %v5961 = vperm.slane %v5559, 0
    %v5962 = vperm.slane %v5560, 0
    %v5963 = vperm.slane %v5561, 0
    %v5964 = vperm.slane %v5562, 0
    %v5965 = vperm.slane %v5563, 0
    %v5966 = vperm.slane %v5564, 0
    %v5967 = vperm.slane %v5565, 0
    %v5968 = vperm.slane %v5566, 0
    %v5969 = vperm.slane %v5567, 0
    %v5970 = vperm.slane %v5568, 0
    %v5971 = vperm.slane %v5569, 0
    %v5972 = vperm.slane %v5570, 0
    %v5973 = vperm.slane %v5571, 0
    %v5974 = vperm.slane %v5572, 0
    %v5975 = vperm.slane %v5573, 0
    %v5976 = vperm.slane %v5574, 0
    %v5977 = vperm.slane %v5575, 0
    %v5978 = vperm.slane %v5576, 0
    %v5979 = vperm.slane %v5577, 0
    %v5980 = vperm.slane %v5578, 0
    %v5981 = vperm.slane %v5579, 0
    %v5982 = vperm.slane %v5580, 0
    %v5983 = vperm.slane %v5581, 0
    %v5984 = vperm.slane %v5582, 0
    %v5985 = vperm.slane %v5583, 0
    %v5986 = vperm.slane %v5584, 0
    %v5987 = vperm.slane %v5585, 0
    %v5988 = vperm.slane %v5586, 0
    %v5989 = vperm.slane %v5587, 0
    %v5990 = vperm.slane %v5588, 0
    %v5991 = vperm.slane %v5589, 0
    %v5992 = vperm.slane %v5590, 0
    %v5993 = vperm.slane %v5591, 0
    %v5994 = vperm.slane %v5592, 0
    %v5995 = vperm.slane %v5593, 0
    %v5996 = vperm.slane %v5594, 0
    %v5997 = vperm.slane %v5595, 0
    %v5998 = vperm.slane %v5596, 0
    %v5999 = vperm.slane %v5597, 0
    %v6000 = vperm.slane %v5598, 0
    %v6001 = vperm.slane %v5599, 0
    %v6002 = vperm.slane %v5600, 0
    %v6003 = vperm.slane %v5601, 0
    %v6004 = vperm.slane %v5602, 0
    %v6005 = vperm.slane %v5603, 0
    %v6006 = vperm.slane %v5604, 0
    %v6007 = vperm.slane %v5605, 0
    %v6008 = vperm.slane %v5606, 0
    %v6009 = vperm.slane %v5607, 0
    %v6010 = vperm.slane %v5608, 0
    %v6011 = vperm.slane %v5609, 0
    %v6012 = vperm.slane %v5610, 0
    %v6013 = vperm.slane %v5611, 0
    %v6014 = vperm.slane %v5612, 0
    %v6015 = vperm.slane %v5613, 0
    %v6016 = vperm.slane %v5614, 0
    %v6017 = vperm.slane %v5615, 0
    %v6018 = vperm.slane %v5616, 0
    %v6019 = vperm.slane %v5617, 0
    %v6020 = vperm.slane %v5618, 0
    %v6021 = vperm.slane %v5619, 0
    %v6022 = vperm.slane %v5620, 0
    %v6023 = vperm.slane %v5621, 0
    %v6024 = vperm.slane %v5622, 0
    %v6025 = vperm.slane %v5623, 0
    %v6026 = vperm.slane %v5624, 0
    %v6027 = vperm.slane %v5625, 0
    %v6028 = vperm.slane %v5626, 0
    %v6029 = vperm.slane %v5627, 0
    %v6030 = vperm.slane %v5628, 0
    %v6031 = vperm.slane %v5629, 0
    %v6032 = vperm.slane %v5630, 0
    %v6033 = vperm.slane %v5631, 0
    %v6034 = vperm.slane %v5632, 0
    %v6035 = vperm.slane %v5633, 0
    %v6036 = vperm.slane %v5634, 0
    %v6037 = vperm.slane %v5635, 0
    %v6038 = vperm.slane %v5636, 0
    %v6039 = vperm.slane %v5637, 0
    %v6040 = vperm.slane %v5638, 0
    %v6041 = vperm.slane %v5639, 0
    %v6042 = vperm.slane %v5640, 0
    %v6043 = vperm.slane %v5641, 0
    %v6044 = vperm.slane %v5642, 0
    %v6045 = vperm.slane %v5643, 0
    %v6046 = vperm.slane %v5644, 0
    %v6047 = vperm.slane %v5645, 0
    %v6048 = vperm.slane %v5646, 0
    %v6049 = vperm.slane %v5647, 0
    %v6050 = vperm.slane %v5648, 0
    %v6051 = vperm.slane %v5649, 0
    %v6052 = vperm.slane %v5650, 0
    %v6053 = vperm.slane %v5651, 0
    %v6054 = vperm.slane %v5652, 0
    %v6055 = vperm.slane %v5653, 0
    %v6056 = vperm.slane %v5654, 0
    %v6057 = vperm.slane %v5655, 0
    %v6058 = vperm.slane %v5656, 0
    %v6059 = vperm.slane %v5657, 0
    %v6060 = vperm.slane %v5658, 0
    %v6061 = vperm.slane %v5659, 0
    %v6062 = vperm.slane %v5660, 0
    %v6063 = vperm.slane %v5661, 0
    %v6064 = vperm.slane %v5662, 0
    %v6065 = vperm.slane %v5663, 0
    %v6066 = vperm.slane %v5664, 0
    %v6067 = vperm.slane %v5665, 0
    %v6068 = vperm.slane %v5666, 0
    %v6069 = vperm.slane %v5667, 0
    %v6070 = vperm.slane %v5668, 0
    %v6071 = vperm.slane %v5669, 0
    %v6072 = vperm.slane %v5670, 0
    %v6073 = vperm.slane %v5671, 0
    %v6074 = vperm.slane %v5672, 0
    %v6075 = vperm.slane %v5673, 0
    %v6076 = vperm.slane %v5674, 0
    %v6077 = vperm.slane %v5675, 0
    %v6078 = vperm.slane %v5676, 0
    %v6079 = vperm.slane %v5677, 0
    %v6080 = vperm.slane %v5678, 0
    %v6081 = vperm.slane %v5679, 0
    %vm6082 = vcmask 1041409
    %v6083 = vsel %vm6082, %v5955, %v5954
    %vm6084 = vcmask 1042434
    %v6085 = vsel %vm6084, %v5956, %v6083
    %vm6086 = vcmask 1043459
    %v6087 = vsel %vm6086, %v5957, %v6085
    %vm6088 = vcmask 1044484
    %v6089 = vsel %vm6088, %v5958, %v6087
    %vm6090 = vcmask 1045509
    %v6091 = vsel %vm6090, %v5959, %v6089
    %vm6092 = vcmask 1046534
    %v6093 = vsel %vm6092, %v5960, %v6091
    %vm6094 = vcmask 1047559
    %v6095 = vsel %vm6094, %v5961, %v6093
    %v6096 = vsel %vm6082, %v5963, %v5962
    %v6097 = vsel %vm6084, %v5964, %v6096
    %v6098 = vsel %vm6086, %v5965, %v6097
    %v6099 = vsel %vm6088, %v5966, %v6098
    %v6100 = vsel %vm6090, %v5967, %v6099
    %v6101 = vsel %vm6092, %v5968, %v6100
    %v6102 = vsel %vm6094, %v5969, %v6101
    %v6103 = vsel %vm6082, %v5971, %v5970
    %v6104 = vsel %vm6084, %v5972, %v6103
    %v6105 = vsel %vm6086, %v5973, %v6104
    %v6106 = vsel %vm6088, %v5974, %v6105
    %v6107 = vsel %vm6090, %v5975, %v6106
    %v6108 = vsel %vm6092, %v5976, %v6107
    %v6109 = vsel %vm6094, %v5977, %v6108
    %v6110 = vsel %vm6082, %v5979, %v5978
    %v6111 = vsel %vm6084, %v5980, %v6110
    %v6112 = vsel %vm6086, %v5981, %v6111
    %v6113 = vsel %vm6088, %v5982, %v6112
    %v6114 = vsel %vm6090, %v5983, %v6113
    %v6115 = vsel %vm6092, %v5984, %v6114
    %v6116 = vsel %vm6094, %v5985, %v6115
    %v6117 = vsel %vm6082, %v5987, %v5986
    %v6118 = vsel %vm6084, %v5988, %v6117
    %v6119 = vsel %vm6086, %v5989, %v6118
    %v6120 = vsel %vm6088, %v5990, %v6119
    %v6121 = vsel %vm6090, %v5991, %v6120
    %v6122 = vsel %vm6092, %v5992, %v6121
    %v6123 = vsel %vm6094, %v5993, %v6122
    %v6124 = vsel %vm6082, %v5995, %v5994
    %v6125 = vsel %vm6084, %v5996, %v6124
    %v6126 = vsel %vm6086, %v5997, %v6125
    %v6127 = vsel %vm6088, %v5998, %v6126
    %v6128 = vsel %vm6090, %v5999, %v6127
    %v6129 = vsel %vm6092, %v6000, %v6128
    %v6130 = vsel %vm6094, %v6001, %v6129
    %v6131 = vsel %vm6082, %v6003, %v6002
    %v6132 = vsel %vm6084, %v6004, %v6131
    %v6133 = vsel %vm6086, %v6005, %v6132
    %v6134 = vsel %vm6088, %v6006, %v6133
    %v6135 = vsel %vm6090, %v6007, %v6134
    %v6136 = vsel %vm6092, %v6008, %v6135
    %v6137 = vsel %vm6094, %v6009, %v6136
    %v6138 = vsel %vm6082, %v6011, %v6010
    %v6139 = vsel %vm6084, %v6012, %v6138
    %v6140 = vsel %vm6086, %v6013, %v6139
    %v6141 = vsel %vm6088, %v6014, %v6140
    %v6142 = vsel %vm6090, %v6015, %v6141
    %v6143 = vsel %vm6092, %v6016, %v6142
    %v6144 = vsel %vm6094, %v6017, %v6143
    %v6145 = vsel %vm6082, %v6019, %v6018
    %v6146 = vsel %vm6084, %v6020, %v6145
    %v6147 = vsel %vm6086, %v6021, %v6146
    %v6148 = vsel %vm6088, %v6022, %v6147
    %v6149 = vsel %vm6090, %v6023, %v6148
    %v6150 = vsel %vm6092, %v6024, %v6149
    %v6151 = vsel %vm6094, %v6025, %v6150
    %v6152 = vsel %vm6082, %v6027, %v6026
    %v6153 = vsel %vm6084, %v6028, %v6152
    %v6154 = vsel %vm6086, %v6029, %v6153
    %v6155 = vsel %vm6088, %v6030, %v6154
    %v6156 = vsel %vm6090, %v6031, %v6155
    %v6157 = vsel %vm6092, %v6032, %v6156
    %v6158 = vsel %vm6094, %v6033, %v6157
    %v6159 = vsel %vm6082, %v6035, %v6034
    %v6160 = vsel %vm6084, %v6036, %v6159
    %v6161 = vsel %vm6086, %v6037, %v6160
    %v6162 = vsel %vm6088, %v6038, %v6161
    %v6163 = vsel %vm6090, %v6039, %v6162
    %v6164 = vsel %vm6092, %v6040, %v6163
    %v6165 = vsel %vm6094, %v6041, %v6164
    %v6166 = vsel %vm6082, %v6043, %v6042
    %v6167 = vsel %vm6084, %v6044, %v6166
    %v6168 = vsel %vm6086, %v6045, %v6167
    %v6169 = vsel %vm6088, %v6046, %v6168
    %v6170 = vsel %vm6090, %v6047, %v6169
    %v6171 = vsel %vm6092, %v6048, %v6170
    %v6172 = vsel %vm6094, %v6049, %v6171
    %v6173 = vsel %vm6082, %v6051, %v6050
    %v6174 = vsel %vm6084, %v6052, %v6173
    %v6175 = vsel %vm6086, %v6053, %v6174
    %v6176 = vsel %vm6088, %v6054, %v6175
    %v6177 = vsel %vm6090, %v6055, %v6176
    %v6178 = vsel %vm6092, %v6056, %v6177
    %v6179 = vsel %vm6094, %v6057, %v6178
    %v6180 = vsel %vm6082, %v6059, %v6058
    %v6181 = vsel %vm6084, %v6060, %v6180
    %v6182 = vsel %vm6086, %v6061, %v6181
    %v6183 = vsel %vm6088, %v6062, %v6182
    %v6184 = vsel %vm6090, %v6063, %v6183
    %v6185 = vsel %vm6092, %v6064, %v6184
    %v6186 = vsel %vm6094, %v6065, %v6185
    %v6187 = vsel %vm6082, %v6067, %v6066
    %v6188 = vsel %vm6084, %v6068, %v6187
    %v6189 = vsel %vm6086, %v6069, %v6188
    %v6190 = vsel %vm6088, %v6070, %v6189
    %v6191 = vsel %vm6090, %v6071, %v6190
    %v6192 = vsel %vm6092, %v6072, %v6191
    %v6193 = vsel %vm6094, %v6073, %v6192
    %v6194 = vsel %vm6082, %v6075, %v6074
    %v6195 = vsel %vm6084, %v6076, %v6194
    %v6196 = vsel %vm6086, %v6077, %v6195
    %v6197 = vsel %vm6088, %v6078, %v6196
    %v6198 = vsel %vm6090, %v6079, %v6197
    %v6199 = vsel %vm6092, %v6080, %v6198
    %v6200 = vsel %vm6094, %v6081, %v6199
    %v6201 = vrot.slane %v6095, 7
    %v6202 = vrot.slane %v6102, 7
    %v6203 = vrot.slane %v6109, 7
    %v6204 = vrot.slane %v6116, 7
    %v6205 = vrot.slane %v6123, 7
    %v6206 = vrot.slane %v6130, 7
    %v6207 = vrot.slane %v6137, 7
    %v6208 = vrot.slane %v6144, 7
    %v6209 = vrot.slane %v6151, 7
    %v6210 = vrot.slane %v6158, 7
    %v6211 = vrot.slane %v6165, 7
    %v6212 = vrot.slane %v6172, 7
    %v6213 = vrot.slane %v6179, 7
    %v6214 = vrot.slane %v6186, 7
    %v6215 = vrot.slane %v6193, 7
    %v6216 = vrot.slane %v6200, 7
    %v6233 = vsel %vm215, 0.0, %v6201
    %v6234 = vsel %vm215, 0.0, %v6202
    %v6235 = vsel %vm215, 0.0, %v6203
    %v6236 = vsel %vm215, 0.0, %v6204
    %v6237 = vsel %vm215, 0.0, %v6205
    %v6238 = vsel %vm215, 0.0, %v6206
    %v6239 = vsel %vm215, 0.0, %v6207
    %v6240 = vsel %vm215, 0.0, %v6208
    %v6241 = vsel %vm215, 0.0, %v6209
    %v6242 = vsel %vm215, 0.0, %v6210
    %v6243 = vsel %vm215, 0.0, %v6211
    %v6244 = vsel %vm215, 0.0, %v6212
    %v6245 = vsel %vm215, 0.0, %v6213
    %v6246 = vsel %vm215, 0.0, %v6214
    %v6247 = vsel %vm215, 0.0, %v6215
    %v6248 = vsel %vm215, 0.0, %v6216
    %v6249 = vsel %vm215, %v6201, 0.0
    %v6250 = vsel %vm215, %v6202, 0.0
    %v6251 = vsel %vm215, %v6203, 0.0
    %v6252 = vsel %vm215, %v6204, 0.0
    %v6253 = vsel %vm215, %v6205, 0.0
    %v6254 = vsel %vm215, %v6206, 0.0
    %v6255 = vsel %vm215, %v6207, 0.0
    %v6256 = vsel %vm215, %v6208, 0.0
    %v6257 = vsel %vm215, %v6209, 0.0
    %v6258 = vsel %vm215, %v6210, 0.0
    %v6259 = vsel %vm215, %v6211, 0.0
    %v6260 = vsel %vm215, %v6212, 0.0
    %v6261 = vsel %vm215, %v6213, 0.0
    %v6262 = vsel %vm215, %v6214, 0.0
    %v6263 = vsel %vm215, %v6215, 0.0
    %v6264 = vsel %vm215, %v6216, 0.0
    %v6293 = vsel %vm571, %v572, %v575
    %v6294 = vrot.slane %v6233, 1
    %v6295 = vrot.slane %v6249, 1
    %v6296 = vsel %vm571, %v6294, %v6295
    %v6297 = vrot.slane %v6234, 1
    %v6298 = vrot.slane %v6250, 1
    %v6299 = vsel %vm571, %v6297, %v6298
    %v6300 = vrot.slane %v6235, 1
    %v6301 = vrot.slane %v6251, 1
    %v6302 = vsel %vm571, %v6300, %v6301
    %v6303 = vrot.slane %v6236, 1
    %v6304 = vrot.slane %v6252, 1
    %v6305 = vsel %vm571, %v6303, %v6304
    %v6306 = vrot.slane %v6237, 1
    %v6307 = vrot.slane %v6253, 1
    %v6308 = vsel %vm571, %v6306, %v6307
    %v6309 = vrot.slane %v6238, 1
    %v6310 = vrot.slane %v6254, 1
    %v6311 = vsel %vm571, %v6309, %v6310
    %v6312 = vrot.slane %v6239, 1
    %v6313 = vrot.slane %v6255, 1
    %v6314 = vsel %vm571, %v6312, %v6313
    %v6315 = vrot.slane %v6241, 1
    %v6316 = vrot.slane %v6257, 1
    %v6317 = vsel %vm571, %v6315, %v6316
    %v6318 = vrot.slane %v6242, 1
    %v6319 = vrot.slane %v6258, 1
    %v6320 = vsel %vm571, %v6318, %v6319
    %v6321 = vrot.slane %v6243, 1
    %v6322 = vrot.slane %v6259, 1
    %v6323 = vsel %vm571, %v6321, %v6322
    %v6324 = vrot.slane %v6244, 1
    %v6325 = vrot.slane %v6260, 1
    %v6326 = vsel %vm571, %v6324, %v6325
    %v6327 = vrot.slane %v6245, 1
    %v6328 = vrot.slane %v6261, 1
    %v6329 = vsel %vm571, %v6327, %v6328
    %v6330 = vrot.slane %v6246, 1
    %v6331 = vrot.slane %v6262, 1
    %v6332 = vsel %vm571, %v6330, %v6331
    %v6333 = vrot.slane %v6247, 1
    %v6334 = vrot.slane %v6263, 1
    %v6335 = vsel %vm571, %v6333, %v6334
    %v6351 = vsel %vm1354, %v1355, %v1358
    %v6352 = vrot.slane %v6233, 2
    %v6353 = vrot.slane %v6249, 2
    %v6354 = vsel %vm1354, %v6352, %v6353
    %v6355 = vrot.slane %v6234, 2
    %v6356 = vrot.slane %v6250, 2
    %v6357 = vsel %vm1354, %v6355, %v6356
    %v6358 = vrot.slane %v6235, 2
    %v6359 = vrot.slane %v6251, 2
    %v6360 = vsel %vm1354, %v6358, %v6359
    %v6361 = vrot.slane %v6236, 2
    %v6362 = vrot.slane %v6252, 2
    %v6363 = vsel %vm1354, %v6361, %v6362
    %v6364 = vrot.slane %v6237, 2
    %v6365 = vrot.slane %v6253, 2
    %v6366 = vsel %vm1354, %v6364, %v6365
    %v6367 = vrot.slane %v6238, 2
    %v6368 = vrot.slane %v6254, 2
    %v6369 = vsel %vm1354, %v6367, %v6368
    %v6370 = vrot.slane %v6239, 2
    %v6371 = vrot.slane %v6255, 2
    %v6372 = vsel %vm1354, %v6370, %v6371
    %v6373 = vrot.slane %v6241, 2
    %v6374 = vrot.slane %v6257, 2
    %v6375 = vsel %vm1354, %v6373, %v6374
    %v6376 = vrot.slane %v6242, 2
    %v6377 = vrot.slane %v6258, 2
    %v6378 = vsel %vm1354, %v6376, %v6377
    %v6379 = vrot.slane %v6243, 2
    %v6380 = vrot.slane %v6259, 2
    %v6381 = vsel %vm1354, %v6379, %v6380
    %v6382 = vrot.slane %v6244, 2
    %v6383 = vrot.slane %v6260, 2
    %v6384 = vsel %vm1354, %v6382, %v6383
    %v6385 = vrot.slane %v6245, 2
    %v6386 = vrot.slane %v6261, 2
    %v6387 = vsel %vm1354, %v6385, %v6386
    %v6388 = vrot.slane %v6246, 2
    %v6389 = vrot.slane %v6262, 2
    %v6390 = vsel %vm1354, %v6388, %v6389
    %v6391 = vrot.slane %v6247, 2
    %v6392 = vrot.slane %v6263, 2
    %v6393 = vsel %vm1354, %v6391, %v6392
    %v6413 = vrot.slane %v6240, 1
    %v6414 = vrot.slane %v6256, 1
    %v6415 = vsel %vm571, %v6413, %v6414
    %v6416 = vrot.slane %v6248, 1
    %v6417 = vrot.slane %v6264, 1
    %v6418 = vsel %vm571, %v6416, %v6417
    %v6421 = vrot.slane %v6240, 2
    %v6422 = vrot.slane %v6256, 2
    %v6423 = vsel %vm1354, %v6421, %v6422
    %v6424 = vrot.slane %v6248, 2
    %v6425 = vrot.slane %v6264, 2
    %v6426 = vsel %vm1354, %v6424, %v6425
    %v6429 = vpack.c.bf16 %v6233, %v412
    %v6430 = vpack.c.bf16 %v6296, %v6293
    %v6431 = vpack.c.bf16 %v6354, %v6351
    %v6432 = vpack.c.bf16 %v6234, %v6233
    %v6433 = vpack.c.bf16 %v6299, %v6296
    %v6434 = vpack.c.bf16 %v6357, %v6354
    %v6435 = vpack.c.bf16 %v6235, %v6234
    %v6436 = vpack.c.bf16 %v6302, %v6299
    %v6437 = vpack.c.bf16 %v6360, %v6357
    %v6438 = vpack.c.bf16 %v6236, %v6235
    %v6439 = vpack.c.bf16 %v6305, %v6302
    %v6440 = vpack.c.bf16 %v6363, %v6360
    %v6441 = vpack.c.bf16 %v6237, %v6236
    %v6442 = vpack.c.bf16 %v6308, %v6305
    %v6443 = vpack.c.bf16 %v6366, %v6363
    %v6444 = vpack.c.bf16 %v6238, %v6237
    %v6445 = vpack.c.bf16 %v6311, %v6308
    %v6446 = vpack.c.bf16 %v6369, %v6366
    %v6447 = vpack.c.bf16 %v6239, %v6238
    %v6448 = vpack.c.bf16 %v6314, %v6311
    %v6449 = vpack.c.bf16 %v6372, %v6369
    %v6450 = vpack.c.bf16 %v6240, %v6239
    %v6451 = vpack.c.bf16 %v6415, %v6314
    %v6452 = vpack.c.bf16 %v6423, %v6372
    %v6453 = vpack.c.bf16 %v412, %v6240
    %v6454 = vpack.c.bf16 %v6293, %v6415
    %v6455 = vpack.c.bf16 %v6351, %v6423
    %v6456 = vpack.c.bf16 %v6241, %v412
    %v6457 = vpack.c.bf16 %v6317, %v6293
    %v6458 = vpack.c.bf16 %v6375, %v6351
    %v6459 = vpack.c.bf16 %v6242, %v6241
    %v6460 = vpack.c.bf16 %v6320, %v6317
    %v6461 = vpack.c.bf16 %v6378, %v6375
    %v6462 = vpack.c.bf16 %v6243, %v6242
    %v6463 = vpack.c.bf16 %v6323, %v6320
    %v6464 = vpack.c.bf16 %v6381, %v6378
    %v6465 = vpack.c.bf16 %v6244, %v6243
    %v6466 = vpack.c.bf16 %v6326, %v6323
    %v6467 = vpack.c.bf16 %v6384, %v6381
    %v6468 = vpack.c.bf16 %v6245, %v6244
    %v6469 = vpack.c.bf16 %v6329, %v6326
    %v6470 = vpack.c.bf16 %v6387, %v6384
    %v6471 = vpack.c.bf16 %v6246, %v6245
    %v6472 = vpack.c.bf16 %v6332, %v6329
    %v6473 = vpack.c.bf16 %v6390, %v6387
    %v6474 = vpack.c.bf16 %v6247, %v6246
    %v6475 = vpack.c.bf16 %v6335, %v6332
    %v6476 = vpack.c.bf16 %v6393, %v6390
    %v6477 = vpack.c.bf16 %v6248, %v6247
    %v6478 = vpack.c.bf16 %v6418, %v6335
    %v6479 = vpack.c.bf16 %v6426, %v6393
    %v6480 = vpack.c.bf16 %v412, %v6248
    %v6481 = vpack.c.bf16 %v6293, %v6418
    %v6482 = vpack.c.bf16 %v6351, %v6426
    %v6627 = vunpack.c.l.b16 %v5680
    %v6628 = vunpack.c.l.b16 %v5681
    %v6629 = vunpack.c.l.b16 %v5682
    %v6630 = vunpack.c.l.b16 %v5683
    %v6631 = vunpack.c.l.b16 %v5684
    %v6632 = vunpack.c.l.b16 %v5685
    %v6633 = vunpack.c.l.b16 %v5686
    %v6634 = vunpack.c.l.b16 %v5687
    %v6635 = vunpack.c.l.b16 %v5688
    %v6636 = vunpack.c.l.b16 %v5689
    %v6637 = vunpack.c.l.b16 %v5690
    %v6638 = vunpack.c.l.b16 %v5691
    %v6639 = vunpack.c.l.b16 %v5692
    %v6640 = vunpack.c.l.b16 %v5693
    %v6641 = vunpack.c.l.b16 %v5694
    %v6642 = vunpack.c.l.b16 %v5695
    %v6643 = vunpack.c.l.b16 %v5696
    %v6644 = vunpack.c.l.b16 %v5697
    %v6645 = vunpack.c.l.b16 %v5698
    %v6646 = vunpack.c.l.b16 %v5699
    %v6647 = vunpack.c.l.b16 %v5700
    %v6648 = vunpack.c.l.b16 %v5701
    %v6649 = vunpack.c.l.b16 %v5702
    %v6650 = vunpack.c.l.b16 %v5703
    %v6651 = vunpack.c.l.b16 %v5704
    %v6652 = vunpack.c.l.b16 %v5705
    %v6653 = vunpack.c.l.b16 %v5706
    %v6654 = vunpack.c.l.b16 %v5707
    %v6655 = vunpack.c.l.b16 %v5708
    %v6656 = vunpack.c.l.b16 %v5709
    %v6657 = vunpack.c.l.b16 %v5710
    %v6658 = vunpack.c.l.b16 %v5711
    %v6659 = vunpack.c.l.b16 %v5712
    %v6660 = vunpack.c.l.b16 %v5713
    %v6661 = vunpack.c.l.b16 %v5714
    %v6662 = vunpack.c.l.b16 %v5715
    %v6663 = vunpack.c.l.b16 %v5716
    %v6664 = vunpack.c.l.b16 %v5717
    %v6665 = vunpack.c.l.b16 %v5718
    %v6666 = vunpack.c.l.b16 %v5719
    %v6667 = vunpack.c.l.b16 %v5720
    %v6668 = vunpack.c.l.b16 %v5721
    %v6669 = vunpack.c.l.b16 %v5722
    %v6670 = vunpack.c.l.b16 %v5723
    %v6671 = vunpack.c.l.b16 %v5724
    %v6672 = vunpack.c.l.b16 %v5725
    %v6673 = vunpack.c.l.b16 %v5726
    %v6674 = vunpack.c.l.b16 %v5727
    %v6675 = vunpack.c.l.b16 %v5728
    %v6676 = vunpack.c.l.b16 %v5729
    %v6677 = vunpack.c.l.b16 %v5730
    %v6678 = vunpack.c.l.b16 %v5731
    %v6679 = vunpack.c.l.b16 %v5732
    %v6680 = vunpack.c.l.b16 %v5733
    %v6681 = vunpack.c.l.b16 %v5734
    %v6682 = vunpack.c.l.b16 %v5735
    %v6683 = vunpack.c.l.b16 %v5736
    %v6684 = vunpack.c.l.b16 %v5737
    %v6685 = vunpack.c.l.b16 %v5738
    %v6686 = vunpack.c.l.b16 %v5739
    %v6687 = vunpack.c.l.b16 %v5740
    %v6688 = vunpack.c.l.b16 %v5741
    %v6689 = vunpack.c.l.b16 %v5742
    %v6690 = vunpack.c.l.b16 %v5743
    %v6691 = vunpack.c.l.b16 %v5744
    %v6692 = vunpack.c.l.b16 %v5745
    %v6693 = vunpack.c.l.b16 %v5746
    %v6694 = vunpack.c.l.b16 %v5747
    %v6695 = vunpack.c.l.b16 %v5748
    %v6696 = vunpack.c.l.b16 %v5749
    %v6697 = vunpack.c.l.b16 %v5750
    %v6698 = vunpack.c.l.b16 %v5751
    %v6699 = vunpack.c.l.b16 %v5752
    %v6700 = vunpack.c.l.b16 %v5753
    %v6701 = vunpack.c.l.b16 %v5754
    %v6702 = vunpack.c.l.b16 %v5755
    %v6703 = vunpack.c.l.b16 %v5756
    %v6704 = vunpack.c.l.b16 %v5757
    %v6705 = vunpack.c.l.b16 %v5758
    %v6706 = vunpack.c.l.b16 %v5759
    %v6707 = vunpack.c.l.b16 %v5760
    %v6708 = vunpack.c.l.b16 %v5761
    %v6709 = vunpack.c.l.b16 %v5762
    %v6710 = vunpack.c.l.b16 %v5763
    %v6711 = vunpack.c.l.b16 %v5764
    %v6712 = vunpack.c.l.b16 %v5765
    %v6713 = vunpack.c.l.b16 %v5766
    %v6714 = vunpack.c.l.b16 %v5767
    %v6715 = vunpack.c.l.b16 %v5768
    %v6716 = vunpack.c.l.b16 %v5769
    %v6717 = vunpack.c.l.b16 %v5770
    %v6718 = vunpack.c.l.b16 %v5771
    %v6719 = vunpack.c.l.b16 %v5772
    %v6720 = vunpack.c.l.b16 %v5773
    %v6721 = vunpack.c.l.b16 %v5774
    %v6722 = vunpack.c.l.b16 %v5775
    %v6723 = vunpack.c.l.b16 %v5776
    %v6724 = vunpack.c.l.b16 %v5777
    %v6725 = vunpack.c.l.b16 %v5778
    %v6726 = vunpack.c.l.b16 %v5779
    %v6727 = vunpack.c.l.b16 %v5780
    %v6728 = vunpack.c.l.b16 %v5781
    %v6729 = vunpack.c.l.b16 %v5782
    %v6730 = vunpack.c.l.b16 %v5783
    %v6731 = vunpack.c.l.b16 %v5784
    %v6732 = vunpack.c.l.b16 %v5785
    %v6733 = vunpack.c.l.b16 %v5786
    %v6734 = vunpack.c.l.b16 %v5787
    %v6735 = vunpack.c.l.b16 %v5788
    %v6736 = vunpack.c.l.b16 %v5789
    %v6737 = vunpack.c.l.b16 %v5790
    %v6738 = vunpack.c.l.b16 %v5791
    %v6739 = vunpack.c.l.b16 %v5792
    %v6740 = vunpack.c.l.b16 %v5793
    %v6741 = vunpack.c.l.b16 %v5794
    %v6742 = vunpack.c.l.b16 %v5795
    %v6743 = vunpack.c.l.b16 %v5796
    %v6744 = vunpack.c.l.b16 %v5797
    %v6745 = vunpack.c.l.b16 %v5798
    %v6746 = vunpack.c.l.b16 %v5799
    %v6747 = vunpack.c.l.b16 %v5800
    %v6748 = vunpack.c.l.b16 %v5801
    %v6749 = vunpack.c.l.b16 %v5802
    %v6750 = vunpack.c.l.b16 %v5803
    %v6751 = vunpack.c.l.b16 %v5804
    %v6752 = vunpack.c.l.b16 %v5805
    %v6753 = vunpack.c.l.b16 %v5806
    %v6754 = vunpack.c.l.b16 %v5807
    %v6755 = vunpack.c.l.b16 %v5808
    %v6756 = vunpack.c.l.b16 %v5809
    %v6757 = vunpack.c.l.b16 %v5810
    %v6758 = vunpack.c.l.b16 %v5811
    %v6759 = vunpack.c.l.b16 %v5812
    %v6760 = vunpack.c.l.b16 %v5813
    %v6761 = vunpack.c.l.b16 %v5814
    %v6762 = vunpack.c.l.b16 %v5815
    %v6763 = vunpack.c.l.b16 %v5816
    %v6764 = vunpack.c.l.b16 %v5817
    %v6765 = vunpack.c.l.b16 %v5818
    %v6766 = vunpack.c.l.b16 %v5819
    %v6767 = vunpack.c.l.b16 %v5820
    %v6768 = vunpack.c.l.b16 %v5821
    %v6769 = vunpack.c.l.b16 %v5822
    %v6770 = vunpack.c.l.b16 %v5823
    %v6771 = vpack.c.b16 %v6628, %v6627
    %v6772 = vpack.c.b16 %v6630, %v6629
    %v6773 = vpack.c.b16 %v6632, %v6631
    %v6774 = vpack.c.b16 %v6634, %v6633
    %v6775 = vpack.c.b16 %v6636, %v6635
    %v6776 = vpack.c.b16 %v6638, %v6637
    %v6777 = vpack.c.b16 %v6640, %v6639
    %v6778 = vpack.c.b16 %v6642, %v6641
    %v6779 = vpack.c.b16 %v6644, %v6643
    %v6780 = vpack.c.b16 %v6646, %v6645
    %v6781 = vpack.c.b16 %v6648, %v6647
    %v6782 = vpack.c.b16 %v6650, %v6649
    %v6783 = vpack.c.b16 %v6652, %v6651
    %v6784 = vpack.c.b16 %v6654, %v6653
    %v6785 = vpack.c.b16 %v6656, %v6655
    %v6786 = vpack.c.b16 %v6658, %v6657
    %v6787 = vpack.c.b16 %v6660, %v6659
    %v6788 = vpack.c.b16 %v6662, %v6661
    %v6789 = vpack.c.b16 %v6664, %v6663
    %v6790 = vpack.c.b16 %v6666, %v6665
    %v6791 = vpack.c.b16 %v6668, %v6667
    %v6792 = vpack.c.b16 %v6670, %v6669
    %v6793 = vpack.c.b16 %v6672, %v6671
    %v6794 = vpack.c.b16 %v6674, %v6673
    %v6795 = vpack.c.b16 %v6676, %v6675
    %v6796 = vpack.c.b16 %v6678, %v6677
    %v6797 = vpack.c.b16 %v6680, %v6679
    %v6798 = vpack.c.b16 %v6682, %v6681
    %v6799 = vpack.c.b16 %v6684, %v6683
    %v6800 = vpack.c.b16 %v6686, %v6685
    %v6801 = vpack.c.b16 %v6688, %v6687
    %v6802 = vpack.c.b16 %v6690, %v6689
    %v6803 = vpack.c.b16 %v6692, %v6691
    %v6804 = vpack.c.b16 %v6694, %v6693
    %v6805 = vpack.c.b16 %v6696, %v6695
    %v6806 = vpack.c.b16 %v6698, %v6697
    %v6807 = vpack.c.b16 %v6700, %v6699
    %v6808 = vpack.c.b16 %v6702, %v6701
    %v6809 = vpack.c.b16 %v6704, %v6703
    %v6810 = vpack.c.b16 %v6706, %v6705
    %v6811 = vpack.c.b16 %v6708, %v6707
    %v6812 = vpack.c.b16 %v6710, %v6709
    %v6813 = vpack.c.b16 %v6712, %v6711
    %v6814 = vpack.c.b16 %v6714, %v6713
    %v6815 = vpack.c.b16 %v6716, %v6715
    %v6816 = vpack.c.b16 %v6718, %v6717
    %v6817 = vpack.c.b16 %v6720, %v6719
    %v6818 = vpack.c.b16 %v6722, %v6721
    %v6819 = vpack.c.b16 %v6724, %v6723
    %v6820 = vpack.c.b16 %v6726, %v6725
    %v6821 = vpack.c.b16 %v6728, %v6727
    %v6822 = vpack.c.b16 %v6730, %v6729
    %v6823 = vpack.c.b16 %v6732, %v6731
    %v6824 = vpack.c.b16 %v6734, %v6733
    %v6825 = vpack.c.b16 %v6736, %v6735
    %v6826 = vpack.c.b16 %v6738, %v6737
    %v6827 = vpack.c.b16 %v6740, %v6739
    %v6828 = vpack.c.b16 %v6742, %v6741
    %v6829 = vpack.c.b16 %v6744, %v6743
    %v6830 = vpack.c.b16 %v6746, %v6745
    %v6831 = vpack.c.b16 %v6748, %v6747
    %v6832 = vpack.c.b16 %v6750, %v6749
    %v6833 = vpack.c.b16 %v6752, %v6751
    %v6834 = vpack.c.b16 %v6754, %v6753
    %v6835 = vpack.c.b16 %v6756, %v6755
    %v6836 = vpack.c.b16 %v6758, %v6757
    %v6837 = vpack.c.b16 %v6760, %v6759
    %v6838 = vpack.c.b16 %v6762, %v6761
    %v6839 = vpack.c.b16 %v6764, %v6763
    %v6840 = vpack.c.b16 %v6766, %v6765
    %v6841 = vpack.c.b16 %v6768, %v6767
    %v6842 = vpack.c.b16 %v6770, %v6769
    %6915 = vmatpush.bf16.msra.mxu0 %v6778
    %6916 = vmatpush.bf16.msra.mxu0 %v6777
    %6917 = vmatpush.bf16.msra.mxu0 %v6776
    %6918 = vmatpush.bf16.msra.mxu0 %v6775
    %6919 = vmatpush.bf16.msra.mxu0 %v6774
    %6920 = vmatpush.bf16.msra.mxu0 %v6773
    %6921 = vmatpush.bf16.msra.mxu0 %v6772
    %6922 = vmatpush.bf16.msra.mxu0 %v6771
    %6923 = vmatmul.bf16.gmra.mxu0 %v6429
    %v6924 = vpop.f32.mrf.mxu0
    %v6925 = vadd.f32 0.0, %v6924
    %v6926 = vpop.f32.mrf.mxu0
    %v6927 = vadd.f32 0.0, %v6926
    %6928 = vmatmul.bf16.gmra.mxu0 %v6435
    %v6929 = vpop.f32.mrf.mxu0
    %v6930 = vadd.f32 0.0, %v6929
    %v6931 = vpop.f32.mrf.mxu0
    %v6932 = vadd.f32 0.0, %v6931
    %6933 = vmatmul.bf16.gmra.mxu0 %v6441
    %v6934 = vpop.f32.mrf.mxu0
    %v6935 = vadd.f32 0.0, %v6934
    %v6936 = vpop.f32.mrf.mxu0
    %v6937 = vadd.f32 0.0, %v6936
    %6938 = vmatmul.bf16.gmra.mxu0 %v6447
    %v6939 = vpop.f32.mrf.mxu0
    %v6940 = vadd.f32 0.0, %v6939
    %v6941 = vpop.f32.mrf.mxu0
    %v6942 = vadd.f32 0.0, %v6941
    %6943 = vmatmul.bf16.gmra.mxu0 %v6456
    %v6944 = vpop.f32.mrf.mxu0
    %v6945 = vadd.f32 0.0, %v6944
    %v6946 = vpop.f32.mrf.mxu0
    %v6947 = vadd.f32 0.0, %v6946
    %6948 = vmatmul.bf16.gmra.mxu0 %v6462
    %v6949 = vpop.f32.mrf.mxu0
    %v6950 = vadd.f32 0.0, %v6949
    %v6951 = vpop.f32.mrf.mxu0
    %v6952 = vadd.f32 0.0, %v6951
    %6953 = vmatmul.bf16.gmra.mxu0 %v6468
    %v6954 = vpop.f32.mrf.mxu0
    %v6955 = vadd.f32 0.0, %v6954
    %v6956 = vpop.f32.mrf.mxu0
    %v6957 = vadd.f32 0.0, %v6956
    %6958 = vmatmul.bf16.gmra.mxu0 %v6474
    %v6959 = vpop.f32.mrf.mxu0
    %v6960 = vadd.f32 0.0, %v6959
    %v6961 = vpop.f32.mrf.mxu0
    %v6962 = vadd.f32 0.0, %v6961
    %6963 = vdwg.mxu0
    %6964 = vmatpush.bf16.msra.mxu0 %v6786
    %6965 = vmatpush.bf16.msra.mxu0 %v6785
    %6966 = vmatpush.bf16.msra.mxu0 %v6784
    %6967 = vmatpush.bf16.msra.mxu0 %v6783
    %6968 = vmatpush.bf16.msra.mxu0 %v6782
    %6969 = vmatpush.bf16.msra.mxu0 %v6781
    %6970 = vmatpush.bf16.msra.mxu0 %v6780
    %6971 = vmatpush.bf16.msra.mxu0 %v6779
    %6972 = vmatmul.bf16.gmra.mxu0 %v6430
    %v6973 = vpop.f32.mrf.mxu0
    %v6974 = vadd.f32 %v6925, %v6973
    %v6975 = vpop.f32.mrf.mxu0
    %v6976 = vadd.f32 %v6927, %v6975
    %6977 = vmatmul.bf16.gmra.mxu0 %v6436
    %v6978 = vpop.f32.mrf.mxu0
    %v6979 = vadd.f32 %v6930, %v6978
    %v6980 = vpop.f32.mrf.mxu0
    %v6981 = vadd.f32 %v6932, %v6980
    %6982 = vmatmul.bf16.gmra.mxu0 %v6442
    %v6983 = vpop.f32.mrf.mxu0
    %v6984 = vadd.f32 %v6935, %v6983
    %v6985 = vpop.f32.mrf.mxu0
    %v6986 = vadd.f32 %v6937, %v6985
    %6987 = vmatmul.bf16.gmra.mxu0 %v6448
    %v6988 = vpop.f32.mrf.mxu0
    %v6989 = vadd.f32 %v6940, %v6988
    %v6990 = vpop.f32.mrf.mxu0
    %v6991 = vadd.f32 %v6942, %v6990
    %6992 = vmatmul.bf16.gmra.mxu0 %v6457
    %v6993 = vpop.f32.mrf.mxu0
    %v6994 = vadd.f32 %v6945, %v6993
    %v6995 = vpop.f32.mrf.mxu0
    %v6996 = vadd.f32 %v6947, %v6995
    %6997 = vmatmul.bf16.gmra.mxu0 %v6463
    %v6998 = vpop.f32.mrf.mxu0
    %v6999 = vadd.f32 %v6950, %v6998
    %v7000 = vpop.f32.mrf.mxu0
    %v7001 = vadd.f32 %v6952, %v7000
    %7002 = vmatmul.bf16.gmra.mxu0 %v6469
    %v7003 = vpop.f32.mrf.mxu0
    %v7004 = vadd.f32 %v6955, %v7003
    %v7005 = vpop.f32.mrf.mxu0
    %v7006 = vadd.f32 %v6957, %v7005
    %7007 = vmatmul.bf16.gmra.mxu0 %v6475
    %v7008 = vpop.f32.mrf.mxu0
    %v7009 = vadd.f32 %v6960, %v7008
    %v7010 = vpop.f32.mrf.mxu0
    %v7011 = vadd.f32 %v6962, %v7010
    %7012 = vdwg.mxu0
    %7013 = vmatpush.bf16.msra.mxu0 %v6794
    %7014 = vmatpush.bf16.msra.mxu0 %v6793
    %7015 = vmatpush.bf16.msra.mxu0 %v6792
    %7016 = vmatpush.bf16.msra.mxu0 %v6791
    %7017 = vmatpush.bf16.msra.mxu0 %v6790
    %7018 = vmatpush.bf16.msra.mxu0 %v6789
    %7019 = vmatpush.bf16.msra.mxu0 %v6788
    %7020 = vmatpush.bf16.msra.mxu0 %v6787
    %7021 = vmatmul.bf16.gmra.mxu0 %v6431
    %v7022 = vpop.f32.mrf.mxu0
    %v7023 = vadd.f32 %v6974, %v7022
    %v7024 = vpop.f32.mrf.mxu0
    %v7025 = vadd.f32 %v6976, %v7024
    %7026 = vmatmul.bf16.gmra.mxu0 %v6437
    %v7027 = vpop.f32.mrf.mxu0
    %v7028 = vadd.f32 %v6979, %v7027
    %v7029 = vpop.f32.mrf.mxu0
    %v7030 = vadd.f32 %v6981, %v7029
    %7031 = vmatmul.bf16.gmra.mxu0 %v6443
    %v7032 = vpop.f32.mrf.mxu0
    %v7033 = vadd.f32 %v6984, %v7032
    %v7034 = vpop.f32.mrf.mxu0
    %v7035 = vadd.f32 %v6986, %v7034
    %7036 = vmatmul.bf16.gmra.mxu0 %v6449
    %v7037 = vpop.f32.mrf.mxu0
    %v7038 = vadd.f32 %v6989, %v7037
    %v7039 = vpop.f32.mrf.mxu0
    %v7040 = vadd.f32 %v6991, %v7039
    %7041 = vmatmul.bf16.gmra.mxu0 %v6458
    %v7042 = vpop.f32.mrf.mxu0
    %v7043 = vadd.f32 %v6994, %v7042
    %v7044 = vpop.f32.mrf.mxu0
    %v7045 = vadd.f32 %v6996, %v7044
    %7046 = vmatmul.bf16.gmra.mxu0 %v6464
    %v7047 = vpop.f32.mrf.mxu0
    %v7048 = vadd.f32 %v6999, %v7047
    %v7049 = vpop.f32.mrf.mxu0
    %v7050 = vadd.f32 %v7001, %v7049
    %7051 = vmatmul.bf16.gmra.mxu0 %v6470
    %v7052 = vpop.f32.mrf.mxu0
    %v7053 = vadd.f32 %v7004, %v7052
    %v7054 = vpop.f32.mrf.mxu0
    %v7055 = vadd.f32 %v7006, %v7054
    %7056 = vmatmul.bf16.gmra.mxu0 %v6476
    %v7057 = vpop.f32.mrf.mxu0
    %v7058 = vadd.f32 %v7009, %v7057
    %v7059 = vpop.f32.mrf.mxu0
    %v7060 = vadd.f32 %v7011, %v7059
    %7061 = vdwg.mxu0
    %7062 = vmatpush.bf16.msra.mxu0 %v6802
    %7063 = vmatpush.bf16.msra.mxu0 %v6801
    %7064 = vmatpush.bf16.msra.mxu0 %v6800
    %7065 = vmatpush.bf16.msra.mxu0 %v6799
    %7066 = vmatpush.bf16.msra.mxu0 %v6798
    %7067 = vmatpush.bf16.msra.mxu0 %v6797
    %7068 = vmatpush.bf16.msra.mxu0 %v6796
    %7069 = vmatpush.bf16.msra.mxu0 %v6795
    %7070 = vmatmul.bf16.gmra.mxu0 %v6432
    %v7071 = vpop.f32.mrf.mxu0
    %v7072 = vadd.f32 %v7023, %v7071
    %v7073 = vpop.f32.mrf.mxu0
    %v7074 = vadd.f32 %v7025, %v7073
    %7075 = vmatmul.bf16.gmra.mxu0 %v6438
    %v7076 = vpop.f32.mrf.mxu0
    %v7077 = vadd.f32 %v7028, %v7076
    %v7078 = vpop.f32.mrf.mxu0
    %v7079 = vadd.f32 %v7030, %v7078
    %7080 = vmatmul.bf16.gmra.mxu0 %v6444
    %v7081 = vpop.f32.mrf.mxu0
    %v7082 = vadd.f32 %v7033, %v7081
    %v7083 = vpop.f32.mrf.mxu0
    %v7084 = vadd.f32 %v7035, %v7083
    %7085 = vmatmul.bf16.gmra.mxu0 %v6450
    %v7086 = vpop.f32.mrf.mxu0
    %v7087 = vadd.f32 %v7038, %v7086
    %v7088 = vpop.f32.mrf.mxu0
    %v7089 = vadd.f32 %v7040, %v7088
    %7090 = vmatmul.bf16.gmra.mxu0 %v6459
    %v7091 = vpop.f32.mrf.mxu0
    %v7092 = vadd.f32 %v7043, %v7091
    %v7093 = vpop.f32.mrf.mxu0
    %v7094 = vadd.f32 %v7045, %v7093
    %7095 = vmatmul.bf16.gmra.mxu0 %v6465
    %v7096 = vpop.f32.mrf.mxu0
    %v7097 = vadd.f32 %v7048, %v7096
    %v7098 = vpop.f32.mrf.mxu0
    %v7099 = vadd.f32 %v7050, %v7098
    %7100 = vmatmul.bf16.gmra.mxu0 %v6471
    %v7101 = vpop.f32.mrf.mxu0
    %v7102 = vadd.f32 %v7053, %v7101
    %v7103 = vpop.f32.mrf.mxu0
    %v7104 = vadd.f32 %v7055, %v7103
    %7105 = vmatmul.bf16.gmra.mxu0 %v6477
    %v7106 = vpop.f32.mrf.mxu0
    %v7107 = vadd.f32 %v7058, %v7106
    %v7108 = vpop.f32.mrf.mxu0
    %v7109 = vadd.f32 %v7060, %v7108
    %7110 = vdwg.mxu0
    %7111 = vmatpush.bf16.msra.mxu0 %v6810
    %7112 = vmatpush.bf16.msra.mxu0 %v6809
    %7113 = vmatpush.bf16.msra.mxu0 %v6808
    %7114 = vmatpush.bf16.msra.mxu0 %v6807
    %7115 = vmatpush.bf16.msra.mxu0 %v6806
    %7116 = vmatpush.bf16.msra.mxu0 %v6805
    %7117 = vmatpush.bf16.msra.mxu0 %v6804
    %7118 = vmatpush.bf16.msra.mxu0 %v6803
    %7119 = vmatmul.bf16.gmra.mxu0 %v6433
    %v7120 = vpop.f32.mrf.mxu0
    %v7121 = vadd.f32 %v7072, %v7120
    %v7122 = vpop.f32.mrf.mxu0
    %v7123 = vadd.f32 %v7074, %v7122
    %7124 = vmatmul.bf16.gmra.mxu0 %v6439
    %v7125 = vpop.f32.mrf.mxu0
    %v7126 = vadd.f32 %v7077, %v7125
    %v7127 = vpop.f32.mrf.mxu0
    %v7128 = vadd.f32 %v7079, %v7127
    %7129 = vmatmul.bf16.gmra.mxu0 %v6445
    %v7130 = vpop.f32.mrf.mxu0
    %v7131 = vadd.f32 %v7082, %v7130
    %v7132 = vpop.f32.mrf.mxu0
    %v7133 = vadd.f32 %v7084, %v7132
    %7134 = vmatmul.bf16.gmra.mxu0 %v6451
    %v7135 = vpop.f32.mrf.mxu0
    %v7136 = vadd.f32 %v7087, %v7135
    %v7137 = vpop.f32.mrf.mxu0
    %v7138 = vadd.f32 %v7089, %v7137
    %7139 = vmatmul.bf16.gmra.mxu0 %v6460
    %v7140 = vpop.f32.mrf.mxu0
    %v7141 = vadd.f32 %v7092, %v7140
    %v7142 = vpop.f32.mrf.mxu0
    %v7143 = vadd.f32 %v7094, %v7142
    %7144 = vmatmul.bf16.gmra.mxu0 %v6466
    %v7145 = vpop.f32.mrf.mxu0
    %v7146 = vadd.f32 %v7097, %v7145
    %v7147 = vpop.f32.mrf.mxu0
    %v7148 = vadd.f32 %v7099, %v7147
    %7149 = vmatmul.bf16.gmra.mxu0 %v6472
    %v7150 = vpop.f32.mrf.mxu0
    %v7151 = vadd.f32 %v7102, %v7150
    %v7152 = vpop.f32.mrf.mxu0
    %v7153 = vadd.f32 %v7104, %v7152
    %7154 = vmatmul.bf16.gmra.mxu0 %v6478
    %v7155 = vpop.f32.mrf.mxu0
    %v7156 = vadd.f32 %v7107, %v7155
    %v7157 = vpop.f32.mrf.mxu0
    %v7158 = vadd.f32 %v7109, %v7157
    %7159 = vdwg.mxu0
    %7160 = vmatpush.bf16.msra.mxu0 %v6818
    %7161 = vmatpush.bf16.msra.mxu0 %v6817
    %7162 = vmatpush.bf16.msra.mxu0 %v6816
    %7163 = vmatpush.bf16.msra.mxu0 %v6815
    %7164 = vmatpush.bf16.msra.mxu0 %v6814
    %7165 = vmatpush.bf16.msra.mxu0 %v6813
    %7166 = vmatpush.bf16.msra.mxu0 %v6812
    %7167 = vmatpush.bf16.msra.mxu0 %v6811
    %7168 = vmatmul.bf16.gmra.mxu0 %v6434
    %v7169 = vpop.f32.mrf.mxu0
    %v7170 = vadd.f32 %v7121, %v7169
    %v7171 = vpop.f32.mrf.mxu0
    %v7172 = vadd.f32 %v7123, %v7171
    %7173 = vmatmul.bf16.gmra.mxu0 %v6440
    %v7174 = vpop.f32.mrf.mxu0
    %v7175 = vadd.f32 %v7126, %v7174
    %v7176 = vpop.f32.mrf.mxu0
    %v7177 = vadd.f32 %v7128, %v7176
    %7178 = vmatmul.bf16.gmra.mxu0 %v6446
    %v7179 = vpop.f32.mrf.mxu0
    %v7180 = vadd.f32 %v7131, %v7179
    %v7181 = vpop.f32.mrf.mxu0
    %v7182 = vadd.f32 %v7133, %v7181
    %7183 = vmatmul.bf16.gmra.mxu0 %v6452
    %v7184 = vpop.f32.mrf.mxu0
    %v7185 = vadd.f32 %v7136, %v7184
    %v7186 = vpop.f32.mrf.mxu0
    %v7187 = vadd.f32 %v7138, %v7186
    %7188 = vmatmul.bf16.gmra.mxu0 %v6461
    %v7189 = vpop.f32.mrf.mxu0
    %v7190 = vadd.f32 %v7141, %v7189
    %v7191 = vpop.f32.mrf.mxu0
    %v7192 = vadd.f32 %v7143, %v7191
    %7193 = vmatmul.bf16.gmra.mxu0 %v6467
    %v7194 = vpop.f32.mrf.mxu0
    %v7195 = vadd.f32 %v7146, %v7194
    %v7196 = vpop.f32.mrf.mxu0
    %v7197 = vadd.f32 %v7148, %v7196
    %7198 = vmatmul.bf16.gmra.mxu0 %v6473
    %v7199 = vpop.f32.mrf.mxu0
    %v7200 = vadd.f32 %v7151, %v7199
    %v7201 = vpop.f32.mrf.mxu0
    %v7202 = vadd.f32 %v7153, %v7201
    %7203 = vmatmul.bf16.gmra.mxu0 %v6479
    %v7204 = vpop.f32.mrf.mxu0
    %v7205 = vadd.f32 %v7156, %v7204
    %v7206 = vpop.f32.mrf.mxu0
    %v7207 = vadd.f32 %v7158, %v7206
    %7208 = vdwg.mxu0
    %7209 = vmatpush.bf16.msra.mxu0 %v6826
    %7210 = vmatpush.bf16.msra.mxu0 %v6825
    %7211 = vmatpush.bf16.msra.mxu0 %v6824
    %7212 = vmatpush.bf16.msra.mxu0 %v6823
    %7213 = vmatpush.bf16.msra.mxu0 %v6822
    %7214 = vmatpush.bf16.msra.mxu0 %v6821
    %7215 = vmatpush.bf16.msra.mxu0 %v6820
    %7216 = vmatpush.bf16.msra.mxu0 %v6819
    %7217 = vmatmul.bf16.gmra.mxu0 %v6435
    %v7218 = vpop.f32.mrf.mxu0
    %v7219 = vadd.f32 %v7170, %v7218
    %v7220 = vpop.f32.mrf.mxu0
    %v7221 = vadd.f32 %v7172, %v7220
    %7222 = vmatmul.bf16.gmra.mxu0 %v6441
    %v7223 = vpop.f32.mrf.mxu0
    %v7224 = vadd.f32 %v7175, %v7223
    %v7225 = vpop.f32.mrf.mxu0
    %v7226 = vadd.f32 %v7177, %v7225
    %7227 = vmatmul.bf16.gmra.mxu0 %v6447
    %v7228 = vpop.f32.mrf.mxu0
    %v7229 = vadd.f32 %v7180, %v7228
    %v7230 = vpop.f32.mrf.mxu0
    %v7231 = vadd.f32 %v7182, %v7230
    %7232 = vmatmul.bf16.gmra.mxu0 %v6453
    %v7233 = vpop.f32.mrf.mxu0
    %v7234 = vadd.f32 %v7185, %v7233
    %v7235 = vpop.f32.mrf.mxu0
    %v7236 = vadd.f32 %v7187, %v7235
    %7237 = vmatmul.bf16.gmra.mxu0 %v6462
    %v7238 = vpop.f32.mrf.mxu0
    %v7239 = vadd.f32 %v7190, %v7238
    %v7240 = vpop.f32.mrf.mxu0
    %v7241 = vadd.f32 %v7192, %v7240
    %7242 = vmatmul.bf16.gmra.mxu0 %v6468
    %v7243 = vpop.f32.mrf.mxu0
    %v7244 = vadd.f32 %v7195, %v7243
    %v7245 = vpop.f32.mrf.mxu0
    %v7246 = vadd.f32 %v7197, %v7245
    %7247 = vmatmul.bf16.gmra.mxu0 %v6474
    %v7248 = vpop.f32.mrf.mxu0
    %v7249 = vadd.f32 %v7200, %v7248
    %v7250 = vpop.f32.mrf.mxu0
    %v7251 = vadd.f32 %v7202, %v7250
    %7252 = vmatmul.bf16.gmra.mxu0 %v6480
    %v7253 = vpop.f32.mrf.mxu0
    %v7254 = vadd.f32 %v7205, %v7253
    %v7255 = vpop.f32.mrf.mxu0
    %v7256 = vadd.f32 %v7207, %v7255
    %7257 = vdwg.mxu0
    %7258 = vmatpush.bf16.msra.mxu0 %v6834
    %7259 = vmatpush.bf16.msra.mxu0 %v6833
    %7260 = vmatpush.bf16.msra.mxu0 %v6832
    %7261 = vmatpush.bf16.msra.mxu0 %v6831
    %7262 = vmatpush.bf16.msra.mxu0 %v6830
    %7263 = vmatpush.bf16.msra.mxu0 %v6829
    %7264 = vmatpush.bf16.msra.mxu0 %v6828
    %7265 = vmatpush.bf16.msra.mxu0 %v6827
    %7266 = vmatmul.bf16.gmra.mxu0 %v6436
    %v7267 = vpop.f32.mrf.mxu0
    %v7268 = vadd.f32 %v7219, %v7267
    %v7269 = vpop.f32.mrf.mxu0
    %v7270 = vadd.f32 %v7221, %v7269
    %7271 = vmatmul.bf16.gmra.mxu0 %v6442
    %v7272 = vpop.f32.mrf.mxu0
    %v7273 = vadd.f32 %v7224, %v7272
    %v7274 = vpop.f32.mrf.mxu0
    %v7275 = vadd.f32 %v7226, %v7274
    %7276 = vmatmul.bf16.gmra.mxu0 %v6448
    %v7277 = vpop.f32.mrf.mxu0
    %v7278 = vadd.f32 %v7229, %v7277
    %v7279 = vpop.f32.mrf.mxu0
    %v7280 = vadd.f32 %v7231, %v7279
    %7281 = vmatmul.bf16.gmra.mxu0 %v6454
    %v7282 = vpop.f32.mrf.mxu0
    %v7283 = vadd.f32 %v7234, %v7282
    %v7284 = vpop.f32.mrf.mxu0
    %v7285 = vadd.f32 %v7236, %v7284
    %7286 = vmatmul.bf16.gmra.mxu0 %v6463
    %v7287 = vpop.f32.mrf.mxu0
    %v7288 = vadd.f32 %v7239, %v7287
    %v7289 = vpop.f32.mrf.mxu0
    %v7290 = vadd.f32 %v7241, %v7289
    %7291 = vmatmul.bf16.gmra.mxu0 %v6469
    %v7292 = vpop.f32.mrf.mxu0
    %v7293 = vadd.f32 %v7244, %v7292
    %v7294 = vpop.f32.mrf.mxu0
    %v7295 = vadd.f32 %v7246, %v7294
    %7296 = vmatmul.bf16.gmra.mxu0 %v6475
    %v7297 = vpop.f32.mrf.mxu0
    %v7298 = vadd.f32 %v7249, %v7297
    %v7299 = vpop.f32.mrf.mxu0
    %v7300 = vadd.f32 %v7251, %v7299
    %7301 = vmatmul.bf16.gmra.mxu0 %v6481
    %v7302 = vpop.f32.mrf.mxu0
    %v7303 = vadd.f32 %v7254, %v7302
    %v7304 = vpop.f32.mrf.mxu0
    %v7305 = vadd.f32 %v7256, %v7304
    %7306 = vdwg.mxu0
    %7307 = vmatpush.bf16.msra.mxu0 %v6842
    %7308 = vmatpush.bf16.msra.mxu0 %v6841
    %7309 = vmatpush.bf16.msra.mxu0 %v6840
    %7310 = vmatpush.bf16.msra.mxu0 %v6839
    %7311 = vmatpush.bf16.msra.mxu0 %v6838
    %7312 = vmatpush.bf16.msra.mxu0 %v6837
    %7313 = vmatpush.bf16.msra.mxu0 %v6836
    %7314 = vmatpush.bf16.msra.mxu0 %v6835
    %7315 = vmatmul.bf16.gmra.mxu0 %v6437
    %v7316 = vpop.f32.mrf.mxu0
    %v7317 = vadd.f32 %v7268, %v7316
    %v7318 = vpop.f32.mrf.mxu0
    %v7319 = vadd.f32 %v7270, %v7318
    %7320 = vmatmul.bf16.gmra.mxu0 %v6443
    %v7321 = vpop.f32.mrf.mxu0
    %v7322 = vadd.f32 %v7273, %v7321
    %v7323 = vpop.f32.mrf.mxu0
    %v7324 = vadd.f32 %v7275, %v7323
    %7325 = vmatmul.bf16.gmra.mxu0 %v6449
    %v7326 = vpop.f32.mrf.mxu0
    %v7327 = vadd.f32 %v7278, %v7326
    %v7328 = vpop.f32.mrf.mxu0
    %v7329 = vadd.f32 %v7280, %v7328
    %7330 = vmatmul.bf16.gmra.mxu0 %v6455
    %v7331 = vpop.f32.mrf.mxu0
    %v7332 = vadd.f32 %v7283, %v7331
    %v7333 = vpop.f32.mrf.mxu0
    %v7334 = vadd.f32 %v7285, %v7333
    %7335 = vmatmul.bf16.gmra.mxu0 %v6464
    %v7336 = vpop.f32.mrf.mxu0
    %v7337 = vadd.f32 %v7288, %v7336
    %v7338 = vpop.f32.mrf.mxu0
    %v7339 = vadd.f32 %v7290, %v7338
    %7340 = vmatmul.bf16.gmra.mxu0 %v6470
    %v7341 = vpop.f32.mrf.mxu0
    %v7342 = vadd.f32 %v7293, %v7341
    %v7343 = vpop.f32.mrf.mxu0
    %v7344 = vadd.f32 %v7295, %v7343
    %7345 = vmatmul.bf16.gmra.mxu0 %v6476
    %v7346 = vpop.f32.mrf.mxu0
    %v7347 = vadd.f32 %v7298, %v7346
    %v7348 = vpop.f32.mrf.mxu0
    %v7349 = vadd.f32 %v7300, %v7348
    %7350 = vmatmul.bf16.gmra.mxu0 %v6482
    %v7351 = vpop.f32.mrf.mxu0
    %v7352 = vadd.f32 %v7303, %v7351
    %v7353 = vpop.f32.mrf.mxu0
    %v7354 = vadd.f32 %v7305, %v7353
    %7355 = vdwg.mxu0
    %v7356 = vadd.f32 %v7317, %v7319
    %v7357 = vadd.f32 %v7356, %v7322
    %v7358 = vadd.f32 %v7357, %v7324
    %v7359 = vadd.f32 %v7358, %v7327
    %v7360 = vadd.f32 %v7359, %v7329
    %v7361 = vadd.f32 %v7360, %v7332
    %v7362 = vadd.f32 %v7361, %v7334
    %v7363 = vadd.f32 %v7362, %v7337
    %v7364 = vadd.f32 %v7363, %v7339
    %v7365 = vadd.f32 %v7364, %v7342
    %v7366 = vadd.f32 %v7365, %v7344
    %v7367 = vadd.f32 %v7366, %v7347
    %v7368 = vadd.f32 %v7367, %v7349
    %v7369 = vadd.f32 %v7368, %v7352
    %v7370 = vadd.f32 %v7369, %v7354
    %v7371 = vrot.slane %v7370, 4
    %v7372 = vadd.f32 %v7370, %v7371
    %v7373 = vrot.slane %v7372, 2
    %v7374 = vadd.f32 %v7372, %v7373
    %v7375 = vrot.slane %v7374, 1
    %v7376 = vadd.f32 %v7374, %v7375
    %v7377 = vrcp.pop 128.0
    %v7378 = vmul.f32 128.0, %v7377
    %v7379 = vsub.f32 1.0, %v7378
    %v7380 = vmul.f32 %v7377, %v7379
    %v7381 = vadd.f32 %v7377, %v7380
    %vm7382 = vweird.f32 %v7377
    %v7383 = vsel %vm7382, %v7377, %v7381
    %v7384 = vmul.f32 %v7376, %v7383
    %v7385 = vsub.f32 %v7317, %v7384
    %v7386 = vsub.f32 %v7319, %v7384
    %v7387 = vsub.f32 %v7322, %v7384
    %v7388 = vsub.f32 %v7324, %v7384
    %v7389 = vsub.f32 %v7327, %v7384
    %v7390 = vsub.f32 %v7329, %v7384
    %v7391 = vsub.f32 %v7332, %v7384
    %v7392 = vsub.f32 %v7334, %v7384
    %v7393 = vsub.f32 %v7337, %v7384
    %v7394 = vsub.f32 %v7339, %v7384
    %v7395 = vsub.f32 %v7342, %v7384
    %v7396 = vsub.f32 %v7344, %v7384
    %v7397 = vsub.f32 %v7347, %v7384
    %v7398 = vsub.f32 %v7349, %v7384
    %v7399 = vsub.f32 %v7352, %v7384
    %v7400 = vsub.f32 %v7354, %v7384
    %v7401 = vmul.f32 %v7385, %v7385
    %v7402 = vmul.f32 %v7386, %v7386
    %v7403 = vmul.f32 %v7387, %v7387
    %v7404 = vmul.f32 %v7388, %v7388
    %v7405 = vmul.f32 %v7389, %v7389
    %v7406 = vmul.f32 %v7390, %v7390
    %v7407 = vmul.f32 %v7391, %v7391
    %v7408 = vmul.f32 %v7392, %v7392
    %v7409 = vmul.f32 %v7393, %v7393
    %v7410 = vmul.f32 %v7394, %v7394
    %v7411 = vmul.f32 %v7395, %v7395
    %v7412 = vmul.f32 %v7396, %v7396
    %v7413 = vmul.f32 %v7397, %v7397
    %v7414 = vmul.f32 %v7398, %v7398
    %v7415 = vmul.f32 %v7399, %v7399
    %v7416 = vmul.f32 %v7400, %v7400
    %v7417 = vadd.f32 %v7401, %v7402
    %v7418 = vadd.f32 %v7417, %v7403
    %v7419 = vadd.f32 %v7418, %v7404
    %v7420 = vadd.f32 %v7419, %v7405
    %v7421 = vadd.f32 %v7420, %v7406
    %v7422 = vadd.f32 %v7421, %v7407
    %v7423 = vadd.f32 %v7422, %v7408
    %v7424 = vadd.f32 %v7423, %v7409
    %v7425 = vadd.f32 %v7424, %v7410
    %v7426 = vadd.f32 %v7425, %v7411
    %v7427 = vadd.f32 %v7426, %v7412
    %v7428 = vadd.f32 %v7427, %v7413
    %v7429 = vadd.f32 %v7428, %v7414
    %v7430 = vadd.f32 %v7429, %v7415
    %v7431 = vadd.f32 %v7430, %v7416
    %v7432 = vrot.slane %v7431, 4
    %v7433 = vadd.f32 %v7431, %v7432
    %v7434 = vrot.slane %v7433, 2
    %v7435 = vadd.f32 %v7433, %v7434
    %v7436 = vrot.slane %v7435, 1
    %v7437 = vadd.f32 %v7435, %v7436
    %v7438 = vmul.f32 %v7437, %v7383
    %v7439 = vadd.f32 %v7438, 1e-05
    %v7440 = vrsqrt.pop %v7439
    %v7441 = vmul.f32 %v7440, %v7439
    %v7442 = vmul.f32 %v7441, %v7440
    %v7443 = vmul.f32 0.5, %v7442
    %v7444 = vsub.f32 1.5, %v7443
    %v7445 = vmul.f32 %v7440, %v7444
    %vm7446 = vweird.f32 %v7439
    %vm7447 = vweird.f32 %v7440
    %vm7448 = vmor %vm7446, %vm7447
    %v7449 = vsel %vm7448, %v7440, %v7445
    %v7450 = vmul.f32 %v7385, %v7449
    %v7451 = vmul.f32 %v7386, %v7449
    %v7452 = vmul.f32 %v7387, %v7449
    %v7453 = vmul.f32 %v7388, %v7449
    %v7454 = vmul.f32 %v7389, %v7449
    %v7455 = vmul.f32 %v7390, %v7449
    %v7456 = vmul.f32 %v7391, %v7449
    %v7457 = vmul.f32 %v7392, %v7449
    %v7458 = vmul.f32 %v7393, %v7449
    %v7459 = vmul.f32 %v7394, %v7449
    %v7460 = vmul.f32 %v7395, %v7449
    %v7461 = vmul.f32 %v7396, %v7449
    %v7462 = vmul.f32 %v7397, %v7449
    %v7463 = vmul.f32 %v7398, %v7449
    %v7464 = vmul.f32 %v7399, %v7449
    %v7465 = vmul.f32 %v7400, %v7449
    %v7467 = vperm.slane %v5824, 0
    %v7469 = vmul.f32 %v7450, %v7467
    %v7470 = vmul.f32 %v7451, %v7467
    %v7471 = vmul.f32 %v7452, %v7467
    %v7472 = vmul.f32 %v7453, %v7467
    %v7473 = vmul.f32 %v7454, %v7467
    %v7474 = vmul.f32 %v7455, %v7467
    %v7475 = vmul.f32 %v7456, %v7467
    %v7476 = vmul.f32 %v7457, %v7467
    %v7477 = vmul.f32 %v7458, %v7467
    %v7478 = vmul.f32 %v7459, %v7467
    %v7479 = vmul.f32 %v7460, %v7467
    %v7480 = vmul.f32 %v7461, %v7467
    %v7481 = vmul.f32 %v7462, %v7467
    %v7482 = vmul.f32 %v7463, %v7467
    %v7483 = vmul.f32 %v7464, %v7467
    %v7484 = vmul.f32 %v7465, %v7467
    %v7486 = vperm.slane %v5825, 0
    %v7488 = vadd.f32 %v7469, %v7486
    %v7489 = vadd.f32 %v7470, %v7486
    %v7490 = vadd.f32 %v7471, %v7486
    %v7491 = vadd.f32 %v7472, %v7486
    %v7492 = vadd.f32 %v7473, %v7486
    %v7493 = vadd.f32 %v7474, %v7486
    %v7494 = vadd.f32 %v7475, %v7486
    %v7495 = vadd.f32 %v7476, %v7486
    %v7496 = vadd.f32 %v7477, %v7486
    %v7497 = vadd.f32 %v7478, %v7486
    %v7498 = vadd.f32 %v7479, %v7486
    %v7499 = vadd.f32 %v7480, %v7486
    %v7500 = vadd.f32 %v7481, %v7486
    %v7501 = vadd.f32 %v7482, %v7486
    %v7502 = vadd.f32 %v7483, %v7486
    %v7503 = vadd.f32 %v7484, %v7486
    %v7504 = vmax.f32 %v7488, 0.0
    %v7505 = vmax.f32 %v7489, 0.0
    %v7506 = vmax.f32 %v7490, 0.0
    %v7507 = vmax.f32 %v7491, 0.0
    %v7508 = vmax.f32 %v7492, 0.0
    %v7509 = vmax.f32 %v7493, 0.0
    %v7510 = vmax.f32 %v7494, 0.0
    %v7511 = vmax.f32 %v7495, 0.0
    %v7512 = vmax.f32 %v7496, 0.0
    %v7513 = vmax.f32 %v7497, 0.0
    %v7514 = vmax.f32 %v7498, 0.0
    %v7515 = vmax.f32 %v7499, 0.0
    %v7516 = vmax.f32 %v7500, 0.0
    %v7517 = vmax.f32 %v7501, 0.0
    %v7518 = vmax.f32 %v7502, 0.0
    %v7519 = vmax.f32 %v7503, 0.0
    %v7536 = vrot.slane %v7504, 2
    %v7537 = vrot.slane %v7504, 4
    %v7538 = vrot.slane %v7504, 6
    %v7539 = vrot.slane %v7505, 2
    %v7540 = vrot.slane %v7505, 4
    %v7541 = vrot.slane %v7505, 6
    %v7542 = vrot.slane %v7506, 2
    %v7543 = vrot.slane %v7506, 4
    %v7544 = vrot.slane %v7506, 6
    %v7545 = vrot.slane %v7507, 2
    %v7546 = vrot.slane %v7507, 4
    %v7547 = vrot.slane %v7507, 6
    %v7548 = vrot.slane %v7508, 2
    %v7549 = vrot.slane %v7508, 4
    %v7550 = vrot.slane %v7508, 6
    %v7551 = vrot.slane %v7509, 2
    %v7552 = vrot.slane %v7509, 4
    %v7553 = vrot.slane %v7509, 6
    %v7554 = vrot.slane %v7510, 2
    %v7555 = vrot.slane %v7510, 4
    %v7556 = vrot.slane %v7510, 6
    %v7557 = vrot.slane %v7511, 2
    %v7558 = vrot.slane %v7511, 4
    %v7559 = vrot.slane %v7511, 6
    %v7560 = vrot.slane %v7512, 2
    %v7561 = vrot.slane %v7512, 4
    %v7562 = vrot.slane %v7512, 6
    %v7563 = vrot.slane %v7513, 2
    %v7564 = vrot.slane %v7513, 4
    %v7565 = vrot.slane %v7513, 6
    %v7566 = vrot.slane %v7514, 2
    %v7567 = vrot.slane %v7514, 4
    %v7568 = vrot.slane %v7514, 6
    %v7569 = vrot.slane %v7515, 2
    %v7570 = vrot.slane %v7515, 4
    %v7571 = vrot.slane %v7515, 6
    %v7572 = vrot.slane %v7516, 2
    %v7573 = vrot.slane %v7516, 4
    %v7574 = vrot.slane %v7516, 6
    %v7575 = vrot.slane %v7517, 2
    %v7576 = vrot.slane %v7517, 4
    %v7577 = vrot.slane %v7517, 6
    %v7578 = vrot.slane %v7518, 2
    %v7579 = vrot.slane %v7518, 4
    %v7580 = vrot.slane %v7518, 6
    %v7581 = vrot.slane %v7519, 2
    %v7582 = vrot.slane %v7519, 4
    %v7583 = vrot.slane %v7519, 6
    %v7632 = vrot.slane %v7504, 7
    %v7633 = vrot.slane %v7632, 2
    %v7634 = vrot.slane %v7536, 7
    %v7635 = vrot.slane %v7634, 2
    %v7636 = vrot.slane %v7537, 7
    %v7637 = vrot.slane %v7636, 2
    %v7638 = vrot.slane %v7538, 7
    %v7639 = vrot.slane %v7638, 2
    %v7640 = vrot.slane %v7505, 7
    %v7641 = vrot.slane %v7640, 2
    %v7642 = vrot.slane %v7539, 7
    %v7643 = vrot.slane %v7642, 2
    %v7644 = vrot.slane %v7540, 7
    %v7645 = vrot.slane %v7644, 2
    %v7646 = vrot.slane %v7541, 7
    %v7647 = vrot.slane %v7646, 2
    %v7648 = vrot.slane %v7506, 7
    %v7649 = vrot.slane %v7648, 2
    %v7650 = vrot.slane %v7542, 7
    %v7651 = vrot.slane %v7650, 2
    %v7652 = vrot.slane %v7543, 7
    %v7653 = vrot.slane %v7652, 2
    %v7654 = vrot.slane %v7544, 7
    %v7655 = vrot.slane %v7654, 2
    %v7656 = vrot.slane %v7507, 7
    %v7657 = vrot.slane %v7656, 2
    %v7658 = vrot.slane %v7545, 7
    %v7659 = vrot.slane %v7658, 2
    %v7660 = vrot.slane %v7546, 7
    %v7661 = vrot.slane %v7660, 2
    %v7662 = vrot.slane %v7547, 7
    %v7663 = vrot.slane %v7662, 2
    %v7664 = vrot.slane %v7508, 7
    %v7665 = vrot.slane %v7664, 2
    %v7666 = vrot.slane %v7548, 7
    %v7667 = vrot.slane %v7666, 2
    %v7668 = vrot.slane %v7549, 7
    %v7669 = vrot.slane %v7668, 2
    %v7670 = vrot.slane %v7550, 7
    %v7671 = vrot.slane %v7670, 2
    %v7672 = vrot.slane %v7509, 7
    %v7673 = vrot.slane %v7672, 2
    %v7674 = vrot.slane %v7551, 7
    %v7675 = vrot.slane %v7674, 2
    %v7676 = vrot.slane %v7552, 7
    %v7677 = vrot.slane %v7676, 2
    %v7678 = vrot.slane %v7553, 7
    %v7679 = vrot.slane %v7678, 2
    %v7680 = vrot.slane %v7510, 7
    %v7681 = vrot.slane %v7680, 2
    %v7682 = vrot.slane %v7554, 7
    %v7683 = vrot.slane %v7682, 2
    %v7684 = vrot.slane %v7555, 7
    %v7685 = vrot.slane %v7684, 2
    %v7686 = vrot.slane %v7556, 7
    %v7687 = vrot.slane %v7686, 2
    %v7688 = vrot.slane %v7511, 7
    %v7689 = vrot.slane %v7688, 2
    %v7690 = vrot.slane %v7557, 7
    %v7691 = vrot.slane %v7690, 2
    %v7692 = vrot.slane %v7558, 7
    %v7693 = vrot.slane %v7692, 2
    %v7694 = vrot.slane %v7559, 7
    %v7695 = vrot.slane %v7694, 2
    %v7696 = vrot.slane %v7512, 7
    %v7697 = vrot.slane %v7696, 2
    %v7698 = vrot.slane %v7560, 7
    %v7699 = vrot.slane %v7698, 2
    %v7700 = vrot.slane %v7561, 7
    %v7701 = vrot.slane %v7700, 2
    %v7702 = vrot.slane %v7562, 7
    %v7703 = vrot.slane %v7702, 2
    %v7704 = vrot.slane %v7513, 7
    %v7705 = vrot.slane %v7704, 2
    %v7706 = vrot.slane %v7563, 7
    %v7707 = vrot.slane %v7706, 2
    %v7708 = vrot.slane %v7564, 7
    %v7709 = vrot.slane %v7708, 2
    %v7710 = vrot.slane %v7565, 7
    %v7711 = vrot.slane %v7710, 2
    %v7712 = vrot.slane %v7514, 7
    %v7713 = vrot.slane %v7712, 2
    %v7714 = vrot.slane %v7566, 7
    %v7715 = vrot.slane %v7714, 2
    %v7716 = vrot.slane %v7567, 7
    %v7717 = vrot.slane %v7716, 2
    %v7718 = vrot.slane %v7568, 7
    %v7719 = vrot.slane %v7718, 2
    %v7720 = vrot.slane %v7515, 7
    %v7721 = vrot.slane %v7720, 2
    %v7722 = vrot.slane %v7569, 7
    %v7723 = vrot.slane %v7722, 2
    %v7724 = vrot.slane %v7570, 7
    %v7725 = vrot.slane %v7724, 2
    %v7726 = vrot.slane %v7571, 7
    %v7727 = vrot.slane %v7726, 2
    %v7728 = vrot.slane %v7516, 7
    %v7729 = vrot.slane %v7728, 2
    %v7730 = vrot.slane %v7572, 7
    %v7731 = vrot.slane %v7730, 2
    %v7732 = vrot.slane %v7573, 7
    %v7733 = vrot.slane %v7732, 2
    %v7734 = vrot.slane %v7574, 7
    %v7735 = vrot.slane %v7734, 2
    %v7736 = vrot.slane %v7517, 7
    %v7737 = vrot.slane %v7736, 2
    %v7738 = vrot.slane %v7575, 7
    %v7739 = vrot.slane %v7738, 2
    %v7740 = vrot.slane %v7576, 7
    %v7741 = vrot.slane %v7740, 2
    %v7742 = vrot.slane %v7577, 7
    %v7743 = vrot.slane %v7742, 2
    %v7744 = vrot.slane %v7518, 7
    %v7745 = vrot.slane %v7744, 2
    %v7746 = vrot.slane %v7578, 7
    %v7747 = vrot.slane %v7746, 2
    %v7748 = vrot.slane %v7579, 7
    %v7749 = vrot.slane %v7748, 2
    %v7750 = vrot.slane %v7580, 7
    %v7751 = vrot.slane %v7750, 2
    %v7752 = vrot.slane %v7519, 7
    %v7753 = vrot.slane %v7752, 2
    %v7754 = vrot.slane %v7581, 7
    %v7755 = vrot.slane %v7754, 2
    %v7756 = vrot.slane %v7582, 7
    %v7757 = vrot.slane %v7756, 2
    %v7758 = vrot.slane %v7583, 7
    %v7759 = vrot.slane %v7758, 2
    %v7824 = vadd.f32 %v7504, %v7633
    %v7825 = vadd.f32 %v7536, %v7635
    %v7826 = vadd.f32 %v7537, %v7637
    %v7827 = vadd.f32 %v7538, %v7639
    %v7828 = vadd.f32 %v7505, %v7641
    %v7829 = vadd.f32 %v7539, %v7643
    %v7830 = vadd.f32 %v7540, %v7645
    %v7831 = vadd.f32 %v7541, %v7647
    %v7832 = vadd.f32 %v7506, %v7649
    %v7833 = vadd.f32 %v7542, %v7651
    %v7834 = vadd.f32 %v7543, %v7653
    %v7835 = vadd.f32 %v7544, %v7655
    %v7836 = vadd.f32 %v7507, %v7657
    %v7837 = vadd.f32 %v7545, %v7659
    %v7838 = vadd.f32 %v7546, %v7661
    %v7839 = vadd.f32 %v7547, %v7663
    %v7840 = vadd.f32 %v7508, %v7665
    %v7841 = vadd.f32 %v7548, %v7667
    %v7842 = vadd.f32 %v7549, %v7669
    %v7843 = vadd.f32 %v7550, %v7671
    %v7844 = vadd.f32 %v7509, %v7673
    %v7845 = vadd.f32 %v7551, %v7675
    %v7846 = vadd.f32 %v7552, %v7677
    %v7847 = vadd.f32 %v7553, %v7679
    %v7848 = vadd.f32 %v7510, %v7681
    %v7849 = vadd.f32 %v7554, %v7683
    %v7850 = vadd.f32 %v7555, %v7685
    %v7851 = vadd.f32 %v7556, %v7687
    %v7852 = vadd.f32 %v7511, %v7689
    %v7853 = vadd.f32 %v7557, %v7691
    %v7854 = vadd.f32 %v7558, %v7693
    %v7855 = vadd.f32 %v7559, %v7695
    %v7856 = vadd.f32 %v7512, %v7697
    %v7857 = vadd.f32 %v7560, %v7699
    %v7858 = vadd.f32 %v7561, %v7701
    %v7859 = vadd.f32 %v7562, %v7703
    %v7860 = vadd.f32 %v7513, %v7705
    %v7861 = vadd.f32 %v7563, %v7707
    %v7862 = vadd.f32 %v7564, %v7709
    %v7863 = vadd.f32 %v7565, %v7711
    %v7864 = vadd.f32 %v7514, %v7713
    %v7865 = vadd.f32 %v7566, %v7715
    %v7866 = vadd.f32 %v7567, %v7717
    %v7867 = vadd.f32 %v7568, %v7719
    %v7868 = vadd.f32 %v7515, %v7721
    %v7869 = vadd.f32 %v7569, %v7723
    %v7870 = vadd.f32 %v7570, %v7725
    %v7871 = vadd.f32 %v7571, %v7727
    %v7872 = vadd.f32 %v7516, %v7729
    %v7873 = vadd.f32 %v7572, %v7731
    %v7874 = vadd.f32 %v7573, %v7733
    %v7875 = vadd.f32 %v7574, %v7735
    %v7876 = vadd.f32 %v7517, %v7737
    %v7877 = vadd.f32 %v7575, %v7739
    %v7878 = vadd.f32 %v7576, %v7741
    %v7879 = vadd.f32 %v7577, %v7743
    %v7880 = vadd.f32 %v7518, %v7745
    %v7881 = vadd.f32 %v7578, %v7747
    %v7882 = vadd.f32 %v7579, %v7749
    %v7883 = vadd.f32 %v7580, %v7751
    %v7884 = vadd.f32 %v7519, %v7753
    %v7885 = vadd.f32 %v7581, %v7755
    %v7886 = vadd.f32 %v7582, %v7757
    %v7887 = vadd.f32 %v7583, %v7759
    %v7888 = vadd.f32 %v7824, %v7828
    %v7889 = vadd.f32 %v7825, %v7829
    %v7890 = vadd.f32 %v7826, %v7830
    %v7891 = vadd.f32 %v7827, %v7831
    %v7892 = vadd.f32 %v7832, %v7836
    %v7893 = vadd.f32 %v7833, %v7837
    %v7894 = vadd.f32 %v7834, %v7838
    %v7895 = vadd.f32 %v7835, %v7839
    %v7896 = vadd.f32 %v7840, %v7844
    %v7897 = vadd.f32 %v7841, %v7845
    %v7898 = vadd.f32 %v7842, %v7846
    %v7899 = vadd.f32 %v7843, %v7847
    %v7900 = vadd.f32 %v7848, %v7852
    %v7901 = vadd.f32 %v7849, %v7853
    %v7902 = vadd.f32 %v7850, %v7854
    %v7903 = vadd.f32 %v7851, %v7855
    %v7904 = vadd.f32 %v7856, %v7860
    %v7905 = vadd.f32 %v7857, %v7861
    %v7906 = vadd.f32 %v7858, %v7862
    %v7907 = vadd.f32 %v7859, %v7863
    %v7908 = vadd.f32 %v7864, %v7868
    %v7909 = vadd.f32 %v7865, %v7869
    %v7910 = vadd.f32 %v7866, %v7870
    %v7911 = vadd.f32 %v7867, %v7871
    %v7912 = vadd.f32 %v7872, %v7876
    %v7913 = vadd.f32 %v7873, %v7877
    %v7914 = vadd.f32 %v7874, %v7878
    %v7915 = vadd.f32 %v7875, %v7879
    %v7916 = vadd.f32 %v7880, %v7884
    %v7917 = vadd.f32 %v7881, %v7885
    %v7918 = vadd.f32 %v7882, %v7886
    %v7919 = vadd.f32 %v7883, %v7887
    %v7920 = vmul.f32 %v7888, 0.25
    %v7921 = vmul.f32 %v7889, 0.25
    %v7922 = vmul.f32 %v7890, 0.25
    %v7923 = vmul.f32 %v7891, 0.25
    %v7924 = vmul.f32 %v7892, 0.25
    %v7925 = vmul.f32 %v7893, 0.25
    %v7926 = vmul.f32 %v7894, 0.25
    %v7927 = vmul.f32 %v7895, 0.25
    %v7928 = vmul.f32 %v7896, 0.25
    %v7929 = vmul.f32 %v7897, 0.25
    %v7930 = vmul.f32 %v7898, 0.25
    %v7931 = vmul.f32 %v7899, 0.25
    %v7932 = vmul.f32 %v7900, 0.25
    %v7933 = vmul.f32 %v7901, 0.25
    %v7934 = vmul.f32 %v7902, 0.25
    %v7935 = vmul.f32 %v7903, 0.25
    %v7936 = vmul.f32 %v7904, 0.25
    %v7937 = vmul.f32 %v7905, 0.25
    %v7938 = vmul.f32 %v7906, 0.25
    %v7939 = vmul.f32 %v7907, 0.25
    %v7940 = vmul.f32 %v7908, 0.25
    %v7941 = vmul.f32 %v7909, 0.25
    %v7942 = vmul.f32 %v7910, 0.25
    %v7943 = vmul.f32 %v7911, 0.25
    %v7944 = vmul.f32 %v7912, 0.25
    %v7945 = vmul.f32 %v7913, 0.25
    %v7946 = vmul.f32 %v7914, 0.25
    %v7947 = vmul.f32 %v7915, 0.25
    %v7948 = vmul.f32 %v7916, 0.25
    %v7949 = vmul.f32 %v7917, 0.25
    %v7950 = vmul.f32 %v7918, 0.25
    %v7951 = vmul.f32 %v7919, 0.25
    %v7952 = vld [vmem:[#allocation2] sm:$0xf]
    %v7953 = vld [vmem:[#allocation2 + $0x4] sm:$0xf]
    %v7954 = vld [vmem:[#allocation2 + $0x8] sm:$0xf]
    %v7955 = vld [vmem:[#allocation2 + $0xc] sm:$0xf]
    %v7956 = vld [vmem:[#allocation2 + $0x10] sm:$0xf]
    %v7957 = vld [vmem:[#allocation2 + $0x14] sm:$0xf]
    %v7958 = vld [vmem:[#allocation2 + $0x18] sm:$0xf]
    %v7959 = vld [vmem:[#allocation2 + $0x1c] sm:$0xf]
    %v7960 = vld [vmem:[#allocation2 + $0x20] sm:$0xf]
    %v7961 = vld [vmem:[#allocation2 + $0x24] sm:$0xf]
    %v7962 = vld [vmem:[#allocation2 + $0x28] sm:$0xf]
    %v7963 = vld [vmem:[#allocation2 + $0x2c] sm:$0xf]
    %v7964 = vld [vmem:[#allocation2 + $0x30] sm:$0xf]
    %v7965 = vld [vmem:[#allocation2 + $0x34] sm:$0xf]
    %v7966 = vld [vmem:[#allocation2 + $0x38] sm:$0xf]
    %v7967 = vld [vmem:[#allocation2 + $0x3c] sm:$0xf]
    %v7968 = vld [vmem:[#allocation2 + $0x40] sm:$0xf]
    %v7969 = vld [vmem:[#allocation2 + $0x44] sm:$0xf]
    %v7970 = vld [vmem:[#allocation2 + $0x48] sm:$0xf]
    %v7971 = vld [vmem:[#allocation2 + $0x4c] sm:$0xf]
    %v7972 = vld [vmem:[#allocation2 + $0x50] sm:$0xf]
    %v7973 = vld [vmem:[#allocation2 + $0x54] sm:$0xf]
    %v7974 = vld [vmem:[#allocation2 + $0x58] sm:$0xf]
    %v7975 = vld [vmem:[#allocation2 + $0x5c] sm:$0xf]
    %v7976 = vld [vmem:[#allocation2 + $0x60] sm:$0xf]
    %v7977 = vld [vmem:[#allocation2 + $0x64] sm:$0xf]
    %v7978 = vld [vmem:[#allocation2 + $0x68] sm:$0xf]
    %v7979 = vld [vmem:[#allocation2 + $0x6c] sm:$0xf]
    %v7980 = vld [vmem:[#allocation2 + $0x70] sm:$0xf]
    %v7981 = vld [vmem:[#allocation2 + $0x74] sm:$0xf]
    %v7982 = vld [vmem:[#allocation2 + $0x78] sm:$0xf]
    %v7983 = vld [vmem:[#allocation2 + $0x7c] sm:$0xf]
    %v7984 = vld [vmem:[#allocation2 + $0x80] sm:$0xf]
    %v7985 = vld [vmem:[#allocation2 + $0x84] sm:$0xf]
    %v7986 = vld [vmem:[#allocation2 + $0x88] sm:$0xf]
    %v7987 = vld [vmem:[#allocation2 + $0x8c] sm:$0xf]
    %v7988 = vld [vmem:[#allocation2 + $0x90] sm:$0xf]
    %v7989 = vld [vmem:[#allocation2 + $0x94] sm:$0xf]
    %v7990 = vld [vmem:[#allocation2 + $0x98] sm:$0xf]
    %v7991 = vld [vmem:[#allocation2 + $0x9c] sm:$0xf]
    %v7992 = vld [vmem:[#allocation2 + $0xa0] sm:$0xf]
    %v7993 = vld [vmem:[#allocation2 + $0xa4] sm:$0xf]
    %v7994 = vld [vmem:[#allocation2 + $0xa8] sm:$0xf]
    %v7995 = vld [vmem:[#allocation2 + $0xac] sm:$0xf]
    %v7996 = vld [vmem:[#allocation2 + $0xb0] sm:$0xf]
    %v7997 = vld [vmem:[#allocation2 + $0xb4] sm:$0xf]
    %v7998 = vld [vmem:[#allocation2 + $0xb8] sm:$0xf]
    %v7999 = vld [vmem:[#allocation2 + $0xbc] sm:$0xf]
    %v8000 = vld [vmem:[#allocation2 + $0xc0] sm:$0xf]
    %v8001 = vld [vmem:[#allocation2 + $0xc4] sm:$0xf]
    %v8002 = vld [vmem:[#allocation2 + $0xc8] sm:$0xf]
    %v8003 = vld [vmem:[#allocation2 + $0xcc] sm:$0xf]
    %v8004 = vld [vmem:[#allocation2 + $0xd0] sm:$0xf]
    %v8005 = vld [vmem:[#allocation2 + $0xd4] sm:$0xf]
    %v8006 = vld [vmem:[#allocation2 + $0xd8] sm:$0xf]
    %v8007 = vld [vmem:[#allocation2 + $0xdc] sm:$0xf]
    %v8008 = vld [vmem:[#allocation2 + $0xe0] sm:$0xf]
    %v8009 = vld [vmem:[#allocation2 + $0xe4] sm:$0xf]
    %v8010 = vld [vmem:[#allocation2 + $0xe8] sm:$0xf]
    %v8011 = vld [vmem:[#allocation2 + $0xec] sm:$0xf]
    %v8012 = vld [vmem:[#allocation2 + $0xf0] sm:$0xf]
    %v8013 = vld [vmem:[#allocation2 + $0xf4] sm:$0xf]
    %v8014 = vld [vmem:[#allocation2 + $0xf8] sm:$0xf]
    %v8015 = vld [vmem:[#allocation2 + $0xfc] sm:$0xf]
    %v8016 = vld [vmem:[#allocation2 + $0x100] sm:$0xf]
    %v8017 = vld [vmem:[#allocation2 + $0x104] sm:$0xf]
    %v8018 = vld [vmem:[#allocation2 + $0x108] sm:$0xf]
    %v8019 = vld [vmem:[#allocation2 + $0x10c] sm:$0xf]
    %v8020 = vld [vmem:[#allocation2 + $0x110] sm:$0xf]
    %v8021 = vld [vmem:[#allocation2 + $0x114] sm:$0xf]
    %v8022 = vld [vmem:[#allocation2 + $0x118] sm:$0xf]
    %v8023 = vld [vmem:[#allocation2 + $0x11c] sm:$0xf]
    %v8024 = vld [vmem:[#allocation2 + $0x120] sm:$0xf]
    %v8025 = vld [vmem:[#allocation2 + $0x124] sm:$0xf]
    %v8026 = vld [vmem:[#allocation2 + $0x128] sm:$0xf]
    %v8027 = vld [vmem:[#allocation2 + $0x12c] sm:$0xf]
    %v8028 = vld [vmem:[#allocation2 + $0x130] sm:$0xf]
    %v8029 = vld [vmem:[#allocation2 + $0x134] sm:$0xf]
    %v8030 = vld [vmem:[#allocation2 + $0x138] sm:$0xf]
    %v8031 = vld [vmem:[#allocation2 + $0x13c] sm:$0xf]
    %v8032 = vld [vmem:[#allocation2 + $0x140] sm:$0xf]
    %v8033 = vld [vmem:[#allocation2 + $0x144] sm:$0xf]
    %v8034 = vld [vmem:[#allocation2 + $0x148] sm:$0xf]
    %v8035 = vld [vmem:[#allocation2 + $0x14c] sm:$0xf]
    %v8036 = vld [vmem:[#allocation2 + $0x150] sm:$0xf]
    %v8037 = vld [vmem:[#allocation2 + $0x154] sm:$0xf]
    %v8038 = vld [vmem:[#allocation2 + $0x158] sm:$0xf]
    %v8039 = vld [vmem:[#allocation2 + $0x15c] sm:$0xf]
    %v8040 = vld [vmem:[#allocation2 + $0x160] sm:$0xf]
    %v8041 = vld [vmem:[#allocation2 + $0x164] sm:$0xf]
    %v8042 = vld [vmem:[#allocation2 + $0x168] sm:$0xf]
    %v8043 = vld [vmem:[#allocation2 + $0x16c] sm:$0xf]
    %v8044 = vld [vmem:[#allocation2 + $0x170] sm:$0xf]
    %v8045 = vld [vmem:[#allocation2 + $0x174] sm:$0xf]
    %v8046 = vld [vmem:[#allocation2 + $0x178] sm:$0xf]
    %v8047 = vld [vmem:[#allocation2 + $0x17c] sm:$0xf]
    %v8048 = vld [vmem:[#allocation2 + $0x180] sm:$0xf]
    %v8049 = vld [vmem:[#allocation2 + $0x184] sm:$0xf]
    %v8050 = vld [vmem:[#allocation2 + $0x188] sm:$0xf]
    %v8051 = vld [vmem:[#allocation2 + $0x18c] sm:$0xf]
    %v8052 = vld [vmem:[#allocation2 + $0x190] sm:$0xf]
    %v8053 = vld [vmem:[#allocation2 + $0x194] sm:$0xf]
    %v8054 = vld [vmem:[#allocation2 + $0x198] sm:$0xf]
    %v8055 = vld [vmem:[#allocation2 + $0x19c] sm:$0xf]
    %v8056 = vld [vmem:[#allocation2 + $0x1a0] sm:$0xf]
    %v8057 = vld [vmem:[#allocation2 + $0x1a4] sm:$0xf]
    %v8058 = vld [vmem:[#allocation2 + $0x1a8] sm:$0xf]
    %v8059 = vld [vmem:[#allocation2 + $0x1ac] sm:$0xf]
    %v8060 = vld [vmem:[#allocation2 + $0x1b0] sm:$0xf]
    %v8061 = vld [vmem:[#allocation2 + $0x1b4] sm:$0xf]
    %v8062 = vld [vmem:[#allocation2 + $0x1b8] sm:$0xf]
    %v8063 = vld [vmem:[#allocation2 + $0x1bc] sm:$0xf]
    %v8064 = vld [vmem:[#allocation2 + $0x1c0] sm:$0xf]
    %v8065 = vld [vmem:[#allocation2 + $0x1c4] sm:$0xf]
    %v8066 = vld [vmem:[#allocation2 + $0x1c8] sm:$0xf]
    %v8067 = vld [vmem:[#allocation2 + $0x1cc] sm:$0xf]
    %v8068 = vld [vmem:[#allocation2 + $0x1d0] sm:$0xf]
    %v8069 = vld [vmem:[#allocation2 + $0x1d4] sm:$0xf]
    %v8070 = vld [vmem:[#allocation2 + $0x1d8] sm:$0xf]
    %v8071 = vld [vmem:[#allocation2 + $0x1dc] sm:$0xf]
    %v8072 = vld [vmem:[#allocation2 + $0x1e0] sm:$0xf]
    %v8073 = vld [vmem:[#allocation2 + $0x1e4] sm:$0xf]
    %v8074 = vld [vmem:[#allocation2 + $0x1e8] sm:$0xf]
    %v8075 = vld [vmem:[#allocation2 + $0x1ec] sm:$0xf]
    %v8076 = vld [vmem:[#allocation2 + $0x1f0] sm:$0xf]
    %v8077 = vld [vmem:[#allocation2 + $0x1f4] sm:$0xf]
    %v8078 = vld [vmem:[#allocation2 + $0x1f8] sm:$0xf]
    %v8079 = vld [vmem:[#allocation2 + $0x1fc] sm:$0xf]
    %v8080 = vld [vmem:[#allocation2 + $0x200] sm:$0xf]
    %v8081 = vld [vmem:[#allocation2 + $0x204] sm:$0xf]
    %v8082 = vld [vmem:[#allocation2 + $0x208] sm:$0xf]
    %v8083 = vld [vmem:[#allocation2 + $0x20c] sm:$0xf]
    %v8084 = vld [vmem:[#allocation2 + $0x210] sm:$0xf]
    %v8085 = vld [vmem:[#allocation2 + $0x214] sm:$0xf]
    %v8086 = vld [vmem:[#allocation2 + $0x218] sm:$0xf]
    %v8087 = vld [vmem:[#allocation2 + $0x21c] sm:$0xf]
    %v8088 = vld [vmem:[#allocation2 + $0x220] sm:$0xf]
    %v8089 = vld [vmem:[#allocation2 + $0x224] sm:$0xf]
    %v8090 = vld [vmem:[#allocation2 + $0x228] sm:$0xf]
    %v8091 = vld [vmem:[#allocation2 + $0x22c] sm:$0xf]
    %v8092 = vld [vmem:[#allocation2 + $0x230] sm:$0xf]
    %v8093 = vld [vmem:[#allocation2 + $0x234] sm:$0xf]
    %v8094 = vld [vmem:[#allocation2 + $0x238] sm:$0xf]
    %v8095 = vld [vmem:[#allocation2 + $0x23c] sm:$0xf]
    %v8096 = vld [vmem:[%s8] sm:$0x1]
    %v8097 = vld [vmem:[%s9] sm:$0x1]
    %v8130 = vperm.slane %v7920, 0
    %v8131 = vperm.slane %v7921, 0
    %v8132 = vperm.slane %v7922, 0
    %v8133 = vperm.slane %v7923, 0
    %v8134 = vperm.slane %v7924, 0
    %v8135 = vperm.slane %v7925, 0
    %v8136 = vperm.slane %v7926, 0
    %v8137 = vperm.slane %v7927, 0
    %v8138 = vperm.slane %v7928, 0
    %v8139 = vperm.slane %v7929, 0
    %v8140 = vperm.slane %v7930, 0
    %v8141 = vperm.slane %v7931, 0
    %v8142 = vperm.slane %v7932, 0
    %v8143 = vperm.slane %v7933, 0
    %v8144 = vperm.slane %v7934, 0
    %v8145 = vperm.slane %v7935, 0
    %v8146 = vperm.slane %v7936, 0
    %v8147 = vperm.slane %v7937, 0
    %v8148 = vperm.slane %v7938, 0
    %v8149 = vperm.slane %v7939, 0
    %v8150 = vperm.slane %v7940, 0
    %v8151 = vperm.slane %v7941, 0
    %v8152 = vperm.slane %v7942, 0
    %v8153 = vperm.slane %v7943, 0
    %v8154 = vperm.slane %v7944, 0
    %v8155 = vperm.slane %v7945, 0
    %v8156 = vperm.slane %v7946, 0
    %v8157 = vperm.slane %v7947, 0
    %v8158 = vperm.slane %v7948, 0
    %v8159 = vperm.slane %v7949, 0
    %v8160 = vperm.slane %v7950, 0
    %v8161 = vperm.slane %v7951, 0
    %v8162 = vsel %vm6082, %v8131, %v8130
    %v8163 = vsel %vm6084, %v8132, %v8162
    %v8164 = vsel %vm6086, %v8133, %v8163
    %v8165 = vsel %vm6082, %v8135, %v8134
    %v8166 = vsel %vm6084, %v8136, %v8165
    %v8167 = vsel %vm6086, %v8137, %v8166
    %v8168 = vsel %vm6082, %v8139, %v8138
    %v8169 = vsel %vm6084, %v8140, %v8168
    %v8170 = vsel %vm6086, %v8141, %v8169
    %v8171 = vsel %vm6082, %v8143, %v8142
    %v8172 = vsel %vm6084, %v8144, %v8171
    %v8173 = vsel %vm6086, %v8145, %v8172
    %v8174 = vsel %vm6082, %v8147, %v8146
    %v8175 = vsel %vm6084, %v8148, %v8174
    %v8176 = vsel %vm6086, %v8149, %v8175
    %v8177 = vsel %vm6082, %v8151, %v8150
    %v8178 = vsel %vm6084, %v8152, %v8177
    %v8179 = vsel %vm6086, %v8153, %v8178
    %v8180 = vsel %vm6082, %v8155, %v8154
    %v8181 = vsel %vm6084, %v8156, %v8180
    %v8182 = vsel %vm6086, %v8157, %v8181
    %v8183 = vsel %vm6082, %v8159, %v8158
    %v8184 = vsel %vm6084, %v8160, %v8183
    %v8185 = vsel %vm6086, %v8161, %v8184
    %v8186 = vrot.slane %v8164, 7
    %v8187 = vrot.slane %v8167, 7
    %v8188 = vrot.slane %v8170, 7
    %v8189 = vrot.slane %v8173, 7
    %v8190 = vrot.slane %v8176, 7
    %v8191 = vrot.slane %v8179, 7
    %v8192 = vrot.slane %v8182, 7
    %v8193 = vrot.slane %v8185, 7
    %v8202 = vsel %vm215, 0.0, %v8186
    %v8203 = vsel %vm215, 0.0, %v8187
    %v8204 = vsel %vm215, 0.0, %v8188
    %v8205 = vsel %vm215, 0.0, %v8189
    %v8206 = vsel %vm215, 0.0, %v8190
    %v8207 = vsel %vm215, 0.0, %v8191
    %v8208 = vsel %vm215, 0.0, %v8192
    %v8209 = vsel %vm215, 0.0, %v8193
    %vm8210 = vcmask 1044480
    %v8211 = vsel %vm8210, %v412, 0.0
    %v8212 = vsel %vm8210, %v8202, 0.0
    %v8213 = vsel %vm8210, %v8203, 0.0
    %v8214 = vsel %vm8210, %v8204, 0.0
    %v8215 = vsel %vm8210, %v8205, 0.0
    %v8216 = vsel %vm8210, %v8206, 0.0
    %v8217 = vsel %vm8210, %v8207, 0.0
    %v8218 = vsel %vm8210, %v8208, 0.0
    %v8219 = vsel %vm8210, %v8209, 0.0
    %v8227 = vrot.slane %v8211, 1
    %v8228 = vrot.slane %v8212, 1
    %v8229 = vrot.slane %v8213, 1
    %v8230 = vrot.slane %v8214, 1
    %v8231 = vrot.slane %v8216, 1
    %v8232 = vrot.slane %v8217, 1
    %v8233 = vrot.slane %v8218, 1
    %v8234 = vrot.slane %v8211, 2
    %v8235 = vrot.slane %v8212, 2
    %v8236 = vrot.slane %v8213, 2
    %v8237 = vrot.slane %v8214, 2
    %v8238 = vrot.slane %v8216, 2
    %v8239 = vrot.slane %v8217, 2
    %v8240 = vrot.slane %v8218, 2
    %v8243 = vrot.slane %v8215, 1
    %v8244 = vrot.slane %v8219, 1
    %v8245 = vrot.slane %v8215, 2
    %v8246 = vrot.slane %v8219, 2
    %v8247 = vrot.slane %v8227, 4
    %v8248 = vrot.slane %v8212, 4
    %v8249 = vrot.slane %v8235, 4
    %v8250 = vrot.slane %v8229, 4
    %v8251 = vrot.slane %v8228, 4
    %v8252 = vrot.slane %v8213, 4
    %v8253 = vrot.slane %v8236, 4
    %v8254 = vrot.slane %v8230, 4
    %v8255 = vrot.slane %v8214, 4
    %v8256 = vrot.slane %v8237, 4
    %v8257 = vrot.slane %v8243, 4
    %v8258 = vrot.slane %v8215, 4
    %v8259 = vrot.slane %v8245, 4
    %v8260 = vrot.slane %v8216, 4
    %v8261 = vrot.slane %v8238, 4
    %v8262 = vrot.slane %v8232, 4
    %v8263 = vrot.slane %v8231, 4
    %v8264 = vrot.slane %v8217, 4
    %v8265 = vrot.slane %v8239, 4
    %v8266 = vrot.slane %v8233, 4
    %v8267 = vrot.slane %v8218, 4
    %v8268 = vrot.slane %v8240, 4
    %v8269 = vrot.slane %v8244, 4
    %v8270 = vrot.slane %v8219, 4
    %v8271 = vrot.slane %v8246, 4
    %vm8272 = vcmask 1043456
    %v8273 = vsel %vm8272, %v8211, %v8247
    %v8274 = vsel %vm8272, %v8234, %v8248
    %v8275 = vsel %vm8272, %v8228, %v8249
    %v8276 = vsel %vm8272, %v8213, %v8250
    %v8277 = vsel %vm8272, %v8212, %v8251
    %v8278 = vsel %vm8272, %v8235, %v8252
    %v8279 = vsel %vm8272, %v8229, %v8253
    %v8280 = vsel %vm8272, %v8214, %v8254
    %v8281 = vsel %vm8272, %v8236, %v8255
    %v8282 = vsel %vm8272, %v8230, %v8256
    %v8283 = vsel %vm8272, %v8215, %v8257
    %v8284 = vsel %vm8272, %v8237, %v8258
    %v8285 = vsel %vm8272, %v8243, %v8259
    %v8286 = vsel %vm8272, %v8234, %v8260
    %v8287 = vsel %vm8272, %v8231, %v8261
    %v8288 = vsel %vm8272, %v8217, %v8262
    %v8289 = vsel %vm8272, %v8216, %v8263
    %v8290 = vsel %vm8272, %v8238, %v8264
    %v8291 = vsel %vm8272, %v8232, %v8265
    %v8292 = vsel %vm8272, %v8218, %v8266
    %v8293 = vsel %vm8272, %v8239, %v8267
    %v8294 = vsel %vm8272, %v8233, %v8268
    %v8295 = vsel %vm8272, %v8219, %v8269
    %v8296 = vsel %vm8272, %v8240, %v8270
    %v8297 = vsel %vm8272, %v8244, %v8271
    %8298 = vst [vmem:[#allocation1] ss:$2 sm:$0xff] %v8273
    %s8299 = scalar_lea.vmem [#allocation1], 1
    %8300 = vst [vmem:[%s8299] ss:$2 sm:$0xff] %v8277
    %s8301 = scalar_lea.vmem [#allocation1], 16
    %8302 = vst [vmem:[%s8301] ss:$2 sm:$0xff] %v8274
    %s8303 = scalar_lea.vmem [#allocation1], 17
    %8304 = vst [vmem:[%s8303] ss:$2 sm:$0xff] %v8278
    %s8305 = scalar_lea.vmem [#allocation1], 32
    %8306 = vst [vmem:[%s8305] ss:$2 sm:$0xff] %v8275
    %s8307 = scalar_lea.vmem [#allocation1], 33
    %8308 = vst [vmem:[%s8307] ss:$2 sm:$0xff] %v8279
    %s8309 = scalar_lea.vmem [#allocation1], 48
    %8310 = vst [vmem:[%s8309] ss:$2 sm:$0xff] %v8276
    %s8311 = scalar_lea.vmem [#allocation1], 49
    %8312 = vst [vmem:[%s8311] ss:$2 sm:$0xff] %v8280
    %v8313 = vld.sshfl [vmem:[#allocation1] sm:$0xff pattern:$0x75316420]
    %v8314 = vld.sshfl [vmem:[#allocation1 + $0x8] sm:$0xff pattern:$0x75316420]
    %v8315 = vld.sshfl [vmem:[#allocation1 + $0x10] sm:$0xff pattern:$0x75316420]
    %v8316 = vld.sshfl [vmem:[#allocation1 + $0x18] sm:$0xff pattern:$0x75316420]
    %v8317 = vld.sshfl [vmem:[#allocation1 + $0x20] sm:$0xff pattern:$0x75316420]
    %v8318 = vld.sshfl [vmem:[#allocation1 + $0x28] sm:$0xff pattern:$0x75316420]
    %v8319 = vld.sshfl [vmem:[#allocation1 + $0x30] sm:$0xff pattern:$0x75316420]
    %v8320 = vld.sshfl [vmem:[#allocation1 + $0x38] sm:$0xff pattern:$0x75316420]
    %8321 = vst [vmem:[#allocation1] ss:$2 sm:$0xff] %v8236
    %8322 = vst [vmem:[%s8299] ss:$2 sm:$0xff] %v8237
    %8323 = vst [vmem:[%s8301] ss:$2 sm:$0xff] %v8276
    %8324 = vst [vmem:[%s8303] ss:$2 sm:$0xff] %v8280
    %8325 = vst [vmem:[%s8305] ss:$2 sm:$0xff] %v8281
    %8326 = vst [vmem:[%s8307] ss:$2 sm:$0xff] %v8284
    %8327 = vst [vmem:[%s8309] ss:$2 sm:$0xff] %v8282
    %8328 = vst [vmem:[%s8311] ss:$2 sm:$0xff] %v8285
    %v8329 = vld.sshfl [vmem:[#allocation1] sm:$0xff pattern:$0x75316420]
    %v8330 = vld.sshfl [vmem:[#allocation1 + $0x10] sm:$0xff pattern:$0x75316420]
    %v8331 = vld.sshfl [vmem:[#allocation1 + $0x18] sm:$0xff pattern:$0x75316420]
    %v8332 = vld.sshfl [vmem:[#allocation1 + $0x20] sm:$0xff pattern:$0x75316420]
    %v8333 = vld.sshfl [vmem:[#allocation1 + $0x28] sm:$0xff pattern:$0x75316420]
    %v8334 = vld.sshfl [vmem:[#allocation1 + $0x30] sm:$0xff pattern:$0x75316420]
    %v8335 = vld.sshfl [vmem:[#allocation1 + $0x38] sm:$0xff pattern:$0x75316420]
    %8336 = vst [vmem:[#allocation1] ss:$2 sm:$0xff] %v8283
    %8337 = vst [vmem:[%s8299] ss:$2 sm:$0xff] %v8273
    %8338 = vst [vmem:[%s8301] ss:$2 sm:$0xff] %v8245
    %8339 = vst [vmem:[%s8303] ss:$2 sm:$0xff] %v8234
    %8340 = vst [vmem:[%s8305] ss:$2 sm:$0xff] %v8273
    %8341 = vst [vmem:[%s8307] ss:$2 sm:$0xff] %v8289
    %8342 = vst [vmem:[%s8309] ss:$2 sm:$0xff] %v8286
    %8343 = vst [vmem:[%s8311] ss:$2 sm:$0xff] %v8290
    %v8344 = vld.sshfl [vmem:[#allocation1] sm:$0xff pattern:$0x75316420]
    %v8345 = vld.sshfl [vmem:[#allocation1 + $0x8] sm:$0xff pattern:$0x75316420]
    %v8346 = vld.sshfl [vmem:[#allocation1 + $0x10] sm:$0xff pattern:$0x75316420]
    %v8347 = vld.sshfl [vmem:[#allocation1 + $0x20] sm:$0xff pattern:$0x75316420]
    %v8348 = vld.sshfl [vmem:[#allocation1 + $0x28] sm:$0xff pattern:$0x75316420]
    %v8349 = vld.sshfl [vmem:[#allocation1 + $0x30] sm:$0xff pattern:$0x75316420]
    %v8350 = vld.sshfl [vmem:[#allocation1 + $0x38] sm:$0xff pattern:$0x75316420]
    %8351 = vst [vmem:[#allocation1] ss:$2 sm:$0xff] %v8287
    %8352 = vst [vmem:[%s8299] ss:$2 sm:$0xff] %v8291
    %8353 = vst [vmem:[%s8301] ss:$2 sm:$0xff] %v8288
    %8354 = vst [vmem:[%s8303] ss:$2 sm:$0xff] %v8292
    %8355 = vst [vmem:[%s8305] ss:$2 sm:$0xff] %v8239
    %8356 = vst [vmem:[%s8307] ss:$2 sm:$0xff] %v8240
    %8357 = vst [vmem:[%s8309] ss:$2 sm:$0xff] %v8288
    %8358 = vst [vmem:[%s8311] ss:$2 sm:$0xff] %v8292
    %v8359 = vld.sshfl [vmem:[#allocation1] sm:$0xff pattern:$0x75316420]
    %v8360 = vld.sshfl [vmem:[#allocation1 + $0x8] sm:$0xff pattern:$0x75316420]
    %v8361 = vld.sshfl [vmem:[#allocation1 + $0x10] sm:$0xff pattern:$0x75316420]
    %v8362 = vld.sshfl [vmem:[#allocation1 + $0x18] sm:$0xff pattern:$0x75316420]
    %v8363 = vld.sshfl [vmem:[#allocation1 + $0x20] sm:$0xff pattern:$0x75316420]
    %v8364 = vld.sshfl [vmem:[#allocation1 + $0x30] sm:$0xff pattern:$0x75316420]
    %v8365 = vld.sshfl [vmem:[#allocation1 + $0x38] sm:$0xff pattern:$0x75316420]
    %8366 = vst [vmem:[#allocation1] ss:$2 sm:$0xff] %v8293
    %8367 = vst [vmem:[%s8299] ss:$2 sm:$0xff] %v8296
    %8368 = vst [vmem:[%s8301] ss:$2 sm:$0xff] %v8294
    %8369 = vst [vmem:[%s8303] ss:$2 sm:$0xff] %v8297
    %8370 = vst [vmem:[%s8305] ss:$2 sm:$0xff] %v8295
    %8371 = vst [vmem:[%s8307] ss:$2 sm:$0xff] %v8273
    %8372 = vst [vmem:[%s8309] ss:$2 sm:$0xff] %v8246
    %8373 = vst [vmem:[%s8311] ss:$2 sm:$0xff] %v8234
    %v8374 = vld.sshfl [vmem:[#allocation1] sm:$0xff pattern:$0x75316420]
    %v8375 = vld.sshfl [vmem:[#allocation1 + $0x8] sm:$0xff pattern:$0x75316420]
    %v8376 = vld.sshfl [vmem:[#allocation1 + $0x10] sm:$0xff pattern:$0x75316420]
    %v8377 = vld.sshfl [vmem:[#allocation1 + $0x18] sm:$0xff pattern:$0x75316420]
    %v8378 = vld.sshfl [vmem:[#allocation1 + $0x20] sm:$0xff pattern:$0x75316420]
    %v8379 = vld.sshfl [vmem:[#allocation1 + $0x28] sm:$0xff pattern:$0x75316420]
    %v8380 = vld.sshfl [vmem:[#allocation1 + $0x30] sm:$0xff pattern:$0x75316420]
    %v8417 = vpack.c.bf16 %v8330, %v8313
    %v8418 = vpack.c.bf16 %v8331, %v8314
    %v8419 = vpack.c.bf16 %v8332, %v8315
    %v8420 = vpack.c.bf16 %v8333, %v8316
    %v8421 = vpack.c.bf16 %v8334, %v8317
    %v8422 = vpack.c.bf16 %v8335, %v8318
    %v8423 = vpack.c.bf16 %v8344, %v8319
    %v8424 = vpack.c.bf16 %v8345, %v8320
    %v8425 = vpack.c.bf16 %v8346, %v8329
    %v8426 = vpack.c.bf16 %v8364, %v8347
    %v8427 = vpack.c.bf16 %v8365, %v8348
    %v8428 = vpack.c.bf16 %v8374, %v8349
    %v8429 = vpack.c.bf16 %v8375, %v8350
    %v8430 = vpack.c.bf16 %v8376, %v8359
    %v8431 = vpack.c.bf16 %v8377, %v8360
    %v8432 = vpack.c.bf16 %v8378, %v8361
    %v8433 = vpack.c.bf16 %v8379, %v8362
    %v8434 = vpack.c.bf16 %v8380, %v8363
    %v8579 = vunpack.c.l.b16 %v7952
    %v8580 = vunpack.c.l.b16 %v7953
    %v8581 = vunpack.c.l.b16 %v7954
    %v8582 = vunpack.c.l.b16 %v7955
    %v8583 = vunpack.c.l.b16 %v7956
    %v8584 = vunpack.c.l.b16 %v7957
    %v8585 = vunpack.c.l.b16 %v7958
    %v8586 = vunpack.c.l.b16 %v7959
    %v8587 = vunpack.c.l.b16 %v7960
    %v8588 = vunpack.c.l.b16 %v7961
    %v8589 = vunpack.c.l.b16 %v7962
    %v8590 = vunpack.c.l.b16 %v7963
    %v8591 = vunpack.c.l.b16 %v7964
    %v8592 = vunpack.c.l.b16 %v7965
    %v8593 = vunpack.c.l.b16 %v7966
    %v8594 = vunpack.c.l.b16 %v7967
    %v8595 = vunpack.c.l.b16 %v7968
    %v8596 = vunpack.c.l.b16 %v7969
    %v8597 = vunpack.c.l.b16 %v7970
    %v8598 = vunpack.c.l.b16 %v7971
    %v8599 = vunpack.c.l.b16 %v7972
    %v8600 = vunpack.c.l.b16 %v7973
    %v8601 = vunpack.c.l.b16 %v7974
    %v8602 = vunpack.c.l.b16 %v7975
    %v8603 = vunpack.c.l.b16 %v7976
    %v8604 = vunpack.c.l.b16 %v7977
    %v8605 = vunpack.c.l.b16 %v7978
    %v8606 = vunpack.c.l.b16 %v7979
    %v8607 = vunpack.c.l.b16 %v7980
    %v8608 = vunpack.c.l.b16 %v7981
    %v8609 = vunpack.c.l.b16 %v7982
    %v8610 = vunpack.c.l.b16 %v7983
    %v8611 = vunpack.c.l.b16 %v7984
    %v8612 = vunpack.c.l.b16 %v7985
    %v8613 = vunpack.c.l.b16 %v7986
    %v8614 = vunpack.c.l.b16 %v7987
    %v8615 = vunpack.c.l.b16 %v7988
    %v8616 = vunpack.c.l.b16 %v7989
    %v8617 = vunpack.c.l.b16 %v7990
    %v8618 = vunpack.c.l.b16 %v7991
    %v8619 = vunpack.c.l.b16 %v7992
    %v8620 = vunpack.c.l.b16 %v7993
    %v8621 = vunpack.c.l.b16 %v7994
    %v8622 = vunpack.c.l.b16 %v7995
    %v8623 = vunpack.c.l.b16 %v7996
    %v8624 = vunpack.c.l.b16 %v7997
    %v8625 = vunpack.c.l.b16 %v7998
    %v8626 = vunpack.c.l.b16 %v7999
    %v8627 = vunpack.c.l.b16 %v8000
    %v8628 = vunpack.c.l.b16 %v8001
    %v8629 = vunpack.c.l.b16 %v8002
    %v8630 = vunpack.c.l.b16 %v8003
    %v8631 = vunpack.c.l.b16 %v8004
    %v8632 = vunpack.c.l.b16 %v8005
    %v8633 = vunpack.c.l.b16 %v8006
    %v8634 = vunpack.c.l.b16 %v8007
    %v8635 = vunpack.c.l.b16 %v8008
    %v8636 = vunpack.c.l.b16 %v8009
    %v8637 = vunpack.c.l.b16 %v8010
    %v8638 = vunpack.c.l.b16 %v8011
    %v8639 = vunpack.c.l.b16 %v8012
    %v8640 = vunpack.c.l.b16 %v8013
    %v8641 = vunpack.c.l.b16 %v8014
    %v8642 = vunpack.c.l.b16 %v8015
    %v8643 = vunpack.c.l.b16 %v8016
    %v8644 = vunpack.c.l.b16 %v8017
    %v8645 = vunpack.c.l.b16 %v8018
    %v8646 = vunpack.c.l.b16 %v8019
    %v8647 = vunpack.c.l.b16 %v8020
    %v8648 = vunpack.c.l.b16 %v8021
    %v8649 = vunpack.c.l.b16 %v8022
    %v8650 = vunpack.c.l.b16 %v8023
    %v8651 = vunpack.c.l.b16 %v8024
    %v8652 = vunpack.c.l.b16 %v8025
    %v8653 = vunpack.c.l.b16 %v8026
    %v8654 = vunpack.c.l.b16 %v8027
    %v8655 = vunpack.c.l.b16 %v8028
    %v8656 = vunpack.c.l.b16 %v8029
    %v8657 = vunpack.c.l.b16 %v8030
    %v8658 = vunpack.c.l.b16 %v8031
    %v8659 = vunpack.c.l.b16 %v8032
    %v8660 = vunpack.c.l.b16 %v8033
    %v8661 = vunpack.c.l.b16 %v8034
    %v8662 = vunpack.c.l.b16 %v8035
    %v8663 = vunpack.c.l.b16 %v8036
    %v8664 = vunpack.c.l.b16 %v8037
    %v8665 = vunpack.c.l.b16 %v8038
    %v8666 = vunpack.c.l.b16 %v8039
    %v8667 = vunpack.c.l.b16 %v8040
    %v8668 = vunpack.c.l.b16 %v8041
    %v8669 = vunpack.c.l.b16 %v8042
    %v8670 = vunpack.c.l.b16 %v8043
    %v8671 = vunpack.c.l.b16 %v8044
    %v8672 = vunpack.c.l.b16 %v8045
    %v8673 = vunpack.c.l.b16 %v8046
    %v8674 = vunpack.c.l.b16 %v8047
    %v8675 = vunpack.c.l.b16 %v8048
    %v8676 = vunpack.c.l.b16 %v8049
    %v8677 = vunpack.c.l.b16 %v8050
    %v8678 = vunpack.c.l.b16 %v8051
    %v8679 = vunpack.c.l.b16 %v8052
    %v8680 = vunpack.c.l.b16 %v8053
    %v8681 = vunpack.c.l.b16 %v8054
    %v8682 = vunpack.c.l.b16 %v8055
    %v8683 = vunpack.c.l.b16 %v8056
    %v8684 = vunpack.c.l.b16 %v8057
    %v8685 = vunpack.c.l.b16 %v8058
    %v8686 = vunpack.c.l.b16 %v8059
    %v8687 = vunpack.c.l.b16 %v8060
    %v8688 = vunpack.c.l.b16 %v8061
    %v8689 = vunpack.c.l.b16 %v8062
    %v8690 = vunpack.c.l.b16 %v8063
    %v8691 = vunpack.c.l.b16 %v8064
    %v8692 = vunpack.c.l.b16 %v8065
    %v8693 = vunpack.c.l.b16 %v8066
    %v8694 = vunpack.c.l.b16 %v8067
    %v8695 = vunpack.c.l.b16 %v8068
    %v8696 = vunpack.c.l.b16 %v8069
    %v8697 = vunpack.c.l.b16 %v8070
    %v8698 = vunpack.c.l.b16 %v8071
    %v8699 = vunpack.c.l.b16 %v8072
    %v8700 = vunpack.c.l.b16 %v8073
    %v8701 = vunpack.c.l.b16 %v8074
    %v8702 = vunpack.c.l.b16 %v8075
    %v8703 = vunpack.c.l.b16 %v8076
    %v8704 = vunpack.c.l.b16 %v8077
    %v8705 = vunpack.c.l.b16 %v8078
    %v8706 = vunpack.c.l.b16 %v8079
    %v8707 = vunpack.c.l.b16 %v8080
    %v8708 = vunpack.c.l.b16 %v8081
    %v8709 = vunpack.c.l.b16 %v8082
    %v8710 = vunpack.c.l.b16 %v8083
    %v8711 = vunpack.c.l.b16 %v8084
    %v8712 = vunpack.c.l.b16 %v8085
    %v8713 = vunpack.c.l.b16 %v8086
    %v8714 = vunpack.c.l.b16 %v8087
    %v8715 = vunpack.c.l.b16 %v8088
    %v8716 = vunpack.c.l.b16 %v8089
    %v8717 = vunpack.c.l.b16 %v8090
    %v8718 = vunpack.c.l.b16 %v8091
    %v8719 = vunpack.c.l.b16 %v8092
    %v8720 = vunpack.c.l.b16 %v8093
    %v8721 = vunpack.c.l.b16 %v8094
    %v8722 = vunpack.c.l.b16 %v8095
    %v8723 = vpack.c.b16 %v8580, %v8579
    %v8724 = vpack.c.b16 %v8582, %v8581
    %v8725 = vpack.c.b16 %v8584, %v8583
    %v8726 = vpack.c.b16 %v8586, %v8585
    %v8727 = vpack.c.b16 %v8588, %v8587
    %v8728 = vpack.c.b16 %v8590, %v8589
    %v8729 = vpack.c.b16 %v8592, %v8591
    %v8730 = vpack.c.b16 %v8594, %v8593
    %v8731 = vpack.c.b16 %v8596, %v8595
    %v8732 = vpack.c.b16 %v8598, %v8597
    %v8733 = vpack.c.b16 %v8600, %v8599
    %v8734 = vpack.c.b16 %v8602, %v8601
    %v8735 = vpack.c.b16 %v8604, %v8603
    %v8736 = vpack.c.b16 %v8606, %v8605
    %v8737 = vpack.c.b16 %v8608, %v8607
    %v8738 = vpack.c.b16 %v8610, %v8609
    %v8739 = vpack.c.b16 %v8612, %v8611
    %v8740 = vpack.c.b16 %v8614, %v8613
    %v8741 = vpack.c.b16 %v8616, %v8615
    %v8742 = vpack.c.b16 %v8618, %v8617
    %v8743 = vpack.c.b16 %v8620, %v8619
    %v8744 = vpack.c.b16 %v8622, %v8621
    %v8745 = vpack.c.b16 %v8624, %v8623
    %v8746 = vpack.c.b16 %v8626, %v8625
    %v8747 = vpack.c.b16 %v8628, %v8627
    %v8748 = vpack.c.b16 %v8630, %v8629
    %v8749 = vpack.c.b16 %v8632, %v8631
    %v8750 = vpack.c.b16 %v8634, %v8633
    %v8751 = vpack.c.b16 %v8636, %v8635
    %v8752 = vpack.c.b16 %v8638, %v8637
    %v8753 = vpack.c.b16 %v8640, %v8639
    %v8754 = vpack.c.b16 %v8642, %v8641
    %v8755 = vpack.c.b16 %v8644, %v8643
    %v8756 = vpack.c.b16 %v8646, %v8645
    %v8757 = vpack.c.b16 %v8648, %v8647
    %v8758 = vpack.c.b16 %v8650, %v8649
    %v8759 = vpack.c.b16 %v8652, %v8651
    %v8760 = vpack.c.b16 %v8654, %v8653
    %v8761 = vpack.c.b16 %v8656, %v8655
    %v8762 = vpack.c.b16 %v8658, %v8657
    %v8763 = vpack.c.b16 %v8660, %v8659
    %v8764 = vpack.c.b16 %v8662, %v8661
    %v8765 = vpack.c.b16 %v8664, %v8663
    %v8766 = vpack.c.b16 %v8666, %v8665
    %v8767 = vpack.c.b16 %v8668, %v8667
    %v8768 = vpack.c.b16 %v8670, %v8669
    %v8769 = vpack.c.b16 %v8672, %v8671
    %v8770 = vpack.c.b16 %v8674, %v8673
    %v8771 = vpack.c.b16 %v8676, %v8675
    %v8772 = vpack.c.b16 %v8678, %v8677
    %v8773 = vpack.c.b16 %v8680, %v8679
    %v8774 = vpack.c.b16 %v8682, %v8681
    %v8775 = vpack.c.b16 %v8684, %v8683
    %v8776 = vpack.c.b16 %v8686, %v8685
    %v8777 = vpack.c.b16 %v8688, %v8687
    %v8778 = vpack.c.b16 %v8690, %v8689
    %v8779 = vpack.c.b16 %v8692, %v8691
    %v8780 = vpack.c.b16 %v8694, %v8693
    %v8781 = vpack.c.b16 %v8696, %v8695
    %v8782 = vpack.c.b16 %v8698, %v8697
    %v8783 = vpack.c.b16 %v8700, %v8699
    %v8784 = vpack.c.b16 %v8702, %v8701
    %v8785 = vpack.c.b16 %v8704, %v8703
    %v8786 = vpack.c.b16 %v8706, %v8705
    %v8787 = vpack.c.b16 %v8708, %v8707
    %v8788 = vpack.c.b16 %v8710, %v8709
    %v8789 = vpack.c.b16 %v8712, %v8711
    %v8790 = vpack.c.b16 %v8714, %v8713
    %v8791 = vpack.c.b16 %v8716, %v8715
    %v8792 = vpack.c.b16 %v8718, %v8717
    %v8793 = vpack.c.b16 %v8720, %v8719
    %v8794 = vpack.c.b16 %v8722, %v8721
    %8867 = vmatpush.bf16.msra.mxu0 %v8730
    %8868 = vmatpush.bf16.msra.mxu0 %v8729
    %8869 = vmatpush.bf16.msra.mxu0 %v8728
    %8870 = vmatpush.bf16.msra.mxu0 %v8727
    %8871 = vmatpush.bf16.msra.mxu0 %v8726
    %8872 = vmatpush.bf16.msra.mxu0 %v8725
    %8873 = vmatpush.bf16.msra.mxu0 %v8724
    %8874 = vmatpush.bf16.msra.mxu0 %v8723
    %8875 = vmatmul.bf16.gmra.mxu0 %v8417
    %v8876 = vpop.f32.mrf.mxu0
    %v8877 = vadd.f32 0.0, %v8876
    %v8878 = vpop.f32.mrf.mxu0
    %v8879 = vadd.f32 0.0, %v8878
    %8880 = vmatmul.bf16.gmra.mxu0 %v8426
    %v8881 = vpop.f32.mrf.mxu0
    %v8882 = vadd.f32 0.0, %v8881
    %v8883 = vpop.f32.mrf.mxu0
    %v8884 = vadd.f32 0.0, %v8883
    %8885 = vdwg.mxu0
    %8886 = vmatpush.bf16.msra.mxu0 %v8738
    %8887 = vmatpush.bf16.msra.mxu0 %v8737
    %8888 = vmatpush.bf16.msra.mxu0 %v8736
    %8889 = vmatpush.bf16.msra.mxu0 %v8735
    %8890 = vmatpush.bf16.msra.mxu0 %v8734
    %8891 = vmatpush.bf16.msra.mxu0 %v8733
    %8892 = vmatpush.bf16.msra.mxu0 %v8732
    %8893 = vmatpush.bf16.msra.mxu0 %v8731
    %8894 = vmatmul.bf16.gmra.mxu0 %v8418
    %v8895 = vpop.f32.mrf.mxu0
    %v8896 = vadd.f32 %v8877, %v8895
    %v8897 = vpop.f32.mrf.mxu0
    %v8898 = vadd.f32 %v8879, %v8897
    %8899 = vmatmul.bf16.gmra.mxu0 %v8427
    %v8900 = vpop.f32.mrf.mxu0
    %v8901 = vadd.f32 %v8882, %v8900
    %v8902 = vpop.f32.mrf.mxu0
    %v8903 = vadd.f32 %v8884, %v8902
    %8904 = vdwg.mxu0
    %8905 = vmatpush.bf16.msra.mxu0 %v8746
    %8906 = vmatpush.bf16.msra.mxu0 %v8745
    %8907 = vmatpush.bf16.msra.mxu0 %v8744
    %8908 = vmatpush.bf16.msra.mxu0 %v8743
    %8909 = vmatpush.bf16.msra.mxu0 %v8742
    %8910 = vmatpush.bf16.msra.mxu0 %v8741
    %8911 = vmatpush.bf16.msra.mxu0 %v8740
    %8912 = vmatpush.bf16.msra.mxu0 %v8739
    %8913 = vmatmul.bf16.gmra.mxu0 %v8419
    %v8914 = vpop.f32.mrf.mxu0
    %v8915 = vadd.f32 %v8896, %v8914
    %v8916 = vpop.f32.mrf.mxu0
    %v8917 = vadd.f32 %v8898, %v8916
    %8918 = vmatmul.bf16.gmra.mxu0 %v8428
    %v8919 = vpop.f32.mrf.mxu0
    %v8920 = vadd.f32 %v8901, %v8919
    %v8921 = vpop.f32.mrf.mxu0
    %v8922 = vadd.f32 %v8903, %v8921
    %8923 = vdwg.mxu0
    %8924 = vmatpush.bf16.msra.mxu0 %v8754
    %8925 = vmatpush.bf16.msra.mxu0 %v8753
    %8926 = vmatpush.bf16.msra.mxu0 %v8752
    %8927 = vmatpush.bf16.msra.mxu0 %v8751
    %8928 = vmatpush.bf16.msra.mxu0 %v8750
    %8929 = vmatpush.bf16.msra.mxu0 %v8749
    %8930 = vmatpush.bf16.msra.mxu0 %v8748
    %8931 = vmatpush.bf16.msra.mxu0 %v8747
    %8932 = vmatmul.bf16.gmra.mxu0 %v8420
    %v8933 = vpop.f32.mrf.mxu0
    %v8934 = vadd.f32 %v8915, %v8933
    %v8935 = vpop.f32.mrf.mxu0
    %v8936 = vadd.f32 %v8917, %v8935
    %8937 = vmatmul.bf16.gmra.mxu0 %v8429
    %v8938 = vpop.f32.mrf.mxu0
    %v8939 = vadd.f32 %v8920, %v8938
    %v8940 = vpop.f32.mrf.mxu0
    %v8941 = vadd.f32 %v8922, %v8940
    %8942 = vdwg.mxu0
    %8943 = vmatpush.bf16.msra.mxu0 %v8762
    %8944 = vmatpush.bf16.msra.mxu0 %v8761
    %8945 = vmatpush.bf16.msra.mxu0 %v8760
    %8946 = vmatpush.bf16.msra.mxu0 %v8759
    %8947 = vmatpush.bf16.msra.mxu0 %v8758
    %8948 = vmatpush.bf16.msra.mxu0 %v8757
    %8949 = vmatpush.bf16.msra.mxu0 %v8756
    %8950 = vmatpush.bf16.msra.mxu0 %v8755
    %8951 = vmatmul.bf16.gmra.mxu0 %v8421
    %v8952 = vpop.f32.mrf.mxu0
    %v8953 = vadd.f32 %v8934, %v8952
    %v8954 = vpop.f32.mrf.mxu0
    %v8955 = vadd.f32 %v8936, %v8954
    %8956 = vmatmul.bf16.gmra.mxu0 %v8430
    %v8957 = vpop.f32.mrf.mxu0
    %v8958 = vadd.f32 %v8939, %v8957
    %v8959 = vpop.f32.mrf.mxu0
    %v8960 = vadd.f32 %v8941, %v8959
    %8961 = vdwg.mxu0
    %8962 = vmatpush.bf16.msra.mxu0 %v8770
    %8963 = vmatpush.bf16.msra.mxu0 %v8769
    %8964 = vmatpush.bf16.msra.mxu0 %v8768
    %8965 = vmatpush.bf16.msra.mxu0 %v8767
    %8966 = vmatpush.bf16.msra.mxu0 %v8766
    %8967 = vmatpush.bf16.msra.mxu0 %v8765
    %8968 = vmatpush.bf16.msra.mxu0 %v8764
    %8969 = vmatpush.bf16.msra.mxu0 %v8763
    %8970 = vmatmul.bf16.gmra.mxu0 %v8422
    %v8971 = vpop.f32.mrf.mxu0
    %v8972 = vadd.f32 %v8953, %v8971
    %v8973 = vpop.f32.mrf.mxu0
    %v8974 = vadd.f32 %v8955, %v8973
    %8975 = vmatmul.bf16.gmra.mxu0 %v8431
    %v8976 = vpop.f32.mrf.mxu0
    %v8977 = vadd.f32 %v8958, %v8976
    %v8978 = vpop.f32.mrf.mxu0
    %v8979 = vadd.f32 %v8960, %v8978
    %8980 = vdwg.mxu0
    %8981 = vmatpush.bf16.msra.mxu0 %v8778
    %8982 = vmatpush.bf16.msra.mxu0 %v8777
    %8983 = vmatpush.bf16.msra.mxu0 %v8776
    %8984 = vmatpush.bf16.msra.mxu0 %v8775
    %8985 = vmatpush.bf16.msra.mxu0 %v8774
    %8986 = vmatpush.bf16.msra.mxu0 %v8773
    %8987 = vmatpush.bf16.msra.mxu0 %v8772
    %8988 = vmatpush.bf16.msra.mxu0 %v8771
    %8989 = vmatmul.bf16.gmra.mxu0 %v8423
    %v8990 = vpop.f32.mrf.mxu0
    %v8991 = vadd.f32 %v8972, %v8990
    %v8992 = vpop.f32.mrf.mxu0
    %v8993 = vadd.f32 %v8974, %v8992
    %8994 = vmatmul.bf16.gmra.mxu0 %v8432
    %v8995 = vpop.f32.mrf.mxu0
    %v8996 = vadd.f32 %v8977, %v8995
    %v8997 = vpop.f32.mrf.mxu0
    %v8998 = vadd.f32 %v8979, %v8997
    %8999 = vdwg.mxu0
    %9000 = vmatpush.bf16.msra.mxu0 %v8786
    %9001 = vmatpush.bf16.msra.mxu0 %v8785
    %9002 = vmatpush.bf16.msra.mxu0 %v8784
    %9003 = vmatpush.bf16.msra.mxu0 %v8783
    %9004 = vmatpush.bf16.msra.mxu0 %v8782
    %9005 = vmatpush.bf16.msra.mxu0 %v8781
    %9006 = vmatpush.bf16.msra.mxu0 %v8780
    %9007 = vmatpush.bf16.msra.mxu0 %v8779
    %9008 = vmatmul.bf16.gmra.mxu0 %v8424
    %v9009 = vpop.f32.mrf.mxu0
    %v9010 = vadd.f32 %v8991, %v9009
    %v9011 = vpop.f32.mrf.mxu0
    %v9012 = vadd.f32 %v8993, %v9011
    %9013 = vmatmul.bf16.gmra.mxu0 %v8433
    %v9014 = vpop.f32.mrf.mxu0
    %v9015 = vadd.f32 %v8996, %v9014
    %v9016 = vpop.f32.mrf.mxu0
    %v9017 = vadd.f32 %v8998, %v9016
    %9018 = vdwg.mxu0
    %9019 = vmatpush.bf16.msra.mxu0 %v8794
    %9020 = vmatpush.bf16.msra.mxu0 %v8793
    %9021 = vmatpush.bf16.msra.mxu0 %v8792
    %9022 = vmatpush.bf16.msra.mxu0 %v8791
    %9023 = vmatpush.bf16.msra.mxu0 %v8790
    %9024 = vmatpush.bf16.msra.mxu0 %v8789
    %9025 = vmatpush.bf16.msra.mxu0 %v8788
    %9026 = vmatpush.bf16.msra.mxu0 %v8787
    %9027 = vmatmul.bf16.gmra.mxu0 %v8425
    %v9028 = vpop.f32.mrf.mxu0
    %v9029 = vadd.f32 %v9010, %v9028
    %v9030 = vpop.f32.mrf.mxu0
    %v9031 = vadd.f32 %v9012, %v9030
    %9032 = vmatmul.bf16.gmra.mxu0 %v8434
    %v9033 = vpop.f32.mrf.mxu0
    %v9034 = vadd.f32 %v9015, %v9033
    %v9035 = vpop.f32.mrf.mxu0
    %v9036 = vadd.f32 %v9017, %v9035
    %9037 = vdwg.mxu0
    %v9038 = vadd.f32 %v9029, %v9031
    %v9039 = vadd.f32 %v9038, %v9034
    %v9040 = vadd.f32 %v9039, %v9036
    %v9041 = vrot.slane %v9040, 4
    %v9042 = vadd.f32 %v9040, %v9041
    %v9043 = vrot.slane %v9042, 2
    %v9044 = vadd.f32 %v9042, %v9043
    %v9045 = vrot.slane %v9044, 1
    %v9046 = vadd.f32 %v9044, %v9045
    %v9047 = vrcp.pop 32.0
    %v9048 = vmul.f32 32.0, %v9047
    %v9049 = vsub.f32 1.0, %v9048
    %v9050 = vmul.f32 %v9047, %v9049
    %v9051 = vadd.f32 %v9047, %v9050
    %vm9052 = vweird.f32 %v9047
    %v9053 = vsel %vm9052, %v9047, %v9051
    %v9054 = vmul.f32 %v9046, %v9053
    %v9055 = vsub.f32 %v9029, %v9054
    %v9056 = vsub.f32 %v9031, %v9054
    %v9057 = vsub.f32 %v9034, %v9054
    %v9058 = vsub.f32 %v9036, %v9054
    %v9059 = vmul.f32 %v9055, %v9055
    %v9060 = vmul.f32 %v9056, %v9056
    %v9061 = vmul.f32 %v9057, %v9057
    %v9062 = vmul.f32 %v9058, %v9058
    %v9063 = vadd.f32 %v9059, %v9060
    %v9064 = vadd.f32 %v9063, %v9061
    %v9065 = vadd.f32 %v9064, %v9062
    %v9066 = vrot.slane %v9065, 4
    %v9067 = vadd.f32 %v9065, %v9066
    %v9068 = vrot.slane %v9067, 2
    %v9069 = vadd.f32 %v9067, %v9068
    %v9070 = vrot.slane %v9069, 1
    %v9071 = vadd.f32 %v9069, %v9070
    %v9072 = vmul.f32 %v9071, %v9053
    %v9073 = vadd.f32 %v9072, 1e-05
    %v9074 = vrsqrt.pop %v9073
    %v9075 = vmul.f32 %v9074, %v9073
    %v9076 = vmul.f32 %v9075, %v9074
    %v9077 = vmul.f32 0.5, %v9076
    %v9078 = vsub.f32 1.5, %v9077
    %v9079 = vmul.f32 %v9074, %v9078
    %vm9080 = vweird.f32 %v9073
    %vm9081 = vweird.f32 %v9074
    %vm9082 = vmor %vm9080, %vm9081
    %v9083 = vsel %vm9082, %v9074, %v9079
    %v9084 = vmul.f32 %v9055, %v9083
    %v9085 = vmul.f32 %v9056, %v9083
    %v9086 = vmul.f32 %v9057, %v9083
    %v9087 = vmul.f32 %v9058, %v9083
    %v9089 = vperm.slane %v8096, 0
    %v9091 = vmul.f32 %v9084, %v9089
    %v9092 = vmul.f32 %v9085, %v9089
    %v9093 = vmul.f32 %v9086, %v9089
    %v9094 = vmul.f32 %v9087, %v9089
    %v9096 = vperm.slane %v8097, 0
    %v9098 = vadd.f32 %v9091, %v9096
    %v9099 = vadd.f32 %v9092, %v9096
    %v9100 = vadd.f32 %v9093, %v9096
    %v9101 = vadd.f32 %v9094, %v9096
    %v9102 = vmax.f32 %v9098, 0.0
    %v9103 = vmax.f32 %v9099, 0.0
    %v9104 = vmax.f32 %v9100, 0.0
    %v9105 = vmax.f32 %v9101, 0.0
    %v9110 = vrot.slane %v9102, 2
    %v9111 = vrot.slane %v9102, 4
    %v9112 = vrot.slane %v9102, 6
    %v9113 = vrot.slane %v9103, 2
    %v9114 = vrot.slane %v9103, 4
    %v9115 = vrot.slane %v9103, 6
    %v9116 = vrot.slane %v9104, 2
    %v9117 = vrot.slane %v9104, 4
    %v9118 = vrot.slane %v9104, 6
    %v9119 = vrot.slane %v9105, 2
    %v9120 = vrot.slane %v9105, 4
    %v9121 = vrot.slane %v9105, 6
    %v9134 = vrot.slane %v9102, 7
    %v9135 = vrot.slane %v9134, 2
    %v9136 = vrot.slane %v9110, 7
    %v9137 = vrot.slane %v9136, 2
    %v9138 = vrot.slane %v9111, 7
    %v9139 = vrot.slane %v9138, 2
    %v9140 = vrot.slane %v9112, 7
    %v9141 = vrot.slane %v9140, 2
    %v9142 = vrot.slane %v9103, 7
    %v9143 = vrot.slane %v9142, 2
    %v9144 = vrot.slane %v9113, 7
    %v9145 = vrot.slane %v9144, 2
    %v9146 = vrot.slane %v9114, 7
    %v9147 = vrot.slane %v9146, 2
    %v9148 = vrot.slane %v9115, 7
    %v9149 = vrot.slane %v9148, 2
    %v9150 = vrot.slane %v9104, 7
    %v9151 = vrot.slane %v9150, 2
    %v9152 = vrot.slane %v9116, 7
    %v9153 = vrot.slane %v9152, 2
    %v9154 = vrot.slane %v9117, 7
    %v9155 = vrot.slane %v9154, 2
    %v9156 = vrot.slane %v9118, 7
    %v9157 = vrot.slane %v9156, 2
    %v9158 = vrot.slane %v9105, 7
    %v9159 = vrot.slane %v9158, 2
    %v9160 = vrot.slane %v9119, 7
    %v9161 = vrot.slane %v9160, 2
    %v9162 = vrot.slane %v9120, 7
    %v9163 = vrot.slane %v9162, 2
    %v9164 = vrot.slane %v9121, 7
    %v9165 = vrot.slane %v9164, 2
    %v9182 = vadd.f32 %v9102, %v9135
    %v9183 = vadd.f32 %v9110, %v9137
    %v9184 = vadd.f32 %v9111, %v9139
    %v9185 = vadd.f32 %v9112, %v9141
    %v9186 = vadd.f32 %v9103, %v9143
    %v9187 = vadd.f32 %v9113, %v9145
    %v9188 = vadd.f32 %v9114, %v9147
    %v9189 = vadd.f32 %v9115, %v9149
    %v9190 = vadd.f32 %v9104, %v9151
    %v9191 = vadd.f32 %v9116, %v9153
    %v9192 = vadd.f32 %v9117, %v9155
    %v9193 = vadd.f32 %v9118, %v9157
    %v9194 = vadd.f32 %v9105, %v9159
    %v9195 = vadd.f32 %v9119, %v9161
    %v9196 = vadd.f32 %v9120, %v9163
    %v9197 = vadd.f32 %v9121, %v9165
    %v9198 = vadd.f32 %v9182, %v9184
    %v9199 = vadd.f32 %v9183, %v9185
    %v9200 = vadd.f32 %v9186, %v9188
    %v9201 = vadd.f32 %v9187, %v9189
    %v9202 = vadd.f32 %v9190, %v9192
    %v9203 = vadd.f32 %v9191, %v9193
    %v9204 = vadd.f32 %v9194, %v9196
    %v9205 = vadd.f32 %v9195, %v9197
    %v9206 = vmul.f32 %v9198, 0.25
    %v9207 = vmul.f32 %v9199, 0.25
    %v9208 = vmul.f32 %v9200, 0.25
    %v9209 = vmul.f32 %v9201, 0.25
    %v9210 = vmul.f32 %v9202, 0.25
    %v9211 = vmul.f32 %v9203, 0.25
    %v9212 = vmul.f32 %v9204, 0.25
    %v9213 = vmul.f32 %v9205, 0.25
    %v9222 = vperm.slane %v9206, 0
    %v9223 = vperm.slane %v9207, 0
    %v9224 = vperm.slane %v9208, 0
    %v9225 = vperm.slane %v9209, 0
    %v9226 = vperm.slane %v9210, 0
    %v9227 = vperm.slane %v9211, 0
    %v9228 = vperm.slane %v9212, 0
    %v9229 = vperm.slane %v9213, 0
    %v9230 = vsel %vm6082, %v9223, %v9222
    %v9231 = vsel %vm6082, %v9225, %v9224
    %v9232 = vsel %vm6082, %v9227, %v9226
    %v9233 = vsel %vm6082, %v9229, %v9228
    %v9238 = vsel %vm215, %v9230, 0.0
    %v9239 = vrot.slane %v9232, 7
    %v9240 = vsel %vm6082, %v9239, %v9238
    %v9241 = vrot.slane %v9230, 1
    %v9242 = vsel %vm215, %v9241, 0.0
    %v9243 = vsel %vm6082, %v9232, %v9242
    %v9244 = vsel %vm215, %v9231, 0.0
    %v9245 = vrot.slane %v9233, 7
    %v9246 = vsel %vm6082, %v9245, %v9244
    %v9247 = vrot.slane %v9231, 1
    %v9248 = vsel %vm215, %v9247, 0.0
    %v9249 = vsel %vm6082, %v9233, %v9248
    %v9250 = vpack.c.bf16 %v9240, %v9240
    %v9251 = vpack.c.bf16 %v9243, %v9243
    %v9252 = vpack.c.bf16 %v9246, %v9246
    %v9253 = vpack.c.bf16 %v9249, %v9249
    %v9254 = vld [vmem:[#allocation5] sm:$0xf]
    %v9255 = vld [vmem:[#allocation5 + $0x4] sm:$0xf]
    %v9256 = vld [vmem:[#allocation5 + $0x8] sm:$0xf]
    %v9257 = vld [vmem:[#allocation5 + $0xc] sm:$0xf]
    %v9258 = vld [vmem:[#allocation5 + $0x10] sm:$0xf]
    %v9259 = vld [vmem:[#allocation5 + $0x14] sm:$0xf]
    %v9260 = vld [vmem:[#allocation5 + $0x18] sm:$0xf]
    %v9261 = vld [vmem:[#allocation5 + $0x1c] sm:$0xf]
    %v9262 = vld [vmem:[#allocation5 + $0x20] sm:$0xf]
    %v9263 = vld [vmem:[#allocation5 + $0x24] sm:$0xf]
    %v9264 = vld [vmem:[#allocation5 + $0x28] sm:$0xf]
    %v9265 = vld [vmem:[#allocation5 + $0x2c] sm:$0xf]
    %v9266 = vld [vmem:[#allocation5 + $0x30] sm:$0xf]
    %v9267 = vld [vmem:[#allocation5 + $0x34] sm:$0xf]
    %v9268 = vld [vmem:[#allocation5 + $0x38] sm:$0xf]
    %v9269 = vld [vmem:[#allocation5 + $0x3c] sm:$0xf]
    %v9270 = vld [vmem:[#allocation5 + $0x40] sm:$0xf]
    %v9271 = vld [vmem:[#allocation5 + $0x44] sm:$0xf]
    %v9272 = vld [vmem:[#allocation5 + $0x48] sm:$0xf]
    %v9273 = vld [vmem:[#allocation5 + $0x4c] sm:$0xf]
    %v9274 = vld [vmem:[#allocation5 + $0x50] sm:$0xf]
    %v9275 = vld [vmem:[#allocation5 + $0x54] sm:$0xf]
    %v9276 = vld [vmem:[#allocation5 + $0x58] sm:$0xf]
    %v9277 = vld [vmem:[#allocation5 + $0x5c] sm:$0xf]
    %v9278 = vld [vmem:[#allocation5 + $0x60] sm:$0xf]
    %v9279 = vld [vmem:[#allocation5 + $0x64] sm:$0xf]
    %v9280 = vld [vmem:[#allocation5 + $0x68] sm:$0xf]
    %v9281 = vld [vmem:[#allocation5 + $0x6c] sm:$0xf]
    %v9282 = vld [vmem:[#allocation5 + $0x70] sm:$0xf]
    %v9283 = vld [vmem:[#allocation5 + $0x74] sm:$0xf]
    %v9284 = vld [vmem:[#allocation5 + $0x78] sm:$0xf]
    %v9285 = vld [vmem:[#allocation5 + $0x7c] sm:$0xf]
    %v9286 = vld [vmem:[#allocation5 + $0x80] sm:$0xf]
    %v9287 = vld [vmem:[#allocation5 + $0x84] sm:$0xf]
    %v9288 = vld [vmem:[#allocation5 + $0x88] sm:$0xf]
    %v9289 = vld [vmem:[#allocation5 + $0x8c] sm:$0xf]
    %v9290 = vld [vmem:[#allocation5 + $0x90] sm:$0xf]
    %v9291 = vld [vmem:[#allocation5 + $0x94] sm:$0xf]
    %v9292 = vld [vmem:[#allocation5 + $0x98] sm:$0xf]
    %v9293 = vld [vmem:[#allocation5 + $0x9c] sm:$0xf]
    %v9294 = vld [vmem:[#allocation5 + $0xa0] sm:$0xf]
    %v9295 = vld [vmem:[#allocation5 + $0xa4] sm:$0xf]
    %v9296 = vld [vmem:[#allocation5 + $0xa8] sm:$0xf]
    %v9297 = vld [vmem:[#allocation5 + $0xac] sm:$0xf]
    %v9298 = vld [vmem:[#allocation5 + $0xb0] sm:$0xf]
    %v9299 = vld [vmem:[#allocation5 + $0xb4] sm:$0xf]
    %v9300 = vld [vmem:[#allocation5 + $0xb8] sm:$0xf]
    %v9301 = vld [vmem:[#allocation5 + $0xbc] sm:$0xf]
    %v9302 = vld [vmem:[#allocation5 + $0xc0] sm:$0xf]
    %v9303 = vld [vmem:[#allocation5 + $0xc4] sm:$0xf]
    %v9304 = vld [vmem:[#allocation5 + $0xc8] sm:$0xf]
    %v9305 = vld [vmem:[#allocation5 + $0xcc] sm:$0xf]
    %v9306 = vld [vmem:[#allocation5 + $0xd0] sm:$0xf]
    %v9307 = vld [vmem:[#allocation5 + $0xd4] sm:$0xf]
    %v9308 = vld [vmem:[#allocation5 + $0xd8] sm:$0xf]
    %v9309 = vld [vmem:[#allocation5 + $0xdc] sm:$0xf]
    %v9310 = vld [vmem:[#allocation5 + $0xe0] sm:$0xf]
    %v9311 = vld [vmem:[#allocation5 + $0xe4] sm:$0xf]
    %v9312 = vld [vmem:[#allocation5 + $0xe8] sm:$0xf]
    %v9313 = vld [vmem:[#allocation5 + $0xec] sm:$0xf]
    %v9314 = vld [vmem:[#allocation5 + $0xf0] sm:$0xf]
    %v9315 = vld [vmem:[#allocation5 + $0xf4] sm:$0xf]
    %v9316 = vld [vmem:[#allocation5 + $0xf8] sm:$0xf]
    %v9317 = vld [vmem:[#allocation5 + $0xfc] sm:$0xf]
    %v9318 = vld [vmem:[%s11] sm:$0x1]
    %v9320 = vperm.slane %v9318, 0
    %v9386 = vunpack.c.l.b16 %v9254
    %v9387 = vunpack.c.l.b16 %v9255
    %v9388 = vunpack.c.l.b16 %v9256
    %v9389 = vunpack.c.l.b16 %v9257
    %v9390 = vunpack.c.l.b16 %v9258
    %v9391 = vunpack.c.l.b16 %v9259
    %v9392 = vunpack.c.l.b16 %v9260
    %v9393 = vunpack.c.l.b16 %v9261
    %v9394 = vunpack.c.l.b16 %v9262
    %v9395 = vunpack.c.l.b16 %v9263
    %v9396 = vunpack.c.l.b16 %v9264
    %v9397 = vunpack.c.l.b16 %v9265
    %v9398 = vunpack.c.l.b16 %v9266
    %v9399 = vunpack.c.l.b16 %v9267
    %v9400 = vunpack.c.l.b16 %v9268
    %v9401 = vunpack.c.l.b16 %v9269
    %v9402 = vunpack.c.l.b16 %v9270
    %v9403 = vunpack.c.l.b16 %v9271
    %v9404 = vunpack.c.l.b16 %v9272
    %v9405 = vunpack.c.l.b16 %v9273
    %v9406 = vunpack.c.l.b16 %v9274
    %v9407 = vunpack.c.l.b16 %v9275
    %v9408 = vunpack.c.l.b16 %v9276
    %v9409 = vunpack.c.l.b16 %v9277
    %v9410 = vunpack.c.l.b16 %v9278
    %v9411 = vunpack.c.l.b16 %v9279
    %v9412 = vunpack.c.l.b16 %v9280
    %v9413 = vunpack.c.l.b16 %v9281
    %v9414 = vunpack.c.l.b16 %v9282
    %v9415 = vunpack.c.l.b16 %v9283
    %v9416 = vunpack.c.l.b16 %v9284
    %v9417 = vunpack.c.l.b16 %v9285
    %v9418 = vunpack.c.l.b16 %v9286
    %v9419 = vunpack.c.l.b16 %v9287
    %v9420 = vunpack.c.l.b16 %v9288
    %v9421 = vunpack.c.l.b16 %v9289
    %v9422 = vunpack.c.l.b16 %v9290
    %v9423 = vunpack.c.l.b16 %v9291
    %v9424 = vunpack.c.l.b16 %v9292
    %v9425 = vunpack.c.l.b16 %v9293
    %v9426 = vunpack.c.l.b16 %v9294
    %v9427 = vunpack.c.l.b16 %v9295
    %v9428 = vunpack.c.l.b16 %v9296
    %v9429 = vunpack.c.l.b16 %v9297
    %v9430 = vunpack.c.l.b16 %v9298
    %v9431 = vunpack.c.l.b16 %v9299
    %v9432 = vunpack.c.l.b16 %v9300
    %v9433 = vunpack.c.l.b16 %v9301
    %v9434 = vunpack.c.l.b16 %v9302
    %v9435 = vunpack.c.l.b16 %v9303
    %v9436 = vunpack.c.l.b16 %v9304
    %v9437 = vunpack.c.l.b16 %v9305
    %v9438 = vunpack.c.l.b16 %v9306
    %v9439 = vunpack.c.l.b16 %v9307
    %v9440 = vunpack.c.l.b16 %v9308
    %v9441 = vunpack.c.l.b16 %v9309
    %v9442 = vunpack.c.l.b16 %v9310
    %v9443 = vunpack.c.l.b16 %v9311
    %v9444 = vunpack.c.l.b16 %v9312
    %v9445 = vunpack.c.l.b16 %v9313
    %v9446 = vunpack.c.l.b16 %v9314
    %v9447 = vunpack.c.l.b16 %v9315
    %v9448 = vunpack.c.l.b16 %v9316
    %v9449 = vunpack.c.l.b16 %v9317
    %v9450 = vpack.c.b16 %v9387, %v9386
    %v9451 = vpack.c.b16 %v9389, %v9388
    %v9452 = vpack.c.b16 %v9391, %v9390
    %v9453 = vpack.c.b16 %v9393, %v9392
    %v9454 = vpack.c.b16 %v9395, %v9394
    %v9455 = vpack.c.b16 %v9397, %v9396
    %v9456 = vpack.c.b16 %v9399, %v9398
    %v9457 = vpack.c.b16 %v9401, %v9400
    %v9458 = vpack.c.b16 %v9403, %v9402
    %v9459 = vpack.c.b16 %v9405, %v9404
    %v9460 = vpack.c.b16 %v9407, %v9406
    %v9461 = vpack.c.b16 %v9409, %v9408
    %v9462 = vpack.c.b16 %v9411, %v9410
    %v9463 = vpack.c.b16 %v9413, %v9412
    %v9464 = vpack.c.b16 %v9415, %v9414
    %v9465 = vpack.c.b16 %v9417, %v9416
    %v9466 = vpack.c.b16 %v9419, %v9418
    %v9467 = vpack.c.b16 %v9421, %v9420
    %v9468 = vpack.c.b16 %v9423, %v9422
    %v9469 = vpack.c.b16 %v9425, %v9424
    %v9470 = vpack.c.b16 %v9427, %v9426
    %v9471 = vpack.c.b16 %v9429, %v9428
    %v9472 = vpack.c.b16 %v9431, %v9430
    %v9473 = vpack.c.b16 %v9433, %v9432
    %v9474 = vpack.c.b16 %v9435, %v9434
    %v9475 = vpack.c.b16 %v9437, %v9436
    %v9476 = vpack.c.b16 %v9439, %v9438
    %v9477 = vpack.c.b16 %v9441, %v9440
    %v9478 = vpack.c.b16 %v9443, %v9442
    %v9479 = vpack.c.b16 %v9445, %v9444
    %v9480 = vpack.c.b16 %v9447, %v9446
    %v9481 = vpack.c.b16 %v9449, %v9448
    %9514 = vmatpush.bf16.msra.mxu0 %v9457
    %9515 = vmatpush.bf16.msra.mxu0 %v9456
    %9516 = vmatpush.bf16.msra.mxu0 %v9455
    %9517 = vmatpush.bf16.msra.mxu0 %v9454
    %9518 = vmatpush.bf16.msra.mxu0 %v9453
    %9519 = vmatpush.bf16.msra.mxu0 %v9452
    %9520 = vmatpush.bf16.msra.mxu0 %v9451
    %9521 = vmatpush.bf16.msra.mxu0 %v9450
    %9522 = vmatmul.bf16.gmra.mxu0 %v9250
    %v9523 = vpop.f32.mrf.mxu0
    %v9524 = vadd.f32 %v9320, %v9523
    %v9525 = vpop.f32.mrf.mxu0
    %9526 = vdwg.mxu0
    %9527 = vmatpush.bf16.msra.mxu0 %v9465
    %9528 = vmatpush.bf16.msra.mxu0 %v9464
    %9529 = vmatpush.bf16.msra.mxu0 %v9463
    %9530 = vmatpush.bf16.msra.mxu0 %v9462
    %9531 = vmatpush.bf16.msra.mxu0 %v9461
    %9532 = vmatpush.bf16.msra.mxu0 %v9460
    %9533 = vmatpush.bf16.msra.mxu0 %v9459
    %9534 = vmatpush.bf16.msra.mxu0 %v9458
    %9535 = vmatmul.bf16.gmra.mxu0 %v9251
    %v9536 = vpop.f32.mrf.mxu0
    %v9537 = vadd.f32 %v9524, %v9536
    %v9538 = vpop.f32.mrf.mxu0
    %9539 = vdwg.mxu0
    %9540 = vmatpush.bf16.msra.mxu0 %v9473
    %9541 = vmatpush.bf16.msra.mxu0 %v9472
    %9542 = vmatpush.bf16.msra.mxu0 %v9471
    %9543 = vmatpush.bf16.msra.mxu0 %v9470
    %9544 = vmatpush.bf16.msra.mxu0 %v9469
    %9545 = vmatpush.bf16.msra.mxu0 %v9468
    %9546 = vmatpush.bf16.msra.mxu0 %v9467
    %9547 = vmatpush.bf16.msra.mxu0 %v9466
    %9548 = vmatmul.bf16.gmra.mxu0 %v9252
    %v9549 = vpop.f32.mrf.mxu0
    %v9550 = vadd.f32 %v9537, %v9549
    %v9551 = vpop.f32.mrf.mxu0
    %9552 = vdwg.mxu0
    %9553 = vmatpush.bf16.msra.mxu0 %v9481
    %9554 = vmatpush.bf16.msra.mxu0 %v9480
    %9555 = vmatpush.bf16.msra.mxu0 %v9479
    %9556 = vmatpush.bf16.msra.mxu0 %v9478
    %9557 = vmatpush.bf16.msra.mxu0 %v9477
    %9558 = vmatpush.bf16.msra.mxu0 %v9476
    %9559 = vmatpush.bf16.msra.mxu0 %v9475
    %9560 = vmatpush.bf16.msra.mxu0 %v9474
    %9561 = vmatmul.bf16.gmra.mxu0 %v9253
    %v9562 = vpop.f32.mrf.mxu0
    %v9563 = vadd.f32 %v9550, %v9562
    %v9564 = vpop.f32.mrf.mxu0
    %9565 = vdwg.mxu0
    %9566 = vst [vmem:[#allocation7] sm:$0x3] %v9563
    // Predicated region
    $region58: #{tpu_custom_call.1} parent=1 // pred_check
      _
    $region59: #{tpu_custom_call.1} parent=1 // pred_check_branch
      %9568 = sbr.rel (0) target = $region61
    $region60: #{tpu_custom_call.1} parent=1 // pred_region
      %9570 = vsyncadd [#allocation4], 0
      %s9572 = sshll.u32 [#allocation7], 4
      %s9573 = int_to_ptr.vmem [resolvable:$true] %s9572
      %s9574 = sshll.u32 %s12, 4
      %s9575 = int_to_ptr.hbm [resolvable:$true] %s9574
      %9577 = dma.vmem_to_hbm [thread:$0]  %s9573, 32, %s9575, [#allocation4]
    $region61: #{tpu_custom_call.1} parent=1 // pred_fallthru
      _
    // Predicated region
    $region62: #{tpu_custom_call.1} parent=1 // pred_check
      _
    $region63: #{tpu_custom_call.1} parent=1 // pred_check_branch
      %9579 = sbr.rel (0) target = $region65
    $region64: #{tpu_custom_call.1} parent=1 // pred_region
      %9581 = dma.done [#allocation4], 32
    $region65: #{tpu_custom_call.1} parent=1 // pred_fallthru
      _
    %9582 = vsyncpa [#allocation3], 1
    %9583 = vsyncpa [#allocation6], 1
    %9584 = vsyncpa [#allocation4], 1

</llo_original>
